<compile_context>
chip_gen: v7x
topology: tpu7x:2x2x1
jax: 0.10.0
libtpu: 0.0.40
codegen_flags: <defaults>
</compile_context>

<pallas_src>
import jax
import jax.numpy as jnp
from jax.experimental import pallas as pl
from jax.experimental.pallas import tpu as pltpu


# -----------------------------------------------------------------------------
# Fused conv3x3(stride 1, pad 1) + BN + ReLU + maxpool2x2 kernel, one batch
# element per grid step.  The conv is a single im2col matmul on the MXU:
# the (H*W, 9*Cin) patch matrix (built by concatenating the 9 shifted views
# along the lane dim) is multiplied by the (9*Cin, Cout) weight in bf16 with
# f32 accumulation.
# -----------------------------------------------------------------------------
def conv_bn_relu_pool_kernel(x_ref, w_ref, scale_ref, bias_ref, o_ref, row_ref):
    # x_ref:    (1, H+2, W+2, Cin)  zero-padded input (f32), one batch element
    # w_ref:    (9*Cin, Cout)       bf16, row = (kh*3+kw)*Cin + cin
    # scale_ref:(1, Cout)           folded BN scale  = gamma / sqrt(var+eps)
    # bias_ref: (1, Cout)           folded BN bias   = (conv_b - mean)*scale + beta
    # o_ref:    (1, H//2, W//2, Cout)
    # row_ref:  VMEM (H//2, W, Cout) row-pooled intermediate
    Ho = o_ref.shape[1]
    Wo = o_ref.shape[2]
    Cout = o_ref.shape[3]
    Cin = x_ref.shape[3]
    H, W = 2 * Ho, 2 * Wo

    # im2col: 9 shifted (H, W, Cin) views concatenated along the channel/lane
    # dim -> (H, W, 9*Cin) -> (H*W, 9*Cin).  Single MXU matmul, K = 9*Cin.
    taps = []
    for dy in range(3):
        for dx in range(3):
            taps.append(x_ref[0, dy:dy + H, dx:dx + W, :])
    patches = jnp.concatenate(taps, axis=-1)                      # (H, W, 9*Cin) f32
    patches = patches.reshape(H * W, 9 * Cin).astype(jnp.bfloat16)
    acc = jnp.dot(patches, w_ref[...],
                  preferred_element_type=jnp.float32)             # (H*W, Cout) f32

    # Folded BatchNorm (inference) + conv bias, then ReLU (f32 epilogue).
    y = acc * scale_ref[0] + bias_ref[0]
    y = jnp.maximum(y, 0.0)

    # 2x2 max pool, stride 2.  Height pool on the value (outer-dim split + max),
    # then width pool via strided sublane reads of the row-pooled scratch.
    y4 = y.reshape(Ho, 2, W, Cout)
    row_ref[...] = jnp.maximum(y4[:, 0, :, :], y4[:, 1, :, :])    # (Ho, W, Cout)
    pooled = jnp.maximum(row_ref[:, pl.ds(0, Wo, 2), :],
                         row_ref[:, pl.ds(1, Wo, 2), :])
    o_ref[0] = pooled.astype(o_ref.dtype)


def conv_bn_relu_pool(x_nhwc, w_mat, scale, bias):
    N, H, W, Cin = x_nhwc.shape
    Cout = w_mat.shape[-1]
    Ho, Wo = H // 2, W // 2
    # TODO(synk): the halo pad stays wrapper-side (one extra HBM pass per conv);
    # at the real 500x500 size this would move into the row-tiled kernel DMA.
    xp = jnp.pad(x_nhwc, ((0, 0), (1, 1), (1, 1), (0, 0)))
    Hp, Wp = H + 2, W + 2
    return pl.pallas_call(
        conv_bn_relu_pool_kernel,
        out_shape=jax.ShapeDtypeStruct((N, Ho, Wo, Cout), jnp.float32),
        grid=(N,),
        in_specs=[
            pl.BlockSpec((1, Hp, Wp, Cin), lambda n: (n, 0, 0, 0)),
            pl.BlockSpec((9 * Cin, Cout), lambda n: (0, 0)),
            pl.BlockSpec((1, Cout), lambda n: (0, 0)),
            pl.BlockSpec((1, Cout), lambda n: (0, 0)),
        ],
        out_specs=pl.BlockSpec((1, Ho, Wo, Cout), lambda n: (n, 0, 0, 0)),
        scratch_shapes=[
            pltpu.VMEM((Ho, W, Cout), jnp.float32),
        ],
        compiler_params=pltpu.CompilerParams(
            dimension_semantics=("parallel",)),       # independent batch elems
    )(xp, w_mat, scale.reshape(1, Cout), bias.reshape(1, Cout))


# -----------------------------------------------------------------------------
# Fused FC stack: out = (relu(relu(x @ W1 + b1) @ W2 + b2)) @ W3 + b3
# All weights are bf16 and fit VMEM at this size; matmuls accumulate in f32.
# -----------------------------------------------------------------------------
def fc_stack_kernel(x_ref, w1_ref, b1_ref, w2_ref, b2_ref, w3_ref, b3_ref, o_ref):
    x = x_ref[...].astype(jnp.bfloat16)
    h1 = jnp.dot(x, w1_ref[...], preferred_element_type=jnp.float32) + b1_ref[0]
    h1 = jnp.maximum(h1, 0.0)
    # TODO(synk): nn.Dropout(0.5) is the identity in inference mode; no-op here.
    h2 = jnp.dot(h1.astype(jnp.bfloat16), w2_ref[...],
                 preferred_element_type=jnp.float32) + b2_ref[0]
    h2 = jnp.maximum(h2, 0.0)
    # TODO(synk): second Dropout is also the identity in inference mode.
    out = jnp.dot(h2.astype(jnp.bfloat16), w3_ref[...],
                  preferred_element_type=jnp.float32) + b3_ref[0]
    o_ref[...] = out.astype(o_ref.dtype)


def fc_stack(x, w1t, b1, w2t, b2, w3t, b3):
    N = x.shape[0]
    out_dim = w3t.shape[1]
    return pl.pallas_call(
        fc_stack_kernel,
        out_shape=jax.ShapeDtypeStruct((N, out_dim), jnp.float32),
    )(x, w1t, b1.reshape(1, -1), w2t, b2.reshape(1, -1), w3t, b3.reshape(1, -1))


# -----------------------------------------------------------------------------
# Parameter setup (deterministic, synthetic) and full forward pass.
# -----------------------------------------------------------------------------
SPATIAL = 32
FEAT = SPATIAL // 8                              # spatial size after 3 pools
FC_IN = 128 * FEAT * FEAT                        # 128 * 4 * 4 = 2048
BN_EPS = 1e-5


def init_params(key):
    ks = jax.random.split(key, 24)
    rn = lambda k, shape, s=0.05: (jax.random.normal(k, shape) * s).astype(jnp.float32)
    p = {}
    conv_dims = [(3, 32), (32, 64), (64, 128)]
    ki = 0
    for i, (cin, cout) in enumerate(conv_dims, start=1):
        p[f'conv{i}_w'] = rn(ks[ki], (cout, cin, 3, 3)); ki += 1       # OIHW
        p[f'conv{i}_b'] = rn(ks[ki], (cout,)); ki += 1
        p[f'bn{i}_gamma'] = 1.0 + rn(ks[ki], (cout,)); ki += 1
        p[f'bn{i}_beta'] = rn(ks[ki], (cout,)); ki += 1
        p[f'bn{i}_mean'] = rn(ks[ki], (cout,)); ki += 1
        p[f'bn{i}_var'] = 1.0 + jnp.abs(rn(ks[ki], (cout,))); ki += 1
    fc_dims = [(FC_IN, 256), (256, 64), (64, 3)]
    for i, (fin, fout) in enumerate(fc_dims, start=1):
        p[f'fc{i}_w'] = rn(ks[ki], (fout, fin)); ki += 1                # (out, in)
        p[f'fc{i}_b'] = rn(ks[ki], (fout,)); ki += 1
    return p


def custom_cnn_forward(x_nchw, p):
    x = jnp.transpose(x_nchw, (0, 2, 3, 1))                             # NCHW -> NHWC
    for i in (1, 2, 3):
        w_oihw = p[f'conv{i}_w']
        cout, cin = w_oihw.shape[0], w_oihw.shape[1]
        # OIHW -> (kh, kw, Cin, Cout) -> (9*Cin, Cout), bf16 for the MXU.
        w_mat = (jnp.transpose(w_oihw, (2, 3, 1, 0))
                 .reshape(9 * cin, cout).astype(jnp.bfloat16))
        scale = p[f'bn{i}_gamma'] / jnp.sqrt(p[f'bn{i}_var'] + BN_EPS)
        bias = (p[f'conv{i}_b'] - p[f'bn{i}_mean']) * scale + p[f'bn{i}_beta']
        x = conv_bn_relu_pool(x, w_mat, scale, bias)

    n = x.shape[0]
    # Flatten in NHWC order; fc1's weight rows are permuted (one-time, below)
    # so this matches PyTorch's x.view(-1, C*H*W) on NCHW exactly.
    x_flat = x.reshape(n, -1)

    # fc1 weight: (256, C*H*W) with rows in (C,H,W) order -> permute to (H,W,C)
    # row order and transpose -> (FC_IN, 256), then bf16.
    w1t = (p['fc1_w'].reshape(256, 128, FEAT, FEAT)
           .transpose(2, 3, 1, 0)
           .reshape(FC_IN, 256).astype(jnp.bfloat16))
    w2t = p['fc2_w'].T.astype(jnp.bfloat16)
    w3t = p['fc3_w'].T.astype(jnp.bfloat16)
    return fc_stack(x_flat, w1t, p['fc1_b'], w2t, p['fc2_b'], w3t, p['fc3_b'])


# Pure-JAX f32 reference for validation.
def reference_forward(x_nchw, p):
    x = jnp.transpose(x_nchw, (0, 2, 3, 1))
    for i in (1, 2, 3):
        w_hwio = jnp.transpose(p[f'conv{i}_w'], (2, 3, 1, 0))
        y = jax.lax.conv_general_dilated(
            x, w_hwio, (1, 1), 'SAME',
            dimension_numbers=('NHWC', 'HWIO', 'NHWC')) + p[f'conv{i}_b']
        scale = p[f'bn{i}_gamma'] / jnp.sqrt(p[f'bn{i}_var'] + BN_EPS)
        y = (y - p[f'bn{i}_mean']) * scale + p[f'bn{i}_beta']
        y = jnp.maximum(y, 0.0)
        x = jax.lax.reduce_window(y, -jnp.inf, jax.lax.max,
                                  (1, 2, 2, 1), (1, 2, 2, 1), 'VALID')
    n = x.shape[0]
    x = jnp.transpose(x, (0, 3, 1, 2)).reshape(n, -1)                   # (C,H,W) flatten
    x = jnp.maximum(x @ p['fc1_w'].T + p['fc1_b'], 0.0)
    x = jnp.maximum(x @ p['fc2_w'].T + p['fc2_b'], 0.0)
    return x @ p['fc3_w'].T + p['fc3_b']


if __name__ == "__main__":
    key = jax.random.PRNGKey(0)
    pkey, xkey = jax.random.split(key)
    params = init_params(pkey)
    x = jax.random.normal(xkey, (2, 3, SPATIAL, SPATIAL), dtype=jnp.float32)

    out = custom_cnn_forward(x, params)
    out = jax.block_until_ready(out)
    assert out.shape == (2, 3), out.shape

    ref = reference_forward(x, params)
    assert jnp.allclose(out, ref, rtol=2e-2, atol=2e-2), (out, ref)

    print("KERNEL_OK")
</pallas_src>

<mosaic_0001>
module attributes {stable_mosaic.version = 11 : i64} {
  func.func @conv_bn_relu_pool_kernel(%arg0: i32, %arg1: memref<1x34x34x3xf32, #tpu.memory_space<vmem>>, %arg2: memref<27x32xbf16, #tpu.memory_space<vmem>>, %arg3: memref<1x32xf32, #tpu.memory_space<vmem>>, %arg4: memref<1x32xf32, #tpu.memory_space<vmem>>, %arg5: memref<1x16x16x32xf32, #tpu.memory_space<vmem>>, %arg6: memref<16x32x32xf32, #tpu.memory_space<vmem>>) attributes {dimension_semantics = [#tpu.dimension_semantics<parallel>], iteration_bounds = array<i64: 2>, scalar_prefetch = 0 : i64, scratch_operands = 1 : i64, tpu.core_type = #tpu.core_type<tc>, window_params = [{transform_indices = @transform_0, window_bounds = array<i64: 1, 34, 34, 3>}, {pipeline_mode = #tpu.pipeline_mode<synchronous>, transform_indices = @transform_1, window_bounds = array<i64: 27, 32>}, {pipeline_mode = #tpu.pipeline_mode<synchronous>, transform_indices = @transform_2, window_bounds = array<i64: 1, 32>}, {pipeline_mode = #tpu.pipeline_mode<synchronous>, transform_indices = @transform_3, window_bounds = array<i64: 1, 32>}, {transform_indices = @transform_4, window_bounds = array<i64: 1, 16, 16, 32>}]} {
    %c0 = arith.constant 0 : index
    %c0_0 = arith.constant 0 : index
    %c0_1 = arith.constant 0 : index
    %c0_2 = arith.constant 0 : index
    %0 = vector.load %arg1[%c0, %c0_0, %c0_1, %c0_2] : memref<1x34x34x3xf32, #tpu.memory_space<vmem>>, vector<1x32x32x3xf32>
    %1 = vector.shape_cast %0 : vector<1x32x32x3xf32> to vector<32x32x3xf32>
    %c0_3 = arith.constant 0 : index
    %c0_4 = arith.constant 0 : index
    %c1 = arith.constant 1 : index
    %c0_5 = arith.constant 0 : index
    %2 = vector.load %arg1[%c0_3, %c0_4, %c1, %c0_5] : memref<1x34x34x3xf32, #tpu.memory_space<vmem>>, vector<1x32x32x3xf32>
    %3 = vector.shape_cast %2 : vector<1x32x32x3xf32> to vector<32x32x3xf32>
    %c0_6 = arith.constant 0 : index
    %c0_7 = arith.constant 0 : index
    %c2 = arith.constant 2 : index
    %c0_8 = arith.constant 0 : index
    %4 = vector.load %arg1[%c0_6, %c0_7, %c2, %c0_8] : memref<1x34x34x3xf32, #tpu.memory_space<vmem>>, vector<1x32x32x3xf32>
    %5 = vector.shape_cast %4 : vector<1x32x32x3xf32> to vector<32x32x3xf32>
    %c0_9 = arith.constant 0 : index
    %c1_10 = arith.constant 1 : index
    %c0_11 = arith.constant 0 : index
    %c0_12 = arith.constant 0 : index
    %6 = vector.load %arg1[%c0_9, %c1_10, %c0_11, %c0_12] : memref<1x34x34x3xf32, #tpu.memory_space<vmem>>, vector<1x32x32x3xf32>
    %7 = vector.shape_cast %6 : vector<1x32x32x3xf32> to vector<32x32x3xf32>
    %c0_13 = arith.constant 0 : index
    %c1_14 = arith.constant 1 : index
    %c1_15 = arith.constant 1 : index
    %c0_16 = arith.constant 0 : index
    %8 = vector.load %arg1[%c0_13, %c1_14, %c1_15, %c0_16] : memref<1x34x34x3xf32, #tpu.memory_space<vmem>>, vector<1x32x32x3xf32>
    %9 = vector.shape_cast %8 : vector<1x32x32x3xf32> to vector<32x32x3xf32>
    %c0_17 = arith.constant 0 : index
    %c1_18 = arith.constant 1 : index
    %c2_19 = arith.constant 2 : index
    %c0_20 = arith.constant 0 : index
    %10 = vector.load %arg1[%c0_17, %c1_18, %c2_19, %c0_20] : memref<1x34x34x3xf32, #tpu.memory_space<vmem>>, vector<1x32x32x3xf32>
    %11 = vector.shape_cast %10 : vector<1x32x32x3xf32> to vector<32x32x3xf32>
    %c0_21 = arith.constant 0 : index
    %c2_22 = arith.constant 2 : index
    %c0_23 = arith.constant 0 : index
    %c0_24 = arith.constant 0 : index
    %12 = vector.load %arg1[%c0_21, %c2_22, %c0_23, %c0_24] : memref<1x34x34x3xf32, #tpu.memory_space<vmem>>, vector<1x32x32x3xf32>
    %13 = vector.shape_cast %12 : vector<1x32x32x3xf32> to vector<32x32x3xf32>
    %c0_25 = arith.constant 0 : index
    %c2_26 = arith.constant 2 : index
    %c1_27 = arith.constant 1 : index
    %c0_28 = arith.constant 0 : index
    %14 = vector.load %arg1[%c0_25, %c2_26, %c1_27, %c0_28] : memref<1x34x34x3xf32, #tpu.memory_space<vmem>>, vector<1x32x32x3xf32>
    %15 = vector.shape_cast %14 : vector<1x32x32x3xf32> to vector<32x32x3xf32>
    %c0_29 = arith.constant 0 : index
    %c2_30 = arith.constant 2 : index
    %c2_31 = arith.constant 2 : index
    %c0_32 = arith.constant 0 : index
    %16 = vector.load %arg1[%c0_29, %c2_30, %c2_31, %c0_32] : memref<1x34x34x3xf32, #tpu.memory_space<vmem>>, vector<1x32x32x3xf32>
    %17 = vector.shape_cast %16 : vector<1x32x32x3xf32> to vector<32x32x3xf32>
    %18 = tpu.concatenate %1, %3, %5, %7, %9, %11, %13, %15, %17 in 2 : vector<32x32x3xf32>, vector<32x32x3xf32>, vector<32x32x3xf32>, vector<32x32x3xf32>, vector<32x32x3xf32>, vector<32x32x3xf32>, vector<32x32x3xf32>, vector<32x32x3xf32>, vector<32x32x3xf32> -> vector<32x32x27xf32>
    %19 = vector.shape_cast %18 : vector<32x32x27xf32> to vector<1024x27xf32>
    %20 = arith.truncf %19 : vector<1024x27xf32> to vector<1024x27xbf16>
    %c0_33 = arith.constant 0 : index
    %c0_34 = arith.constant 0 : index
    %21 = vector.load %arg2[%c0_33, %c0_34] : memref<27x32xbf16, #tpu.memory_space<vmem>>, vector<27x32xbf16>
    %cst = arith.constant dense<0.000000e+00> : vector<1024x32xf32>
    %22 = tpu.matmul %20, %21, %cst {dimension_numbers = #tpu.dot_dimension_numbers<[1], [0], [0], [1], [0, 0, 1, 1], [], []>} : vector<1024x27xbf16>, vector<27x32xbf16>, vector<1024x32xf32> -> vector<1024x32xf32>
    %c0_35 = arith.constant 0 : index
    %c0_36 = arith.constant 0 : index
    %23 = vector.load %arg3[%c0_35, %c0_36] : memref<1x32xf32, #tpu.memory_space<vmem>>, vector<1x32xf32>
    %24 = vector.shape_cast %23 : vector<1x32xf32> to vector<32xf32>
    %25 = vector.shape_cast %24 : vector<32xf32> to vector<1x32xf32>
    %26 = vector.broadcast %25 : vector<1x32xf32> to vector<1024x32xf32>
    %27 = arith.mulf %22, %26 : vector<1024x32xf32>
    %c0_37 = arith.constant 0 : index
    %c0_38 = arith.constant 0 : index
    %28 = vector.load %arg4[%c0_37, %c0_38] : memref<1x32xf32, #tpu.memory_space<vmem>>, vector<1x32xf32>
    %29 = vector.shape_cast %28 : vector<1x32xf32> to vector<32xf32>
    %30 = vector.shape_cast %29 : vector<32xf32> to vector<1x32xf32>
    %31 = vector.broadcast %30 : vector<1x32xf32> to vector<1024x32xf32>
    %32 = arith.addf %27, %31 : vector<1024x32xf32>
    %cst_39 = arith.constant 0.000000e+00 : f32
    %33 = vector.broadcast %cst_39 : f32 to vector<1024x32xf32>
    %34 = arith.maximumf %32, %33 : vector<1024x32xf32>
    %35 = vector.shape_cast %34 : vector<1024x32xf32> to vector<16x2x32x32xf32>
    %36 = vector.extract_strided_slice %35 {offsets = [0, 0, 0, 0], sizes = [16, 1, 32, 32], strides = [1, 1, 1, 1]} : vector<16x2x32x32xf32> to vector<16x1x32x32xf32>
    %37 = vector.shape_cast %36 : vector<16x1x32x32xf32> to vector<16x32x32xf32>
    %38 = vector.extract_strided_slice %35 {offsets = [0, 1, 0, 0], sizes = [16, 1, 32, 32], strides = [1, 1, 1, 1]} : vector<16x2x32x32xf32> to vector<16x1x32x32xf32>
    %39 = vector.shape_cast %38 : vector<16x1x32x32xf32> to vector<16x32x32xf32>
    %40 = arith.maximumf %37, %39 : vector<16x32x32xf32>
    %c0_40 = arith.constant 0 : index
    %c0_41 = arith.constant 0 : index
    %c0_42 = arith.constant 0 : index
    %41 = vector.load %arg6[%c0_40, %c0_41, %c0_42] : memref<16x32x32xf32, #tpu.memory_space<vmem>>, vector<16x32x32xf32>
    tpu.vector_store %arg6[%c0_40, %c0_41, %c0_42], %40 {strides = array<i32>} : memref<16x32x32xf32, #tpu.memory_space<vmem>>, vector<16x32x32xf32>,
    %c0_43 = arith.constant 0 : index
    %c0_44 = arith.constant 0 : index
    %c0_45 = arith.constant 0 : index
    %42 = tpu.strided_load %arg6[%c0_43, %c0_44, %c0_45] {strides = array<i32: 1, 2, 1>} : memref<16x32x32xf32, #tpu.memory_space<vmem>>, vector<16x16x32xf32>
    %c0_46 = arith.constant 0 : index
    %c1_47 = arith.constant 1 : index
    %c0_48 = arith.constant 0 : index
    %43 = tpu.strided_load %arg6[%c0_46, %c1_47, %c0_48] {strides = array<i32: 1, 2, 1>} : memref<16x32x32xf32, #tpu.memory_space<vmem>>, vector<16x16x32xf32>
    %44 = arith.maximumf %42, %43 : vector<16x16x32xf32>
    %c0_49 = arith.constant 0 : index
    %c0_50 = arith.constant 0 : index
    %c0_51 = arith.constant 0 : index
    %c0_52 = arith.constant 0 : index
    %45 = vector.load %arg5[%c0_49, %c0_50, %c0_51, %c0_52] : memref<1x16x16x32xf32, #tpu.memory_space<vmem>>, vector<1x16x16x32xf32>
    %46 = vector.shape_cast %45 : vector<1x16x16x32xf32> to vector<16x16x32xf32>
    %47 = vector.shape_cast %44 : vector<16x16x32xf32> to vector<1x16x16x32xf32>
    tpu.vector_store %arg5[%c0_49, %c0_50, %c0_51, %c0_52], %47 {strides = array<i32>} : memref<1x16x16x32xf32, #tpu.memory_space<vmem>>, vector<1x16x16x32xf32>,
    return
  }
  func.func @transform_0(%arg0: i32) -> (i32, i32, i32, i32) {
    %c0_i32 = arith.constant 0 : i32
    %c0_i32_0 = arith.constant 0 : i32
    %c0_i32_1 = arith.constant 0 : i32
    %c0_i32_2 = arith.constant 0 : i32
    return %arg0, %c0_i32, %c0_i32_0, %c0_i32_1 : i32, i32, i32, i32
  }
  func.func @transform_1(%arg0: i32) -> (i32, i32) {
    %c0_i32 = arith.constant 0 : i32
    %c0_i32_0 = arith.constant 0 : i32
    %c0_i32_1 = arith.constant 0 : i32
    return %c0_i32, %c0_i32_0 : i32, i32
  }
  func.func @transform_2(%arg0: i32) -> (i32, i32) {
    %c0_i32 = arith.constant 0 : i32
    %c0_i32_0 = arith.constant 0 : i32
    %c0_i32_1 = arith.constant 0 : i32
    return %c0_i32, %c0_i32_0 : i32, i32
  }
  func.func @transform_3(%arg0: i32) -> (i32, i32) {
    %c0_i32 = arith.constant 0 : i32
    %c0_i32_0 = arith.constant 0 : i32
    %c0_i32_1 = arith.constant 0 : i32
    return %c0_i32, %c0_i32_0 : i32, i32
  }
  func.func @transform_4(%arg0: i32) -> (i32, i32, i32, i32) {
    %c0_i32 = arith.constant 0 : i32
    %c0_i32_0 = arith.constant 0 : i32
    %c0_i32_1 = arith.constant 0 : i32
    %c0_i32_2 = arith.constant 0 : i32
    return %arg0, %c0_i32, %c0_i32_0, %c0_i32_1 : i32, i32, i32, i32
  }
}

</mosaic_0001>

<llo_original>
// kernel: tpu_custom_call.1
$region0: #{tpu_custom_call.1}
  #allocation0 [shape = 'u32[]', space=smem, size = 0x4, offset = 0x4, fixed_abs, tag = 'smem constant byte address 0x4 - core index']
  #allocation1 [shape = 'u32[144,128]{1,0:T(1,128)}', space=vmem, size = 0x12000, scoped, tag = 'internal scratch']
  #allocation2 [shape = 'f32[16,32,32]{2,1,0:T(8,128)}', space=vmem, size = 0x40000, scoped, tag = 'scratch operand']
  %s0 = inlined_call_operand.vmem [shape: f32[2,34,34,3], index: 0, kind: input, shape index: {}]
  %s1 = inlined_call_operand.vmem [shape: bf16[27,32], index: 1, kind: input, shape index: {}]
  %s2 = inlined_call_operand.vmem [shape: f32[1,32], index: 2, kind: input, shape index: {}]
  %s3 = inlined_call_operand.vmem [shape: f32[1,32], index: 3, kind: input, shape index: {}]
  %s4 = inlined_call_operand.hbm [shape: f32[2,16,16,32], index: 4, kind: output, shape index: {}]
  %s5 = sld [smem:[#allocation0]]
  $region49: #{tpu_custom_call.1} parent=0
    _
  %s7 = ssub.s32 1, %s5
  %s8 = scalar_select 0, %s7, %s5
  $region1: #{tpu_custom_call.1} parent=0
    #allocation3 [shape = 'u8[262144]{0}', space=vmem, size = 0x40000, scoped, tag = 'output window, operand 0']
    #allocation4 [shape = 's32[2]{0}', space=sflag, size = 0x8, scoped, tag = 'scoped memory for tpu_custom_call.1']
    %9 = vsyncpa [#allocation4], 0
    %s10 = scalar_lea.sflag [#allocation4], 1
    %11 = vsyncpa %s10, 0
    loop: start=0, step=1, limit=4
    $region2: #{tpu_custom_call.1} parent=1 // loop_pre_header
      _
    $region3: #{tpu_custom_call.1} parent=1 // loop_header
      %s13 = sphi 0, %s17
      %p14 = scmp.ge.s32.totalorder %s13, 4
      %s23 = sphi 0, %s25
      %s26 = sphi 0, %s23
      %s27 = sphi 0, %s26
      %s43 = sphi 0, %s27
      %s47 = sphi 0, %s47
      %s49 = sphi 0, %s47
      %s50 = sphi 0, %s49
      %s64 = sphi 0, %s50
      %s68 = sphi 0, %s68
      %s70 = sphi 0, %s68
      %s71 = sphi 0, %s70
      %s85 = sphi 0, %s71
      %s89 = sphi 0, %s89
      %s91 = sphi 0, %s89
      %s92 = sphi 0, %s91
      %s106 = sphi 0, %s92
      %s112 = sphi 0, %s114
      %s115 = sphi 0, %s112
      %s116 = sphi 0, %s115
      %s132 = sphi 0, %s116
    $region4: #{tpu_custom_call.1} parent=1 // loop_header_branch
      %16 = sbr.rel (%p14) target = $region8
    $region5: #{tpu_custom_call.1} parent=1 // loop_body
      %s18 = ssub.s32 %s13, 1
      %s19 = ssub.s32 %s13, 2
      %s20 = sadd.s32 %s13, 1
      %s21 = ssub.s32 %s13, %s20
      %p22 = scmp.eq.s32.totalorder %s21, 0
      %s24 = sadd.s32 %s23, 1
      %s25 = scalar_select %p22, %s23, %s24
      %p28 = pneg %p22
      %p29 = scmp.eq.s32.totalorder %s13, 1
      %p30 = por %p28, %p29
      %p31 = scmp.ne.s32.totalorder %s23, %s26
      %p32 = scmp.eq.s32.totalorder %s13, 0
      %p33 = por %p31, %p32
      %p34 = scmp.ne.s32.totalorder %s23, %s26
      %p35 = scmp.eq.s32.totalorder %s18, 1
      %p36 = por %p34, %p35
      %p37 = scmp.ne.s32.totalorder %s26, %s27
      %p38 = scmp.eq.s32.totalorder %s18, 0
      %p39 = por %p37, %p38
      %p40 = scmp.ne.s32.totalorder %s26, %s27
      %p41 = scmp.eq.s32.totalorder %s19, 1
      %p42 = por %p40, %p41
      %p44 = scmp.ne.s32.totalorder %s27, %s43
      %p45 = scmp.eq.s32.totalorder %s19, 0
      %p46 = por %p44, %p45
      %s48 = sadd.s32 %s47, 1
      %p51 = scmp.eq.s32.totalorder %s13, 1
      %p52 = scmp.ne.s32.totalorder %s47, %s49
      %p53 = scmp.eq.s32.totalorder %s13, 0
      %p54 = por %p52, %p53
      %p55 = scmp.ne.s32.totalorder %s47, %s49
      %p56 = scmp.eq.s32.totalorder %s18, 1
      %p57 = por %p55, %p56
      %p58 = scmp.ne.s32.totalorder %s49, %s50
      %p59 = scmp.eq.s32.totalorder %s18, 0
      %p60 = por %p58, %p59
      %p61 = scmp.ne.s32.totalorder %s49, %s50
      %p62 = scmp.eq.s32.totalorder %s19, 1
      %p63 = por %p61, %p62
      %p65 = scmp.ne.s32.totalorder %s50, %s64
      %p66 = scmp.eq.s32.totalorder %s19, 0
      %p67 = por %p65, %p66
      %s69 = sadd.s32 %s68, 1
      %p72 = scmp.eq.s32.totalorder %s13, 1
      %p73 = scmp.ne.s32.totalorder %s68, %s70
      %p74 = scmp.eq.s32.totalorder %s13, 0
      %p75 = por %p73, %p74
      %p76 = scmp.ne.s32.totalorder %s68, %s70
      %p77 = scmp.eq.s32.totalorder %s18, 1
      %p78 = por %p76, %p77
      %p79 = scmp.ne.s32.totalorder %s70, %s71
      %p80 = scmp.eq.s32.totalorder %s18, 0
      %p81 = por %p79, %p80
      %p82 = scmp.ne.s32.totalorder %s70, %s71
      %p83 = scmp.eq.s32.totalorder %s19, 1
      %p84 = por %p82, %p83
      %p86 = scmp.ne.s32.totalorder %s71, %s85
      %p87 = scmp.eq.s32.totalorder %s19, 0
      %p88 = por %p86, %p87
      %s90 = sadd.s32 %s89, 1
      %p93 = scmp.eq.s32.totalorder %s13, 1
      %p94 = scmp.ne.s32.totalorder %s89, %s91
      %p95 = scmp.eq.s32.totalorder %s13, 0
      %p96 = por %p94, %p95
      %p97 = scmp.ne.s32.totalorder %s89, %s91
      %p98 = scmp.eq.s32.totalorder %s18, 1
      %p99 = por %p97, %p98
      %p100 = scmp.ne.s32.totalorder %s91, %s92
      %p101 = scmp.eq.s32.totalorder %s18, 0
      %p102 = por %p100, %p101
      %p103 = scmp.ne.s32.totalorder %s91, %s92
      %p104 = scmp.eq.s32.totalorder %s19, 1
      %p105 = por %p103, %p104
      %p107 = scmp.ne.s32.totalorder %s92, %s106
      %p108 = scmp.eq.s32.totalorder %s19, 0
      %p109 = por %p107, %p108
      %s110 = ssub.s32 %s13, %s20
      %p111 = scmp.eq.s32.totalorder %s110, 0
      %s113 = sadd.s32 %s112, 1
      %s114 = scalar_select %p111, %s112, %s113
      %p117 = pneg %p111
      %p118 = scmp.eq.s32.totalorder %s13, 1
      %p119 = por %p117, %p118
      %p120 = scmp.ne.s32.totalorder %s112, %s115
      %p121 = scmp.eq.s32.totalorder %s13, 0
      %p122 = por %p120, %p121
      %p123 = scmp.ne.s32.totalorder %s112, %s115
      %p124 = scmp.eq.s32.totalorder %s18, 1
      %p125 = por %p123, %p124
      %p126 = scmp.ne.s32.totalorder %s115, %s116
      %p127 = scmp.eq.s32.totalorder %s18, 0
      %p128 = por %p126, %p127
      %p129 = scmp.ne.s32.totalorder %s115, %s116
      %p130 = scmp.eq.s32.totalorder %s19, 1
      %p131 = por %p129, %p130
      %p133 = scmp.ne.s32.totalorder %s116, %s132
      %p134 = scmp.eq.s32.totalorder %s19, 0
      %p135 = por %p133, %p134
      %p136 = scmp.le.s32.totalorder 1, %s13
      %p137 = scmp.lt.s32.totalorder %s13, 3
      %p138 = pnand %p136, %p137
      %p139 = pneg %p138
      // Predicated region
      $region9: #{tpu_custom_call.1} parent=5 // pred_check
        _
      $region10: #{tpu_custom_call.1} parent=5 // pred_check_branch
        %141 = sbr.rel (%p138) target = $region12
      $region11: #{tpu_custom_call.1} parent=5 // pred_region
        %s142 = ssub.s32 %s13, 1
        // Predicated region
        $region13: #{tpu_custom_call.1} parent=11 // pred_check
          %p143 = pneg %p60
        $region14: #{tpu_custom_call.1} parent=11 // pred_check_branch
          %145 = sbr.rel (%p143) target = $region16
        $region15: #{tpu_custom_call.1} parent=11 // pred_region
          _
        $region16: #{tpu_custom_call.1} parent=11 // pred_fallthru
          _
        // Predicated region
        $region17: #{tpu_custom_call.1} parent=11 // pred_check
          %p146 = pneg %p81
        $region18: #{tpu_custom_call.1} parent=11 // pred_check_branch
          %148 = sbr.rel (%p146) target = $region20
        $region19: #{tpu_custom_call.1} parent=11 // pred_region
          _
        $region20: #{tpu_custom_call.1} parent=11 // pred_fallthru
          _
        // Predicated region
        $region21: #{tpu_custom_call.1} parent=11 // pred_check
          %p149 = pneg %p102
        $region22: #{tpu_custom_call.1} parent=11 // pred_check_branch
          %151 = sbr.rel (%p149) target = $region24
        $region23: #{tpu_custom_call.1} parent=11 // pred_region
          _
        $region24: #{tpu_custom_call.1} parent=11 // pred_fallthru
          _
      $region12: #{tpu_custom_call.1} parent=5 // pred_fallthru
        _
      %p152 = scmp.lt.s32.totalorder %s13, 2
      // Predicated region
      $region25: #{tpu_custom_call.1} parent=5 // pred_check
        %p153 = pneg %p152
      $region26: #{tpu_custom_call.1} parent=5 // pred_check_branch
        %155 = sbr.rel (%p153) target = $region28
      $region27: #{tpu_custom_call.1} parent=5 // pred_region
        // Predicated region
        $region29: #{tpu_custom_call.1} parent=27 // pred_check
          %p156 = pneg %p33
        $region30: #{tpu_custom_call.1} parent=27 // pred_check_branch
          %158 = sbr.rel (%p156) target = $region32
        $region31: #{tpu_custom_call.1} parent=27 // pred_region
          %p159 = scmp.lt.s32.totalorder %s13, 1
          %s160 = scalar_select %p159, %s13, 1
          %s161 = smul.addr %s160, 170
          %s162 = smul.addr %s161, 8
          %s163 = scalar_lea.vmem %s0, %s162
        $region32: #{tpu_custom_call.1} parent=27 // pred_fallthru
          _
      $region28: #{tpu_custom_call.1} parent=5 // pred_fallthru
        _
      %p164 = scmp.le.s32.totalorder 1, %s13
      %p165 = scmp.lt.s32.totalorder %s13, 3
      %p166 = pnand %p164, %p165
      %p167 = pneg %p166
      // Predicated region
      $region33: #{tpu_custom_call.1} parent=5 // pred_check
        _
      $region34: #{tpu_custom_call.1} parent=5 // pred_check_branch
        %169 = sbr.rel (%p166) target = $region36
      $region35: #{tpu_custom_call.1} parent=5 // pred_region
        %s170 = ssub.s32 %s13, 1
        %p171 = scmp.lt.s32.totalorder %s18, 1
        %s172 = scalar_select %p171, %s18, 1
        %s173 = smul.addr %s172, 170
        %s174 = smul.addr %s173, 8
        %s175 = scalar_lea.vmem %s0, %s174
        %p176 = pneg %p39
        %p177 = pneg %p36
        %p178 = pneg %p60
        %p179 = pneg %p57
        %p180 = pneg %p81
        %p181 = pneg %p78
        %p182 = pneg %p102
        %p183 = pneg %p99
        %p184 = pneg %p128
        %p185 = pneg %p125
        %s186 = sand.u32 %s115, 1
        %s187 = scalar_lea.sflag [#allocation4], %s186
        %s188 = sand.u32 %s115, 1
        %s189 = smul.addr %s188, 256
        %s190 = scalar_lea.vmem [#allocation3], %s189
        %p191 = scmp.lt.s32.totalorder %s18, 1
        %s192 = scalar_select %p191, %s18, 1
        %s193 = smul.addr %s192, 170
        %s194 = smul.addr %s193, 8
        %s195 = scalar_lea.vmem %s0, %s194
        %v197 = vld [vmem:[%s195] sm:$0xff]
        %v198 = vld [vmem:[%s195 + $0x8] sm:$0xff]
        %v199 = vld [vmem:[%s195 + $0x10] sm:$0xff]
        %v200 = vld [vmem:[%s195 + $0x18] sm:$0xff]
        %v201 = vld [vmem:[%s195 + $0x28] sm:$0xff]
        %v202 = vld [vmem:[%s195 + $0x30] sm:$0xff]
        %v203 = vld [vmem:[%s195 + $0x38] sm:$0xff]
        %v204 = vld [vmem:[%s195 + $0x40] sm:$0xff]
        %v205 = vld [vmem:[%s195 + $0x50] sm:$0xff]
        %v206 = vld [vmem:[%s195 + $0x58] sm:$0xff]
        %v207 = vld [vmem:[%s195 + $0x60] sm:$0xff]
        %v208 = vld [vmem:[%s195 + $0x68] sm:$0xff]
        %v209 = vld [vmem:[%s195 + $0x78] sm:$0xff]
        %v210 = vld [vmem:[%s195 + $0x80] sm:$0xff]
        %v211 = vld [vmem:[%s195 + $0x88] sm:$0xff]
        %v212 = vld [vmem:[%s195 + $0x90] sm:$0xff]
        %v213 = vld [vmem:[%s195 + $0xa0] sm:$0xff]
        %v214 = vld [vmem:[%s195 + $0xa8] sm:$0xff]
        %v215 = vld [vmem:[%s195 + $0xb0] sm:$0xff]
        %v216 = vld [vmem:[%s195 + $0xb8] sm:$0xff]
        %v217 = vld [vmem:[%s195 + $0xc8] sm:$0xff]
        %v218 = vld [vmem:[%s195 + $0xd0] sm:$0xff]
        %v219 = vld [vmem:[%s195 + $0xd8] sm:$0xff]
        %v220 = vld [vmem:[%s195 + $0xe0] sm:$0xff]
        %v221 = vld [vmem:[%s195 + $0xf0] sm:$0xff]
        %v222 = vld [vmem:[%s195 + $0xf8] sm:$0xff]
        %v223 = vld [vmem:[%s195 + $0x100] sm:$0xff]
        %v224 = vld [vmem:[%s195 + $0x108] sm:$0xff]
        %v225 = vld [vmem:[%s195 + $0x118] sm:$0xff]
        %v226 = vld [vmem:[%s195 + $0x120] sm:$0xff]
        %v227 = vld [vmem:[%s195 + $0x128] sm:$0xff]
        %v228 = vld [vmem:[%s195 + $0x130] sm:$0xff]
        %v229 = vld [vmem:[%s195 + $0x140] sm:$0xff]
        %v230 = vld [vmem:[%s195 + $0x148] sm:$0xff]
        %v231 = vld [vmem:[%s195 + $0x150] sm:$0xff]
        %v232 = vld [vmem:[%s195 + $0x158] sm:$0xff]
        %v233 = vld [vmem:[%s195 + $0x168] sm:$0xff]
        %v234 = vld [vmem:[%s195 + $0x170] sm:$0xff]
        %v235 = vld [vmem:[%s195 + $0x178] sm:$0xff]
        %v236 = vld [vmem:[%s195 + $0x180] sm:$0xff]
        %v237 = vld [vmem:[%s195 + $0x190] sm:$0xff]
        %v238 = vld [vmem:[%s195 + $0x198] sm:$0xff]
        %v239 = vld [vmem:[%s195 + $0x1a0] sm:$0xff]
        %v240 = vld [vmem:[%s195 + $0x1a8] sm:$0xff]
        %v241 = vld [vmem:[%s195 + $0x1b8] sm:$0xff]
        %v242 = vld [vmem:[%s195 + $0x1c0] sm:$0xff]
        %v243 = vld [vmem:[%s195 + $0x1c8] sm:$0xff]
        %v244 = vld [vmem:[%s195 + $0x1d0] sm:$0xff]
        %v245 = vld [vmem:[%s195 + $0x1e0] sm:$0xff]
        %v246 = vld [vmem:[%s195 + $0x1e8] sm:$0xff]
        %v247 = vld [vmem:[%s195 + $0x1f0] sm:$0xff]
        %v248 = vld [vmem:[%s195 + $0x1f8] sm:$0xff]
        %v249 = vld [vmem:[%s195 + $0x208] sm:$0xff]
        %v250 = vld [vmem:[%s195 + $0x210] sm:$0xff]
        %v251 = vld [vmem:[%s195 + $0x218] sm:$0xff]
        %v252 = vld [vmem:[%s195 + $0x220] sm:$0xff]
        %v253 = vld [vmem:[%s195 + $0x230] sm:$0xff]
        %v254 = vld [vmem:[%s195 + $0x238] sm:$0xff]
        %v255 = vld [vmem:[%s195 + $0x240] sm:$0xff]
        %v256 = vld [vmem:[%s195 + $0x248] sm:$0xff]
        %v257 = vld [vmem:[%s195 + $0x258] sm:$0xff]
        %v258 = vld [vmem:[%s195 + $0x260] sm:$0xff]
        %v259 = vld [vmem:[%s195 + $0x268] sm:$0xff]
        %v260 = vld [vmem:[%s195 + $0x270] sm:$0xff]
        %v261 = vld [vmem:[%s195 + $0x280] sm:$0xff]
        %v262 = vld [vmem:[%s195 + $0x288] sm:$0xff]
        %v263 = vld [vmem:[%s195 + $0x290] sm:$0xff]
        %v264 = vld [vmem:[%s195 + $0x298] sm:$0xff]
        %v265 = vld [vmem:[%s195 + $0x2a8] sm:$0xff]
        %v266 = vld [vmem:[%s195 + $0x2b0] sm:$0xff]
        %v267 = vld [vmem:[%s195 + $0x2b8] sm:$0xff]
        %v268 = vld [vmem:[%s195 + $0x2c0] sm:$0xff]
        %v269 = vld [vmem:[%s195 + $0x2d0] sm:$0xff]
        %v270 = vld [vmem:[%s195 + $0x2d8] sm:$0xff]
        %v271 = vld [vmem:[%s195 + $0x2e0] sm:$0xff]
        %v272 = vld [vmem:[%s195 + $0x2e8] sm:$0xff]
        %v273 = vld [vmem:[%s195 + $0x2f8] sm:$0xff]
        %v274 = vld [vmem:[%s195 + $0x300] sm:$0xff]
        %v275 = vld [vmem:[%s195 + $0x308] sm:$0xff]
        %v276 = vld [vmem:[%s195 + $0x310] sm:$0xff]
        %v277 = vld [vmem:[%s195 + $0x320] sm:$0xff]
        %v278 = vld [vmem:[%s195 + $0x328] sm:$0xff]
        %v279 = vld [vmem:[%s195 + $0x330] sm:$0xff]
        %v280 = vld [vmem:[%s195 + $0x338] sm:$0xff]
        %v281 = vld [vmem:[%s195 + $0x348] sm:$0xff]
        %v282 = vld [vmem:[%s195 + $0x350] sm:$0xff]
        %v283 = vld [vmem:[%s195 + $0x358] sm:$0xff]
        %v284 = vld [vmem:[%s195 + $0x360] sm:$0xff]
        %v285 = vld [vmem:[%s195 + $0x370] sm:$0xff]
        %v286 = vld [vmem:[%s195 + $0x378] sm:$0xff]
        %v287 = vld [vmem:[%s195 + $0x380] sm:$0xff]
        %v288 = vld [vmem:[%s195 + $0x388] sm:$0xff]
        %v289 = vld [vmem:[%s195 + $0x398] sm:$0xff]
        %v290 = vld [vmem:[%s195 + $0x3a0] sm:$0xff]
        %v291 = vld [vmem:[%s195 + $0x3a8] sm:$0xff]
        %v292 = vld [vmem:[%s195 + $0x3b0] sm:$0xff]
        %v293 = vld [vmem:[%s195 + $0x3c0] sm:$0xff]
        %v294 = vld [vmem:[%s195 + $0x3c8] sm:$0xff]
        %v295 = vld [vmem:[%s195 + $0x3d0] sm:$0xff]
        %v296 = vld [vmem:[%s195 + $0x3d8] sm:$0xff]
        %v297 = vld [vmem:[%s195 + $0x3e8] sm:$0xff]
        %v298 = vld [vmem:[%s195 + $0x3f0] sm:$0xff]
        %v299 = vld [vmem:[%s195 + $0x3f8] sm:$0xff]
        %v300 = vld [vmem:[%s195 + $0x400] sm:$0xff]
        %v301 = vld [vmem:[%s195 + $0x410] sm:$0xff]
        %v302 = vld [vmem:[%s195 + $0x418] sm:$0xff]
        %v303 = vld [vmem:[%s195 + $0x420] sm:$0xff]
        %v304 = vld [vmem:[%s195 + $0x428] sm:$0xff]
        %v305 = vld [vmem:[%s195 + $0x438] sm:$0xff]
        %v306 = vld [vmem:[%s195 + $0x440] sm:$0xff]
        %v307 = vld [vmem:[%s195 + $0x448] sm:$0xff]
        %v308 = vld [vmem:[%s195 + $0x450] sm:$0xff]
        %v309 = vld [vmem:[%s195 + $0x460] sm:$0xff]
        %v310 = vld [vmem:[%s195 + $0x468] sm:$0xff]
        %v311 = vld [vmem:[%s195 + $0x470] sm:$0xff]
        %v312 = vld [vmem:[%s195 + $0x478] sm:$0xff]
        %v313 = vld [vmem:[%s195 + $0x488] sm:$0xff]
        %v314 = vld [vmem:[%s195 + $0x490] sm:$0xff]
        %v315 = vld [vmem:[%s195 + $0x498] sm:$0xff]
        %v316 = vld [vmem:[%s195 + $0x4a0] sm:$0xff]
        %v317 = vld [vmem:[%s195 + $0x4b0] sm:$0xff]
        %v318 = vld [vmem:[%s195 + $0x4b8] sm:$0xff]
        %v319 = vld [vmem:[%s195 + $0x4c0] sm:$0xff]
        %v320 = vld [vmem:[%s195 + $0x4c8] sm:$0xff]
        %v321 = vld [vmem:[%s195 + $0x4d8] sm:$0xff]
        %v322 = vld [vmem:[%s195 + $0x4e0] sm:$0xff]
        %v323 = vld [vmem:[%s195 + $0x4e8] sm:$0xff]
        %v324 = vld [vmem:[%s195 + $0x4f0] sm:$0xff]
        %v325 = vld [vmem:[%s195 + $0x1] sm:$0xff]
        %v326 = vld [vmem:[%s195 + $0x9] sm:$0xff]
        %v327 = vld [vmem:[%s195 + $0x11] sm:$0xff]
        %v328 = vld [vmem:[%s195 + $0x19] sm:$0xff]
        %v329 = vld [vmem:[%s195 + $0x29] sm:$0xff]
        %v330 = vld [vmem:[%s195 + $0x31] sm:$0xff]
        %v331 = vld [vmem:[%s195 + $0x39] sm:$0xff]
        %v332 = vld [vmem:[%s195 + $0x41] sm:$0xff]
        %v333 = vld [vmem:[%s195 + $0x51] sm:$0xff]
        %v334 = vld [vmem:[%s195 + $0x59] sm:$0xff]
        %v335 = vld [vmem:[%s195 + $0x61] sm:$0xff]
        %v336 = vld [vmem:[%s195 + $0x69] sm:$0xff]
        %v337 = vld [vmem:[%s195 + $0x79] sm:$0xff]
        %v338 = vld [vmem:[%s195 + $0x81] sm:$0xff]
        %v339 = vld [vmem:[%s195 + $0x89] sm:$0xff]
        %v340 = vld [vmem:[%s195 + $0x91] sm:$0xff]
        %v341 = vld [vmem:[%s195 + $0xa1] sm:$0xff]
        %v342 = vld [vmem:[%s195 + $0xa9] sm:$0xff]
        %v343 = vld [vmem:[%s195 + $0xb1] sm:$0xff]
        %v344 = vld [vmem:[%s195 + $0xb9] sm:$0xff]
        %v345 = vld [vmem:[%s195 + $0xc9] sm:$0xff]
        %v346 = vld [vmem:[%s195 + $0xd1] sm:$0xff]
        %v347 = vld [vmem:[%s195 + $0xd9] sm:$0xff]
        %v348 = vld [vmem:[%s195 + $0xe1] sm:$0xff]
        %v349 = vld [vmem:[%s195 + $0xf1] sm:$0xff]
        %v350 = vld [vmem:[%s195 + $0xf9] sm:$0xff]
        %v351 = vld [vmem:[%s195 + $0x101] sm:$0xff]
        %v352 = vld [vmem:[%s195 + $0x109] sm:$0xff]
        %v353 = vld [vmem:[%s195 + $0x119] sm:$0xff]
        %v354 = vld [vmem:[%s195 + $0x121] sm:$0xff]
        %v355 = vld [vmem:[%s195 + $0x129] sm:$0xff]
        %v356 = vld [vmem:[%s195 + $0x131] sm:$0xff]
        %v357 = vld [vmem:[%s195 + $0x141] sm:$0xff]
        %v358 = vld [vmem:[%s195 + $0x149] sm:$0xff]
        %v359 = vld [vmem:[%s195 + $0x151] sm:$0xff]
        %v360 = vld [vmem:[%s195 + $0x159] sm:$0xff]
        %v361 = vld [vmem:[%s195 + $0x169] sm:$0xff]
        %v362 = vld [vmem:[%s195 + $0x171] sm:$0xff]
        %v363 = vld [vmem:[%s195 + $0x179] sm:$0xff]
        %v364 = vld [vmem:[%s195 + $0x181] sm:$0xff]
        %v365 = vld [vmem:[%s195 + $0x191] sm:$0xff]
        %v366 = vld [vmem:[%s195 + $0x199] sm:$0xff]
        %v367 = vld [vmem:[%s195 + $0x1a1] sm:$0xff]
        %v368 = vld [vmem:[%s195 + $0x1a9] sm:$0xff]
        %v369 = vld [vmem:[%s195 + $0x1b9] sm:$0xff]
        %v370 = vld [vmem:[%s195 + $0x1c1] sm:$0xff]
        %v371 = vld [vmem:[%s195 + $0x1c9] sm:$0xff]
        %v372 = vld [vmem:[%s195 + $0x1d1] sm:$0xff]
        %v373 = vld [vmem:[%s195 + $0x1e1] sm:$0xff]
        %v374 = vld [vmem:[%s195 + $0x1e9] sm:$0xff]
        %v375 = vld [vmem:[%s195 + $0x1f1] sm:$0xff]
        %v376 = vld [vmem:[%s195 + $0x1f9] sm:$0xff]
        %v377 = vld [vmem:[%s195 + $0x209] sm:$0xff]
        %v378 = vld [vmem:[%s195 + $0x211] sm:$0xff]
        %v379 = vld [vmem:[%s195 + $0x219] sm:$0xff]
        %v380 = vld [vmem:[%s195 + $0x221] sm:$0xff]
        %v381 = vld [vmem:[%s195 + $0x231] sm:$0xff]
        %v382 = vld [vmem:[%s195 + $0x239] sm:$0xff]
        %v383 = vld [vmem:[%s195 + $0x241] sm:$0xff]
        %v384 = vld [vmem:[%s195 + $0x249] sm:$0xff]
        %v385 = vld [vmem:[%s195 + $0x259] sm:$0xff]
        %v386 = vld [vmem:[%s195 + $0x261] sm:$0xff]
        %v387 = vld [vmem:[%s195 + $0x269] sm:$0xff]
        %v388 = vld [vmem:[%s195 + $0x271] sm:$0xff]
        %v389 = vld [vmem:[%s195 + $0x281] sm:$0xff]
        %v390 = vld [vmem:[%s195 + $0x289] sm:$0xff]
        %v391 = vld [vmem:[%s195 + $0x291] sm:$0xff]
        %v392 = vld [vmem:[%s195 + $0x299] sm:$0xff]
        %v393 = vld [vmem:[%s195 + $0x2a9] sm:$0xff]
        %v394 = vld [vmem:[%s195 + $0x2b1] sm:$0xff]
        %v395 = vld [vmem:[%s195 + $0x2b9] sm:$0xff]
        %v396 = vld [vmem:[%s195 + $0x2c1] sm:$0xff]
        %v397 = vld [vmem:[%s195 + $0x2d1] sm:$0xff]
        %v398 = vld [vmem:[%s195 + $0x2d9] sm:$0xff]
        %v399 = vld [vmem:[%s195 + $0x2e1] sm:$0xff]
        %v400 = vld [vmem:[%s195 + $0x2e9] sm:$0xff]
        %v401 = vld [vmem:[%s195 + $0x2f9] sm:$0xff]
        %v402 = vld [vmem:[%s195 + $0x301] sm:$0xff]
        %v403 = vld [vmem:[%s195 + $0x309] sm:$0xff]
        %v404 = vld [vmem:[%s195 + $0x311] sm:$0xff]
        %v405 = vld [vmem:[%s195 + $0x321] sm:$0xff]
        %v406 = vld [vmem:[%s195 + $0x329] sm:$0xff]
        %v407 = vld [vmem:[%s195 + $0x331] sm:$0xff]
        %v408 = vld [vmem:[%s195 + $0x339] sm:$0xff]
        %v409 = vld [vmem:[%s195 + $0x349] sm:$0xff]
        %v410 = vld [vmem:[%s195 + $0x351] sm:$0xff]
        %v411 = vld [vmem:[%s195 + $0x359] sm:$0xff]
        %v412 = vld [vmem:[%s195 + $0x361] sm:$0xff]
        %v413 = vld [vmem:[%s195 + $0x371] sm:$0xff]
        %v414 = vld [vmem:[%s195 + $0x379] sm:$0xff]
        %v415 = vld [vmem:[%s195 + $0x381] sm:$0xff]
        %v416 = vld [vmem:[%s195 + $0x389] sm:$0xff]
        %v417 = vld [vmem:[%s195 + $0x399] sm:$0xff]
        %v418 = vld [vmem:[%s195 + $0x3a1] sm:$0xff]
        %v419 = vld [vmem:[%s195 + $0x3a9] sm:$0xff]
        %v420 = vld [vmem:[%s195 + $0x3b1] sm:$0xff]
        %v421 = vld [vmem:[%s195 + $0x3c1] sm:$0xff]
        %v422 = vld [vmem:[%s195 + $0x3c9] sm:$0xff]
        %v423 = vld [vmem:[%s195 + $0x3d1] sm:$0xff]
        %v424 = vld [vmem:[%s195 + $0x3d9] sm:$0xff]
        %v425 = vld [vmem:[%s195 + $0x3e9] sm:$0xff]
        %v426 = vld [vmem:[%s195 + $0x3f1] sm:$0xff]
        %v427 = vld [vmem:[%s195 + $0x3f9] sm:$0xff]
        %v428 = vld [vmem:[%s195 + $0x401] sm:$0xff]
        %v429 = vld [vmem:[%s195 + $0x411] sm:$0xff]
        %v430 = vld [vmem:[%s195 + $0x419] sm:$0xff]
        %v431 = vld [vmem:[%s195 + $0x421] sm:$0xff]
        %v432 = vld [vmem:[%s195 + $0x429] sm:$0xff]
        %v433 = vld [vmem:[%s195 + $0x439] sm:$0xff]
        %v434 = vld [vmem:[%s195 + $0x441] sm:$0xff]
        %v435 = vld [vmem:[%s195 + $0x449] sm:$0xff]
        %v436 = vld [vmem:[%s195 + $0x451] sm:$0xff]
        %v437 = vld [vmem:[%s195 + $0x461] sm:$0xff]
        %v438 = vld [vmem:[%s195 + $0x469] sm:$0xff]
        %v439 = vld [vmem:[%s195 + $0x471] sm:$0xff]
        %v440 = vld [vmem:[%s195 + $0x479] sm:$0xff]
        %v441 = vld [vmem:[%s195 + $0x489] sm:$0xff]
        %v442 = vld [vmem:[%s195 + $0x491] sm:$0xff]
        %v443 = vld [vmem:[%s195 + $0x499] sm:$0xff]
        %v444 = vld [vmem:[%s195 + $0x4a1] sm:$0xff]
        %v445 = vld [vmem:[%s195 + $0x4b1] sm:$0xff]
        %v446 = vld [vmem:[%s195 + $0x4b9] sm:$0xff]
        %v447 = vld [vmem:[%s195 + $0x4c1] sm:$0xff]
        %v448 = vld [vmem:[%s195 + $0x4c9] sm:$0xff]
        %v449 = vld [vmem:[%s195 + $0x4d9] sm:$0xff]
        %v450 = vld [vmem:[%s195 + $0x4e1] sm:$0xff]
        %v451 = vld [vmem:[%s195 + $0x4e9] sm:$0xff]
        %v452 = vld [vmem:[%s195 + $0x4f1] sm:$0xff]
        %v453 = vld [vmem:[%s195 + $0x2] sm:$0xff]
        %v454 = vld [vmem:[%s195 + $0xa] sm:$0xff]
        %v455 = vld [vmem:[%s195 + $0x12] sm:$0xff]
        %v456 = vld [vmem:[%s195 + $0x1a] sm:$0xff]
        %v457 = vld [vmem:[%s195 + $0x2a] sm:$0xff]
        %v458 = vld [vmem:[%s195 + $0x32] sm:$0xff]
        %v459 = vld [vmem:[%s195 + $0x3a] sm:$0xff]
        %v460 = vld [vmem:[%s195 + $0x42] sm:$0xff]
        %v461 = vld [vmem:[%s195 + $0x52] sm:$0xff]
        %v462 = vld [vmem:[%s195 + $0x5a] sm:$0xff]
        %v463 = vld [vmem:[%s195 + $0x62] sm:$0xff]
        %v464 = vld [vmem:[%s195 + $0x6a] sm:$0xff]
        %v465 = vld [vmem:[%s195 + $0x7a] sm:$0xff]
        %v466 = vld [vmem:[%s195 + $0x82] sm:$0xff]
        %v467 = vld [vmem:[%s195 + $0x8a] sm:$0xff]
        %v468 = vld [vmem:[%s195 + $0x92] sm:$0xff]
        %v469 = vld [vmem:[%s195 + $0xa2] sm:$0xff]
        %v470 = vld [vmem:[%s195 + $0xaa] sm:$0xff]
        %v471 = vld [vmem:[%s195 + $0xb2] sm:$0xff]
        %v472 = vld [vmem:[%s195 + $0xba] sm:$0xff]
        %v473 = vld [vmem:[%s195 + $0xca] sm:$0xff]
        %v474 = vld [vmem:[%s195 + $0xd2] sm:$0xff]
        %v475 = vld [vmem:[%s195 + $0xda] sm:$0xff]
        %v476 = vld [vmem:[%s195 + $0xe2] sm:$0xff]
        %v477 = vld [vmem:[%s195 + $0xf2] sm:$0xff]
        %v478 = vld [vmem:[%s195 + $0xfa] sm:$0xff]
        %v479 = vld [vmem:[%s195 + $0x102] sm:$0xff]
        %v480 = vld [vmem:[%s195 + $0x10a] sm:$0xff]
        %v481 = vld [vmem:[%s195 + $0x11a] sm:$0xff]
        %v482 = vld [vmem:[%s195 + $0x122] sm:$0xff]
        %v483 = vld [vmem:[%s195 + $0x12a] sm:$0xff]
        %v484 = vld [vmem:[%s195 + $0x132] sm:$0xff]
        %v485 = vld [vmem:[%s195 + $0x142] sm:$0xff]
        %v486 = vld [vmem:[%s195 + $0x14a] sm:$0xff]
        %v487 = vld [vmem:[%s195 + $0x152] sm:$0xff]
        %v488 = vld [vmem:[%s195 + $0x15a] sm:$0xff]
        %v489 = vld [vmem:[%s195 + $0x16a] sm:$0xff]
        %v490 = vld [vmem:[%s195 + $0x172] sm:$0xff]
        %v491 = vld [vmem:[%s195 + $0x17a] sm:$0xff]
        %v492 = vld [vmem:[%s195 + $0x182] sm:$0xff]
        %v493 = vld [vmem:[%s195 + $0x192] sm:$0xff]
        %v494 = vld [vmem:[%s195 + $0x19a] sm:$0xff]
        %v495 = vld [vmem:[%s195 + $0x1a2] sm:$0xff]
        %v496 = vld [vmem:[%s195 + $0x1aa] sm:$0xff]
        %v497 = vld [vmem:[%s195 + $0x1ba] sm:$0xff]
        %v498 = vld [vmem:[%s195 + $0x1c2] sm:$0xff]
        %v499 = vld [vmem:[%s195 + $0x1ca] sm:$0xff]
        %v500 = vld [vmem:[%s195 + $0x1d2] sm:$0xff]
        %v501 = vld [vmem:[%s195 + $0x1e2] sm:$0xff]
        %v502 = vld [vmem:[%s195 + $0x1ea] sm:$0xff]
        %v503 = vld [vmem:[%s195 + $0x1f2] sm:$0xff]
        %v504 = vld [vmem:[%s195 + $0x1fa] sm:$0xff]
        %v505 = vld [vmem:[%s195 + $0x20a] sm:$0xff]
        %v506 = vld [vmem:[%s195 + $0x212] sm:$0xff]
        %v507 = vld [vmem:[%s195 + $0x21a] sm:$0xff]
        %v508 = vld [vmem:[%s195 + $0x222] sm:$0xff]
        %v509 = vld [vmem:[%s195 + $0x232] sm:$0xff]
        %v510 = vld [vmem:[%s195 + $0x23a] sm:$0xff]
        %v511 = vld [vmem:[%s195 + $0x242] sm:$0xff]
        %v512 = vld [vmem:[%s195 + $0x24a] sm:$0xff]
        %v513 = vld [vmem:[%s195 + $0x25a] sm:$0xff]
        %v514 = vld [vmem:[%s195 + $0x262] sm:$0xff]
        %v515 = vld [vmem:[%s195 + $0x26a] sm:$0xff]
        %v516 = vld [vmem:[%s195 + $0x272] sm:$0xff]
        %v517 = vld [vmem:[%s195 + $0x282] sm:$0xff]
        %v518 = vld [vmem:[%s195 + $0x28a] sm:$0xff]
        %v519 = vld [vmem:[%s195 + $0x292] sm:$0xff]
        %v520 = vld [vmem:[%s195 + $0x29a] sm:$0xff]
        %v521 = vld [vmem:[%s195 + $0x2aa] sm:$0xff]
        %v522 = vld [vmem:[%s195 + $0x2b2] sm:$0xff]
        %v523 = vld [vmem:[%s195 + $0x2ba] sm:$0xff]
        %v524 = vld [vmem:[%s195 + $0x2c2] sm:$0xff]
        %v525 = vld [vmem:[%s195 + $0x2d2] sm:$0xff]
        %v526 = vld [vmem:[%s195 + $0x2da] sm:$0xff]
        %v527 = vld [vmem:[%s195 + $0x2e2] sm:$0xff]
        %v528 = vld [vmem:[%s195 + $0x2ea] sm:$0xff]
        %v529 = vld [vmem:[%s195 + $0x2fa] sm:$0xff]
        %v530 = vld [vmem:[%s195 + $0x302] sm:$0xff]
        %v531 = vld [vmem:[%s195 + $0x30a] sm:$0xff]
        %v532 = vld [vmem:[%s195 + $0x312] sm:$0xff]
        %v533 = vld [vmem:[%s195 + $0x322] sm:$0xff]
        %v534 = vld [vmem:[%s195 + $0x32a] sm:$0xff]
        %v535 = vld [vmem:[%s195 + $0x332] sm:$0xff]
        %v536 = vld [vmem:[%s195 + $0x33a] sm:$0xff]
        %v537 = vld [vmem:[%s195 + $0x34a] sm:$0xff]
        %v538 = vld [vmem:[%s195 + $0x352] sm:$0xff]
        %v539 = vld [vmem:[%s195 + $0x35a] sm:$0xff]
        %v540 = vld [vmem:[%s195 + $0x362] sm:$0xff]
        %v541 = vld [vmem:[%s195 + $0x372] sm:$0xff]
        %v542 = vld [vmem:[%s195 + $0x37a] sm:$0xff]
        %v543 = vld [vmem:[%s195 + $0x382] sm:$0xff]
        %v544 = vld [vmem:[%s195 + $0x38a] sm:$0xff]
        %v545 = vld [vmem:[%s195 + $0x39a] sm:$0xff]
        %v546 = vld [vmem:[%s195 + $0x3a2] sm:$0xff]
        %v547 = vld [vmem:[%s195 + $0x3aa] sm:$0xff]
        %v548 = vld [vmem:[%s195 + $0x3b2] sm:$0xff]
        %v549 = vld [vmem:[%s195 + $0x3c2] sm:$0xff]
        %v550 = vld [vmem:[%s195 + $0x3ca] sm:$0xff]
        %v551 = vld [vmem:[%s195 + $0x3d2] sm:$0xff]
        %v552 = vld [vmem:[%s195 + $0x3da] sm:$0xff]
        %v553 = vld [vmem:[%s195 + $0x3ea] sm:$0xff]
        %v554 = vld [vmem:[%s195 + $0x3f2] sm:$0xff]
        %v555 = vld [vmem:[%s195 + $0x3fa] sm:$0xff]
        %v556 = vld [vmem:[%s195 + $0x402] sm:$0xff]
        %v557 = vld [vmem:[%s195 + $0x412] sm:$0xff]
        %v558 = vld [vmem:[%s195 + $0x41a] sm:$0xff]
        %v559 = vld [vmem:[%s195 + $0x422] sm:$0xff]
        %v560 = vld [vmem:[%s195 + $0x42a] sm:$0xff]
        %v561 = vld [vmem:[%s195 + $0x43a] sm:$0xff]
        %v562 = vld [vmem:[%s195 + $0x442] sm:$0xff]
        %v563 = vld [vmem:[%s195 + $0x44a] sm:$0xff]
        %v564 = vld [vmem:[%s195 + $0x452] sm:$0xff]
        %v565 = vld [vmem:[%s195 + $0x462] sm:$0xff]
        %v566 = vld [vmem:[%s195 + $0x46a] sm:$0xff]
        %v567 = vld [vmem:[%s195 + $0x472] sm:$0xff]
        %v568 = vld [vmem:[%s195 + $0x47a] sm:$0xff]
        %v569 = vld [vmem:[%s195 + $0x48a] sm:$0xff]
        %v570 = vld [vmem:[%s195 + $0x492] sm:$0xff]
        %v571 = vld [vmem:[%s195 + $0x49a] sm:$0xff]
        %v572 = vld [vmem:[%s195 + $0x4a2] sm:$0xff]
        %v573 = vld [vmem:[%s195 + $0x4b2] sm:$0xff]
        %v574 = vld [vmem:[%s195 + $0x4ba] sm:$0xff]
        %v575 = vld [vmem:[%s195 + $0x4c2] sm:$0xff]
        %v576 = vld [vmem:[%s195 + $0x4ca] sm:$0xff]
        %v577 = vld [vmem:[%s195 + $0x4da] sm:$0xff]
        %v578 = vld [vmem:[%s195 + $0x4e2] sm:$0xff]
        %v579 = vld [vmem:[%s195 + $0x4ea] sm:$0xff]
        %v580 = vld [vmem:[%s195 + $0x4f2] sm:$0xff]
        %s581 = scalar_lea.vmem %s195, 40
        %v582 = vld [vmem:[%s581] sm:$0xff]
        %v583 = vld [vmem:[%s581 + $0x8] sm:$0xff]
        %v584 = vld [vmem:[%s581 + $0x10] sm:$0xff]
        %v585 = vld [vmem:[%s581 + $0x18] sm:$0xff]
        %v586 = vld [vmem:[%s581 + $0x28] sm:$0xff]
        %v587 = vld [vmem:[%s581 + $0x30] sm:$0xff]
        %v588 = vld [vmem:[%s581 + $0x38] sm:$0xff]
        %v589 = vld [vmem:[%s581 + $0x40] sm:$0xff]
        %v590 = vld [vmem:[%s581 + $0x50] sm:$0xff]
        %v591 = vld [vmem:[%s581 + $0x58] sm:$0xff]
        %v592 = vld [vmem:[%s581 + $0x60] sm:$0xff]
        %v593 = vld [vmem:[%s581 + $0x68] sm:$0xff]
        %v594 = vld [vmem:[%s581 + $0x78] sm:$0xff]
        %v595 = vld [vmem:[%s581 + $0x80] sm:$0xff]
        %v596 = vld [vmem:[%s581 + $0x88] sm:$0xff]
        %v597 = vld [vmem:[%s581 + $0x90] sm:$0xff]
        %v598 = vld [vmem:[%s581 + $0xa0] sm:$0xff]
        %v599 = vld [vmem:[%s581 + $0xa8] sm:$0xff]
        %v600 = vld [vmem:[%s581 + $0xb0] sm:$0xff]
        %v601 = vld [vmem:[%s581 + $0xb8] sm:$0xff]
        %v602 = vld [vmem:[%s581 + $0xc8] sm:$0xff]
        %v603 = vld [vmem:[%s581 + $0xd0] sm:$0xff]
        %v604 = vld [vmem:[%s581 + $0xd8] sm:$0xff]
        %v605 = vld [vmem:[%s581 + $0xe0] sm:$0xff]
        %v606 = vld [vmem:[%s581 + $0xf0] sm:$0xff]
        %v607 = vld [vmem:[%s581 + $0xf8] sm:$0xff]
        %v608 = vld [vmem:[%s581 + $0x100] sm:$0xff]
        %v609 = vld [vmem:[%s581 + $0x108] sm:$0xff]
        %v610 = vld [vmem:[%s581 + $0x118] sm:$0xff]
        %v611 = vld [vmem:[%s581 + $0x120] sm:$0xff]
        %v612 = vld [vmem:[%s581 + $0x128] sm:$0xff]
        %v613 = vld [vmem:[%s581 + $0x130] sm:$0xff]
        %v614 = vld [vmem:[%s581 + $0x140] sm:$0xff]
        %v615 = vld [vmem:[%s581 + $0x148] sm:$0xff]
        %v616 = vld [vmem:[%s581 + $0x150] sm:$0xff]
        %v617 = vld [vmem:[%s581 + $0x158] sm:$0xff]
        %v618 = vld [vmem:[%s581 + $0x168] sm:$0xff]
        %v619 = vld [vmem:[%s581 + $0x170] sm:$0xff]
        %v620 = vld [vmem:[%s581 + $0x178] sm:$0xff]
        %v621 = vld [vmem:[%s581 + $0x180] sm:$0xff]
        %v622 = vld [vmem:[%s581 + $0x190] sm:$0xff]
        %v623 = vld [vmem:[%s581 + $0x198] sm:$0xff]
        %v624 = vld [vmem:[%s581 + $0x1a0] sm:$0xff]
        %v625 = vld [vmem:[%s581 + $0x1a8] sm:$0xff]
        %v626 = vld [vmem:[%s581 + $0x1b8] sm:$0xff]
        %v627 = vld [vmem:[%s581 + $0x1c0] sm:$0xff]
        %v628 = vld [vmem:[%s581 + $0x1c8] sm:$0xff]
        %v629 = vld [vmem:[%s581 + $0x1d0] sm:$0xff]
        %v630 = vld [vmem:[%s581 + $0x1e0] sm:$0xff]
        %v631 = vld [vmem:[%s581 + $0x1e8] sm:$0xff]
        %v632 = vld [vmem:[%s581 + $0x1f0] sm:$0xff]
        %v633 = vld [vmem:[%s581 + $0x1f8] sm:$0xff]
        %v634 = vld [vmem:[%s581 + $0x208] sm:$0xff]
        %v635 = vld [vmem:[%s581 + $0x210] sm:$0xff]
        %v636 = vld [vmem:[%s581 + $0x218] sm:$0xff]
        %v637 = vld [vmem:[%s581 + $0x220] sm:$0xff]
        %v638 = vld [vmem:[%s581 + $0x230] sm:$0xff]
        %v639 = vld [vmem:[%s581 + $0x238] sm:$0xff]
        %v640 = vld [vmem:[%s581 + $0x240] sm:$0xff]
        %v641 = vld [vmem:[%s581 + $0x248] sm:$0xff]
        %v642 = vld [vmem:[%s581 + $0x258] sm:$0xff]
        %v643 = vld [vmem:[%s581 + $0x260] sm:$0xff]
        %v644 = vld [vmem:[%s581 + $0x268] sm:$0xff]
        %v645 = vld [vmem:[%s581 + $0x270] sm:$0xff]
        %v646 = vld [vmem:[%s581 + $0x280] sm:$0xff]
        %v647 = vld [vmem:[%s581 + $0x288] sm:$0xff]
        %v648 = vld [vmem:[%s581 + $0x290] sm:$0xff]
        %v649 = vld [vmem:[%s581 + $0x298] sm:$0xff]
        %v650 = vld [vmem:[%s581 + $0x2a8] sm:$0xff]
        %v651 = vld [vmem:[%s581 + $0x2b0] sm:$0xff]
        %v652 = vld [vmem:[%s581 + $0x2b8] sm:$0xff]
        %v653 = vld [vmem:[%s581 + $0x2c0] sm:$0xff]
        %v654 = vld [vmem:[%s581 + $0x2d0] sm:$0xff]
        %v655 = vld [vmem:[%s581 + $0x2d8] sm:$0xff]
        %v656 = vld [vmem:[%s581 + $0x2e0] sm:$0xff]
        %v657 = vld [vmem:[%s581 + $0x2e8] sm:$0xff]
        %v658 = vld [vmem:[%s581 + $0x2f8] sm:$0xff]
        %v659 = vld [vmem:[%s581 + $0x300] sm:$0xff]
        %v660 = vld [vmem:[%s581 + $0x308] sm:$0xff]
        %v661 = vld [vmem:[%s581 + $0x310] sm:$0xff]
        %v662 = vld [vmem:[%s581 + $0x320] sm:$0xff]
        %v663 = vld [vmem:[%s581 + $0x328] sm:$0xff]
        %v664 = vld [vmem:[%s581 + $0x330] sm:$0xff]
        %v665 = vld [vmem:[%s581 + $0x338] sm:$0xff]
        %v666 = vld [vmem:[%s581 + $0x348] sm:$0xff]
        %v667 = vld [vmem:[%s581 + $0x350] sm:$0xff]
        %v668 = vld [vmem:[%s581 + $0x358] sm:$0xff]
        %v669 = vld [vmem:[%s581 + $0x360] sm:$0xff]
        %v670 = vld [vmem:[%s581 + $0x370] sm:$0xff]
        %v671 = vld [vmem:[%s581 + $0x378] sm:$0xff]
        %v672 = vld [vmem:[%s581 + $0x380] sm:$0xff]
        %v673 = vld [vmem:[%s581 + $0x388] sm:$0xff]
        %v674 = vld [vmem:[%s581 + $0x398] sm:$0xff]
        %v675 = vld [vmem:[%s581 + $0x3a0] sm:$0xff]
        %v676 = vld [vmem:[%s581 + $0x3a8] sm:$0xff]
        %v677 = vld [vmem:[%s581 + $0x3b0] sm:$0xff]
        %v678 = vld [vmem:[%s581 + $0x3c0] sm:$0xff]
        %v679 = vld [vmem:[%s581 + $0x3c8] sm:$0xff]
        %v680 = vld [vmem:[%s581 + $0x3d0] sm:$0xff]
        %v681 = vld [vmem:[%s581 + $0x3d8] sm:$0xff]
        %v682 = vld [vmem:[%s581 + $0x3e8] sm:$0xff]
        %v683 = vld [vmem:[%s581 + $0x3f0] sm:$0xff]
        %v684 = vld [vmem:[%s581 + $0x3f8] sm:$0xff]
        %v685 = vld [vmem:[%s581 + $0x400] sm:$0xff]
        %v686 = vld [vmem:[%s581 + $0x410] sm:$0xff]
        %v687 = vld [vmem:[%s581 + $0x418] sm:$0xff]
        %v688 = vld [vmem:[%s581 + $0x420] sm:$0xff]
        %v689 = vld [vmem:[%s581 + $0x428] sm:$0xff]
        %v690 = vld [vmem:[%s581 + $0x438] sm:$0xff]
        %v691 = vld [vmem:[%s581 + $0x440] sm:$0xff]
        %v692 = vld [vmem:[%s581 + $0x448] sm:$0xff]
        %v693 = vld [vmem:[%s581 + $0x450] sm:$0xff]
        %v694 = vld [vmem:[%s581 + $0x460] sm:$0xff]
        %v695 = vld [vmem:[%s581 + $0x468] sm:$0xff]
        %v696 = vld [vmem:[%s581 + $0x470] sm:$0xff]
        %v697 = vld [vmem:[%s581 + $0x478] sm:$0xff]
        %v698 = vld [vmem:[%s581 + $0x488] sm:$0xff]
        %v699 = vld [vmem:[%s581 + $0x490] sm:$0xff]
        %v700 = vld [vmem:[%s581 + $0x498] sm:$0xff]
        %v701 = vld [vmem:[%s581 + $0x4a0] sm:$0xff]
        %v702 = vld [vmem:[%s581 + $0x4b0] sm:$0xff]
        %v703 = vld [vmem:[%s581 + $0x4b8] sm:$0xff]
        %v704 = vld [vmem:[%s581 + $0x4c0] sm:$0xff]
        %v705 = vld [vmem:[%s581 + $0x4c8] sm:$0xff]
        %v706 = vld [vmem:[%s581 + $0x4d8] sm:$0xff]
        %v707 = vld [vmem:[%s581 + $0x4e0] sm:$0xff]
        %v708 = vld [vmem:[%s581 + $0x4e8] sm:$0xff]
        %v709 = vld [vmem:[%s581 + $0x4f0] sm:$0xff]
        %v710 = vld [vmem:[%s581 + $0x1] sm:$0xff]
        %v711 = vld [vmem:[%s581 + $0x9] sm:$0xff]
        %v712 = vld [vmem:[%s581 + $0x11] sm:$0xff]
        %v713 = vld [vmem:[%s581 + $0x19] sm:$0xff]
        %v714 = vld [vmem:[%s581 + $0x29] sm:$0xff]
        %v715 = vld [vmem:[%s581 + $0x31] sm:$0xff]
        %v716 = vld [vmem:[%s581 + $0x39] sm:$0xff]
        %v717 = vld [vmem:[%s581 + $0x41] sm:$0xff]
        %v718 = vld [vmem:[%s581 + $0x51] sm:$0xff]
        %v719 = vld [vmem:[%s581 + $0x59] sm:$0xff]
        %v720 = vld [vmem:[%s581 + $0x61] sm:$0xff]
        %v721 = vld [vmem:[%s581 + $0x69] sm:$0xff]
        %v722 = vld [vmem:[%s581 + $0x79] sm:$0xff]
        %v723 = vld [vmem:[%s581 + $0x81] sm:$0xff]
        %v724 = vld [vmem:[%s581 + $0x89] sm:$0xff]
        %v725 = vld [vmem:[%s581 + $0x91] sm:$0xff]
        %v726 = vld [vmem:[%s581 + $0xa1] sm:$0xff]
        %v727 = vld [vmem:[%s581 + $0xa9] sm:$0xff]
        %v728 = vld [vmem:[%s581 + $0xb1] sm:$0xff]
        %v729 = vld [vmem:[%s581 + $0xb9] sm:$0xff]
        %v730 = vld [vmem:[%s581 + $0xc9] sm:$0xff]
        %v731 = vld [vmem:[%s581 + $0xd1] sm:$0xff]
        %v732 = vld [vmem:[%s581 + $0xd9] sm:$0xff]
        %v733 = vld [vmem:[%s581 + $0xe1] sm:$0xff]
        %v734 = vld [vmem:[%s581 + $0xf1] sm:$0xff]
        %v735 = vld [vmem:[%s581 + $0xf9] sm:$0xff]
        %v736 = vld [vmem:[%s581 + $0x101] sm:$0xff]
        %v737 = vld [vmem:[%s581 + $0x109] sm:$0xff]
        %v738 = vld [vmem:[%s581 + $0x119] sm:$0xff]
        %v739 = vld [vmem:[%s581 + $0x121] sm:$0xff]
        %v740 = vld [vmem:[%s581 + $0x129] sm:$0xff]
        %v741 = vld [vmem:[%s581 + $0x131] sm:$0xff]
        %v742 = vld [vmem:[%s581 + $0x141] sm:$0xff]
        %v743 = vld [vmem:[%s581 + $0x149] sm:$0xff]
        %v744 = vld [vmem:[%s581 + $0x151] sm:$0xff]
        %v745 = vld [vmem:[%s581 + $0x159] sm:$0xff]
        %v746 = vld [vmem:[%s581 + $0x169] sm:$0xff]
        %v747 = vld [vmem:[%s581 + $0x171] sm:$0xff]
        %v748 = vld [vmem:[%s581 + $0x179] sm:$0xff]
        %v749 = vld [vmem:[%s581 + $0x181] sm:$0xff]
        %v750 = vld [vmem:[%s581 + $0x191] sm:$0xff]
        %v751 = vld [vmem:[%s581 + $0x199] sm:$0xff]
        %v752 = vld [vmem:[%s581 + $0x1a1] sm:$0xff]
        %v753 = vld [vmem:[%s581 + $0x1a9] sm:$0xff]
        %v754 = vld [vmem:[%s581 + $0x1b9] sm:$0xff]
        %v755 = vld [vmem:[%s581 + $0x1c1] sm:$0xff]
        %v756 = vld [vmem:[%s581 + $0x1c9] sm:$0xff]
        %v757 = vld [vmem:[%s581 + $0x1d1] sm:$0xff]
        %v758 = vld [vmem:[%s581 + $0x1e1] sm:$0xff]
        %v759 = vld [vmem:[%s581 + $0x1e9] sm:$0xff]
        %v760 = vld [vmem:[%s581 + $0x1f1] sm:$0xff]
        %v761 = vld [vmem:[%s581 + $0x1f9] sm:$0xff]
        %v762 = vld [vmem:[%s581 + $0x209] sm:$0xff]
        %v763 = vld [vmem:[%s581 + $0x211] sm:$0xff]
        %v764 = vld [vmem:[%s581 + $0x219] sm:$0xff]
        %v765 = vld [vmem:[%s581 + $0x221] sm:$0xff]
        %v766 = vld [vmem:[%s581 + $0x231] sm:$0xff]
        %v767 = vld [vmem:[%s581 + $0x239] sm:$0xff]
        %v768 = vld [vmem:[%s581 + $0x241] sm:$0xff]
        %v769 = vld [vmem:[%s581 + $0x249] sm:$0xff]
        %v770 = vld [vmem:[%s581 + $0x259] sm:$0xff]
        %v771 = vld [vmem:[%s581 + $0x261] sm:$0xff]
        %v772 = vld [vmem:[%s581 + $0x269] sm:$0xff]
        %v773 = vld [vmem:[%s581 + $0x271] sm:$0xff]
        %v774 = vld [vmem:[%s581 + $0x281] sm:$0xff]
        %v775 = vld [vmem:[%s581 + $0x289] sm:$0xff]
        %v776 = vld [vmem:[%s581 + $0x291] sm:$0xff]
        %v777 = vld [vmem:[%s581 + $0x299] sm:$0xff]
        %v778 = vld [vmem:[%s581 + $0x2a9] sm:$0xff]
        %v779 = vld [vmem:[%s581 + $0x2b1] sm:$0xff]
        %v780 = vld [vmem:[%s581 + $0x2b9] sm:$0xff]
        %v781 = vld [vmem:[%s581 + $0x2c1] sm:$0xff]
        %v782 = vld [vmem:[%s581 + $0x2d1] sm:$0xff]
        %v783 = vld [vmem:[%s581 + $0x2d9] sm:$0xff]
        %v784 = vld [vmem:[%s581 + $0x2e1] sm:$0xff]
        %v785 = vld [vmem:[%s581 + $0x2e9] sm:$0xff]
        %v786 = vld [vmem:[%s581 + $0x2f9] sm:$0xff]
        %v787 = vld [vmem:[%s581 + $0x301] sm:$0xff]
        %v788 = vld [vmem:[%s581 + $0x309] sm:$0xff]
        %v789 = vld [vmem:[%s581 + $0x311] sm:$0xff]
        %v790 = vld [vmem:[%s581 + $0x321] sm:$0xff]
        %v791 = vld [vmem:[%s581 + $0x329] sm:$0xff]
        %v792 = vld [vmem:[%s581 + $0x331] sm:$0xff]
        %v793 = vld [vmem:[%s581 + $0x339] sm:$0xff]
        %v794 = vld [vmem:[%s581 + $0x349] sm:$0xff]
        %v795 = vld [vmem:[%s581 + $0x351] sm:$0xff]
        %v796 = vld [vmem:[%s581 + $0x359] sm:$0xff]
        %v797 = vld [vmem:[%s581 + $0x361] sm:$0xff]
        %v798 = vld [vmem:[%s581 + $0x371] sm:$0xff]
        %v799 = vld [vmem:[%s581 + $0x379] sm:$0xff]
        %v800 = vld [vmem:[%s581 + $0x381] sm:$0xff]
        %v801 = vld [vmem:[%s581 + $0x389] sm:$0xff]
        %v802 = vld [vmem:[%s581 + $0x399] sm:$0xff]
        %v803 = vld [vmem:[%s581 + $0x3a1] sm:$0xff]
        %v804 = vld [vmem:[%s581 + $0x3a9] sm:$0xff]
        %v805 = vld [vmem:[%s581 + $0x3b1] sm:$0xff]
        %v806 = vld [vmem:[%s581 + $0x3c1] sm:$0xff]
        %v807 = vld [vmem:[%s581 + $0x3c9] sm:$0xff]
        %v808 = vld [vmem:[%s581 + $0x3d1] sm:$0xff]
        %v809 = vld [vmem:[%s581 + $0x3d9] sm:$0xff]
        %v810 = vld [vmem:[%s581 + $0x3e9] sm:$0xff]
        %v811 = vld [vmem:[%s581 + $0x3f1] sm:$0xff]
        %v812 = vld [vmem:[%s581 + $0x3f9] sm:$0xff]
        %v813 = vld [vmem:[%s581 + $0x401] sm:$0xff]
        %v814 = vld [vmem:[%s581 + $0x411] sm:$0xff]
        %v815 = vld [vmem:[%s581 + $0x419] sm:$0xff]
        %v816 = vld [vmem:[%s581 + $0x421] sm:$0xff]
        %v817 = vld [vmem:[%s581 + $0x429] sm:$0xff]
        %v818 = vld [vmem:[%s581 + $0x439] sm:$0xff]
        %v819 = vld [vmem:[%s581 + $0x441] sm:$0xff]
        %v820 = vld [vmem:[%s581 + $0x449] sm:$0xff]
        %v821 = vld [vmem:[%s581 + $0x451] sm:$0xff]
        %v822 = vld [vmem:[%s581 + $0x461] sm:$0xff]
        %v823 = vld [vmem:[%s581 + $0x469] sm:$0xff]
        %v824 = vld [vmem:[%s581 + $0x471] sm:$0xff]
        %v825 = vld [vmem:[%s581 + $0x479] sm:$0xff]
        %v826 = vld [vmem:[%s581 + $0x489] sm:$0xff]
        %v827 = vld [vmem:[%s581 + $0x491] sm:$0xff]
        %v828 = vld [vmem:[%s581 + $0x499] sm:$0xff]
        %v829 = vld [vmem:[%s581 + $0x4a1] sm:$0xff]
        %v830 = vld [vmem:[%s581 + $0x4b1] sm:$0xff]
        %v831 = vld [vmem:[%s581 + $0x4b9] sm:$0xff]
        %v832 = vld [vmem:[%s581 + $0x4c1] sm:$0xff]
        %v833 = vld [vmem:[%s581 + $0x4c9] sm:$0xff]
        %v834 = vld [vmem:[%s581 + $0x4d9] sm:$0xff]
        %v835 = vld [vmem:[%s581 + $0x4e1] sm:$0xff]
        %v836 = vld [vmem:[%s581 + $0x4e9] sm:$0xff]
        %v837 = vld [vmem:[%s581 + $0x4f1] sm:$0xff]
        %v838 = vld [vmem:[%s581 + $0x2] sm:$0xff]
        %v839 = vld [vmem:[%s581 + $0xa] sm:$0xff]
        %v840 = vld [vmem:[%s581 + $0x12] sm:$0xff]
        %v841 = vld [vmem:[%s581 + $0x1a] sm:$0xff]
        %v842 = vld [vmem:[%s581 + $0x2a] sm:$0xff]
        %v843 = vld [vmem:[%s581 + $0x32] sm:$0xff]
        %v844 = vld [vmem:[%s581 + $0x3a] sm:$0xff]
        %v845 = vld [vmem:[%s581 + $0x42] sm:$0xff]
        %v846 = vld [vmem:[%s581 + $0x52] sm:$0xff]
        %v847 = vld [vmem:[%s581 + $0x5a] sm:$0xff]
        %v848 = vld [vmem:[%s581 + $0x62] sm:$0xff]
        %v849 = vld [vmem:[%s581 + $0x6a] sm:$0xff]
        %v850 = vld [vmem:[%s581 + $0x7a] sm:$0xff]
        %v851 = vld [vmem:[%s581 + $0x82] sm:$0xff]
        %v852 = vld [vmem:[%s581 + $0x8a] sm:$0xff]
        %v853 = vld [vmem:[%s581 + $0x92] sm:$0xff]
        %v854 = vld [vmem:[%s581 + $0xa2] sm:$0xff]
        %v855 = vld [vmem:[%s581 + $0xaa] sm:$0xff]
        %v856 = vld [vmem:[%s581 + $0xb2] sm:$0xff]
        %v857 = vld [vmem:[%s581 + $0xba] sm:$0xff]
        %v858 = vld [vmem:[%s581 + $0xca] sm:$0xff]
        %v859 = vld [vmem:[%s581 + $0xd2] sm:$0xff]
        %v860 = vld [vmem:[%s581 + $0xda] sm:$0xff]
        %v861 = vld [vmem:[%s581 + $0xe2] sm:$0xff]
        %v862 = vld [vmem:[%s581 + $0xf2] sm:$0xff]
        %v863 = vld [vmem:[%s581 + $0xfa] sm:$0xff]
        %v864 = vld [vmem:[%s581 + $0x102] sm:$0xff]
        %v865 = vld [vmem:[%s581 + $0x10a] sm:$0xff]
        %v866 = vld [vmem:[%s581 + $0x11a] sm:$0xff]
        %v867 = vld [vmem:[%s581 + $0x122] sm:$0xff]
        %v868 = vld [vmem:[%s581 + $0x12a] sm:$0xff]
        %v869 = vld [vmem:[%s581 + $0x132] sm:$0xff]
        %v870 = vld [vmem:[%s581 + $0x142] sm:$0xff]
        %v871 = vld [vmem:[%s581 + $0x14a] sm:$0xff]
        %v872 = vld [vmem:[%s581 + $0x152] sm:$0xff]
        %v873 = vld [vmem:[%s581 + $0x15a] sm:$0xff]
        %v874 = vld [vmem:[%s581 + $0x16a] sm:$0xff]
        %v875 = vld [vmem:[%s581 + $0x172] sm:$0xff]
        %v876 = vld [vmem:[%s581 + $0x17a] sm:$0xff]
        %v877 = vld [vmem:[%s581 + $0x182] sm:$0xff]
        %v878 = vld [vmem:[%s581 + $0x192] sm:$0xff]
        %v879 = vld [vmem:[%s581 + $0x19a] sm:$0xff]
        %v880 = vld [vmem:[%s581 + $0x1a2] sm:$0xff]
        %v881 = vld [vmem:[%s581 + $0x1aa] sm:$0xff]
        %v882 = vld [vmem:[%s581 + $0x1ba] sm:$0xff]
        %v883 = vld [vmem:[%s581 + $0x1c2] sm:$0xff]
        %v884 = vld [vmem:[%s581 + $0x1ca] sm:$0xff]
        %v885 = vld [vmem:[%s581 + $0x1d2] sm:$0xff]
        %v886 = vld [vmem:[%s581 + $0x1e2] sm:$0xff]
        %v887 = vld [vmem:[%s581 + $0x1ea] sm:$0xff]
        %v888 = vld [vmem:[%s581 + $0x1f2] sm:$0xff]
        %v889 = vld [vmem:[%s581 + $0x1fa] sm:$0xff]
        %v890 = vld [vmem:[%s581 + $0x20a] sm:$0xff]
        %v891 = vld [vmem:[%s581 + $0x212] sm:$0xff]
        %v892 = vld [vmem:[%s581 + $0x21a] sm:$0xff]
        %v893 = vld [vmem:[%s581 + $0x222] sm:$0xff]
        %v894 = vld [vmem:[%s581 + $0x232] sm:$0xff]
        %v895 = vld [vmem:[%s581 + $0x23a] sm:$0xff]
        %v896 = vld [vmem:[%s581 + $0x242] sm:$0xff]
        %v897 = vld [vmem:[%s581 + $0x24a] sm:$0xff]
        %v898 = vld [vmem:[%s581 + $0x25a] sm:$0xff]
        %v899 = vld [vmem:[%s581 + $0x262] sm:$0xff]
        %v900 = vld [vmem:[%s581 + $0x26a] sm:$0xff]
        %v901 = vld [vmem:[%s581 + $0x272] sm:$0xff]
        %v902 = vld [vmem:[%s581 + $0x282] sm:$0xff]
        %v903 = vld [vmem:[%s581 + $0x28a] sm:$0xff]
        %v904 = vld [vmem:[%s581 + $0x292] sm:$0xff]
        %v905 = vld [vmem:[%s581 + $0x29a] sm:$0xff]
        %v906 = vld [vmem:[%s581 + $0x2aa] sm:$0xff]
        %v907 = vld [vmem:[%s581 + $0x2b2] sm:$0xff]
        %v908 = vld [vmem:[%s581 + $0x2ba] sm:$0xff]
        %v909 = vld [vmem:[%s581 + $0x2c2] sm:$0xff]
        %v910 = vld [vmem:[%s581 + $0x2d2] sm:$0xff]
        %v911 = vld [vmem:[%s581 + $0x2da] sm:$0xff]
        %v912 = vld [vmem:[%s581 + $0x2e2] sm:$0xff]
        %v913 = vld [vmem:[%s581 + $0x2ea] sm:$0xff]
        %v914 = vld [vmem:[%s581 + $0x2fa] sm:$0xff]
        %v915 = vld [vmem:[%s581 + $0x302] sm:$0xff]
        %v916 = vld [vmem:[%s581 + $0x30a] sm:$0xff]
        %v917 = vld [vmem:[%s581 + $0x312] sm:$0xff]
        %v918 = vld [vmem:[%s581 + $0x322] sm:$0xff]
        %v919 = vld [vmem:[%s581 + $0x32a] sm:$0xff]
        %v920 = vld [vmem:[%s581 + $0x332] sm:$0xff]
        %v921 = vld [vmem:[%s581 + $0x33a] sm:$0xff]
        %v922 = vld [vmem:[%s581 + $0x34a] sm:$0xff]
        %v923 = vld [vmem:[%s581 + $0x352] sm:$0xff]
        %v924 = vld [vmem:[%s581 + $0x35a] sm:$0xff]
        %v925 = vld [vmem:[%s581 + $0x362] sm:$0xff]
        %v926 = vld [vmem:[%s581 + $0x372] sm:$0xff]
        %v927 = vld [vmem:[%s581 + $0x37a] sm:$0xff]
        %v928 = vld [vmem:[%s581 + $0x382] sm:$0xff]
        %v929 = vld [vmem:[%s581 + $0x38a] sm:$0xff]
        %v930 = vld [vmem:[%s581 + $0x39a] sm:$0xff]
        %v931 = vld [vmem:[%s581 + $0x3a2] sm:$0xff]
        %v932 = vld [vmem:[%s581 + $0x3aa] sm:$0xff]
        %v933 = vld [vmem:[%s581 + $0x3b2] sm:$0xff]
        %v934 = vld [vmem:[%s581 + $0x3c2] sm:$0xff]
        %v935 = vld [vmem:[%s581 + $0x3ca] sm:$0xff]
        %v936 = vld [vmem:[%s581 + $0x3d2] sm:$0xff]
        %v937 = vld [vmem:[%s581 + $0x3da] sm:$0xff]
        %v938 = vld [vmem:[%s581 + $0x3ea] sm:$0xff]
        %v939 = vld [vmem:[%s581 + $0x3f2] sm:$0xff]
        %v940 = vld [vmem:[%s581 + $0x3fa] sm:$0xff]
        %v941 = vld [vmem:[%s581 + $0x402] sm:$0xff]
        %v942 = vld [vmem:[%s581 + $0x412] sm:$0xff]
        %v943 = vld [vmem:[%s581 + $0x41a] sm:$0xff]
        %v944 = vld [vmem:[%s581 + $0x422] sm:$0xff]
        %v945 = vld [vmem:[%s581 + $0x42a] sm:$0xff]
        %v946 = vld [vmem:[%s581 + $0x43a] sm:$0xff]
        %v947 = vld [vmem:[%s581 + $0x442] sm:$0xff]
        %v948 = vld [vmem:[%s581 + $0x44a] sm:$0xff]
        %v949 = vld [vmem:[%s581 + $0x452] sm:$0xff]
        %v950 = vld [vmem:[%s581 + $0x462] sm:$0xff]
        %v951 = vld [vmem:[%s581 + $0x46a] sm:$0xff]
        %v952 = vld [vmem:[%s581 + $0x472] sm:$0xff]
        %v953 = vld [vmem:[%s581 + $0x47a] sm:$0xff]
        %v954 = vld [vmem:[%s581 + $0x48a] sm:$0xff]
        %v955 = vld [vmem:[%s581 + $0x492] sm:$0xff]
        %v956 = vld [vmem:[%s581 + $0x49a] sm:$0xff]
        %v957 = vld [vmem:[%s581 + $0x4a2] sm:$0xff]
        %v958 = vld [vmem:[%s581 + $0x4b2] sm:$0xff]
        %v959 = vld [vmem:[%s581 + $0x4ba] sm:$0xff]
        %v960 = vld [vmem:[%s581 + $0x4c2] sm:$0xff]
        %v961 = vld [vmem:[%s581 + $0x4ca] sm:$0xff]
        %v962 = vld [vmem:[%s581 + $0x4da] sm:$0xff]
        %v963 = vld [vmem:[%s581 + $0x4e2] sm:$0xff]
        %v964 = vld [vmem:[%s581 + $0x4ea] sm:$0xff]
        %v965 = vld [vmem:[%s581 + $0x4f2] sm:$0xff]
        %s966 = scalar_lea.vmem %s195, 80
        %v967 = vld [vmem:[%s966] sm:$0xff]
        %v968 = vld [vmem:[%s966 + $0x8] sm:$0xff]
        %v969 = vld [vmem:[%s966 + $0x10] sm:$0xff]
        %v970 = vld [vmem:[%s966 + $0x18] sm:$0xff]
        %v971 = vld [vmem:[%s966 + $0x28] sm:$0xff]
        %v972 = vld [vmem:[%s966 + $0x30] sm:$0xff]
        %v973 = vld [vmem:[%s966 + $0x38] sm:$0xff]
        %v974 = vld [vmem:[%s966 + $0x40] sm:$0xff]
        %v975 = vld [vmem:[%s966 + $0x50] sm:$0xff]
        %v976 = vld [vmem:[%s966 + $0x58] sm:$0xff]
        %v977 = vld [vmem:[%s966 + $0x60] sm:$0xff]
        %v978 = vld [vmem:[%s966 + $0x68] sm:$0xff]
        %v979 = vld [vmem:[%s966 + $0x78] sm:$0xff]
        %v980 = vld [vmem:[%s966 + $0x80] sm:$0xff]
        %v981 = vld [vmem:[%s966 + $0x88] sm:$0xff]
        %v982 = vld [vmem:[%s966 + $0x90] sm:$0xff]
        %v983 = vld [vmem:[%s966 + $0xa0] sm:$0xff]
        %v984 = vld [vmem:[%s966 + $0xa8] sm:$0xff]
        %v985 = vld [vmem:[%s966 + $0xb0] sm:$0xff]
        %v986 = vld [vmem:[%s966 + $0xb8] sm:$0xff]
        %v987 = vld [vmem:[%s966 + $0xc8] sm:$0xff]
        %v988 = vld [vmem:[%s966 + $0xd0] sm:$0xff]
        %v989 = vld [vmem:[%s966 + $0xd8] sm:$0xff]
        %v990 = vld [vmem:[%s966 + $0xe0] sm:$0xff]
        %v991 = vld [vmem:[%s966 + $0xf0] sm:$0xff]
        %v992 = vld [vmem:[%s966 + $0xf8] sm:$0xff]
        %v993 = vld [vmem:[%s966 + $0x100] sm:$0xff]
        %v994 = vld [vmem:[%s966 + $0x108] sm:$0xff]
        %v995 = vld [vmem:[%s966 + $0x118] sm:$0xff]
        %v996 = vld [vmem:[%s966 + $0x120] sm:$0xff]
        %v997 = vld [vmem:[%s966 + $0x128] sm:$0xff]
        %v998 = vld [vmem:[%s966 + $0x130] sm:$0xff]
        %v999 = vld [vmem:[%s966 + $0x140] sm:$0xff]
        %v1000 = vld [vmem:[%s966 + $0x148] sm:$0xff]
        %v1001 = vld [vmem:[%s966 + $0x150] sm:$0xff]
        %v1002 = vld [vmem:[%s966 + $0x158] sm:$0xff]
        %v1003 = vld [vmem:[%s966 + $0x168] sm:$0xff]
        %v1004 = vld [vmem:[%s966 + $0x170] sm:$0xff]
        %v1005 = vld [vmem:[%s966 + $0x178] sm:$0xff]
        %v1006 = vld [vmem:[%s966 + $0x180] sm:$0xff]
        %v1007 = vld [vmem:[%s966 + $0x190] sm:$0xff]
        %v1008 = vld [vmem:[%s966 + $0x198] sm:$0xff]
        %v1009 = vld [vmem:[%s966 + $0x1a0] sm:$0xff]
        %v1010 = vld [vmem:[%s966 + $0x1a8] sm:$0xff]
        %v1011 = vld [vmem:[%s966 + $0x1b8] sm:$0xff]
        %v1012 = vld [vmem:[%s966 + $0x1c0] sm:$0xff]
        %v1013 = vld [vmem:[%s966 + $0x1c8] sm:$0xff]
        %v1014 = vld [vmem:[%s966 + $0x1d0] sm:$0xff]
        %v1015 = vld [vmem:[%s966 + $0x1e0] sm:$0xff]
        %v1016 = vld [vmem:[%s966 + $0x1e8] sm:$0xff]
        %v1017 = vld [vmem:[%s966 + $0x1f0] sm:$0xff]
        %v1018 = vld [vmem:[%s966 + $0x1f8] sm:$0xff]
        %v1019 = vld [vmem:[%s966 + $0x208] sm:$0xff]
        %v1020 = vld [vmem:[%s966 + $0x210] sm:$0xff]
        %v1021 = vld [vmem:[%s966 + $0x218] sm:$0xff]
        %v1022 = vld [vmem:[%s966 + $0x220] sm:$0xff]
        %v1023 = vld [vmem:[%s966 + $0x230] sm:$0xff]
        %v1024 = vld [vmem:[%s966 + $0x238] sm:$0xff]
        %v1025 = vld [vmem:[%s966 + $0x240] sm:$0xff]
        %v1026 = vld [vmem:[%s966 + $0x248] sm:$0xff]
        %v1027 = vld [vmem:[%s966 + $0x258] sm:$0xff]
        %v1028 = vld [vmem:[%s966 + $0x260] sm:$0xff]
        %v1029 = vld [vmem:[%s966 + $0x268] sm:$0xff]
        %v1030 = vld [vmem:[%s966 + $0x270] sm:$0xff]
        %v1031 = vld [vmem:[%s966 + $0x280] sm:$0xff]
        %v1032 = vld [vmem:[%s966 + $0x288] sm:$0xff]
        %v1033 = vld [vmem:[%s966 + $0x290] sm:$0xff]
        %v1034 = vld [vmem:[%s966 + $0x298] sm:$0xff]
        %v1035 = vld [vmem:[%s966 + $0x2a8] sm:$0xff]
        %v1036 = vld [vmem:[%s966 + $0x2b0] sm:$0xff]
        %v1037 = vld [vmem:[%s966 + $0x2b8] sm:$0xff]
        %v1038 = vld [vmem:[%s966 + $0x2c0] sm:$0xff]
        %v1039 = vld [vmem:[%s966 + $0x2d0] sm:$0xff]
        %v1040 = vld [vmem:[%s966 + $0x2d8] sm:$0xff]
        %v1041 = vld [vmem:[%s966 + $0x2e0] sm:$0xff]
        %v1042 = vld [vmem:[%s966 + $0x2e8] sm:$0xff]
        %v1043 = vld [vmem:[%s966 + $0x2f8] sm:$0xff]
        %v1044 = vld [vmem:[%s966 + $0x300] sm:$0xff]
        %v1045 = vld [vmem:[%s966 + $0x308] sm:$0xff]
        %v1046 = vld [vmem:[%s966 + $0x310] sm:$0xff]
        %v1047 = vld [vmem:[%s966 + $0x320] sm:$0xff]
        %v1048 = vld [vmem:[%s966 + $0x328] sm:$0xff]
        %v1049 = vld [vmem:[%s966 + $0x330] sm:$0xff]
        %v1050 = vld [vmem:[%s966 + $0x338] sm:$0xff]
        %v1051 = vld [vmem:[%s966 + $0x348] sm:$0xff]
        %v1052 = vld [vmem:[%s966 + $0x350] sm:$0xff]
        %v1053 = vld [vmem:[%s966 + $0x358] sm:$0xff]
        %v1054 = vld [vmem:[%s966 + $0x360] sm:$0xff]
        %v1055 = vld [vmem:[%s966 + $0x370] sm:$0xff]
        %v1056 = vld [vmem:[%s966 + $0x378] sm:$0xff]
        %v1057 = vld [vmem:[%s966 + $0x380] sm:$0xff]
        %v1058 = vld [vmem:[%s966 + $0x388] sm:$0xff]
        %v1059 = vld [vmem:[%s966 + $0x398] sm:$0xff]
        %v1060 = vld [vmem:[%s966 + $0x3a0] sm:$0xff]
        %v1061 = vld [vmem:[%s966 + $0x3a8] sm:$0xff]
        %v1062 = vld [vmem:[%s966 + $0x3b0] sm:$0xff]
        %v1063 = vld [vmem:[%s966 + $0x3c0] sm:$0xff]
        %v1064 = vld [vmem:[%s966 + $0x3c8] sm:$0xff]
        %v1065 = vld [vmem:[%s966 + $0x3d0] sm:$0xff]
        %v1066 = vld [vmem:[%s966 + $0x3d8] sm:$0xff]
        %v1067 = vld [vmem:[%s966 + $0x3e8] sm:$0xff]
        %v1068 = vld [vmem:[%s966 + $0x3f0] sm:$0xff]
        %v1069 = vld [vmem:[%s966 + $0x3f8] sm:$0xff]
        %v1070 = vld [vmem:[%s966 + $0x400] sm:$0xff]
        %v1071 = vld [vmem:[%s966 + $0x410] sm:$0xff]
        %v1072 = vld [vmem:[%s966 + $0x418] sm:$0xff]
        %v1073 = vld [vmem:[%s966 + $0x420] sm:$0xff]
        %v1074 = vld [vmem:[%s966 + $0x428] sm:$0xff]
        %v1075 = vld [vmem:[%s966 + $0x438] sm:$0xff]
        %v1076 = vld [vmem:[%s966 + $0x440] sm:$0xff]
        %v1077 = vld [vmem:[%s966 + $0x448] sm:$0xff]
        %v1078 = vld [vmem:[%s966 + $0x450] sm:$0xff]
        %v1079 = vld [vmem:[%s966 + $0x460] sm:$0xff]
        %v1080 = vld [vmem:[%s966 + $0x468] sm:$0xff]
        %v1081 = vld [vmem:[%s966 + $0x470] sm:$0xff]
        %v1082 = vld [vmem:[%s966 + $0x478] sm:$0xff]
        %v1083 = vld [vmem:[%s966 + $0x488] sm:$0xff]
        %v1084 = vld [vmem:[%s966 + $0x490] sm:$0xff]
        %v1085 = vld [vmem:[%s966 + $0x498] sm:$0xff]
        %v1086 = vld [vmem:[%s966 + $0x4a0] sm:$0xff]
        %v1087 = vld [vmem:[%s966 + $0x4b0] sm:$0xff]
        %v1088 = vld [vmem:[%s966 + $0x4b8] sm:$0xff]
        %v1089 = vld [vmem:[%s966 + $0x4c0] sm:$0xff]
        %v1090 = vld [vmem:[%s966 + $0x4c8] sm:$0xff]
        %v1091 = vld [vmem:[%s966 + $0x4d8] sm:$0xff]
        %v1092 = vld [vmem:[%s966 + $0x4e0] sm:$0xff]
        %v1093 = vld [vmem:[%s966 + $0x4e8] sm:$0xff]
        %v1094 = vld [vmem:[%s966 + $0x4f0] sm:$0xff]
        %v1095 = vld [vmem:[%s966 + $0x1] sm:$0xff]
        %v1096 = vld [vmem:[%s966 + $0x9] sm:$0xff]
        %v1097 = vld [vmem:[%s966 + $0x11] sm:$0xff]
        %v1098 = vld [vmem:[%s966 + $0x19] sm:$0xff]
        %v1099 = vld [vmem:[%s966 + $0x29] sm:$0xff]
        %v1100 = vld [vmem:[%s966 + $0x31] sm:$0xff]
        %v1101 = vld [vmem:[%s966 + $0x39] sm:$0xff]
        %v1102 = vld [vmem:[%s966 + $0x41] sm:$0xff]
        %v1103 = vld [vmem:[%s966 + $0x51] sm:$0xff]
        %v1104 = vld [vmem:[%s966 + $0x59] sm:$0xff]
        %v1105 = vld [vmem:[%s966 + $0x61] sm:$0xff]
        %v1106 = vld [vmem:[%s966 + $0x69] sm:$0xff]
        %v1107 = vld [vmem:[%s966 + $0x79] sm:$0xff]
        %v1108 = vld [vmem:[%s966 + $0x81] sm:$0xff]
        %v1109 = vld [vmem:[%s966 + $0x89] sm:$0xff]
        %v1110 = vld [vmem:[%s966 + $0x91] sm:$0xff]
        %v1111 = vld [vmem:[%s966 + $0xa1] sm:$0xff]
        %v1112 = vld [vmem:[%s966 + $0xa9] sm:$0xff]
        %v1113 = vld [vmem:[%s966 + $0xb1] sm:$0xff]
        %v1114 = vld [vmem:[%s966 + $0xb9] sm:$0xff]
        %v1115 = vld [vmem:[%s966 + $0xc9] sm:$0xff]
        %v1116 = vld [vmem:[%s966 + $0xd1] sm:$0xff]
        %v1117 = vld [vmem:[%s966 + $0xd9] sm:$0xff]
        %v1118 = vld [vmem:[%s966 + $0xe1] sm:$0xff]
        %v1119 = vld [vmem:[%s966 + $0xf1] sm:$0xff]
        %v1120 = vld [vmem:[%s966 + $0xf9] sm:$0xff]
        %v1121 = vld [vmem:[%s966 + $0x101] sm:$0xff]
        %v1122 = vld [vmem:[%s966 + $0x109] sm:$0xff]
        %v1123 = vld [vmem:[%s966 + $0x119] sm:$0xff]
        %v1124 = vld [vmem:[%s966 + $0x121] sm:$0xff]
        %v1125 = vld [vmem:[%s966 + $0x129] sm:$0xff]
        %v1126 = vld [vmem:[%s966 + $0x131] sm:$0xff]
        %v1127 = vld [vmem:[%s966 + $0x141] sm:$0xff]
        %v1128 = vld [vmem:[%s966 + $0x149] sm:$0xff]
        %v1129 = vld [vmem:[%s966 + $0x151] sm:$0xff]
        %v1130 = vld [vmem:[%s966 + $0x159] sm:$0xff]
        %v1131 = vld [vmem:[%s966 + $0x169] sm:$0xff]
        %v1132 = vld [vmem:[%s966 + $0x171] sm:$0xff]
        %v1133 = vld [vmem:[%s966 + $0x179] sm:$0xff]
        %v1134 = vld [vmem:[%s966 + $0x181] sm:$0xff]
        %v1135 = vld [vmem:[%s966 + $0x191] sm:$0xff]
        %v1136 = vld [vmem:[%s966 + $0x199] sm:$0xff]
        %v1137 = vld [vmem:[%s966 + $0x1a1] sm:$0xff]
        %v1138 = vld [vmem:[%s966 + $0x1a9] sm:$0xff]
        %v1139 = vld [vmem:[%s966 + $0x1b9] sm:$0xff]
        %v1140 = vld [vmem:[%s966 + $0x1c1] sm:$0xff]
        %v1141 = vld [vmem:[%s966 + $0x1c9] sm:$0xff]
        %v1142 = vld [vmem:[%s966 + $0x1d1] sm:$0xff]
        %v1143 = vld [vmem:[%s966 + $0x1e1] sm:$0xff]
        %v1144 = vld [vmem:[%s966 + $0x1e9] sm:$0xff]
        %v1145 = vld [vmem:[%s966 + $0x1f1] sm:$0xff]
        %v1146 = vld [vmem:[%s966 + $0x1f9] sm:$0xff]
        %v1147 = vld [vmem:[%s966 + $0x209] sm:$0xff]
        %v1148 = vld [vmem:[%s966 + $0x211] sm:$0xff]
        %v1149 = vld [vmem:[%s966 + $0x219] sm:$0xff]
        %v1150 = vld [vmem:[%s966 + $0x221] sm:$0xff]
        %v1151 = vld [vmem:[%s966 + $0x231] sm:$0xff]
        %v1152 = vld [vmem:[%s966 + $0x239] sm:$0xff]
        %v1153 = vld [vmem:[%s966 + $0x241] sm:$0xff]
        %v1154 = vld [vmem:[%s966 + $0x249] sm:$0xff]
        %v1155 = vld [vmem:[%s966 + $0x259] sm:$0xff]
        %v1156 = vld [vmem:[%s966 + $0x261] sm:$0xff]
        %v1157 = vld [vmem:[%s966 + $0x269] sm:$0xff]
        %v1158 = vld [vmem:[%s966 + $0x271] sm:$0xff]
        %v1159 = vld [vmem:[%s966 + $0x281] sm:$0xff]
        %v1160 = vld [vmem:[%s966 + $0x289] sm:$0xff]
        %v1161 = vld [vmem:[%s966 + $0x291] sm:$0xff]
        %v1162 = vld [vmem:[%s966 + $0x299] sm:$0xff]
        %v1163 = vld [vmem:[%s966 + $0x2a9] sm:$0xff]
        %v1164 = vld [vmem:[%s966 + $0x2b1] sm:$0xff]
        %v1165 = vld [vmem:[%s966 + $0x2b9] sm:$0xff]
        %v1166 = vld [vmem:[%s966 + $0x2c1] sm:$0xff]
        %v1167 = vld [vmem:[%s966 + $0x2d1] sm:$0xff]
        %v1168 = vld [vmem:[%s966 + $0x2d9] sm:$0xff]
        %v1169 = vld [vmem:[%s966 + $0x2e1] sm:$0xff]
        %v1170 = vld [vmem:[%s966 + $0x2e9] sm:$0xff]
        %v1171 = vld [vmem:[%s966 + $0x2f9] sm:$0xff]
        %v1172 = vld [vmem:[%s966 + $0x301] sm:$0xff]
        %v1173 = vld [vmem:[%s966 + $0x309] sm:$0xff]
        %v1174 = vld [vmem:[%s966 + $0x311] sm:$0xff]
        %v1175 = vld [vmem:[%s966 + $0x321] sm:$0xff]
        %v1176 = vld [vmem:[%s966 + $0x329] sm:$0xff]
        %v1177 = vld [vmem:[%s966 + $0x331] sm:$0xff]
        %v1178 = vld [vmem:[%s966 + $0x339] sm:$0xff]
        %v1179 = vld [vmem:[%s966 + $0x349] sm:$0xff]
        %v1180 = vld [vmem:[%s966 + $0x351] sm:$0xff]
        %v1181 = vld [vmem:[%s966 + $0x359] sm:$0xff]
        %v1182 = vld [vmem:[%s966 + $0x361] sm:$0xff]
        %v1183 = vld [vmem:[%s966 + $0x371] sm:$0xff]
        %v1184 = vld [vmem:[%s966 + $0x379] sm:$0xff]
        %v1185 = vld [vmem:[%s966 + $0x381] sm:$0xff]
        %v1186 = vld [vmem:[%s966 + $0x389] sm:$0xff]
        %v1187 = vld [vmem:[%s966 + $0x399] sm:$0xff]
        %v1188 = vld [vmem:[%s966 + $0x3a1] sm:$0xff]
        %v1189 = vld [vmem:[%s966 + $0x3a9] sm:$0xff]
        %v1190 = vld [vmem:[%s966 + $0x3b1] sm:$0xff]
        %v1191 = vld [vmem:[%s966 + $0x3c1] sm:$0xff]
        %v1192 = vld [vmem:[%s966 + $0x3c9] sm:$0xff]
        %v1193 = vld [vmem:[%s966 + $0x3d1] sm:$0xff]
        %v1194 = vld [vmem:[%s966 + $0x3d9] sm:$0xff]
        %v1195 = vld [vmem:[%s966 + $0x3e9] sm:$0xff]
        %v1196 = vld [vmem:[%s966 + $0x3f1] sm:$0xff]
        %v1197 = vld [vmem:[%s966 + $0x3f9] sm:$0xff]
        %v1198 = vld [vmem:[%s966 + $0x401] sm:$0xff]
        %v1199 = vld [vmem:[%s966 + $0x411] sm:$0xff]
        %v1200 = vld [vmem:[%s966 + $0x419] sm:$0xff]
        %v1201 = vld [vmem:[%s966 + $0x421] sm:$0xff]
        %v1202 = vld [vmem:[%s966 + $0x429] sm:$0xff]
        %v1203 = vld [vmem:[%s966 + $0x439] sm:$0xff]
        %v1204 = vld [vmem:[%s966 + $0x441] sm:$0xff]
        %v1205 = vld [vmem:[%s966 + $0x449] sm:$0xff]
        %v1206 = vld [vmem:[%s966 + $0x451] sm:$0xff]
        %v1207 = vld [vmem:[%s966 + $0x461] sm:$0xff]
        %v1208 = vld [vmem:[%s966 + $0x469] sm:$0xff]
        %v1209 = vld [vmem:[%s966 + $0x471] sm:$0xff]
        %v1210 = vld [vmem:[%s966 + $0x479] sm:$0xff]
        %v1211 = vld [vmem:[%s966 + $0x489] sm:$0xff]
        %v1212 = vld [vmem:[%s966 + $0x491] sm:$0xff]
        %v1213 = vld [vmem:[%s966 + $0x499] sm:$0xff]
        %v1214 = vld [vmem:[%s966 + $0x4a1] sm:$0xff]
        %v1215 = vld [vmem:[%s966 + $0x4b1] sm:$0xff]
        %v1216 = vld [vmem:[%s966 + $0x4b9] sm:$0xff]
        %v1217 = vld [vmem:[%s966 + $0x4c1] sm:$0xff]
        %v1218 = vld [vmem:[%s966 + $0x4c9] sm:$0xff]
        %v1219 = vld [vmem:[%s966 + $0x4d9] sm:$0xff]
        %v1220 = vld [vmem:[%s966 + $0x4e1] sm:$0xff]
        %v1221 = vld [vmem:[%s966 + $0x4e9] sm:$0xff]
        %v1222 = vld [vmem:[%s966 + $0x4f1] sm:$0xff]
        %v1223 = vld [vmem:[%s966 + $0x2] sm:$0xff]
        %v1224 = vld [vmem:[%s966 + $0xa] sm:$0xff]
        %v1225 = vld [vmem:[%s966 + $0x12] sm:$0xff]
        %v1226 = vld [vmem:[%s966 + $0x1a] sm:$0xff]
        %v1227 = vld [vmem:[%s966 + $0x2a] sm:$0xff]
        %v1228 = vld [vmem:[%s966 + $0x32] sm:$0xff]
        %v1229 = vld [vmem:[%s966 + $0x3a] sm:$0xff]
        %v1230 = vld [vmem:[%s966 + $0x42] sm:$0xff]
        %v1231 = vld [vmem:[%s966 + $0x52] sm:$0xff]
        %v1232 = vld [vmem:[%s966 + $0x5a] sm:$0xff]
        %v1233 = vld [vmem:[%s966 + $0x62] sm:$0xff]
        %v1234 = vld [vmem:[%s966 + $0x6a] sm:$0xff]
        %v1235 = vld [vmem:[%s966 + $0x7a] sm:$0xff]
        %v1236 = vld [vmem:[%s966 + $0x82] sm:$0xff]
        %v1237 = vld [vmem:[%s966 + $0x8a] sm:$0xff]
        %v1238 = vld [vmem:[%s966 + $0x92] sm:$0xff]
        %v1239 = vld [vmem:[%s966 + $0xa2] sm:$0xff]
        %v1240 = vld [vmem:[%s966 + $0xaa] sm:$0xff]
        %v1241 = vld [vmem:[%s966 + $0xb2] sm:$0xff]
        %v1242 = vld [vmem:[%s966 + $0xba] sm:$0xff]
        %v1243 = vld [vmem:[%s966 + $0xca] sm:$0xff]
        %v1244 = vld [vmem:[%s966 + $0xd2] sm:$0xff]
        %v1245 = vld [vmem:[%s966 + $0xda] sm:$0xff]
        %v1246 = vld [vmem:[%s966 + $0xe2] sm:$0xff]
        %v1247 = vld [vmem:[%s966 + $0xf2] sm:$0xff]
        %v1248 = vld [vmem:[%s966 + $0xfa] sm:$0xff]
        %v1249 = vld [vmem:[%s966 + $0x102] sm:$0xff]
        %v1250 = vld [vmem:[%s966 + $0x10a] sm:$0xff]
        %v1251 = vld [vmem:[%s966 + $0x11a] sm:$0xff]
        %v1252 = vld [vmem:[%s966 + $0x122] sm:$0xff]
        %v1253 = vld [vmem:[%s966 + $0x12a] sm:$0xff]
        %v1254 = vld [vmem:[%s966 + $0x132] sm:$0xff]
        %v1255 = vld [vmem:[%s966 + $0x142] sm:$0xff]
        %v1256 = vld [vmem:[%s966 + $0x14a] sm:$0xff]
        %v1257 = vld [vmem:[%s966 + $0x152] sm:$0xff]
        %v1258 = vld [vmem:[%s966 + $0x15a] sm:$0xff]
        %v1259 = vld [vmem:[%s966 + $0x16a] sm:$0xff]
        %v1260 = vld [vmem:[%s966 + $0x172] sm:$0xff]
        %v1261 = vld [vmem:[%s966 + $0x17a] sm:$0xff]
        %v1262 = vld [vmem:[%s966 + $0x182] sm:$0xff]
        %v1263 = vld [vmem:[%s966 + $0x192] sm:$0xff]
        %v1264 = vld [vmem:[%s966 + $0x19a] sm:$0xff]
        %v1265 = vld [vmem:[%s966 + $0x1a2] sm:$0xff]
        %v1266 = vld [vmem:[%s966 + $0x1aa] sm:$0xff]
        %v1267 = vld [vmem:[%s966 + $0x1ba] sm:$0xff]
        %v1268 = vld [vmem:[%s966 + $0x1c2] sm:$0xff]
        %v1269 = vld [vmem:[%s966 + $0x1ca] sm:$0xff]
        %v1270 = vld [vmem:[%s966 + $0x1d2] sm:$0xff]
        %v1271 = vld [vmem:[%s966 + $0x1e2] sm:$0xff]
        %v1272 = vld [vmem:[%s966 + $0x1ea] sm:$0xff]
        %v1273 = vld [vmem:[%s966 + $0x1f2] sm:$0xff]
        %v1274 = vld [vmem:[%s966 + $0x1fa] sm:$0xff]
        %v1275 = vld [vmem:[%s966 + $0x20a] sm:$0xff]
        %v1276 = vld [vmem:[%s966 + $0x212] sm:$0xff]
        %v1277 = vld [vmem:[%s966 + $0x21a] sm:$0xff]
        %v1278 = vld [vmem:[%s966 + $0x222] sm:$0xff]
        %v1279 = vld [vmem:[%s966 + $0x232] sm:$0xff]
        %v1280 = vld [vmem:[%s966 + $0x23a] sm:$0xff]
        %v1281 = vld [vmem:[%s966 + $0x242] sm:$0xff]
        %v1282 = vld [vmem:[%s966 + $0x24a] sm:$0xff]
        %v1283 = vld [vmem:[%s966 + $0x25a] sm:$0xff]
        %v1284 = vld [vmem:[%s966 + $0x262] sm:$0xff]
        %v1285 = vld [vmem:[%s966 + $0x26a] sm:$0xff]
        %v1286 = vld [vmem:[%s966 + $0x272] sm:$0xff]
        %v1287 = vld [vmem:[%s966 + $0x282] sm:$0xff]
        %v1288 = vld [vmem:[%s966 + $0x28a] sm:$0xff]
        %v1289 = vld [vmem:[%s966 + $0x292] sm:$0xff]
        %v1290 = vld [vmem:[%s966 + $0x29a] sm:$0xff]
        %v1291 = vld [vmem:[%s966 + $0x2aa] sm:$0xff]
        %v1292 = vld [vmem:[%s966 + $0x2b2] sm:$0xff]
        %v1293 = vld [vmem:[%s966 + $0x2ba] sm:$0xff]
        %v1294 = vld [vmem:[%s966 + $0x2c2] sm:$0xff]
        %v1295 = vld [vmem:[%s966 + $0x2d2] sm:$0xff]
        %v1296 = vld [vmem:[%s966 + $0x2da] sm:$0xff]
        %v1297 = vld [vmem:[%s966 + $0x2e2] sm:$0xff]
        %v1298 = vld [vmem:[%s966 + $0x2ea] sm:$0xff]
        %v1299 = vld [vmem:[%s966 + $0x2fa] sm:$0xff]
        %v1300 = vld [vmem:[%s966 + $0x302] sm:$0xff]
        %v1301 = vld [vmem:[%s966 + $0x30a] sm:$0xff]
        %v1302 = vld [vmem:[%s966 + $0x312] sm:$0xff]
        %v1303 = vld [vmem:[%s966 + $0x322] sm:$0xff]
        %v1304 = vld [vmem:[%s966 + $0x32a] sm:$0xff]
        %v1305 = vld [vmem:[%s966 + $0x332] sm:$0xff]
        %v1306 = vld [vmem:[%s966 + $0x33a] sm:$0xff]
        %v1307 = vld [vmem:[%s966 + $0x34a] sm:$0xff]
        %v1308 = vld [vmem:[%s966 + $0x352] sm:$0xff]
        %v1309 = vld [vmem:[%s966 + $0x35a] sm:$0xff]
        %v1310 = vld [vmem:[%s966 + $0x362] sm:$0xff]
        %v1311 = vld [vmem:[%s966 + $0x372] sm:$0xff]
        %v1312 = vld [vmem:[%s966 + $0x37a] sm:$0xff]
        %v1313 = vld [vmem:[%s966 + $0x382] sm:$0xff]
        %v1314 = vld [vmem:[%s966 + $0x38a] sm:$0xff]
        %v1315 = vld [vmem:[%s966 + $0x39a] sm:$0xff]
        %v1316 = vld [vmem:[%s966 + $0x3a2] sm:$0xff]
        %v1317 = vld [vmem:[%s966 + $0x3aa] sm:$0xff]
        %v1318 = vld [vmem:[%s966 + $0x3b2] sm:$0xff]
        %v1319 = vld [vmem:[%s966 + $0x3c2] sm:$0xff]
        %v1320 = vld [vmem:[%s966 + $0x3ca] sm:$0xff]
        %v1321 = vld [vmem:[%s966 + $0x3d2] sm:$0xff]
        %v1322 = vld [vmem:[%s966 + $0x3da] sm:$0xff]
        %v1323 = vld [vmem:[%s966 + $0x3ea] sm:$0xff]
        %v1324 = vld [vmem:[%s966 + $0x3f2] sm:$0xff]
        %v1325 = vld [vmem:[%s966 + $0x3fa] sm:$0xff]
        %v1326 = vld [vmem:[%s966 + $0x402] sm:$0xff]
        %v1327 = vld [vmem:[%s966 + $0x412] sm:$0xff]
        %v1328 = vld [vmem:[%s966 + $0x41a] sm:$0xff]
        %v1329 = vld [vmem:[%s966 + $0x422] sm:$0xff]
        %v1330 = vld [vmem:[%s966 + $0x42a] sm:$0xff]
        %v1331 = vld [vmem:[%s966 + $0x43a] sm:$0xff]
        %v1332 = vld [vmem:[%s966 + $0x442] sm:$0xff]
        %v1333 = vld [vmem:[%s966 + $0x44a] sm:$0xff]
        %v1334 = vld [vmem:[%s966 + $0x452] sm:$0xff]
        %v1335 = vld [vmem:[%s966 + $0x462] sm:$0xff]
        %v1336 = vld [vmem:[%s966 + $0x46a] sm:$0xff]
        %v1337 = vld [vmem:[%s966 + $0x472] sm:$0xff]
        %v1338 = vld [vmem:[%s966 + $0x47a] sm:$0xff]
        %v1339 = vld [vmem:[%s966 + $0x48a] sm:$0xff]
        %v1340 = vld [vmem:[%s966 + $0x492] sm:$0xff]
        %v1341 = vld [vmem:[%s966 + $0x49a] sm:$0xff]
        %v1342 = vld [vmem:[%s966 + $0x4a2] sm:$0xff]
        %v1343 = vld [vmem:[%s966 + $0x4b2] sm:$0xff]
        %v1344 = vld [vmem:[%s966 + $0x4ba] sm:$0xff]
        %v1345 = vld [vmem:[%s966 + $0x4c2] sm:$0xff]
        %v1346 = vld [vmem:[%s966 + $0x4ca] sm:$0xff]
        %v1347 = vld [vmem:[%s966 + $0x4da] sm:$0xff]
        %v1348 = vld [vmem:[%s966 + $0x4e2] sm:$0xff]
        %v1349 = vld [vmem:[%s966 + $0x4ea] sm:$0xff]
        %v1350 = vld [vmem:[%s966 + $0x4f2] sm:$0xff]
        %1479 = vrot.lane.b32.xlu0 %v325, 3
        %v1480 = vpop.permute.xlu0 %1479
        %1481 = vrot.lane.b32.xlu0 %v326, 3
        %v1482 = vpop.permute.xlu0 %1481
        %1483 = vrot.lane.b32.xlu0 %v327, 3
        %v1484 = vpop.permute.xlu0 %1483
        %1485 = vrot.lane.b32.xlu0 %v328, 3
        %v1486 = vpop.permute.xlu0 %1485
        %1487 = vrot.lane.b32.xlu0 %v329, 3
        %v1488 = vpop.permute.xlu0 %1487
        %1489 = vrot.lane.b32.xlu0 %v330, 3
        %v1490 = vpop.permute.xlu0 %1489
        %1491 = vrot.lane.b32.xlu0 %v331, 3
        %v1492 = vpop.permute.xlu0 %1491
        %1493 = vrot.lane.b32.xlu0 %v332, 3
        %v1494 = vpop.permute.xlu0 %1493
        %1495 = vrot.lane.b32.xlu0 %v333, 3
        %v1496 = vpop.permute.xlu0 %1495
        %1497 = vrot.lane.b32.xlu0 %v334, 3
        %v1498 = vpop.permute.xlu0 %1497
        %1499 = vrot.lane.b32.xlu0 %v335, 3
        %v1500 = vpop.permute.xlu0 %1499
        %1501 = vrot.lane.b32.xlu0 %v336, 3
        %v1502 = vpop.permute.xlu0 %1501
        %1503 = vrot.lane.b32.xlu0 %v337, 3
        %v1504 = vpop.permute.xlu0 %1503
        %1505 = vrot.lane.b32.xlu0 %v338, 3
        %v1506 = vpop.permute.xlu0 %1505
        %1507 = vrot.lane.b32.xlu0 %v339, 3
        %v1508 = vpop.permute.xlu0 %1507
        %1509 = vrot.lane.b32.xlu0 %v340, 3
        %v1510 = vpop.permute.xlu0 %1509
        %1511 = vrot.lane.b32.xlu0 %v341, 3
        %v1512 = vpop.permute.xlu0 %1511
        %1513 = vrot.lane.b32.xlu0 %v342, 3
        %v1514 = vpop.permute.xlu0 %1513
        %1515 = vrot.lane.b32.xlu0 %v343, 3
        %v1516 = vpop.permute.xlu0 %1515
        %1517 = vrot.lane.b32.xlu0 %v344, 3
        %v1518 = vpop.permute.xlu0 %1517
        %1519 = vrot.lane.b32.xlu0 %v345, 3
        %v1520 = vpop.permute.xlu0 %1519
        %1521 = vrot.lane.b32.xlu0 %v346, 3
        %v1522 = vpop.permute.xlu0 %1521
        %1523 = vrot.lane.b32.xlu0 %v347, 3
        %v1524 = vpop.permute.xlu0 %1523
        %1525 = vrot.lane.b32.xlu0 %v348, 3
        %v1526 = vpop.permute.xlu0 %1525
        %1527 = vrot.lane.b32.xlu0 %v349, 3
        %v1528 = vpop.permute.xlu0 %1527
        %1529 = vrot.lane.b32.xlu0 %v350, 3
        %v1530 = vpop.permute.xlu0 %1529
        %1531 = vrot.lane.b32.xlu0 %v351, 3
        %v1532 = vpop.permute.xlu0 %1531
        %1533 = vrot.lane.b32.xlu0 %v352, 3
        %v1534 = vpop.permute.xlu0 %1533
        %1535 = vrot.lane.b32.xlu0 %v353, 3
        %v1536 = vpop.permute.xlu0 %1535
        %1537 = vrot.lane.b32.xlu0 %v354, 3
        %v1538 = vpop.permute.xlu0 %1537
        %1539 = vrot.lane.b32.xlu0 %v355, 3
        %v1540 = vpop.permute.xlu0 %1539
        %1541 = vrot.lane.b32.xlu0 %v356, 3
        %v1542 = vpop.permute.xlu0 %1541
        %1543 = vrot.lane.b32.xlu0 %v357, 3
        %v1544 = vpop.permute.xlu0 %1543
        %1545 = vrot.lane.b32.xlu0 %v358, 3
        %v1546 = vpop.permute.xlu0 %1545
        %1547 = vrot.lane.b32.xlu0 %v359, 3
        %v1548 = vpop.permute.xlu0 %1547
        %1549 = vrot.lane.b32.xlu0 %v360, 3
        %v1550 = vpop.permute.xlu0 %1549
        %1551 = vrot.lane.b32.xlu0 %v361, 3
        %v1552 = vpop.permute.xlu0 %1551
        %1553 = vrot.lane.b32.xlu0 %v362, 3
        %v1554 = vpop.permute.xlu0 %1553
        %1555 = vrot.lane.b32.xlu0 %v363, 3
        %v1556 = vpop.permute.xlu0 %1555
        %1557 = vrot.lane.b32.xlu0 %v364, 3
        %v1558 = vpop.permute.xlu0 %1557
        %1559 = vrot.lane.b32.xlu0 %v365, 3
        %v1560 = vpop.permute.xlu0 %1559
        %1561 = vrot.lane.b32.xlu0 %v366, 3
        %v1562 = vpop.permute.xlu0 %1561
        %1563 = vrot.lane.b32.xlu0 %v367, 3
        %v1564 = vpop.permute.xlu0 %1563
        %1565 = vrot.lane.b32.xlu0 %v368, 3
        %v1566 = vpop.permute.xlu0 %1565
        %1567 = vrot.lane.b32.xlu0 %v369, 3
        %v1568 = vpop.permute.xlu0 %1567
        %1569 = vrot.lane.b32.xlu0 %v370, 3
        %v1570 = vpop.permute.xlu0 %1569
        %1571 = vrot.lane.b32.xlu0 %v371, 3
        %v1572 = vpop.permute.xlu0 %1571
        %1573 = vrot.lane.b32.xlu0 %v372, 3
        %v1574 = vpop.permute.xlu0 %1573
        %1575 = vrot.lane.b32.xlu0 %v373, 3
        %v1576 = vpop.permute.xlu0 %1575
        %1577 = vrot.lane.b32.xlu0 %v374, 3
        %v1578 = vpop.permute.xlu0 %1577
        %1579 = vrot.lane.b32.xlu0 %v375, 3
        %v1580 = vpop.permute.xlu0 %1579
        %1581 = vrot.lane.b32.xlu0 %v376, 3
        %v1582 = vpop.permute.xlu0 %1581
        %1583 = vrot.lane.b32.xlu0 %v377, 3
        %v1584 = vpop.permute.xlu0 %1583
        %1585 = vrot.lane.b32.xlu0 %v378, 3
        %v1586 = vpop.permute.xlu0 %1585
        %1587 = vrot.lane.b32.xlu0 %v379, 3
        %v1588 = vpop.permute.xlu0 %1587
        %1589 = vrot.lane.b32.xlu0 %v380, 3
        %v1590 = vpop.permute.xlu0 %1589
        %1591 = vrot.lane.b32.xlu0 %v381, 3
        %v1592 = vpop.permute.xlu0 %1591
        %1593 = vrot.lane.b32.xlu0 %v382, 3
        %v1594 = vpop.permute.xlu0 %1593
        %1595 = vrot.lane.b32.xlu0 %v383, 3
        %v1596 = vpop.permute.xlu0 %1595
        %1597 = vrot.lane.b32.xlu0 %v384, 3
        %v1598 = vpop.permute.xlu0 %1597
        %1599 = vrot.lane.b32.xlu0 %v385, 3
        %v1600 = vpop.permute.xlu0 %1599
        %1601 = vrot.lane.b32.xlu0 %v386, 3
        %v1602 = vpop.permute.xlu0 %1601
        %1603 = vrot.lane.b32.xlu0 %v387, 3
        %v1604 = vpop.permute.xlu0 %1603
        %1605 = vrot.lane.b32.xlu0 %v388, 3
        %v1606 = vpop.permute.xlu0 %1605
        %1607 = vrot.lane.b32.xlu0 %v389, 3
        %v1608 = vpop.permute.xlu0 %1607
        %1609 = vrot.lane.b32.xlu0 %v390, 3
        %v1610 = vpop.permute.xlu0 %1609
        %1611 = vrot.lane.b32.xlu0 %v391, 3
        %v1612 = vpop.permute.xlu0 %1611
        %1613 = vrot.lane.b32.xlu0 %v392, 3
        %v1614 = vpop.permute.xlu0 %1613
        %1615 = vrot.lane.b32.xlu0 %v393, 3
        %v1616 = vpop.permute.xlu0 %1615
        %1617 = vrot.lane.b32.xlu0 %v394, 3
        %v1618 = vpop.permute.xlu0 %1617
        %1619 = vrot.lane.b32.xlu0 %v395, 3
        %v1620 = vpop.permute.xlu0 %1619
        %1621 = vrot.lane.b32.xlu0 %v396, 3
        %v1622 = vpop.permute.xlu0 %1621
        %1623 = vrot.lane.b32.xlu0 %v397, 3
        %v1624 = vpop.permute.xlu0 %1623
        %1625 = vrot.lane.b32.xlu0 %v398, 3
        %v1626 = vpop.permute.xlu0 %1625
        %1627 = vrot.lane.b32.xlu0 %v399, 3
        %v1628 = vpop.permute.xlu0 %1627
        %1629 = vrot.lane.b32.xlu0 %v400, 3
        %v1630 = vpop.permute.xlu0 %1629
        %1631 = vrot.lane.b32.xlu0 %v401, 3
        %v1632 = vpop.permute.xlu0 %1631
        %1633 = vrot.lane.b32.xlu0 %v402, 3
        %v1634 = vpop.permute.xlu0 %1633
        %1635 = vrot.lane.b32.xlu0 %v403, 3
        %v1636 = vpop.permute.xlu0 %1635
        %1637 = vrot.lane.b32.xlu0 %v404, 3
        %v1638 = vpop.permute.xlu0 %1637
        %1639 = vrot.lane.b32.xlu0 %v405, 3
        %v1640 = vpop.permute.xlu0 %1639
        %1641 = vrot.lane.b32.xlu0 %v406, 3
        %v1642 = vpop.permute.xlu0 %1641
        %1643 = vrot.lane.b32.xlu0 %v407, 3
        %v1644 = vpop.permute.xlu0 %1643
        %1645 = vrot.lane.b32.xlu0 %v408, 3
        %v1646 = vpop.permute.xlu0 %1645
        %1647 = vrot.lane.b32.xlu0 %v409, 3
        %v1648 = vpop.permute.xlu0 %1647
        %1649 = vrot.lane.b32.xlu0 %v410, 3
        %v1650 = vpop.permute.xlu0 %1649
        %1651 = vrot.lane.b32.xlu0 %v411, 3
        %v1652 = vpop.permute.xlu0 %1651
        %1653 = vrot.lane.b32.xlu0 %v412, 3
        %v1654 = vpop.permute.xlu0 %1653
        %1655 = vrot.lane.b32.xlu0 %v413, 3
        %v1656 = vpop.permute.xlu0 %1655
        %1657 = vrot.lane.b32.xlu0 %v414, 3
        %v1658 = vpop.permute.xlu0 %1657
        %1659 = vrot.lane.b32.xlu0 %v415, 3
        %v1660 = vpop.permute.xlu0 %1659
        %1661 = vrot.lane.b32.xlu0 %v416, 3
        %v1662 = vpop.permute.xlu0 %1661
        %1663 = vrot.lane.b32.xlu0 %v417, 3
        %v1664 = vpop.permute.xlu0 %1663
        %1665 = vrot.lane.b32.xlu0 %v418, 3
        %v1666 = vpop.permute.xlu0 %1665
        %1667 = vrot.lane.b32.xlu0 %v419, 3
        %v1668 = vpop.permute.xlu0 %1667
        %1669 = vrot.lane.b32.xlu0 %v420, 3
        %v1670 = vpop.permute.xlu0 %1669
        %1671 = vrot.lane.b32.xlu0 %v421, 3
        %v1672 = vpop.permute.xlu0 %1671
        %1673 = vrot.lane.b32.xlu0 %v422, 3
        %v1674 = vpop.permute.xlu0 %1673
        %1675 = vrot.lane.b32.xlu0 %v423, 3
        %v1676 = vpop.permute.xlu0 %1675
        %1677 = vrot.lane.b32.xlu0 %v424, 3
        %v1678 = vpop.permute.xlu0 %1677
        %1679 = vrot.lane.b32.xlu0 %v425, 3
        %v1680 = vpop.permute.xlu0 %1679
        %1681 = vrot.lane.b32.xlu0 %v426, 3
        %v1682 = vpop.permute.xlu0 %1681
        %1683 = vrot.lane.b32.xlu0 %v427, 3
        %v1684 = vpop.permute.xlu0 %1683
        %1685 = vrot.lane.b32.xlu0 %v428, 3
        %v1686 = vpop.permute.xlu0 %1685
        %1687 = vrot.lane.b32.xlu0 %v429, 3
        %v1688 = vpop.permute.xlu0 %1687
        %1689 = vrot.lane.b32.xlu0 %v430, 3
        %v1690 = vpop.permute.xlu0 %1689
        %1691 = vrot.lane.b32.xlu0 %v431, 3
        %v1692 = vpop.permute.xlu0 %1691
        %1693 = vrot.lane.b32.xlu0 %v432, 3
        %v1694 = vpop.permute.xlu0 %1693
        %1695 = vrot.lane.b32.xlu0 %v433, 3
        %v1696 = vpop.permute.xlu0 %1695
        %1697 = vrot.lane.b32.xlu0 %v434, 3
        %v1698 = vpop.permute.xlu0 %1697
        %1699 = vrot.lane.b32.xlu0 %v435, 3
        %v1700 = vpop.permute.xlu0 %1699
        %1701 = vrot.lane.b32.xlu0 %v436, 3
        %v1702 = vpop.permute.xlu0 %1701
        %1703 = vrot.lane.b32.xlu0 %v437, 3
        %v1704 = vpop.permute.xlu0 %1703
        %1705 = vrot.lane.b32.xlu0 %v438, 3
        %v1706 = vpop.permute.xlu0 %1705
        %1707 = vrot.lane.b32.xlu0 %v439, 3
        %v1708 = vpop.permute.xlu0 %1707
        %1709 = vrot.lane.b32.xlu0 %v440, 3
        %v1710 = vpop.permute.xlu0 %1709
        %1711 = vrot.lane.b32.xlu0 %v441, 3
        %v1712 = vpop.permute.xlu0 %1711
        %1713 = vrot.lane.b32.xlu0 %v442, 3
        %v1714 = vpop.permute.xlu0 %1713
        %1715 = vrot.lane.b32.xlu0 %v443, 3
        %v1716 = vpop.permute.xlu0 %1715
        %1717 = vrot.lane.b32.xlu0 %v444, 3
        %v1718 = vpop.permute.xlu0 %1717
        %1719 = vrot.lane.b32.xlu0 %v445, 3
        %v1720 = vpop.permute.xlu0 %1719
        %1721 = vrot.lane.b32.xlu0 %v446, 3
        %v1722 = vpop.permute.xlu0 %1721
        %1723 = vrot.lane.b32.xlu0 %v447, 3
        %v1724 = vpop.permute.xlu0 %1723
        %1725 = vrot.lane.b32.xlu0 %v448, 3
        %v1726 = vpop.permute.xlu0 %1725
        %1727 = vrot.lane.b32.xlu0 %v449, 3
        %v1728 = vpop.permute.xlu0 %1727
        %1729 = vrot.lane.b32.xlu0 %v450, 3
        %v1730 = vpop.permute.xlu0 %1729
        %1731 = vrot.lane.b32.xlu0 %v451, 3
        %v1732 = vpop.permute.xlu0 %1731
        %1733 = vrot.lane.b32.xlu0 %v452, 3
        %v1734 = vpop.permute.xlu0 %1733
        %1991 = vrot.lane.b32.xlu0 %v453, 6
        %v1992 = vpop.permute.xlu0 %1991
        %1993 = vrot.lane.b32.xlu0 %v454, 6
        %v1994 = vpop.permute.xlu0 %1993
        %1995 = vrot.lane.b32.xlu0 %v455, 6
        %v1996 = vpop.permute.xlu0 %1995
        %1997 = vrot.lane.b32.xlu0 %v456, 6
        %v1998 = vpop.permute.xlu0 %1997
        %1999 = vrot.lane.b32.xlu0 %v457, 6
        %v2000 = vpop.permute.xlu0 %1999
        %2001 = vrot.lane.b32.xlu0 %v458, 6
        %v2002 = vpop.permute.xlu0 %2001
        %2003 = vrot.lane.b32.xlu0 %v459, 6
        %v2004 = vpop.permute.xlu0 %2003
        %2005 = vrot.lane.b32.xlu0 %v460, 6
        %v2006 = vpop.permute.xlu0 %2005
        %2007 = vrot.lane.b32.xlu0 %v461, 6
        %v2008 = vpop.permute.xlu0 %2007
        %2009 = vrot.lane.b32.xlu0 %v462, 6
        %v2010 = vpop.permute.xlu0 %2009
        %2011 = vrot.lane.b32.xlu0 %v463, 6
        %v2012 = vpop.permute.xlu0 %2011
        %2013 = vrot.lane.b32.xlu0 %v464, 6
        %v2014 = vpop.permute.xlu0 %2013
        %2015 = vrot.lane.b32.xlu0 %v465, 6
        %v2016 = vpop.permute.xlu0 %2015
        %2017 = vrot.lane.b32.xlu0 %v466, 6
        %v2018 = vpop.permute.xlu0 %2017
        %2019 = vrot.lane.b32.xlu0 %v467, 6
        %v2020 = vpop.permute.xlu0 %2019
        %2021 = vrot.lane.b32.xlu0 %v468, 6
        %v2022 = vpop.permute.xlu0 %2021
        %2023 = vrot.lane.b32.xlu0 %v469, 6
        %v2024 = vpop.permute.xlu0 %2023
        %2025 = vrot.lane.b32.xlu0 %v470, 6
        %v2026 = vpop.permute.xlu0 %2025
        %2027 = vrot.lane.b32.xlu0 %v471, 6
        %v2028 = vpop.permute.xlu0 %2027
        %2029 = vrot.lane.b32.xlu0 %v472, 6
        %v2030 = vpop.permute.xlu0 %2029
        %2031 = vrot.lane.b32.xlu0 %v473, 6
        %v2032 = vpop.permute.xlu0 %2031
        %2033 = vrot.lane.b32.xlu0 %v474, 6
        %v2034 = vpop.permute.xlu0 %2033
        %2035 = vrot.lane.b32.xlu0 %v475, 6
        %v2036 = vpop.permute.xlu0 %2035
        %2037 = vrot.lane.b32.xlu0 %v476, 6
        %v2038 = vpop.permute.xlu0 %2037
        %2039 = vrot.lane.b32.xlu0 %v477, 6
        %v2040 = vpop.permute.xlu0 %2039
        %2041 = vrot.lane.b32.xlu0 %v478, 6
        %v2042 = vpop.permute.xlu0 %2041
        %2043 = vrot.lane.b32.xlu0 %v479, 6
        %v2044 = vpop.permute.xlu0 %2043
        %2045 = vrot.lane.b32.xlu0 %v480, 6
        %v2046 = vpop.permute.xlu0 %2045
        %2047 = vrot.lane.b32.xlu0 %v481, 6
        %v2048 = vpop.permute.xlu0 %2047
        %2049 = vrot.lane.b32.xlu0 %v482, 6
        %v2050 = vpop.permute.xlu0 %2049
        %2051 = vrot.lane.b32.xlu0 %v483, 6
        %v2052 = vpop.permute.xlu0 %2051
        %2053 = vrot.lane.b32.xlu0 %v484, 6
        %v2054 = vpop.permute.xlu0 %2053
        %2055 = vrot.lane.b32.xlu0 %v485, 6
        %v2056 = vpop.permute.xlu0 %2055
        %2057 = vrot.lane.b32.xlu0 %v486, 6
        %v2058 = vpop.permute.xlu0 %2057
        %2059 = vrot.lane.b32.xlu0 %v487, 6
        %v2060 = vpop.permute.xlu0 %2059
        %2061 = vrot.lane.b32.xlu0 %v488, 6
        %v2062 = vpop.permute.xlu0 %2061
        %2063 = vrot.lane.b32.xlu0 %v489, 6
        %v2064 = vpop.permute.xlu0 %2063
        %2065 = vrot.lane.b32.xlu0 %v490, 6
        %v2066 = vpop.permute.xlu0 %2065
        %2067 = vrot.lane.b32.xlu0 %v491, 6
        %v2068 = vpop.permute.xlu0 %2067
        %2069 = vrot.lane.b32.xlu0 %v492, 6
        %v2070 = vpop.permute.xlu0 %2069
        %2071 = vrot.lane.b32.xlu0 %v493, 6
        %v2072 = vpop.permute.xlu0 %2071
        %2073 = vrot.lane.b32.xlu0 %v494, 6
        %v2074 = vpop.permute.xlu0 %2073
        %2075 = vrot.lane.b32.xlu0 %v495, 6
        %v2076 = vpop.permute.xlu0 %2075
        %2077 = vrot.lane.b32.xlu0 %v496, 6
        %v2078 = vpop.permute.xlu0 %2077
        %2079 = vrot.lane.b32.xlu0 %v497, 6
        %v2080 = vpop.permute.xlu0 %2079
        %2081 = vrot.lane.b32.xlu0 %v498, 6
        %v2082 = vpop.permute.xlu0 %2081
        %2083 = vrot.lane.b32.xlu0 %v499, 6
        %v2084 = vpop.permute.xlu0 %2083
        %2085 = vrot.lane.b32.xlu0 %v500, 6
        %v2086 = vpop.permute.xlu0 %2085
        %2087 = vrot.lane.b32.xlu0 %v501, 6
        %v2088 = vpop.permute.xlu0 %2087
        %2089 = vrot.lane.b32.xlu0 %v502, 6
        %v2090 = vpop.permute.xlu0 %2089
        %2091 = vrot.lane.b32.xlu0 %v503, 6
        %v2092 = vpop.permute.xlu0 %2091
        %2093 = vrot.lane.b32.xlu0 %v504, 6
        %v2094 = vpop.permute.xlu0 %2093
        %2095 = vrot.lane.b32.xlu0 %v505, 6
        %v2096 = vpop.permute.xlu0 %2095
        %2097 = vrot.lane.b32.xlu0 %v506, 6
        %v2098 = vpop.permute.xlu0 %2097
        %2099 = vrot.lane.b32.xlu0 %v507, 6
        %v2100 = vpop.permute.xlu0 %2099
        %2101 = vrot.lane.b32.xlu0 %v508, 6
        %v2102 = vpop.permute.xlu0 %2101
        %2103 = vrot.lane.b32.xlu0 %v509, 6
        %v2104 = vpop.permute.xlu0 %2103
        %2105 = vrot.lane.b32.xlu0 %v510, 6
        %v2106 = vpop.permute.xlu0 %2105
        %2107 = vrot.lane.b32.xlu0 %v511, 6
        %v2108 = vpop.permute.xlu0 %2107
        %2109 = vrot.lane.b32.xlu0 %v512, 6
        %v2110 = vpop.permute.xlu0 %2109
        %2111 = vrot.lane.b32.xlu0 %v513, 6
        %v2112 = vpop.permute.xlu0 %2111
        %2113 = vrot.lane.b32.xlu0 %v514, 6
        %v2114 = vpop.permute.xlu0 %2113
        %2115 = vrot.lane.b32.xlu0 %v515, 6
        %v2116 = vpop.permute.xlu0 %2115
        %2117 = vrot.lane.b32.xlu0 %v516, 6
        %v2118 = vpop.permute.xlu0 %2117
        %2119 = vrot.lane.b32.xlu0 %v517, 6
        %v2120 = vpop.permute.xlu0 %2119
        %2121 = vrot.lane.b32.xlu0 %v518, 6
        %v2122 = vpop.permute.xlu0 %2121
        %2123 = vrot.lane.b32.xlu0 %v519, 6
        %v2124 = vpop.permute.xlu0 %2123
        %2125 = vrot.lane.b32.xlu0 %v520, 6
        %v2126 = vpop.permute.xlu0 %2125
        %2127 = vrot.lane.b32.xlu0 %v521, 6
        %v2128 = vpop.permute.xlu0 %2127
        %2129 = vrot.lane.b32.xlu0 %v522, 6
        %v2130 = vpop.permute.xlu0 %2129
        %2131 = vrot.lane.b32.xlu0 %v523, 6
        %v2132 = vpop.permute.xlu0 %2131
        %2133 = vrot.lane.b32.xlu0 %v524, 6
        %v2134 = vpop.permute.xlu0 %2133
        %2135 = vrot.lane.b32.xlu0 %v525, 6
        %v2136 = vpop.permute.xlu0 %2135
        %2137 = vrot.lane.b32.xlu0 %v526, 6
        %v2138 = vpop.permute.xlu0 %2137
        %2139 = vrot.lane.b32.xlu0 %v527, 6
        %v2140 = vpop.permute.xlu0 %2139
        %2141 = vrot.lane.b32.xlu0 %v528, 6
        %v2142 = vpop.permute.xlu0 %2141
        %2143 = vrot.lane.b32.xlu0 %v529, 6
        %v2144 = vpop.permute.xlu0 %2143
        %2145 = vrot.lane.b32.xlu0 %v530, 6
        %v2146 = vpop.permute.xlu0 %2145
        %2147 = vrot.lane.b32.xlu0 %v531, 6
        %v2148 = vpop.permute.xlu0 %2147
        %2149 = vrot.lane.b32.xlu0 %v532, 6
        %v2150 = vpop.permute.xlu0 %2149
        %2151 = vrot.lane.b32.xlu0 %v533, 6
        %v2152 = vpop.permute.xlu0 %2151
        %2153 = vrot.lane.b32.xlu0 %v534, 6
        %v2154 = vpop.permute.xlu0 %2153
        %2155 = vrot.lane.b32.xlu0 %v535, 6
        %v2156 = vpop.permute.xlu0 %2155
        %2157 = vrot.lane.b32.xlu0 %v536, 6
        %v2158 = vpop.permute.xlu0 %2157
        %2159 = vrot.lane.b32.xlu0 %v537, 6
        %v2160 = vpop.permute.xlu0 %2159
        %2161 = vrot.lane.b32.xlu0 %v538, 6
        %v2162 = vpop.permute.xlu0 %2161
        %2163 = vrot.lane.b32.xlu0 %v539, 6
        %v2164 = vpop.permute.xlu0 %2163
        %2165 = vrot.lane.b32.xlu0 %v540, 6
        %v2166 = vpop.permute.xlu0 %2165
        %2167 = vrot.lane.b32.xlu0 %v541, 6
        %v2168 = vpop.permute.xlu0 %2167
        %2169 = vrot.lane.b32.xlu0 %v542, 6
        %v2170 = vpop.permute.xlu0 %2169
        %2171 = vrot.lane.b32.xlu0 %v543, 6
        %v2172 = vpop.permute.xlu0 %2171
        %2173 = vrot.lane.b32.xlu0 %v544, 6
        %v2174 = vpop.permute.xlu0 %2173
        %2175 = vrot.lane.b32.xlu0 %v545, 6
        %v2176 = vpop.permute.xlu0 %2175
        %2177 = vrot.lane.b32.xlu0 %v546, 6
        %v2178 = vpop.permute.xlu0 %2177
        %2179 = vrot.lane.b32.xlu0 %v547, 6
        %v2180 = vpop.permute.xlu0 %2179
        %2181 = vrot.lane.b32.xlu0 %v548, 6
        %v2182 = vpop.permute.xlu0 %2181
        %2183 = vrot.lane.b32.xlu0 %v549, 6
        %v2184 = vpop.permute.xlu0 %2183
        %2185 = vrot.lane.b32.xlu0 %v550, 6
        %v2186 = vpop.permute.xlu0 %2185
        %2187 = vrot.lane.b32.xlu0 %v551, 6
        %v2188 = vpop.permute.xlu0 %2187
        %2189 = vrot.lane.b32.xlu0 %v552, 6
        %v2190 = vpop.permute.xlu0 %2189
        %2191 = vrot.lane.b32.xlu0 %v553, 6
        %v2192 = vpop.permute.xlu0 %2191
        %2193 = vrot.lane.b32.xlu0 %v554, 6
        %v2194 = vpop.permute.xlu0 %2193
        %2195 = vrot.lane.b32.xlu0 %v555, 6
        %v2196 = vpop.permute.xlu0 %2195
        %2197 = vrot.lane.b32.xlu0 %v556, 6
        %v2198 = vpop.permute.xlu0 %2197
        %2199 = vrot.lane.b32.xlu0 %v557, 6
        %v2200 = vpop.permute.xlu0 %2199
        %2201 = vrot.lane.b32.xlu0 %v558, 6
        %v2202 = vpop.permute.xlu0 %2201
        %2203 = vrot.lane.b32.xlu0 %v559, 6
        %v2204 = vpop.permute.xlu0 %2203
        %2205 = vrot.lane.b32.xlu0 %v560, 6
        %v2206 = vpop.permute.xlu0 %2205
        %2207 = vrot.lane.b32.xlu0 %v561, 6
        %v2208 = vpop.permute.xlu0 %2207
        %2209 = vrot.lane.b32.xlu0 %v562, 6
        %v2210 = vpop.permute.xlu0 %2209
        %2211 = vrot.lane.b32.xlu0 %v563, 6
        %v2212 = vpop.permute.xlu0 %2211
        %2213 = vrot.lane.b32.xlu0 %v564, 6
        %v2214 = vpop.permute.xlu0 %2213
        %2215 = vrot.lane.b32.xlu0 %v565, 6
        %v2216 = vpop.permute.xlu0 %2215
        %2217 = vrot.lane.b32.xlu0 %v566, 6
        %v2218 = vpop.permute.xlu0 %2217
        %2219 = vrot.lane.b32.xlu0 %v567, 6
        %v2220 = vpop.permute.xlu0 %2219
        %2221 = vrot.lane.b32.xlu0 %v568, 6
        %v2222 = vpop.permute.xlu0 %2221
        %2223 = vrot.lane.b32.xlu0 %v569, 6
        %v2224 = vpop.permute.xlu0 %2223
        %2225 = vrot.lane.b32.xlu0 %v570, 6
        %v2226 = vpop.permute.xlu0 %2225
        %2227 = vrot.lane.b32.xlu0 %v571, 6
        %v2228 = vpop.permute.xlu0 %2227
        %2229 = vrot.lane.b32.xlu0 %v572, 6
        %v2230 = vpop.permute.xlu0 %2229
        %2231 = vrot.lane.b32.xlu0 %v573, 6
        %v2232 = vpop.permute.xlu0 %2231
        %2233 = vrot.lane.b32.xlu0 %v574, 6
        %v2234 = vpop.permute.xlu0 %2233
        %2235 = vrot.lane.b32.xlu0 %v575, 6
        %v2236 = vpop.permute.xlu0 %2235
        %2237 = vrot.lane.b32.xlu0 %v576, 6
        %v2238 = vpop.permute.xlu0 %2237
        %2239 = vrot.lane.b32.xlu0 %v577, 6
        %v2240 = vpop.permute.xlu0 %2239
        %2241 = vrot.lane.b32.xlu0 %v578, 6
        %v2242 = vpop.permute.xlu0 %2241
        %2243 = vrot.lane.b32.xlu0 %v579, 6
        %v2244 = vpop.permute.xlu0 %2243
        %2245 = vrot.lane.b32.xlu0 %v580, 6
        %v2246 = vpop.permute.xlu0 %2245
        %2503 = vrot.lane.b32.xlu0 %v582, 9
        %v2504 = vpop.permute.xlu0 %2503
        %2505 = vrot.lane.b32.xlu0 %v583, 9
        %v2506 = vpop.permute.xlu0 %2505
        %2507 = vrot.lane.b32.xlu0 %v584, 9
        %v2508 = vpop.permute.xlu0 %2507
        %2509 = vrot.lane.b32.xlu0 %v585, 9
        %v2510 = vpop.permute.xlu0 %2509
        %2511 = vrot.lane.b32.xlu0 %v586, 9
        %v2512 = vpop.permute.xlu0 %2511
        %2513 = vrot.lane.b32.xlu0 %v587, 9
        %v2514 = vpop.permute.xlu0 %2513
        %2515 = vrot.lane.b32.xlu0 %v588, 9
        %v2516 = vpop.permute.xlu0 %2515
        %2517 = vrot.lane.b32.xlu0 %v589, 9
        %v2518 = vpop.permute.xlu0 %2517
        %2519 = vrot.lane.b32.xlu0 %v590, 9
        %v2520 = vpop.permute.xlu0 %2519
        %2521 = vrot.lane.b32.xlu0 %v591, 9
        %v2522 = vpop.permute.xlu0 %2521
        %2523 = vrot.lane.b32.xlu0 %v592, 9
        %v2524 = vpop.permute.xlu0 %2523
        %2525 = vrot.lane.b32.xlu0 %v593, 9
        %v2526 = vpop.permute.xlu0 %2525
        %2527 = vrot.lane.b32.xlu0 %v594, 9
        %v2528 = vpop.permute.xlu0 %2527
        %2529 = vrot.lane.b32.xlu0 %v595, 9
        %v2530 = vpop.permute.xlu0 %2529
        %2531 = vrot.lane.b32.xlu0 %v596, 9
        %v2532 = vpop.permute.xlu0 %2531
        %2533 = vrot.lane.b32.xlu0 %v597, 9
        %v2534 = vpop.permute.xlu0 %2533
        %2535 = vrot.lane.b32.xlu0 %v598, 9
        %v2536 = vpop.permute.xlu0 %2535
        %2537 = vrot.lane.b32.xlu0 %v599, 9
        %v2538 = vpop.permute.xlu0 %2537
        %2539 = vrot.lane.b32.xlu0 %v600, 9
        %v2540 = vpop.permute.xlu0 %2539
        %2541 = vrot.lane.b32.xlu0 %v601, 9
        %v2542 = vpop.permute.xlu0 %2541
        %2543 = vrot.lane.b32.xlu0 %v602, 9
        %v2544 = vpop.permute.xlu0 %2543
        %2545 = vrot.lane.b32.xlu0 %v603, 9
        %v2546 = vpop.permute.xlu0 %2545
        %2547 = vrot.lane.b32.xlu0 %v604, 9
        %v2548 = vpop.permute.xlu0 %2547
        %2549 = vrot.lane.b32.xlu0 %v605, 9
        %v2550 = vpop.permute.xlu0 %2549
        %2551 = vrot.lane.b32.xlu0 %v606, 9
        %v2552 = vpop.permute.xlu0 %2551
        %2553 = vrot.lane.b32.xlu0 %v607, 9
        %v2554 = vpop.permute.xlu0 %2553
        %2555 = vrot.lane.b32.xlu0 %v608, 9
        %v2556 = vpop.permute.xlu0 %2555
        %2557 = vrot.lane.b32.xlu0 %v609, 9
        %v2558 = vpop.permute.xlu0 %2557
        %2559 = vrot.lane.b32.xlu0 %v610, 9
        %v2560 = vpop.permute.xlu0 %2559
        %2561 = vrot.lane.b32.xlu0 %v611, 9
        %v2562 = vpop.permute.xlu0 %2561
        %2563 = vrot.lane.b32.xlu0 %v612, 9
        %v2564 = vpop.permute.xlu0 %2563
        %2565 = vrot.lane.b32.xlu0 %v613, 9
        %v2566 = vpop.permute.xlu0 %2565
        %2567 = vrot.lane.b32.xlu0 %v614, 9
        %v2568 = vpop.permute.xlu0 %2567
        %2569 = vrot.lane.b32.xlu0 %v615, 9
        %v2570 = vpop.permute.xlu0 %2569
        %2571 = vrot.lane.b32.xlu0 %v616, 9
        %v2572 = vpop.permute.xlu0 %2571
        %2573 = vrot.lane.b32.xlu0 %v617, 9
        %v2574 = vpop.permute.xlu0 %2573
        %2575 = vrot.lane.b32.xlu0 %v618, 9
        %v2576 = vpop.permute.xlu0 %2575
        %2577 = vrot.lane.b32.xlu0 %v619, 9
        %v2578 = vpop.permute.xlu0 %2577
        %2579 = vrot.lane.b32.xlu0 %v620, 9
        %v2580 = vpop.permute.xlu0 %2579
        %2581 = vrot.lane.b32.xlu0 %v621, 9
        %v2582 = vpop.permute.xlu0 %2581
        %2583 = vrot.lane.b32.xlu0 %v622, 9
        %v2584 = vpop.permute.xlu0 %2583
        %2585 = vrot.lane.b32.xlu0 %v623, 9
        %v2586 = vpop.permute.xlu0 %2585
        %2587 = vrot.lane.b32.xlu0 %v624, 9
        %v2588 = vpop.permute.xlu0 %2587
        %2589 = vrot.lane.b32.xlu0 %v625, 9
        %v2590 = vpop.permute.xlu0 %2589
        %2591 = vrot.lane.b32.xlu0 %v626, 9
        %v2592 = vpop.permute.xlu0 %2591
        %2593 = vrot.lane.b32.xlu0 %v627, 9
        %v2594 = vpop.permute.xlu0 %2593
        %2595 = vrot.lane.b32.xlu0 %v628, 9
        %v2596 = vpop.permute.xlu0 %2595
        %2597 = vrot.lane.b32.xlu0 %v629, 9
        %v2598 = vpop.permute.xlu0 %2597
        %2599 = vrot.lane.b32.xlu0 %v630, 9
        %v2600 = vpop.permute.xlu0 %2599
        %2601 = vrot.lane.b32.xlu0 %v631, 9
        %v2602 = vpop.permute.xlu0 %2601
        %2603 = vrot.lane.b32.xlu0 %v632, 9
        %v2604 = vpop.permute.xlu0 %2603
        %2605 = vrot.lane.b32.xlu0 %v633, 9
        %v2606 = vpop.permute.xlu0 %2605
        %2607 = vrot.lane.b32.xlu0 %v634, 9
        %v2608 = vpop.permute.xlu0 %2607
        %2609 = vrot.lane.b32.xlu0 %v635, 9
        %v2610 = vpop.permute.xlu0 %2609
        %2611 = vrot.lane.b32.xlu0 %v636, 9
        %v2612 = vpop.permute.xlu0 %2611
        %2613 = vrot.lane.b32.xlu0 %v637, 9
        %v2614 = vpop.permute.xlu0 %2613
        %2615 = vrot.lane.b32.xlu0 %v638, 9
        %v2616 = vpop.permute.xlu0 %2615
        %2617 = vrot.lane.b32.xlu0 %v639, 9
        %v2618 = vpop.permute.xlu0 %2617
        %2619 = vrot.lane.b32.xlu0 %v640, 9
        %v2620 = vpop.permute.xlu0 %2619
        %2621 = vrot.lane.b32.xlu0 %v641, 9
        %v2622 = vpop.permute.xlu0 %2621
        %2623 = vrot.lane.b32.xlu0 %v642, 9
        %v2624 = vpop.permute.xlu0 %2623
        %2625 = vrot.lane.b32.xlu0 %v643, 9
        %v2626 = vpop.permute.xlu0 %2625
        %2627 = vrot.lane.b32.xlu0 %v644, 9
        %v2628 = vpop.permute.xlu0 %2627
        %2629 = vrot.lane.b32.xlu0 %v645, 9
        %v2630 = vpop.permute.xlu0 %2629
        %2631 = vrot.lane.b32.xlu0 %v646, 9
        %v2632 = vpop.permute.xlu0 %2631
        %2633 = vrot.lane.b32.xlu0 %v647, 9
        %v2634 = vpop.permute.xlu0 %2633
        %2635 = vrot.lane.b32.xlu0 %v648, 9
        %v2636 = vpop.permute.xlu0 %2635
        %2637 = vrot.lane.b32.xlu0 %v649, 9
        %v2638 = vpop.permute.xlu0 %2637
        %2639 = vrot.lane.b32.xlu0 %v650, 9
        %v2640 = vpop.permute.xlu0 %2639
        %2641 = vrot.lane.b32.xlu0 %v651, 9
        %v2642 = vpop.permute.xlu0 %2641
        %2643 = vrot.lane.b32.xlu0 %v652, 9
        %v2644 = vpop.permute.xlu0 %2643
        %2645 = vrot.lane.b32.xlu0 %v653, 9
        %v2646 = vpop.permute.xlu0 %2645
        %2647 = vrot.lane.b32.xlu0 %v654, 9
        %v2648 = vpop.permute.xlu0 %2647
        %2649 = vrot.lane.b32.xlu0 %v655, 9
        %v2650 = vpop.permute.xlu0 %2649
        %2651 = vrot.lane.b32.xlu0 %v656, 9
        %v2652 = vpop.permute.xlu0 %2651
        %2653 = vrot.lane.b32.xlu0 %v657, 9
        %v2654 = vpop.permute.xlu0 %2653
        %2655 = vrot.lane.b32.xlu0 %v658, 9
        %v2656 = vpop.permute.xlu0 %2655
        %2657 = vrot.lane.b32.xlu0 %v659, 9
        %v2658 = vpop.permute.xlu0 %2657
        %2659 = vrot.lane.b32.xlu0 %v660, 9
        %v2660 = vpop.permute.xlu0 %2659
        %2661 = vrot.lane.b32.xlu0 %v661, 9
        %v2662 = vpop.permute.xlu0 %2661
        %2663 = vrot.lane.b32.xlu0 %v662, 9
        %v2664 = vpop.permute.xlu0 %2663
        %2665 = vrot.lane.b32.xlu0 %v663, 9
        %v2666 = vpop.permute.xlu0 %2665
        %2667 = vrot.lane.b32.xlu0 %v664, 9
        %v2668 = vpop.permute.xlu0 %2667
        %2669 = vrot.lane.b32.xlu0 %v665, 9
        %v2670 = vpop.permute.xlu0 %2669
        %2671 = vrot.lane.b32.xlu0 %v666, 9
        %v2672 = vpop.permute.xlu0 %2671
        %2673 = vrot.lane.b32.xlu0 %v667, 9
        %v2674 = vpop.permute.xlu0 %2673
        %2675 = vrot.lane.b32.xlu0 %v668, 9
        %v2676 = vpop.permute.xlu0 %2675
        %2677 = vrot.lane.b32.xlu0 %v669, 9
        %v2678 = vpop.permute.xlu0 %2677
        %2679 = vrot.lane.b32.xlu0 %v670, 9
        %v2680 = vpop.permute.xlu0 %2679
        %2681 = vrot.lane.b32.xlu0 %v671, 9
        %v2682 = vpop.permute.xlu0 %2681
        %2683 = vrot.lane.b32.xlu0 %v672, 9
        %v2684 = vpop.permute.xlu0 %2683
        %2685 = vrot.lane.b32.xlu0 %v673, 9
        %v2686 = vpop.permute.xlu0 %2685
        %2687 = vrot.lane.b32.xlu0 %v674, 9
        %v2688 = vpop.permute.xlu0 %2687
        %2689 = vrot.lane.b32.xlu0 %v675, 9
        %v2690 = vpop.permute.xlu0 %2689
        %2691 = vrot.lane.b32.xlu0 %v676, 9
        %v2692 = vpop.permute.xlu0 %2691
        %2693 = vrot.lane.b32.xlu0 %v677, 9
        %v2694 = vpop.permute.xlu0 %2693
        %2695 = vrot.lane.b32.xlu0 %v678, 9
        %v2696 = vpop.permute.xlu0 %2695
        %2697 = vrot.lane.b32.xlu0 %v679, 9
        %v2698 = vpop.permute.xlu0 %2697
        %2699 = vrot.lane.b32.xlu0 %v680, 9
        %v2700 = vpop.permute.xlu0 %2699
        %2701 = vrot.lane.b32.xlu0 %v681, 9
        %v2702 = vpop.permute.xlu0 %2701
        %2703 = vrot.lane.b32.xlu0 %v682, 9
        %v2704 = vpop.permute.xlu0 %2703
        %2705 = vrot.lane.b32.xlu0 %v683, 9
        %v2706 = vpop.permute.xlu0 %2705
        %2707 = vrot.lane.b32.xlu0 %v684, 9
        %v2708 = vpop.permute.xlu0 %2707
        %2709 = vrot.lane.b32.xlu0 %v685, 9
        %v2710 = vpop.permute.xlu0 %2709
        %2711 = vrot.lane.b32.xlu0 %v686, 9
        %v2712 = vpop.permute.xlu0 %2711
        %2713 = vrot.lane.b32.xlu0 %v687, 9
        %v2714 = vpop.permute.xlu0 %2713
        %2715 = vrot.lane.b32.xlu0 %v688, 9
        %v2716 = vpop.permute.xlu0 %2715
        %2717 = vrot.lane.b32.xlu0 %v689, 9
        %v2718 = vpop.permute.xlu0 %2717
        %2719 = vrot.lane.b32.xlu0 %v690, 9
        %v2720 = vpop.permute.xlu0 %2719
        %2721 = vrot.lane.b32.xlu0 %v691, 9
        %v2722 = vpop.permute.xlu0 %2721
        %2723 = vrot.lane.b32.xlu0 %v692, 9
        %v2724 = vpop.permute.xlu0 %2723
        %2725 = vrot.lane.b32.xlu0 %v693, 9
        %v2726 = vpop.permute.xlu0 %2725
        %2727 = vrot.lane.b32.xlu0 %v694, 9
        %v2728 = vpop.permute.xlu0 %2727
        %2729 = vrot.lane.b32.xlu0 %v695, 9
        %v2730 = vpop.permute.xlu0 %2729
        %2731 = vrot.lane.b32.xlu0 %v696, 9
        %v2732 = vpop.permute.xlu0 %2731
        %2733 = vrot.lane.b32.xlu0 %v697, 9
        %v2734 = vpop.permute.xlu0 %2733
        %2735 = vrot.lane.b32.xlu0 %v698, 9
        %v2736 = vpop.permute.xlu0 %2735
        %2737 = vrot.lane.b32.xlu0 %v699, 9
        %v2738 = vpop.permute.xlu0 %2737
        %2739 = vrot.lane.b32.xlu0 %v700, 9
        %v2740 = vpop.permute.xlu0 %2739
        %2741 = vrot.lane.b32.xlu0 %v701, 9
        %v2742 = vpop.permute.xlu0 %2741
        %2743 = vrot.lane.b32.xlu0 %v702, 9
        %v2744 = vpop.permute.xlu0 %2743
        %2745 = vrot.lane.b32.xlu0 %v703, 9
        %v2746 = vpop.permute.xlu0 %2745
        %2747 = vrot.lane.b32.xlu0 %v704, 9
        %v2748 = vpop.permute.xlu0 %2747
        %2749 = vrot.lane.b32.xlu0 %v705, 9
        %v2750 = vpop.permute.xlu0 %2749
        %2751 = vrot.lane.b32.xlu0 %v706, 9
        %v2752 = vpop.permute.xlu0 %2751
        %2753 = vrot.lane.b32.xlu0 %v707, 9
        %v2754 = vpop.permute.xlu0 %2753
        %2755 = vrot.lane.b32.xlu0 %v708, 9
        %v2756 = vpop.permute.xlu0 %2755
        %2757 = vrot.lane.b32.xlu0 %v709, 9
        %v2758 = vpop.permute.xlu0 %2757
        %3015 = vrot.lane.b32.xlu0 %v710, 12
        %v3016 = vpop.permute.xlu0 %3015
        %3017 = vrot.lane.b32.xlu0 %v711, 12
        %v3018 = vpop.permute.xlu0 %3017
        %3019 = vrot.lane.b32.xlu0 %v712, 12
        %v3020 = vpop.permute.xlu0 %3019
        %3021 = vrot.lane.b32.xlu0 %v713, 12
        %v3022 = vpop.permute.xlu0 %3021
        %3023 = vrot.lane.b32.xlu0 %v714, 12
        %v3024 = vpop.permute.xlu0 %3023
        %3025 = vrot.lane.b32.xlu0 %v715, 12
        %v3026 = vpop.permute.xlu0 %3025
        %3027 = vrot.lane.b32.xlu0 %v716, 12
        %v3028 = vpop.permute.xlu0 %3027
        %3029 = vrot.lane.b32.xlu0 %v717, 12
        %v3030 = vpop.permute.xlu0 %3029
        %3031 = vrot.lane.b32.xlu0 %v718, 12
        %v3032 = vpop.permute.xlu0 %3031
        %3033 = vrot.lane.b32.xlu0 %v719, 12
        %v3034 = vpop.permute.xlu0 %3033
        %3035 = vrot.lane.b32.xlu0 %v720, 12
        %v3036 = vpop.permute.xlu0 %3035
        %3037 = vrot.lane.b32.xlu0 %v721, 12
        %v3038 = vpop.permute.xlu0 %3037
        %3039 = vrot.lane.b32.xlu0 %v722, 12
        %v3040 = vpop.permute.xlu0 %3039
        %3041 = vrot.lane.b32.xlu0 %v723, 12
        %v3042 = vpop.permute.xlu0 %3041
        %3043 = vrot.lane.b32.xlu0 %v724, 12
        %v3044 = vpop.permute.xlu0 %3043
        %3045 = vrot.lane.b32.xlu0 %v725, 12
        %v3046 = vpop.permute.xlu0 %3045
        %3047 = vrot.lane.b32.xlu0 %v726, 12
        %v3048 = vpop.permute.xlu0 %3047
        %3049 = vrot.lane.b32.xlu0 %v727, 12
        %v3050 = vpop.permute.xlu0 %3049
        %3051 = vrot.lane.b32.xlu0 %v728, 12
        %v3052 = vpop.permute.xlu0 %3051
        %3053 = vrot.lane.b32.xlu0 %v729, 12
        %v3054 = vpop.permute.xlu0 %3053
        %3055 = vrot.lane.b32.xlu0 %v730, 12
        %v3056 = vpop.permute.xlu0 %3055
        %3057 = vrot.lane.b32.xlu0 %v731, 12
        %v3058 = vpop.permute.xlu0 %3057
        %3059 = vrot.lane.b32.xlu0 %v732, 12
        %v3060 = vpop.permute.xlu0 %3059
        %3061 = vrot.lane.b32.xlu0 %v733, 12
        %v3062 = vpop.permute.xlu0 %3061
        %3063 = vrot.lane.b32.xlu0 %v734, 12
        %v3064 = vpop.permute.xlu0 %3063
        %3065 = vrot.lane.b32.xlu0 %v735, 12
        %v3066 = vpop.permute.xlu0 %3065
        %3067 = vrot.lane.b32.xlu0 %v736, 12
        %v3068 = vpop.permute.xlu0 %3067
        %3069 = vrot.lane.b32.xlu0 %v737, 12
        %v3070 = vpop.permute.xlu0 %3069
        %3071 = vrot.lane.b32.xlu0 %v738, 12
        %v3072 = vpop.permute.xlu0 %3071
        %3073 = vrot.lane.b32.xlu0 %v739, 12
        %v3074 = vpop.permute.xlu0 %3073
        %3075 = vrot.lane.b32.xlu0 %v740, 12
        %v3076 = vpop.permute.xlu0 %3075
        %3077 = vrot.lane.b32.xlu0 %v741, 12
        %v3078 = vpop.permute.xlu0 %3077
        %3079 = vrot.lane.b32.xlu0 %v742, 12
        %v3080 = vpop.permute.xlu0 %3079
        %3081 = vrot.lane.b32.xlu0 %v743, 12
        %v3082 = vpop.permute.xlu0 %3081
        %3083 = vrot.lane.b32.xlu0 %v744, 12
        %v3084 = vpop.permute.xlu0 %3083
        %3085 = vrot.lane.b32.xlu0 %v745, 12
        %v3086 = vpop.permute.xlu0 %3085
        %3087 = vrot.lane.b32.xlu0 %v746, 12
        %v3088 = vpop.permute.xlu0 %3087
        %3089 = vrot.lane.b32.xlu0 %v747, 12
        %v3090 = vpop.permute.xlu0 %3089
        %3091 = vrot.lane.b32.xlu0 %v748, 12
        %v3092 = vpop.permute.xlu0 %3091
        %3093 = vrot.lane.b32.xlu0 %v749, 12
        %v3094 = vpop.permute.xlu0 %3093
        %3095 = vrot.lane.b32.xlu0 %v750, 12
        %v3096 = vpop.permute.xlu0 %3095
        %3097 = vrot.lane.b32.xlu0 %v751, 12
        %v3098 = vpop.permute.xlu0 %3097
        %3099 = vrot.lane.b32.xlu0 %v752, 12
        %v3100 = vpop.permute.xlu0 %3099
        %3101 = vrot.lane.b32.xlu0 %v753, 12
        %v3102 = vpop.permute.xlu0 %3101
        %3103 = vrot.lane.b32.xlu0 %v754, 12
        %v3104 = vpop.permute.xlu0 %3103
        %3105 = vrot.lane.b32.xlu0 %v755, 12
        %v3106 = vpop.permute.xlu0 %3105
        %3107 = vrot.lane.b32.xlu0 %v756, 12
        %v3108 = vpop.permute.xlu0 %3107
        %3109 = vrot.lane.b32.xlu0 %v757, 12
        %v3110 = vpop.permute.xlu0 %3109
        %3111 = vrot.lane.b32.xlu0 %v758, 12
        %v3112 = vpop.permute.xlu0 %3111
        %3113 = vrot.lane.b32.xlu0 %v759, 12
        %v3114 = vpop.permute.xlu0 %3113
        %3115 = vrot.lane.b32.xlu0 %v760, 12
        %v3116 = vpop.permute.xlu0 %3115
        %3117 = vrot.lane.b32.xlu0 %v761, 12
        %v3118 = vpop.permute.xlu0 %3117
        %3119 = vrot.lane.b32.xlu0 %v762, 12
        %v3120 = vpop.permute.xlu0 %3119
        %3121 = vrot.lane.b32.xlu0 %v763, 12
        %v3122 = vpop.permute.xlu0 %3121
        %3123 = vrot.lane.b32.xlu0 %v764, 12
        %v3124 = vpop.permute.xlu0 %3123
        %3125 = vrot.lane.b32.xlu0 %v765, 12
        %v3126 = vpop.permute.xlu0 %3125
        %3127 = vrot.lane.b32.xlu0 %v766, 12
        %v3128 = vpop.permute.xlu0 %3127
        %3129 = vrot.lane.b32.xlu0 %v767, 12
        %v3130 = vpop.permute.xlu0 %3129
        %3131 = vrot.lane.b32.xlu0 %v768, 12
        %v3132 = vpop.permute.xlu0 %3131
        %3133 = vrot.lane.b32.xlu0 %v769, 12
        %v3134 = vpop.permute.xlu0 %3133
        %3135 = vrot.lane.b32.xlu0 %v770, 12
        %v3136 = vpop.permute.xlu0 %3135
        %3137 = vrot.lane.b32.xlu0 %v771, 12
        %v3138 = vpop.permute.xlu0 %3137
        %3139 = vrot.lane.b32.xlu0 %v772, 12
        %v3140 = vpop.permute.xlu0 %3139
        %3141 = vrot.lane.b32.xlu0 %v773, 12
        %v3142 = vpop.permute.xlu0 %3141
        %3143 = vrot.lane.b32.xlu0 %v774, 12
        %v3144 = vpop.permute.xlu0 %3143
        %3145 = vrot.lane.b32.xlu0 %v775, 12
        %v3146 = vpop.permute.xlu0 %3145
        %3147 = vrot.lane.b32.xlu0 %v776, 12
        %v3148 = vpop.permute.xlu0 %3147
        %3149 = vrot.lane.b32.xlu0 %v777, 12
        %v3150 = vpop.permute.xlu0 %3149
        %3151 = vrot.lane.b32.xlu0 %v778, 12
        %v3152 = vpop.permute.xlu0 %3151
        %3153 = vrot.lane.b32.xlu0 %v779, 12
        %v3154 = vpop.permute.xlu0 %3153
        %3155 = vrot.lane.b32.xlu0 %v780, 12
        %v3156 = vpop.permute.xlu0 %3155
        %3157 = vrot.lane.b32.xlu0 %v781, 12
        %v3158 = vpop.permute.xlu0 %3157
        %3159 = vrot.lane.b32.xlu0 %v782, 12
        %v3160 = vpop.permute.xlu0 %3159
        %3161 = vrot.lane.b32.xlu0 %v783, 12
        %v3162 = vpop.permute.xlu0 %3161
        %3163 = vrot.lane.b32.xlu0 %v784, 12
        %v3164 = vpop.permute.xlu0 %3163
        %3165 = vrot.lane.b32.xlu0 %v785, 12
        %v3166 = vpop.permute.xlu0 %3165
        %3167 = vrot.lane.b32.xlu0 %v786, 12
        %v3168 = vpop.permute.xlu0 %3167
        %3169 = vrot.lane.b32.xlu0 %v787, 12
        %v3170 = vpop.permute.xlu0 %3169
        %3171 = vrot.lane.b32.xlu0 %v788, 12
        %v3172 = vpop.permute.xlu0 %3171
        %3173 = vrot.lane.b32.xlu0 %v789, 12
        %v3174 = vpop.permute.xlu0 %3173
        %3175 = vrot.lane.b32.xlu0 %v790, 12
        %v3176 = vpop.permute.xlu0 %3175
        %3177 = vrot.lane.b32.xlu0 %v791, 12
        %v3178 = vpop.permute.xlu0 %3177
        %3179 = vrot.lane.b32.xlu0 %v792, 12
        %v3180 = vpop.permute.xlu0 %3179
        %3181 = vrot.lane.b32.xlu0 %v793, 12
        %v3182 = vpop.permute.xlu0 %3181
        %3183 = vrot.lane.b32.xlu0 %v794, 12
        %v3184 = vpop.permute.xlu0 %3183
        %3185 = vrot.lane.b32.xlu0 %v795, 12
        %v3186 = vpop.permute.xlu0 %3185
        %3187 = vrot.lane.b32.xlu0 %v796, 12
        %v3188 = vpop.permute.xlu0 %3187
        %3189 = vrot.lane.b32.xlu0 %v797, 12
        %v3190 = vpop.permute.xlu0 %3189
        %3191 = vrot.lane.b32.xlu0 %v798, 12
        %v3192 = vpop.permute.xlu0 %3191
        %3193 = vrot.lane.b32.xlu0 %v799, 12
        %v3194 = vpop.permute.xlu0 %3193
        %3195 = vrot.lane.b32.xlu0 %v800, 12
        %v3196 = vpop.permute.xlu0 %3195
        %3197 = vrot.lane.b32.xlu0 %v801, 12
        %v3198 = vpop.permute.xlu0 %3197
        %3199 = vrot.lane.b32.xlu0 %v802, 12
        %v3200 = vpop.permute.xlu0 %3199
        %3201 = vrot.lane.b32.xlu0 %v803, 12
        %v3202 = vpop.permute.xlu0 %3201
        %3203 = vrot.lane.b32.xlu0 %v804, 12
        %v3204 = vpop.permute.xlu0 %3203
        %3205 = vrot.lane.b32.xlu0 %v805, 12
        %v3206 = vpop.permute.xlu0 %3205
        %3207 = vrot.lane.b32.xlu0 %v806, 12
        %v3208 = vpop.permute.xlu0 %3207
        %3209 = vrot.lane.b32.xlu0 %v807, 12
        %v3210 = vpop.permute.xlu0 %3209
        %3211 = vrot.lane.b32.xlu0 %v808, 12
        %v3212 = vpop.permute.xlu0 %3211
        %3213 = vrot.lane.b32.xlu0 %v809, 12
        %v3214 = vpop.permute.xlu0 %3213
        %3215 = vrot.lane.b32.xlu0 %v810, 12
        %v3216 = vpop.permute.xlu0 %3215
        %3217 = vrot.lane.b32.xlu0 %v811, 12
        %v3218 = vpop.permute.xlu0 %3217
        %3219 = vrot.lane.b32.xlu0 %v812, 12
        %v3220 = vpop.permute.xlu0 %3219
        %3221 = vrot.lane.b32.xlu0 %v813, 12
        %v3222 = vpop.permute.xlu0 %3221
        %3223 = vrot.lane.b32.xlu0 %v814, 12
        %v3224 = vpop.permute.xlu0 %3223
        %3225 = vrot.lane.b32.xlu0 %v815, 12
        %v3226 = vpop.permute.xlu0 %3225
        %3227 = vrot.lane.b32.xlu0 %v816, 12
        %v3228 = vpop.permute.xlu0 %3227
        %3229 = vrot.lane.b32.xlu0 %v817, 12
        %v3230 = vpop.permute.xlu0 %3229
        %3231 = vrot.lane.b32.xlu0 %v818, 12
        %v3232 = vpop.permute.xlu0 %3231
        %3233 = vrot.lane.b32.xlu0 %v819, 12
        %v3234 = vpop.permute.xlu0 %3233
        %3235 = vrot.lane.b32.xlu0 %v820, 12
        %v3236 = vpop.permute.xlu0 %3235
        %3237 = vrot.lane.b32.xlu0 %v821, 12
        %v3238 = vpop.permute.xlu0 %3237
        %3239 = vrot.lane.b32.xlu0 %v822, 12
        %v3240 = vpop.permute.xlu0 %3239
        %3241 = vrot.lane.b32.xlu0 %v823, 12
        %v3242 = vpop.permute.xlu0 %3241
        %3243 = vrot.lane.b32.xlu0 %v824, 12
        %v3244 = vpop.permute.xlu0 %3243
        %3245 = vrot.lane.b32.xlu0 %v825, 12
        %v3246 = vpop.permute.xlu0 %3245
        %3247 = vrot.lane.b32.xlu0 %v826, 12
        %v3248 = vpop.permute.xlu0 %3247
        %3249 = vrot.lane.b32.xlu0 %v827, 12
        %v3250 = vpop.permute.xlu0 %3249
        %3251 = vrot.lane.b32.xlu0 %v828, 12
        %v3252 = vpop.permute.xlu0 %3251
        %3253 = vrot.lane.b32.xlu0 %v829, 12
        %v3254 = vpop.permute.xlu0 %3253
        %3255 = vrot.lane.b32.xlu0 %v830, 12
        %v3256 = vpop.permute.xlu0 %3255
        %3257 = vrot.lane.b32.xlu0 %v831, 12
        %v3258 = vpop.permute.xlu0 %3257
        %3259 = vrot.lane.b32.xlu0 %v832, 12
        %v3260 = vpop.permute.xlu0 %3259
        %3261 = vrot.lane.b32.xlu0 %v833, 12
        %v3262 = vpop.permute.xlu0 %3261
        %3263 = vrot.lane.b32.xlu0 %v834, 12
        %v3264 = vpop.permute.xlu0 %3263
        %3265 = vrot.lane.b32.xlu0 %v835, 12
        %v3266 = vpop.permute.xlu0 %3265
        %3267 = vrot.lane.b32.xlu0 %v836, 12
        %v3268 = vpop.permute.xlu0 %3267
        %3269 = vrot.lane.b32.xlu0 %v837, 12
        %v3270 = vpop.permute.xlu0 %3269
        %3527 = vrot.lane.b32.xlu0 %v838, 15
        %v3528 = vpop.permute.xlu0 %3527
        %3529 = vrot.lane.b32.xlu0 %v839, 15
        %v3530 = vpop.permute.xlu0 %3529
        %3531 = vrot.lane.b32.xlu0 %v840, 15
        %v3532 = vpop.permute.xlu0 %3531
        %3533 = vrot.lane.b32.xlu0 %v841, 15
        %v3534 = vpop.permute.xlu0 %3533
        %3535 = vrot.lane.b32.xlu0 %v842, 15
        %v3536 = vpop.permute.xlu0 %3535
        %3537 = vrot.lane.b32.xlu0 %v843, 15
        %v3538 = vpop.permute.xlu0 %3537
        %3539 = vrot.lane.b32.xlu0 %v844, 15
        %v3540 = vpop.permute.xlu0 %3539
        %3541 = vrot.lane.b32.xlu0 %v845, 15
        %v3542 = vpop.permute.xlu0 %3541
        %3543 = vrot.lane.b32.xlu0 %v846, 15
        %v3544 = vpop.permute.xlu0 %3543
        %3545 = vrot.lane.b32.xlu0 %v847, 15
        %v3546 = vpop.permute.xlu0 %3545
        %3547 = vrot.lane.b32.xlu0 %v848, 15
        %v3548 = vpop.permute.xlu0 %3547
        %3549 = vrot.lane.b32.xlu0 %v849, 15
        %v3550 = vpop.permute.xlu0 %3549
        %3551 = vrot.lane.b32.xlu0 %v850, 15
        %v3552 = vpop.permute.xlu0 %3551
        %3553 = vrot.lane.b32.xlu0 %v851, 15
        %v3554 = vpop.permute.xlu0 %3553
        %3555 = vrot.lane.b32.xlu0 %v852, 15
        %v3556 = vpop.permute.xlu0 %3555
        %3557 = vrot.lane.b32.xlu0 %v853, 15
        %v3558 = vpop.permute.xlu0 %3557
        %3559 = vrot.lane.b32.xlu0 %v854, 15
        %v3560 = vpop.permute.xlu0 %3559
        %3561 = vrot.lane.b32.xlu0 %v855, 15
        %v3562 = vpop.permute.xlu0 %3561
        %3563 = vrot.lane.b32.xlu0 %v856, 15
        %v3564 = vpop.permute.xlu0 %3563
        %3565 = vrot.lane.b32.xlu0 %v857, 15
        %v3566 = vpop.permute.xlu0 %3565
        %3567 = vrot.lane.b32.xlu0 %v858, 15
        %v3568 = vpop.permute.xlu0 %3567
        %3569 = vrot.lane.b32.xlu0 %v859, 15
        %v3570 = vpop.permute.xlu0 %3569
        %3571 = vrot.lane.b32.xlu0 %v860, 15
        %v3572 = vpop.permute.xlu0 %3571
        %3573 = vrot.lane.b32.xlu0 %v861, 15
        %v3574 = vpop.permute.xlu0 %3573
        %3575 = vrot.lane.b32.xlu0 %v862, 15
        %v3576 = vpop.permute.xlu0 %3575
        %3577 = vrot.lane.b32.xlu0 %v863, 15
        %v3578 = vpop.permute.xlu0 %3577
        %3579 = vrot.lane.b32.xlu0 %v864, 15
        %v3580 = vpop.permute.xlu0 %3579
        %3581 = vrot.lane.b32.xlu0 %v865, 15
        %v3582 = vpop.permute.xlu0 %3581
        %3583 = vrot.lane.b32.xlu0 %v866, 15
        %v3584 = vpop.permute.xlu0 %3583
        %3585 = vrot.lane.b32.xlu0 %v867, 15
        %v3586 = vpop.permute.xlu0 %3585
        %3587 = vrot.lane.b32.xlu0 %v868, 15
        %v3588 = vpop.permute.xlu0 %3587
        %3589 = vrot.lane.b32.xlu0 %v869, 15
        %v3590 = vpop.permute.xlu0 %3589
        %3591 = vrot.lane.b32.xlu0 %v870, 15
        %v3592 = vpop.permute.xlu0 %3591
        %3593 = vrot.lane.b32.xlu0 %v871, 15
        %v3594 = vpop.permute.xlu0 %3593
        %3595 = vrot.lane.b32.xlu0 %v872, 15
        %v3596 = vpop.permute.xlu0 %3595
        %3597 = vrot.lane.b32.xlu0 %v873, 15
        %v3598 = vpop.permute.xlu0 %3597
        %3599 = vrot.lane.b32.xlu0 %v874, 15
        %v3600 = vpop.permute.xlu0 %3599
        %3601 = vrot.lane.b32.xlu0 %v875, 15
        %v3602 = vpop.permute.xlu0 %3601
        %3603 = vrot.lane.b32.xlu0 %v876, 15
        %v3604 = vpop.permute.xlu0 %3603
        %3605 = vrot.lane.b32.xlu0 %v877, 15
        %v3606 = vpop.permute.xlu0 %3605
        %3607 = vrot.lane.b32.xlu0 %v878, 15
        %v3608 = vpop.permute.xlu0 %3607
        %3609 = vrot.lane.b32.xlu0 %v879, 15
        %v3610 = vpop.permute.xlu0 %3609
        %3611 = vrot.lane.b32.xlu0 %v880, 15
        %v3612 = vpop.permute.xlu0 %3611
        %3613 = vrot.lane.b32.xlu0 %v881, 15
        %v3614 = vpop.permute.xlu0 %3613
        %3615 = vrot.lane.b32.xlu0 %v882, 15
        %v3616 = vpop.permute.xlu0 %3615
        %3617 = vrot.lane.b32.xlu0 %v883, 15
        %v3618 = vpop.permute.xlu0 %3617
        %3619 = vrot.lane.b32.xlu0 %v884, 15
        %v3620 = vpop.permute.xlu0 %3619
        %3621 = vrot.lane.b32.xlu0 %v885, 15
        %v3622 = vpop.permute.xlu0 %3621
        %3623 = vrot.lane.b32.xlu0 %v886, 15
        %v3624 = vpop.permute.xlu0 %3623
        %3625 = vrot.lane.b32.xlu0 %v887, 15
        %v3626 = vpop.permute.xlu0 %3625
        %3627 = vrot.lane.b32.xlu0 %v888, 15
        %v3628 = vpop.permute.xlu0 %3627
        %3629 = vrot.lane.b32.xlu0 %v889, 15
        %v3630 = vpop.permute.xlu0 %3629
        %3631 = vrot.lane.b32.xlu0 %v890, 15
        %v3632 = vpop.permute.xlu0 %3631
        %3633 = vrot.lane.b32.xlu0 %v891, 15
        %v3634 = vpop.permute.xlu0 %3633
        %3635 = vrot.lane.b32.xlu0 %v892, 15
        %v3636 = vpop.permute.xlu0 %3635
        %3637 = vrot.lane.b32.xlu0 %v893, 15
        %v3638 = vpop.permute.xlu0 %3637
        %3639 = vrot.lane.b32.xlu0 %v894, 15
        %v3640 = vpop.permute.xlu0 %3639
        %3641 = vrot.lane.b32.xlu0 %v895, 15
        %v3642 = vpop.permute.xlu0 %3641
        %3643 = vrot.lane.b32.xlu0 %v896, 15
        %v3644 = vpop.permute.xlu0 %3643
        %3645 = vrot.lane.b32.xlu0 %v897, 15
        %v3646 = vpop.permute.xlu0 %3645
        %3647 = vrot.lane.b32.xlu0 %v898, 15
        %v3648 = vpop.permute.xlu0 %3647
        %3649 = vrot.lane.b32.xlu0 %v899, 15
        %v3650 = vpop.permute.xlu0 %3649
        %3651 = vrot.lane.b32.xlu0 %v900, 15
        %v3652 = vpop.permute.xlu0 %3651
        %3653 = vrot.lane.b32.xlu0 %v901, 15
        %v3654 = vpop.permute.xlu0 %3653
        %3655 = vrot.lane.b32.xlu0 %v902, 15
        %v3656 = vpop.permute.xlu0 %3655
        %3657 = vrot.lane.b32.xlu0 %v903, 15
        %v3658 = vpop.permute.xlu0 %3657
        %3659 = vrot.lane.b32.xlu0 %v904, 15
        %v3660 = vpop.permute.xlu0 %3659
        %3661 = vrot.lane.b32.xlu0 %v905, 15
        %v3662 = vpop.permute.xlu0 %3661
        %3663 = vrot.lane.b32.xlu0 %v906, 15
        %v3664 = vpop.permute.xlu0 %3663
        %3665 = vrot.lane.b32.xlu0 %v907, 15
        %v3666 = vpop.permute.xlu0 %3665
        %3667 = vrot.lane.b32.xlu0 %v908, 15
        %v3668 = vpop.permute.xlu0 %3667
        %3669 = vrot.lane.b32.xlu0 %v909, 15
        %v3670 = vpop.permute.xlu0 %3669
        %3671 = vrot.lane.b32.xlu0 %v910, 15
        %v3672 = vpop.permute.xlu0 %3671
        %3673 = vrot.lane.b32.xlu0 %v911, 15
        %v3674 = vpop.permute.xlu0 %3673
        %3675 = vrot.lane.b32.xlu0 %v912, 15
        %v3676 = vpop.permute.xlu0 %3675
        %3677 = vrot.lane.b32.xlu0 %v913, 15
        %v3678 = vpop.permute.xlu0 %3677
        %3679 = vrot.lane.b32.xlu0 %v914, 15
        %v3680 = vpop.permute.xlu0 %3679
        %3681 = vrot.lane.b32.xlu0 %v915, 15
        %v3682 = vpop.permute.xlu0 %3681
        %3683 = vrot.lane.b32.xlu0 %v916, 15
        %v3684 = vpop.permute.xlu0 %3683
        %3685 = vrot.lane.b32.xlu0 %v917, 15
        %v3686 = vpop.permute.xlu0 %3685
        %3687 = vrot.lane.b32.xlu0 %v918, 15
        %v3688 = vpop.permute.xlu0 %3687
        %3689 = vrot.lane.b32.xlu0 %v919, 15
        %v3690 = vpop.permute.xlu0 %3689
        %3691 = vrot.lane.b32.xlu0 %v920, 15
        %v3692 = vpop.permute.xlu0 %3691
        %3693 = vrot.lane.b32.xlu0 %v921, 15
        %v3694 = vpop.permute.xlu0 %3693
        %3695 = vrot.lane.b32.xlu0 %v922, 15
        %v3696 = vpop.permute.xlu0 %3695
        %3697 = vrot.lane.b32.xlu0 %v923, 15
        %v3698 = vpop.permute.xlu0 %3697
        %3699 = vrot.lane.b32.xlu0 %v924, 15
        %v3700 = vpop.permute.xlu0 %3699
        %3701 = vrot.lane.b32.xlu0 %v925, 15
        %v3702 = vpop.permute.xlu0 %3701
        %3703 = vrot.lane.b32.xlu0 %v926, 15
        %v3704 = vpop.permute.xlu0 %3703
        %3705 = vrot.lane.b32.xlu0 %v927, 15
        %v3706 = vpop.permute.xlu0 %3705
        %3707 = vrot.lane.b32.xlu0 %v928, 15
        %v3708 = vpop.permute.xlu0 %3707
        %3709 = vrot.lane.b32.xlu0 %v929, 15
        %v3710 = vpop.permute.xlu0 %3709
        %3711 = vrot.lane.b32.xlu0 %v930, 15
        %v3712 = vpop.permute.xlu0 %3711
        %3713 = vrot.lane.b32.xlu0 %v931, 15
        %v3714 = vpop.permute.xlu0 %3713
        %3715 = vrot.lane.b32.xlu0 %v932, 15
        %v3716 = vpop.permute.xlu0 %3715
        %3717 = vrot.lane.b32.xlu0 %v933, 15
        %v3718 = vpop.permute.xlu0 %3717
        %3719 = vrot.lane.b32.xlu0 %v934, 15
        %v3720 = vpop.permute.xlu0 %3719
        %3721 = vrot.lane.b32.xlu0 %v935, 15
        %v3722 = vpop.permute.xlu0 %3721
        %3723 = vrot.lane.b32.xlu0 %v936, 15
        %v3724 = vpop.permute.xlu0 %3723
        %3725 = vrot.lane.b32.xlu0 %v937, 15
        %v3726 = vpop.permute.xlu0 %3725
        %3727 = vrot.lane.b32.xlu0 %v938, 15
        %v3728 = vpop.permute.xlu0 %3727
        %3729 = vrot.lane.b32.xlu0 %v939, 15
        %v3730 = vpop.permute.xlu0 %3729
        %3731 = vrot.lane.b32.xlu0 %v940, 15
        %v3732 = vpop.permute.xlu0 %3731
        %3733 = vrot.lane.b32.xlu0 %v941, 15
        %v3734 = vpop.permute.xlu0 %3733
        %3735 = vrot.lane.b32.xlu0 %v942, 15
        %v3736 = vpop.permute.xlu0 %3735
        %3737 = vrot.lane.b32.xlu0 %v943, 15
        %v3738 = vpop.permute.xlu0 %3737
        %3739 = vrot.lane.b32.xlu0 %v944, 15
        %v3740 = vpop.permute.xlu0 %3739
        %3741 = vrot.lane.b32.xlu0 %v945, 15
        %v3742 = vpop.permute.xlu0 %3741
        %3743 = vrot.lane.b32.xlu0 %v946, 15
        %v3744 = vpop.permute.xlu0 %3743
        %3745 = vrot.lane.b32.xlu0 %v947, 15
        %v3746 = vpop.permute.xlu0 %3745
        %3747 = vrot.lane.b32.xlu0 %v948, 15
        %v3748 = vpop.permute.xlu0 %3747
        %3749 = vrot.lane.b32.xlu0 %v949, 15
        %v3750 = vpop.permute.xlu0 %3749
        %3751 = vrot.lane.b32.xlu0 %v950, 15
        %v3752 = vpop.permute.xlu0 %3751
        %3753 = vrot.lane.b32.xlu0 %v951, 15
        %v3754 = vpop.permute.xlu0 %3753
        %3755 = vrot.lane.b32.xlu0 %v952, 15
        %v3756 = vpop.permute.xlu0 %3755
        %3757 = vrot.lane.b32.xlu0 %v953, 15
        %v3758 = vpop.permute.xlu0 %3757
        %3759 = vrot.lane.b32.xlu0 %v954, 15
        %v3760 = vpop.permute.xlu0 %3759
        %3761 = vrot.lane.b32.xlu0 %v955, 15
        %v3762 = vpop.permute.xlu0 %3761
        %3763 = vrot.lane.b32.xlu0 %v956, 15
        %v3764 = vpop.permute.xlu0 %3763
        %3765 = vrot.lane.b32.xlu0 %v957, 15
        %v3766 = vpop.permute.xlu0 %3765
        %3767 = vrot.lane.b32.xlu0 %v958, 15
        %v3768 = vpop.permute.xlu0 %3767
        %3769 = vrot.lane.b32.xlu0 %v959, 15
        %v3770 = vpop.permute.xlu0 %3769
        %3771 = vrot.lane.b32.xlu0 %v960, 15
        %v3772 = vpop.permute.xlu0 %3771
        %3773 = vrot.lane.b32.xlu0 %v961, 15
        %v3774 = vpop.permute.xlu0 %3773
        %3775 = vrot.lane.b32.xlu0 %v962, 15
        %v3776 = vpop.permute.xlu0 %3775
        %3777 = vrot.lane.b32.xlu0 %v963, 15
        %v3778 = vpop.permute.xlu0 %3777
        %3779 = vrot.lane.b32.xlu0 %v964, 15
        %v3780 = vpop.permute.xlu0 %3779
        %3781 = vrot.lane.b32.xlu0 %v965, 15
        %v3782 = vpop.permute.xlu0 %3781
        %4039 = vrot.lane.b32.xlu0 %v967, 18
        %v4040 = vpop.permute.xlu0 %4039
        %4041 = vrot.lane.b32.xlu0 %v968, 18
        %v4042 = vpop.permute.xlu0 %4041
        %4043 = vrot.lane.b32.xlu0 %v969, 18
        %v4044 = vpop.permute.xlu0 %4043
        %4045 = vrot.lane.b32.xlu0 %v970, 18
        %v4046 = vpop.permute.xlu0 %4045
        %4047 = vrot.lane.b32.xlu0 %v971, 18
        %v4048 = vpop.permute.xlu0 %4047
        %4049 = vrot.lane.b32.xlu0 %v972, 18
        %v4050 = vpop.permute.xlu0 %4049
        %4051 = vrot.lane.b32.xlu0 %v973, 18
        %v4052 = vpop.permute.xlu0 %4051
        %4053 = vrot.lane.b32.xlu0 %v974, 18
        %v4054 = vpop.permute.xlu0 %4053
        %4055 = vrot.lane.b32.xlu0 %v975, 18
        %v4056 = vpop.permute.xlu0 %4055
        %4057 = vrot.lane.b32.xlu0 %v976, 18
        %v4058 = vpop.permute.xlu0 %4057
        %4059 = vrot.lane.b32.xlu0 %v977, 18
        %v4060 = vpop.permute.xlu0 %4059
        %4061 = vrot.lane.b32.xlu0 %v978, 18
        %v4062 = vpop.permute.xlu0 %4061
        %4063 = vrot.lane.b32.xlu0 %v979, 18
        %v4064 = vpop.permute.xlu0 %4063
        %4065 = vrot.lane.b32.xlu0 %v980, 18
        %v4066 = vpop.permute.xlu0 %4065
        %4067 = vrot.lane.b32.xlu0 %v981, 18
        %v4068 = vpop.permute.xlu0 %4067
        %4069 = vrot.lane.b32.xlu0 %v982, 18
        %v4070 = vpop.permute.xlu0 %4069
        %4071 = vrot.lane.b32.xlu0 %v983, 18
        %v4072 = vpop.permute.xlu0 %4071
        %4073 = vrot.lane.b32.xlu0 %v984, 18
        %v4074 = vpop.permute.xlu0 %4073
        %4075 = vrot.lane.b32.xlu0 %v985, 18
        %v4076 = vpop.permute.xlu0 %4075
        %4077 = vrot.lane.b32.xlu0 %v986, 18
        %v4078 = vpop.permute.xlu0 %4077
        %4079 = vrot.lane.b32.xlu0 %v987, 18
        %v4080 = vpop.permute.xlu0 %4079
        %4081 = vrot.lane.b32.xlu0 %v988, 18
        %v4082 = vpop.permute.xlu0 %4081
        %4083 = vrot.lane.b32.xlu0 %v989, 18
        %v4084 = vpop.permute.xlu0 %4083
        %4085 = vrot.lane.b32.xlu0 %v990, 18
        %v4086 = vpop.permute.xlu0 %4085
        %4087 = vrot.lane.b32.xlu0 %v991, 18
        %v4088 = vpop.permute.xlu0 %4087
        %4089 = vrot.lane.b32.xlu0 %v992, 18
        %v4090 = vpop.permute.xlu0 %4089
        %4091 = vrot.lane.b32.xlu0 %v993, 18
        %v4092 = vpop.permute.xlu0 %4091
        %4093 = vrot.lane.b32.xlu0 %v994, 18
        %v4094 = vpop.permute.xlu0 %4093
        %4095 = vrot.lane.b32.xlu0 %v995, 18
        %v4096 = vpop.permute.xlu0 %4095
        %4097 = vrot.lane.b32.xlu0 %v996, 18
        %v4098 = vpop.permute.xlu0 %4097
        %4099 = vrot.lane.b32.xlu0 %v997, 18
        %v4100 = vpop.permute.xlu0 %4099
        %4101 = vrot.lane.b32.xlu0 %v998, 18
        %v4102 = vpop.permute.xlu0 %4101
        %4103 = vrot.lane.b32.xlu0 %v999, 18
        %v4104 = vpop.permute.xlu0 %4103
        %4105 = vrot.lane.b32.xlu0 %v1000, 18
        %v4106 = vpop.permute.xlu0 %4105
        %4107 = vrot.lane.b32.xlu0 %v1001, 18
        %v4108 = vpop.permute.xlu0 %4107
        %4109 = vrot.lane.b32.xlu0 %v1002, 18
        %v4110 = vpop.permute.xlu0 %4109
        %4111 = vrot.lane.b32.xlu0 %v1003, 18
        %v4112 = vpop.permute.xlu0 %4111
        %4113 = vrot.lane.b32.xlu0 %v1004, 18
        %v4114 = vpop.permute.xlu0 %4113
        %4115 = vrot.lane.b32.xlu0 %v1005, 18
        %v4116 = vpop.permute.xlu0 %4115
        %4117 = vrot.lane.b32.xlu0 %v1006, 18
        %v4118 = vpop.permute.xlu0 %4117
        %4119 = vrot.lane.b32.xlu0 %v1007, 18
        %v4120 = vpop.permute.xlu0 %4119
        %4121 = vrot.lane.b32.xlu0 %v1008, 18
        %v4122 = vpop.permute.xlu0 %4121
        %4123 = vrot.lane.b32.xlu0 %v1009, 18
        %v4124 = vpop.permute.xlu0 %4123
        %4125 = vrot.lane.b32.xlu0 %v1010, 18
        %v4126 = vpop.permute.xlu0 %4125
        %4127 = vrot.lane.b32.xlu0 %v1011, 18
        %v4128 = vpop.permute.xlu0 %4127
        %4129 = vrot.lane.b32.xlu0 %v1012, 18
        %v4130 = vpop.permute.xlu0 %4129
        %4131 = vrot.lane.b32.xlu0 %v1013, 18
        %v4132 = vpop.permute.xlu0 %4131
        %4133 = vrot.lane.b32.xlu0 %v1014, 18
        %v4134 = vpop.permute.xlu0 %4133
        %4135 = vrot.lane.b32.xlu0 %v1015, 18
        %v4136 = vpop.permute.xlu0 %4135
        %4137 = vrot.lane.b32.xlu0 %v1016, 18
        %v4138 = vpop.permute.xlu0 %4137
        %4139 = vrot.lane.b32.xlu0 %v1017, 18
        %v4140 = vpop.permute.xlu0 %4139
        %4141 = vrot.lane.b32.xlu0 %v1018, 18
        %v4142 = vpop.permute.xlu0 %4141
        %4143 = vrot.lane.b32.xlu0 %v1019, 18
        %v4144 = vpop.permute.xlu0 %4143
        %4145 = vrot.lane.b32.xlu0 %v1020, 18
        %v4146 = vpop.permute.xlu0 %4145
        %4147 = vrot.lane.b32.xlu0 %v1021, 18
        %v4148 = vpop.permute.xlu0 %4147
        %4149 = vrot.lane.b32.xlu0 %v1022, 18
        %v4150 = vpop.permute.xlu0 %4149
        %4151 = vrot.lane.b32.xlu0 %v1023, 18
        %v4152 = vpop.permute.xlu0 %4151
        %4153 = vrot.lane.b32.xlu0 %v1024, 18
        %v4154 = vpop.permute.xlu0 %4153
        %4155 = vrot.lane.b32.xlu0 %v1025, 18
        %v4156 = vpop.permute.xlu0 %4155
        %4157 = vrot.lane.b32.xlu0 %v1026, 18
        %v4158 = vpop.permute.xlu0 %4157
        %4159 = vrot.lane.b32.xlu0 %v1027, 18
        %v4160 = vpop.permute.xlu0 %4159
        %4161 = vrot.lane.b32.xlu0 %v1028, 18
        %v4162 = vpop.permute.xlu0 %4161
        %4163 = vrot.lane.b32.xlu0 %v1029, 18
        %v4164 = vpop.permute.xlu0 %4163
        %4165 = vrot.lane.b32.xlu0 %v1030, 18
        %v4166 = vpop.permute.xlu0 %4165
        %4167 = vrot.lane.b32.xlu0 %v1031, 18
        %v4168 = vpop.permute.xlu0 %4167
        %4169 = vrot.lane.b32.xlu0 %v1032, 18
        %v4170 = vpop.permute.xlu0 %4169
        %4171 = vrot.lane.b32.xlu0 %v1033, 18
        %v4172 = vpop.permute.xlu0 %4171
        %4173 = vrot.lane.b32.xlu0 %v1034, 18
        %v4174 = vpop.permute.xlu0 %4173
        %4175 = vrot.lane.b32.xlu0 %v1035, 18
        %v4176 = vpop.permute.xlu0 %4175
        %4177 = vrot.lane.b32.xlu0 %v1036, 18
        %v4178 = vpop.permute.xlu0 %4177
        %4179 = vrot.lane.b32.xlu0 %v1037, 18
        %v4180 = vpop.permute.xlu0 %4179
        %4181 = vrot.lane.b32.xlu0 %v1038, 18
        %v4182 = vpop.permute.xlu0 %4181
        %4183 = vrot.lane.b32.xlu0 %v1039, 18
        %v4184 = vpop.permute.xlu0 %4183
        %4185 = vrot.lane.b32.xlu0 %v1040, 18
        %v4186 = vpop.permute.xlu0 %4185
        %4187 = vrot.lane.b32.xlu0 %v1041, 18
        %v4188 = vpop.permute.xlu0 %4187
        %4189 = vrot.lane.b32.xlu0 %v1042, 18
        %v4190 = vpop.permute.xlu0 %4189
        %4191 = vrot.lane.b32.xlu0 %v1043, 18
        %v4192 = vpop.permute.xlu0 %4191
        %4193 = vrot.lane.b32.xlu0 %v1044, 18
        %v4194 = vpop.permute.xlu0 %4193
        %4195 = vrot.lane.b32.xlu0 %v1045, 18
        %v4196 = vpop.permute.xlu0 %4195
        %4197 = vrot.lane.b32.xlu0 %v1046, 18
        %v4198 = vpop.permute.xlu0 %4197
        %4199 = vrot.lane.b32.xlu0 %v1047, 18
        %v4200 = vpop.permute.xlu0 %4199
        %4201 = vrot.lane.b32.xlu0 %v1048, 18
        %v4202 = vpop.permute.xlu0 %4201
        %4203 = vrot.lane.b32.xlu0 %v1049, 18
        %v4204 = vpop.permute.xlu0 %4203
        %4205 = vrot.lane.b32.xlu0 %v1050, 18
        %v4206 = vpop.permute.xlu0 %4205
        %4207 = vrot.lane.b32.xlu0 %v1051, 18
        %v4208 = vpop.permute.xlu0 %4207
        %4209 = vrot.lane.b32.xlu0 %v1052, 18
        %v4210 = vpop.permute.xlu0 %4209
        %4211 = vrot.lane.b32.xlu0 %v1053, 18
        %v4212 = vpop.permute.xlu0 %4211
        %4213 = vrot.lane.b32.xlu0 %v1054, 18
        %v4214 = vpop.permute.xlu0 %4213
        %4215 = vrot.lane.b32.xlu0 %v1055, 18
        %v4216 = vpop.permute.xlu0 %4215
        %4217 = vrot.lane.b32.xlu0 %v1056, 18
        %v4218 = vpop.permute.xlu0 %4217
        %4219 = vrot.lane.b32.xlu0 %v1057, 18
        %v4220 = vpop.permute.xlu0 %4219
        %4221 = vrot.lane.b32.xlu0 %v1058, 18
        %v4222 = vpop.permute.xlu0 %4221
        %4223 = vrot.lane.b32.xlu0 %v1059, 18
        %v4224 = vpop.permute.xlu0 %4223
        %4225 = vrot.lane.b32.xlu0 %v1060, 18
        %v4226 = vpop.permute.xlu0 %4225
        %4227 = vrot.lane.b32.xlu0 %v1061, 18
        %v4228 = vpop.permute.xlu0 %4227
        %4229 = vrot.lane.b32.xlu0 %v1062, 18
        %v4230 = vpop.permute.xlu0 %4229
        %4231 = vrot.lane.b32.xlu0 %v1063, 18
        %v4232 = vpop.permute.xlu0 %4231
        %4233 = vrot.lane.b32.xlu0 %v1064, 18
        %v4234 = vpop.permute.xlu0 %4233
        %4235 = vrot.lane.b32.xlu0 %v1065, 18
        %v4236 = vpop.permute.xlu0 %4235
        %4237 = vrot.lane.b32.xlu0 %v1066, 18
        %v4238 = vpop.permute.xlu0 %4237
        %4239 = vrot.lane.b32.xlu0 %v1067, 18
        %v4240 = vpop.permute.xlu0 %4239
        %4241 = vrot.lane.b32.xlu0 %v1068, 18
        %v4242 = vpop.permute.xlu0 %4241
        %4243 = vrot.lane.b32.xlu0 %v1069, 18
        %v4244 = vpop.permute.xlu0 %4243
        %4245 = vrot.lane.b32.xlu0 %v1070, 18
        %v4246 = vpop.permute.xlu0 %4245
        %4247 = vrot.lane.b32.xlu0 %v1071, 18
        %v4248 = vpop.permute.xlu0 %4247
        %4249 = vrot.lane.b32.xlu0 %v1072, 18
        %v4250 = vpop.permute.xlu0 %4249
        %4251 = vrot.lane.b32.xlu0 %v1073, 18
        %v4252 = vpop.permute.xlu0 %4251
        %4253 = vrot.lane.b32.xlu0 %v1074, 18
        %v4254 = vpop.permute.xlu0 %4253
        %4255 = vrot.lane.b32.xlu0 %v1075, 18
        %v4256 = vpop.permute.xlu0 %4255
        %4257 = vrot.lane.b32.xlu0 %v1076, 18
        %v4258 = vpop.permute.xlu0 %4257
        %4259 = vrot.lane.b32.xlu0 %v1077, 18
        %v4260 = vpop.permute.xlu0 %4259
        %4261 = vrot.lane.b32.xlu0 %v1078, 18
        %v4262 = vpop.permute.xlu0 %4261
        %4263 = vrot.lane.b32.xlu0 %v1079, 18
        %v4264 = vpop.permute.xlu0 %4263
        %4265 = vrot.lane.b32.xlu0 %v1080, 18
        %v4266 = vpop.permute.xlu0 %4265
        %4267 = vrot.lane.b32.xlu0 %v1081, 18
        %v4268 = vpop.permute.xlu0 %4267
        %4269 = vrot.lane.b32.xlu0 %v1082, 18
        %v4270 = vpop.permute.xlu0 %4269
        %4271 = vrot.lane.b32.xlu0 %v1083, 18
        %v4272 = vpop.permute.xlu0 %4271
        %4273 = vrot.lane.b32.xlu0 %v1084, 18
        %v4274 = vpop.permute.xlu0 %4273
        %4275 = vrot.lane.b32.xlu0 %v1085, 18
        %v4276 = vpop.permute.xlu0 %4275
        %4277 = vrot.lane.b32.xlu0 %v1086, 18
        %v4278 = vpop.permute.xlu0 %4277
        %4279 = vrot.lane.b32.xlu0 %v1087, 18
        %v4280 = vpop.permute.xlu0 %4279
        %4281 = vrot.lane.b32.xlu0 %v1088, 18
        %v4282 = vpop.permute.xlu0 %4281
        %4283 = vrot.lane.b32.xlu0 %v1089, 18
        %v4284 = vpop.permute.xlu0 %4283
        %4285 = vrot.lane.b32.xlu0 %v1090, 18
        %v4286 = vpop.permute.xlu0 %4285
        %4287 = vrot.lane.b32.xlu0 %v1091, 18
        %v4288 = vpop.permute.xlu0 %4287
        %4289 = vrot.lane.b32.xlu0 %v1092, 18
        %v4290 = vpop.permute.xlu0 %4289
        %4291 = vrot.lane.b32.xlu0 %v1093, 18
        %v4292 = vpop.permute.xlu0 %4291
        %4293 = vrot.lane.b32.xlu0 %v1094, 18
        %v4294 = vpop.permute.xlu0 %4293
        %4551 = vrot.lane.b32.xlu0 %v1095, 21
        %v4552 = vpop.permute.xlu0 %4551
        %4553 = vrot.lane.b32.xlu0 %v1096, 21
        %v4554 = vpop.permute.xlu0 %4553
        %4555 = vrot.lane.b32.xlu0 %v1097, 21
        %v4556 = vpop.permute.xlu0 %4555
        %4557 = vrot.lane.b32.xlu0 %v1098, 21
        %v4558 = vpop.permute.xlu0 %4557
        %4559 = vrot.lane.b32.xlu0 %v1099, 21
        %v4560 = vpop.permute.xlu0 %4559
        %4561 = vrot.lane.b32.xlu0 %v1100, 21
        %v4562 = vpop.permute.xlu0 %4561
        %4563 = vrot.lane.b32.xlu0 %v1101, 21
        %v4564 = vpop.permute.xlu0 %4563
        %4565 = vrot.lane.b32.xlu0 %v1102, 21
        %v4566 = vpop.permute.xlu0 %4565
        %4567 = vrot.lane.b32.xlu0 %v1103, 21
        %v4568 = vpop.permute.xlu0 %4567
        %4569 = vrot.lane.b32.xlu0 %v1104, 21
        %v4570 = vpop.permute.xlu0 %4569
        %4571 = vrot.lane.b32.xlu0 %v1105, 21
        %v4572 = vpop.permute.xlu0 %4571
        %4573 = vrot.lane.b32.xlu0 %v1106, 21
        %v4574 = vpop.permute.xlu0 %4573
        %4575 = vrot.lane.b32.xlu0 %v1107, 21
        %v4576 = vpop.permute.xlu0 %4575
        %4577 = vrot.lane.b32.xlu0 %v1108, 21
        %v4578 = vpop.permute.xlu0 %4577
        %4579 = vrot.lane.b32.xlu0 %v1109, 21
        %v4580 = vpop.permute.xlu0 %4579
        %4581 = vrot.lane.b32.xlu0 %v1110, 21
        %v4582 = vpop.permute.xlu0 %4581
        %4583 = vrot.lane.b32.xlu0 %v1111, 21
        %v4584 = vpop.permute.xlu0 %4583
        %4585 = vrot.lane.b32.xlu0 %v1112, 21
        %v4586 = vpop.permute.xlu0 %4585
        %4587 = vrot.lane.b32.xlu0 %v1113, 21
        %v4588 = vpop.permute.xlu0 %4587
        %4589 = vrot.lane.b32.xlu0 %v1114, 21
        %v4590 = vpop.permute.xlu0 %4589
        %4591 = vrot.lane.b32.xlu0 %v1115, 21
        %v4592 = vpop.permute.xlu0 %4591
        %4593 = vrot.lane.b32.xlu0 %v1116, 21
        %v4594 = vpop.permute.xlu0 %4593
        %4595 = vrot.lane.b32.xlu0 %v1117, 21
        %v4596 = vpop.permute.xlu0 %4595
        %4597 = vrot.lane.b32.xlu0 %v1118, 21
        %v4598 = vpop.permute.xlu0 %4597
        %4599 = vrot.lane.b32.xlu0 %v1119, 21
        %v4600 = vpop.permute.xlu0 %4599
        %4601 = vrot.lane.b32.xlu0 %v1120, 21
        %v4602 = vpop.permute.xlu0 %4601
        %4603 = vrot.lane.b32.xlu0 %v1121, 21
        %v4604 = vpop.permute.xlu0 %4603
        %4605 = vrot.lane.b32.xlu0 %v1122, 21
        %v4606 = vpop.permute.xlu0 %4605
        %4607 = vrot.lane.b32.xlu0 %v1123, 21
        %v4608 = vpop.permute.xlu0 %4607
        %4609 = vrot.lane.b32.xlu0 %v1124, 21
        %v4610 = vpop.permute.xlu0 %4609
        %4611 = vrot.lane.b32.xlu0 %v1125, 21
        %v4612 = vpop.permute.xlu0 %4611
        %4613 = vrot.lane.b32.xlu0 %v1126, 21
        %v4614 = vpop.permute.xlu0 %4613
        %4615 = vrot.lane.b32.xlu0 %v1127, 21
        %v4616 = vpop.permute.xlu0 %4615
        %4617 = vrot.lane.b32.xlu0 %v1128, 21
        %v4618 = vpop.permute.xlu0 %4617
        %4619 = vrot.lane.b32.xlu0 %v1129, 21
        %v4620 = vpop.permute.xlu0 %4619
        %4621 = vrot.lane.b32.xlu0 %v1130, 21
        %v4622 = vpop.permute.xlu0 %4621
        %4623 = vrot.lane.b32.xlu0 %v1131, 21
        %v4624 = vpop.permute.xlu0 %4623
        %4625 = vrot.lane.b32.xlu0 %v1132, 21
        %v4626 = vpop.permute.xlu0 %4625
        %4627 = vrot.lane.b32.xlu0 %v1133, 21
        %v4628 = vpop.permute.xlu0 %4627
        %4629 = vrot.lane.b32.xlu0 %v1134, 21
        %v4630 = vpop.permute.xlu0 %4629
        %4631 = vrot.lane.b32.xlu0 %v1135, 21
        %v4632 = vpop.permute.xlu0 %4631
        %4633 = vrot.lane.b32.xlu0 %v1136, 21
        %v4634 = vpop.permute.xlu0 %4633
        %4635 = vrot.lane.b32.xlu0 %v1137, 21
        %v4636 = vpop.permute.xlu0 %4635
        %4637 = vrot.lane.b32.xlu0 %v1138, 21
        %v4638 = vpop.permute.xlu0 %4637
        %4639 = vrot.lane.b32.xlu0 %v1139, 21
        %v4640 = vpop.permute.xlu0 %4639
        %4641 = vrot.lane.b32.xlu0 %v1140, 21
        %v4642 = vpop.permute.xlu0 %4641
        %4643 = vrot.lane.b32.xlu0 %v1141, 21
        %v4644 = vpop.permute.xlu0 %4643
        %4645 = vrot.lane.b32.xlu0 %v1142, 21
        %v4646 = vpop.permute.xlu0 %4645
        %4647 = vrot.lane.b32.xlu0 %v1143, 21
        %v4648 = vpop.permute.xlu0 %4647
        %4649 = vrot.lane.b32.xlu0 %v1144, 21
        %v4650 = vpop.permute.xlu0 %4649
        %4651 = vrot.lane.b32.xlu0 %v1145, 21
        %v4652 = vpop.permute.xlu0 %4651
        %4653 = vrot.lane.b32.xlu0 %v1146, 21
        %v4654 = vpop.permute.xlu0 %4653
        %4655 = vrot.lane.b32.xlu0 %v1147, 21
        %v4656 = vpop.permute.xlu0 %4655
        %4657 = vrot.lane.b32.xlu0 %v1148, 21
        %v4658 = vpop.permute.xlu0 %4657
        %4659 = vrot.lane.b32.xlu0 %v1149, 21
        %v4660 = vpop.permute.xlu0 %4659
        %4661 = vrot.lane.b32.xlu0 %v1150, 21
        %v4662 = vpop.permute.xlu0 %4661
        %4663 = vrot.lane.b32.xlu0 %v1151, 21
        %v4664 = vpop.permute.xlu0 %4663
        %4665 = vrot.lane.b32.xlu0 %v1152, 21
        %v4666 = vpop.permute.xlu0 %4665
        %4667 = vrot.lane.b32.xlu0 %v1153, 21
        %v4668 = vpop.permute.xlu0 %4667
        %4669 = vrot.lane.b32.xlu0 %v1154, 21
        %v4670 = vpop.permute.xlu0 %4669
        %4671 = vrot.lane.b32.xlu0 %v1155, 21
        %v4672 = vpop.permute.xlu0 %4671
        %4673 = vrot.lane.b32.xlu0 %v1156, 21
        %v4674 = vpop.permute.xlu0 %4673
        %4675 = vrot.lane.b32.xlu0 %v1157, 21
        %v4676 = vpop.permute.xlu0 %4675
        %4677 = vrot.lane.b32.xlu0 %v1158, 21
        %v4678 = vpop.permute.xlu0 %4677
        %4679 = vrot.lane.b32.xlu0 %v1159, 21
        %v4680 = vpop.permute.xlu0 %4679
        %4681 = vrot.lane.b32.xlu0 %v1160, 21
        %v4682 = vpop.permute.xlu0 %4681
        %4683 = vrot.lane.b32.xlu0 %v1161, 21
        %v4684 = vpop.permute.xlu0 %4683
        %4685 = vrot.lane.b32.xlu0 %v1162, 21
        %v4686 = vpop.permute.xlu0 %4685
        %4687 = vrot.lane.b32.xlu0 %v1163, 21
        %v4688 = vpop.permute.xlu0 %4687
        %4689 = vrot.lane.b32.xlu0 %v1164, 21
        %v4690 = vpop.permute.xlu0 %4689
        %4691 = vrot.lane.b32.xlu0 %v1165, 21
        %v4692 = vpop.permute.xlu0 %4691
        %4693 = vrot.lane.b32.xlu0 %v1166, 21
        %v4694 = vpop.permute.xlu0 %4693
        %4695 = vrot.lane.b32.xlu0 %v1167, 21
        %v4696 = vpop.permute.xlu0 %4695
        %4697 = vrot.lane.b32.xlu0 %v1168, 21
        %v4698 = vpop.permute.xlu0 %4697
        %4699 = vrot.lane.b32.xlu0 %v1169, 21
        %v4700 = vpop.permute.xlu0 %4699
        %4701 = vrot.lane.b32.xlu0 %v1170, 21
        %v4702 = vpop.permute.xlu0 %4701
        %4703 = vrot.lane.b32.xlu0 %v1171, 21
        %v4704 = vpop.permute.xlu0 %4703
        %4705 = vrot.lane.b32.xlu0 %v1172, 21
        %v4706 = vpop.permute.xlu0 %4705
        %4707 = vrot.lane.b32.xlu0 %v1173, 21
        %v4708 = vpop.permute.xlu0 %4707
        %4709 = vrot.lane.b32.xlu0 %v1174, 21
        %v4710 = vpop.permute.xlu0 %4709
        %4711 = vrot.lane.b32.xlu0 %v1175, 21
        %v4712 = vpop.permute.xlu0 %4711
        %4713 = vrot.lane.b32.xlu0 %v1176, 21
        %v4714 = vpop.permute.xlu0 %4713
        %4715 = vrot.lane.b32.xlu0 %v1177, 21
        %v4716 = vpop.permute.xlu0 %4715
        %4717 = vrot.lane.b32.xlu0 %v1178, 21
        %v4718 = vpop.permute.xlu0 %4717
        %4719 = vrot.lane.b32.xlu0 %v1179, 21
        %v4720 = vpop.permute.xlu0 %4719
        %4721 = vrot.lane.b32.xlu0 %v1180, 21
        %v4722 = vpop.permute.xlu0 %4721
        %4723 = vrot.lane.b32.xlu0 %v1181, 21
        %v4724 = vpop.permute.xlu0 %4723
        %4725 = vrot.lane.b32.xlu0 %v1182, 21
        %v4726 = vpop.permute.xlu0 %4725
        %4727 = vrot.lane.b32.xlu0 %v1183, 21
        %v4728 = vpop.permute.xlu0 %4727
        %4729 = vrot.lane.b32.xlu0 %v1184, 21
        %v4730 = vpop.permute.xlu0 %4729
        %4731 = vrot.lane.b32.xlu0 %v1185, 21
        %v4732 = vpop.permute.xlu0 %4731
        %4733 = vrot.lane.b32.xlu0 %v1186, 21
        %v4734 = vpop.permute.xlu0 %4733
        %4735 = vrot.lane.b32.xlu0 %v1187, 21
        %v4736 = vpop.permute.xlu0 %4735
        %4737 = vrot.lane.b32.xlu0 %v1188, 21
        %v4738 = vpop.permute.xlu0 %4737
        %4739 = vrot.lane.b32.xlu0 %v1189, 21
        %v4740 = vpop.permute.xlu0 %4739
        %4741 = vrot.lane.b32.xlu0 %v1190, 21
        %v4742 = vpop.permute.xlu0 %4741
        %4743 = vrot.lane.b32.xlu0 %v1191, 21
        %v4744 = vpop.permute.xlu0 %4743
        %4745 = vrot.lane.b32.xlu0 %v1192, 21
        %v4746 = vpop.permute.xlu0 %4745
        %4747 = vrot.lane.b32.xlu0 %v1193, 21
        %v4748 = vpop.permute.xlu0 %4747
        %4749 = vrot.lane.b32.xlu0 %v1194, 21
        %v4750 = vpop.permute.xlu0 %4749
        %4751 = vrot.lane.b32.xlu0 %v1195, 21
        %v4752 = vpop.permute.xlu0 %4751
        %4753 = vrot.lane.b32.xlu0 %v1196, 21
        %v4754 = vpop.permute.xlu0 %4753
        %4755 = vrot.lane.b32.xlu0 %v1197, 21
        %v4756 = vpop.permute.xlu0 %4755
        %4757 = vrot.lane.b32.xlu0 %v1198, 21
        %v4758 = vpop.permute.xlu0 %4757
        %4759 = vrot.lane.b32.xlu0 %v1199, 21
        %v4760 = vpop.permute.xlu0 %4759
        %4761 = vrot.lane.b32.xlu0 %v1200, 21
        %v4762 = vpop.permute.xlu0 %4761
        %4763 = vrot.lane.b32.xlu0 %v1201, 21
        %v4764 = vpop.permute.xlu0 %4763
        %4765 = vrot.lane.b32.xlu0 %v1202, 21
        %v4766 = vpop.permute.xlu0 %4765
        %4767 = vrot.lane.b32.xlu0 %v1203, 21
        %v4768 = vpop.permute.xlu0 %4767
        %4769 = vrot.lane.b32.xlu0 %v1204, 21
        %v4770 = vpop.permute.xlu0 %4769
        %4771 = vrot.lane.b32.xlu0 %v1205, 21
        %v4772 = vpop.permute.xlu0 %4771
        %4773 = vrot.lane.b32.xlu0 %v1206, 21
        %v4774 = vpop.permute.xlu0 %4773
        %4775 = vrot.lane.b32.xlu0 %v1207, 21
        %v4776 = vpop.permute.xlu0 %4775
        %4777 = vrot.lane.b32.xlu0 %v1208, 21
        %v4778 = vpop.permute.xlu0 %4777
        %4779 = vrot.lane.b32.xlu0 %v1209, 21
        %v4780 = vpop.permute.xlu0 %4779
        %4781 = vrot.lane.b32.xlu0 %v1210, 21
        %v4782 = vpop.permute.xlu0 %4781
        %4783 = vrot.lane.b32.xlu0 %v1211, 21
        %v4784 = vpop.permute.xlu0 %4783
        %4785 = vrot.lane.b32.xlu0 %v1212, 21
        %v4786 = vpop.permute.xlu0 %4785
        %4787 = vrot.lane.b32.xlu0 %v1213, 21
        %v4788 = vpop.permute.xlu0 %4787
        %4789 = vrot.lane.b32.xlu0 %v1214, 21
        %v4790 = vpop.permute.xlu0 %4789
        %4791 = vrot.lane.b32.xlu0 %v1215, 21
        %v4792 = vpop.permute.xlu0 %4791
        %4793 = vrot.lane.b32.xlu0 %v1216, 21
        %v4794 = vpop.permute.xlu0 %4793
        %4795 = vrot.lane.b32.xlu0 %v1217, 21
        %v4796 = vpop.permute.xlu0 %4795
        %4797 = vrot.lane.b32.xlu0 %v1218, 21
        %v4798 = vpop.permute.xlu0 %4797
        %4799 = vrot.lane.b32.xlu0 %v1219, 21
        %v4800 = vpop.permute.xlu0 %4799
        %4801 = vrot.lane.b32.xlu0 %v1220, 21
        %v4802 = vpop.permute.xlu0 %4801
        %4803 = vrot.lane.b32.xlu0 %v1221, 21
        %v4804 = vpop.permute.xlu0 %4803
        %4805 = vrot.lane.b32.xlu0 %v1222, 21
        %v4806 = vpop.permute.xlu0 %4805
        %5063 = vrot.lane.b32.xlu0 %v1223, 24
        %v5064 = vpop.permute.xlu0 %5063
        %5065 = vrot.lane.b32.xlu0 %v1224, 24
        %v5066 = vpop.permute.xlu0 %5065
        %5067 = vrot.lane.b32.xlu0 %v1225, 24
        %v5068 = vpop.permute.xlu0 %5067
        %5069 = vrot.lane.b32.xlu0 %v1226, 24
        %v5070 = vpop.permute.xlu0 %5069
        %5071 = vrot.lane.b32.xlu0 %v1227, 24
        %v5072 = vpop.permute.xlu0 %5071
        %5073 = vrot.lane.b32.xlu0 %v1228, 24
        %v5074 = vpop.permute.xlu0 %5073
        %5075 = vrot.lane.b32.xlu0 %v1229, 24
        %v5076 = vpop.permute.xlu0 %5075
        %5077 = vrot.lane.b32.xlu0 %v1230, 24
        %v5078 = vpop.permute.xlu0 %5077
        %5079 = vrot.lane.b32.xlu0 %v1231, 24
        %v5080 = vpop.permute.xlu0 %5079
        %5081 = vrot.lane.b32.xlu0 %v1232, 24
        %v5082 = vpop.permute.xlu0 %5081
        %5083 = vrot.lane.b32.xlu0 %v1233, 24
        %v5084 = vpop.permute.xlu0 %5083
        %5085 = vrot.lane.b32.xlu0 %v1234, 24
        %v5086 = vpop.permute.xlu0 %5085
        %5087 = vrot.lane.b32.xlu0 %v1235, 24
        %v5088 = vpop.permute.xlu0 %5087
        %5089 = vrot.lane.b32.xlu0 %v1236, 24
        %v5090 = vpop.permute.xlu0 %5089
        %5091 = vrot.lane.b32.xlu0 %v1237, 24
        %v5092 = vpop.permute.xlu0 %5091
        %5093 = vrot.lane.b32.xlu0 %v1238, 24
        %v5094 = vpop.permute.xlu0 %5093
        %5095 = vrot.lane.b32.xlu0 %v1239, 24
        %v5096 = vpop.permute.xlu0 %5095
        %5097 = vrot.lane.b32.xlu0 %v1240, 24
        %v5098 = vpop.permute.xlu0 %5097
        %5099 = vrot.lane.b32.xlu0 %v1241, 24
        %v5100 = vpop.permute.xlu0 %5099
        %5101 = vrot.lane.b32.xlu0 %v1242, 24
        %v5102 = vpop.permute.xlu0 %5101
        %5103 = vrot.lane.b32.xlu0 %v1243, 24
        %v5104 = vpop.permute.xlu0 %5103
        %5105 = vrot.lane.b32.xlu0 %v1244, 24
        %v5106 = vpop.permute.xlu0 %5105
        %5107 = vrot.lane.b32.xlu0 %v1245, 24
        %v5108 = vpop.permute.xlu0 %5107
        %5109 = vrot.lane.b32.xlu0 %v1246, 24
        %v5110 = vpop.permute.xlu0 %5109
        %5111 = vrot.lane.b32.xlu0 %v1247, 24
        %v5112 = vpop.permute.xlu0 %5111
        %5113 = vrot.lane.b32.xlu0 %v1248, 24
        %v5114 = vpop.permute.xlu0 %5113
        %5115 = vrot.lane.b32.xlu0 %v1249, 24
        %v5116 = vpop.permute.xlu0 %5115
        %5117 = vrot.lane.b32.xlu0 %v1250, 24
        %v5118 = vpop.permute.xlu0 %5117
        %5119 = vrot.lane.b32.xlu0 %v1251, 24
        %v5120 = vpop.permute.xlu0 %5119
        %5121 = vrot.lane.b32.xlu0 %v1252, 24
        %v5122 = vpop.permute.xlu0 %5121
        %5123 = vrot.lane.b32.xlu0 %v1253, 24
        %v5124 = vpop.permute.xlu0 %5123
        %5125 = vrot.lane.b32.xlu0 %v1254, 24
        %v5126 = vpop.permute.xlu0 %5125
        %5127 = vrot.lane.b32.xlu0 %v1255, 24
        %v5128 = vpop.permute.xlu0 %5127
        %5129 = vrot.lane.b32.xlu0 %v1256, 24
        %v5130 = vpop.permute.xlu0 %5129
        %5131 = vrot.lane.b32.xlu0 %v1257, 24
        %v5132 = vpop.permute.xlu0 %5131
        %5133 = vrot.lane.b32.xlu0 %v1258, 24
        %v5134 = vpop.permute.xlu0 %5133
        %5135 = vrot.lane.b32.xlu0 %v1259, 24
        %v5136 = vpop.permute.xlu0 %5135
        %5137 = vrot.lane.b32.xlu0 %v1260, 24
        %v5138 = vpop.permute.xlu0 %5137
        %5139 = vrot.lane.b32.xlu0 %v1261, 24
        %v5140 = vpop.permute.xlu0 %5139
        %5141 = vrot.lane.b32.xlu0 %v1262, 24
        %v5142 = vpop.permute.xlu0 %5141
        %5143 = vrot.lane.b32.xlu0 %v1263, 24
        %v5144 = vpop.permute.xlu0 %5143
        %5145 = vrot.lane.b32.xlu0 %v1264, 24
        %v5146 = vpop.permute.xlu0 %5145
        %5147 = vrot.lane.b32.xlu0 %v1265, 24
        %v5148 = vpop.permute.xlu0 %5147
        %5149 = vrot.lane.b32.xlu0 %v1266, 24
        %v5150 = vpop.permute.xlu0 %5149
        %5151 = vrot.lane.b32.xlu0 %v1267, 24
        %v5152 = vpop.permute.xlu0 %5151
        %5153 = vrot.lane.b32.xlu0 %v1268, 24
        %v5154 = vpop.permute.xlu0 %5153
        %5155 = vrot.lane.b32.xlu0 %v1269, 24
        %v5156 = vpop.permute.xlu0 %5155
        %5157 = vrot.lane.b32.xlu0 %v1270, 24
        %v5158 = vpop.permute.xlu0 %5157
        %5159 = vrot.lane.b32.xlu0 %v1271, 24
        %v5160 = vpop.permute.xlu0 %5159
        %5161 = vrot.lane.b32.xlu0 %v1272, 24
        %v5162 = vpop.permute.xlu0 %5161
        %5163 = vrot.lane.b32.xlu0 %v1273, 24
        %v5164 = vpop.permute.xlu0 %5163
        %5165 = vrot.lane.b32.xlu0 %v1274, 24
        %v5166 = vpop.permute.xlu0 %5165
        %5167 = vrot.lane.b32.xlu0 %v1275, 24
        %v5168 = vpop.permute.xlu0 %5167
        %5169 = vrot.lane.b32.xlu0 %v1276, 24
        %v5170 = vpop.permute.xlu0 %5169
        %5171 = vrot.lane.b32.xlu0 %v1277, 24
        %v5172 = vpop.permute.xlu0 %5171
        %5173 = vrot.lane.b32.xlu0 %v1278, 24
        %v5174 = vpop.permute.xlu0 %5173
        %5175 = vrot.lane.b32.xlu0 %v1279, 24
        %v5176 = vpop.permute.xlu0 %5175
        %5177 = vrot.lane.b32.xlu0 %v1280, 24
        %v5178 = vpop.permute.xlu0 %5177
        %5179 = vrot.lane.b32.xlu0 %v1281, 24
        %v5180 = vpop.permute.xlu0 %5179
        %5181 = vrot.lane.b32.xlu0 %v1282, 24
        %v5182 = vpop.permute.xlu0 %5181
        %5183 = vrot.lane.b32.xlu0 %v1283, 24
        %v5184 = vpop.permute.xlu0 %5183
        %5185 = vrot.lane.b32.xlu0 %v1284, 24
        %v5186 = vpop.permute.xlu0 %5185
        %5187 = vrot.lane.b32.xlu0 %v1285, 24
        %v5188 = vpop.permute.xlu0 %5187
        %5189 = vrot.lane.b32.xlu0 %v1286, 24
        %v5190 = vpop.permute.xlu0 %5189
        %5191 = vrot.lane.b32.xlu0 %v1287, 24
        %v5192 = vpop.permute.xlu0 %5191
        %5193 = vrot.lane.b32.xlu0 %v1288, 24
        %v5194 = vpop.permute.xlu0 %5193
        %5195 = vrot.lane.b32.xlu0 %v1289, 24
        %v5196 = vpop.permute.xlu0 %5195
        %5197 = vrot.lane.b32.xlu0 %v1290, 24
        %v5198 = vpop.permute.xlu0 %5197
        %5199 = vrot.lane.b32.xlu0 %v1291, 24
        %v5200 = vpop.permute.xlu0 %5199
        %5201 = vrot.lane.b32.xlu0 %v1292, 24
        %v5202 = vpop.permute.xlu0 %5201
        %5203 = vrot.lane.b32.xlu0 %v1293, 24
        %v5204 = vpop.permute.xlu0 %5203
        %5205 = vrot.lane.b32.xlu0 %v1294, 24
        %v5206 = vpop.permute.xlu0 %5205
        %5207 = vrot.lane.b32.xlu0 %v1295, 24
        %v5208 = vpop.permute.xlu0 %5207
        %5209 = vrot.lane.b32.xlu0 %v1296, 24
        %v5210 = vpop.permute.xlu0 %5209
        %5211 = vrot.lane.b32.xlu0 %v1297, 24
        %v5212 = vpop.permute.xlu0 %5211
        %5213 = vrot.lane.b32.xlu0 %v1298, 24
        %v5214 = vpop.permute.xlu0 %5213
        %5215 = vrot.lane.b32.xlu0 %v1299, 24
        %v5216 = vpop.permute.xlu0 %5215
        %5217 = vrot.lane.b32.xlu0 %v1300, 24
        %v5218 = vpop.permute.xlu0 %5217
        %5219 = vrot.lane.b32.xlu0 %v1301, 24
        %v5220 = vpop.permute.xlu0 %5219
        %5221 = vrot.lane.b32.xlu0 %v1302, 24
        %v5222 = vpop.permute.xlu0 %5221
        %5223 = vrot.lane.b32.xlu0 %v1303, 24
        %v5224 = vpop.permute.xlu0 %5223
        %5225 = vrot.lane.b32.xlu0 %v1304, 24
        %v5226 = vpop.permute.xlu0 %5225
        %5227 = vrot.lane.b32.xlu0 %v1305, 24
        %v5228 = vpop.permute.xlu0 %5227
        %5229 = vrot.lane.b32.xlu0 %v1306, 24
        %v5230 = vpop.permute.xlu0 %5229
        %5231 = vrot.lane.b32.xlu0 %v1307, 24
        %v5232 = vpop.permute.xlu0 %5231
        %5233 = vrot.lane.b32.xlu0 %v1308, 24
        %v5234 = vpop.permute.xlu0 %5233
        %5235 = vrot.lane.b32.xlu0 %v1309, 24
        %v5236 = vpop.permute.xlu0 %5235
        %5237 = vrot.lane.b32.xlu0 %v1310, 24
        %v5238 = vpop.permute.xlu0 %5237
        %5239 = vrot.lane.b32.xlu0 %v1311, 24
        %v5240 = vpop.permute.xlu0 %5239
        %5241 = vrot.lane.b32.xlu0 %v1312, 24
        %v5242 = vpop.permute.xlu0 %5241
        %5243 = vrot.lane.b32.xlu0 %v1313, 24
        %v5244 = vpop.permute.xlu0 %5243
        %5245 = vrot.lane.b32.xlu0 %v1314, 24
        %v5246 = vpop.permute.xlu0 %5245
        %5247 = vrot.lane.b32.xlu0 %v1315, 24
        %v5248 = vpop.permute.xlu0 %5247
        %5249 = vrot.lane.b32.xlu0 %v1316, 24
        %v5250 = vpop.permute.xlu0 %5249
        %5251 = vrot.lane.b32.xlu0 %v1317, 24
        %v5252 = vpop.permute.xlu0 %5251
        %5253 = vrot.lane.b32.xlu0 %v1318, 24
        %v5254 = vpop.permute.xlu0 %5253
        %5255 = vrot.lane.b32.xlu0 %v1319, 24
        %v5256 = vpop.permute.xlu0 %5255
        %5257 = vrot.lane.b32.xlu0 %v1320, 24
        %v5258 = vpop.permute.xlu0 %5257
        %5259 = vrot.lane.b32.xlu0 %v1321, 24
        %v5260 = vpop.permute.xlu0 %5259
        %5261 = vrot.lane.b32.xlu0 %v1322, 24
        %v5262 = vpop.permute.xlu0 %5261
        %5263 = vrot.lane.b32.xlu0 %v1323, 24
        %v5264 = vpop.permute.xlu0 %5263
        %5265 = vrot.lane.b32.xlu0 %v1324, 24
        %v5266 = vpop.permute.xlu0 %5265
        %5267 = vrot.lane.b32.xlu0 %v1325, 24
        %v5268 = vpop.permute.xlu0 %5267
        %5269 = vrot.lane.b32.xlu0 %v1326, 24
        %v5270 = vpop.permute.xlu0 %5269
        %5271 = vrot.lane.b32.xlu0 %v1327, 24
        %v5272 = vpop.permute.xlu0 %5271
        %5273 = vrot.lane.b32.xlu0 %v1328, 24
        %v5274 = vpop.permute.xlu0 %5273
        %5275 = vrot.lane.b32.xlu0 %v1329, 24
        %v5276 = vpop.permute.xlu0 %5275
        %5277 = vrot.lane.b32.xlu0 %v1330, 24
        %v5278 = vpop.permute.xlu0 %5277
        %5279 = vrot.lane.b32.xlu0 %v1331, 24
        %v5280 = vpop.permute.xlu0 %5279
        %5281 = vrot.lane.b32.xlu0 %v1332, 24
        %v5282 = vpop.permute.xlu0 %5281
        %5283 = vrot.lane.b32.xlu0 %v1333, 24
        %v5284 = vpop.permute.xlu0 %5283
        %5285 = vrot.lane.b32.xlu0 %v1334, 24
        %v5286 = vpop.permute.xlu0 %5285
        %5287 = vrot.lane.b32.xlu0 %v1335, 24
        %v5288 = vpop.permute.xlu0 %5287
        %5289 = vrot.lane.b32.xlu0 %v1336, 24
        %v5290 = vpop.permute.xlu0 %5289
        %5291 = vrot.lane.b32.xlu0 %v1337, 24
        %v5292 = vpop.permute.xlu0 %5291
        %5293 = vrot.lane.b32.xlu0 %v1338, 24
        %v5294 = vpop.permute.xlu0 %5293
        %5295 = vrot.lane.b32.xlu0 %v1339, 24
        %v5296 = vpop.permute.xlu0 %5295
        %5297 = vrot.lane.b32.xlu0 %v1340, 24
        %v5298 = vpop.permute.xlu0 %5297
        %5299 = vrot.lane.b32.xlu0 %v1341, 24
        %v5300 = vpop.permute.xlu0 %5299
        %5301 = vrot.lane.b32.xlu0 %v1342, 24
        %v5302 = vpop.permute.xlu0 %5301
        %5303 = vrot.lane.b32.xlu0 %v1343, 24
        %v5304 = vpop.permute.xlu0 %5303
        %5305 = vrot.lane.b32.xlu0 %v1344, 24
        %v5306 = vpop.permute.xlu0 %5305
        %5307 = vrot.lane.b32.xlu0 %v1345, 24
        %v5308 = vpop.permute.xlu0 %5307
        %5309 = vrot.lane.b32.xlu0 %v1346, 24
        %v5310 = vpop.permute.xlu0 %5309
        %5311 = vrot.lane.b32.xlu0 %v1347, 24
        %v5312 = vpop.permute.xlu0 %5311
        %5313 = vrot.lane.b32.xlu0 %v1348, 24
        %v5314 = vpop.permute.xlu0 %5313
        %5315 = vrot.lane.b32.xlu0 %v1349, 24
        %v5316 = vpop.permute.xlu0 %5315
        %5317 = vrot.lane.b32.xlu0 %v1350, 24
        %v5318 = vpop.permute.xlu0 %5317
        %vm5447 = vcmask 23552
        %v5448 = vsel %vm5447, %v197, %v1480
        %v5449 = vsel %vm5447, %v198, %v1482
        %v5450 = vsel %vm5447, %v199, %v1484
        %v5451 = vsel %vm5447, %v200, %v1486
        %v5452 = vsel %vm5447, %v201, %v1488
        %v5453 = vsel %vm5447, %v202, %v1490
        %v5454 = vsel %vm5447, %v203, %v1492
        %v5455 = vsel %vm5447, %v204, %v1494
        %v5456 = vsel %vm5447, %v205, %v1496
        %v5457 = vsel %vm5447, %v206, %v1498
        %v5458 = vsel %vm5447, %v207, %v1500
        %v5459 = vsel %vm5447, %v208, %v1502
        %v5460 = vsel %vm5447, %v209, %v1504
        %v5461 = vsel %vm5447, %v210, %v1506
        %v5462 = vsel %vm5447, %v211, %v1508
        %v5463 = vsel %vm5447, %v212, %v1510
        %v5464 = vsel %vm5447, %v213, %v1512
        %v5465 = vsel %vm5447, %v214, %v1514
        %v5466 = vsel %vm5447, %v215, %v1516
        %v5467 = vsel %vm5447, %v216, %v1518
        %v5468 = vsel %vm5447, %v217, %v1520
        %v5469 = vsel %vm5447, %v218, %v1522
        %v5470 = vsel %vm5447, %v219, %v1524
        %v5471 = vsel %vm5447, %v220, %v1526
        %v5472 = vsel %vm5447, %v221, %v1528
        %v5473 = vsel %vm5447, %v222, %v1530
        %v5474 = vsel %vm5447, %v223, %v1532
        %v5475 = vsel %vm5447, %v224, %v1534
        %v5476 = vsel %vm5447, %v225, %v1536
        %v5477 = vsel %vm5447, %v226, %v1538
        %v5478 = vsel %vm5447, %v227, %v1540
        %v5479 = vsel %vm5447, %v228, %v1542
        %v5480 = vsel %vm5447, %v229, %v1544
        %v5481 = vsel %vm5447, %v230, %v1546
        %v5482 = vsel %vm5447, %v231, %v1548
        %v5483 = vsel %vm5447, %v232, %v1550
        %v5484 = vsel %vm5447, %v233, %v1552
        %v5485 = vsel %vm5447, %v234, %v1554
        %v5486 = vsel %vm5447, %v235, %v1556
        %v5487 = vsel %vm5447, %v236, %v1558
        %v5488 = vsel %vm5447, %v237, %v1560
        %v5489 = vsel %vm5447, %v238, %v1562
        %v5490 = vsel %vm5447, %v239, %v1564
        %v5491 = vsel %vm5447, %v240, %v1566
        %v5492 = vsel %vm5447, %v241, %v1568
        %v5493 = vsel %vm5447, %v242, %v1570
        %v5494 = vsel %vm5447, %v243, %v1572
        %v5495 = vsel %vm5447, %v244, %v1574
        %v5496 = vsel %vm5447, %v245, %v1576
        %v5497 = vsel %vm5447, %v246, %v1578
        %v5498 = vsel %vm5447, %v247, %v1580
        %v5499 = vsel %vm5447, %v248, %v1582
        %v5500 = vsel %vm5447, %v249, %v1584
        %v5501 = vsel %vm5447, %v250, %v1586
        %v5502 = vsel %vm5447, %v251, %v1588
        %v5503 = vsel %vm5447, %v252, %v1590
        %v5504 = vsel %vm5447, %v253, %v1592
        %v5505 = vsel %vm5447, %v254, %v1594
        %v5506 = vsel %vm5447, %v255, %v1596
        %v5507 = vsel %vm5447, %v256, %v1598
        %v5508 = vsel %vm5447, %v257, %v1600
        %v5509 = vsel %vm5447, %v258, %v1602
        %v5510 = vsel %vm5447, %v259, %v1604
        %v5511 = vsel %vm5447, %v260, %v1606
        %v5512 = vsel %vm5447, %v261, %v1608
        %v5513 = vsel %vm5447, %v262, %v1610
        %v5514 = vsel %vm5447, %v263, %v1612
        %v5515 = vsel %vm5447, %v264, %v1614
        %v5516 = vsel %vm5447, %v265, %v1616
        %v5517 = vsel %vm5447, %v266, %v1618
        %v5518 = vsel %vm5447, %v267, %v1620
        %v5519 = vsel %vm5447, %v268, %v1622
        %v5520 = vsel %vm5447, %v269, %v1624
        %v5521 = vsel %vm5447, %v270, %v1626
        %v5522 = vsel %vm5447, %v271, %v1628
        %v5523 = vsel %vm5447, %v272, %v1630
        %v5524 = vsel %vm5447, %v273, %v1632
        %v5525 = vsel %vm5447, %v274, %v1634
        %v5526 = vsel %vm5447, %v275, %v1636
        %v5527 = vsel %vm5447, %v276, %v1638
        %v5528 = vsel %vm5447, %v277, %v1640
        %v5529 = vsel %vm5447, %v278, %v1642
        %v5530 = vsel %vm5447, %v279, %v1644
        %v5531 = vsel %vm5447, %v280, %v1646
        %v5532 = vsel %vm5447, %v281, %v1648
        %v5533 = vsel %vm5447, %v282, %v1650
        %v5534 = vsel %vm5447, %v283, %v1652
        %v5535 = vsel %vm5447, %v284, %v1654
        %v5536 = vsel %vm5447, %v285, %v1656
        %v5537 = vsel %vm5447, %v286, %v1658
        %v5538 = vsel %vm5447, %v287, %v1660
        %v5539 = vsel %vm5447, %v288, %v1662
        %v5540 = vsel %vm5447, %v289, %v1664
        %v5541 = vsel %vm5447, %v290, %v1666
        %v5542 = vsel %vm5447, %v291, %v1668
        %v5543 = vsel %vm5447, %v292, %v1670
        %v5544 = vsel %vm5447, %v293, %v1672
        %v5545 = vsel %vm5447, %v294, %v1674
        %v5546 = vsel %vm5447, %v295, %v1676
        %v5547 = vsel %vm5447, %v296, %v1678
        %v5548 = vsel %vm5447, %v297, %v1680
        %v5549 = vsel %vm5447, %v298, %v1682
        %v5550 = vsel %vm5447, %v299, %v1684
        %v5551 = vsel %vm5447, %v300, %v1686
        %v5552 = vsel %vm5447, %v301, %v1688
        %v5553 = vsel %vm5447, %v302, %v1690
        %v5554 = vsel %vm5447, %v303, %v1692
        %v5555 = vsel %vm5447, %v304, %v1694
        %v5556 = vsel %vm5447, %v305, %v1696
        %v5557 = vsel %vm5447, %v306, %v1698
        %v5558 = vsel %vm5447, %v307, %v1700
        %v5559 = vsel %vm5447, %v308, %v1702
        %v5560 = vsel %vm5447, %v309, %v1704
        %v5561 = vsel %vm5447, %v310, %v1706
        %v5562 = vsel %vm5447, %v311, %v1708
        %v5563 = vsel %vm5447, %v312, %v1710
        %v5564 = vsel %vm5447, %v313, %v1712
        %v5565 = vsel %vm5447, %v314, %v1714
        %v5566 = vsel %vm5447, %v315, %v1716
        %v5567 = vsel %vm5447, %v316, %v1718
        %v5568 = vsel %vm5447, %v317, %v1720
        %v5569 = vsel %vm5447, %v318, %v1722
        %v5570 = vsel %vm5447, %v319, %v1724
        %v5571 = vsel %vm5447, %v320, %v1726
        %v5572 = vsel %vm5447, %v321, %v1728
        %v5573 = vsel %vm5447, %v322, %v1730
        %v5574 = vsel %vm5447, %v323, %v1732
        %v5575 = vsel %vm5447, %v324, %v1734
        %vm5576 = vcmask 48128
        %v5577 = vsel %vm5576, %v5448, %v1992
        %v5578 = vsel %vm5576, %v5449, %v1994
        %v5579 = vsel %vm5576, %v5450, %v1996
        %v5580 = vsel %vm5576, %v5451, %v1998
        %v5581 = vsel %vm5576, %v5452, %v2000
        %v5582 = vsel %vm5576, %v5453, %v2002
        %v5583 = vsel %vm5576, %v5454, %v2004
        %v5584 = vsel %vm5576, %v5455, %v2006
        %v5585 = vsel %vm5576, %v5456, %v2008
        %v5586 = vsel %vm5576, %v5457, %v2010
        %v5587 = vsel %vm5576, %v5458, %v2012
        %v5588 = vsel %vm5576, %v5459, %v2014
        %v5589 = vsel %vm5576, %v5460, %v2016
        %v5590 = vsel %vm5576, %v5461, %v2018
        %v5591 = vsel %vm5576, %v5462, %v2020
        %v5592 = vsel %vm5576, %v5463, %v2022
        %v5593 = vsel %vm5576, %v5464, %v2024
        %v5594 = vsel %vm5576, %v5465, %v2026
        %v5595 = vsel %vm5576, %v5466, %v2028
        %v5596 = vsel %vm5576, %v5467, %v2030
        %v5597 = vsel %vm5576, %v5468, %v2032
        %v5598 = vsel %vm5576, %v5469, %v2034
        %v5599 = vsel %vm5576, %v5470, %v2036
        %v5600 = vsel %vm5576, %v5471, %v2038
        %v5601 = vsel %vm5576, %v5472, %v2040
        %v5602 = vsel %vm5576, %v5473, %v2042
        %v5603 = vsel %vm5576, %v5474, %v2044
        %v5604 = vsel %vm5576, %v5475, %v2046
        %v5605 = vsel %vm5576, %v5476, %v2048
        %v5606 = vsel %vm5576, %v5477, %v2050
        %v5607 = vsel %vm5576, %v5478, %v2052
        %v5608 = vsel %vm5576, %v5479, %v2054
        %v5609 = vsel %vm5576, %v5480, %v2056
        %v5610 = vsel %vm5576, %v5481, %v2058
        %v5611 = vsel %vm5576, %v5482, %v2060
        %v5612 = vsel %vm5576, %v5483, %v2062
        %v5613 = vsel %vm5576, %v5484, %v2064
        %v5614 = vsel %vm5576, %v5485, %v2066
        %v5615 = vsel %vm5576, %v5486, %v2068
        %v5616 = vsel %vm5576, %v5487, %v2070
        %v5617 = vsel %vm5576, %v5488, %v2072
        %v5618 = vsel %vm5576, %v5489, %v2074
        %v5619 = vsel %vm5576, %v5490, %v2076
        %v5620 = vsel %vm5576, %v5491, %v2078
        %v5621 = vsel %vm5576, %v5492, %v2080
        %v5622 = vsel %vm5576, %v5493, %v2082
        %v5623 = vsel %vm5576, %v5494, %v2084
        %v5624 = vsel %vm5576, %v5495, %v2086
        %v5625 = vsel %vm5576, %v5496, %v2088
        %v5626 = vsel %vm5576, %v5497, %v2090
        %v5627 = vsel %vm5576, %v5498, %v2092
        %v5628 = vsel %vm5576, %v5499, %v2094
        %v5629 = vsel %vm5576, %v5500, %v2096
        %v5630 = vsel %vm5576, %v5501, %v2098
        %v5631 = vsel %vm5576, %v5502, %v2100
        %v5632 = vsel %vm5576, %v5503, %v2102
        %v5633 = vsel %vm5576, %v5504, %v2104
        %v5634 = vsel %vm5576, %v5505, %v2106
        %v5635 = vsel %vm5576, %v5506, %v2108
        %v5636 = vsel %vm5576, %v5507, %v2110
        %v5637 = vsel %vm5576, %v5508, %v2112
        %v5638 = vsel %vm5576, %v5509, %v2114
        %v5639 = vsel %vm5576, %v5510, %v2116
        %v5640 = vsel %vm5576, %v5511, %v2118
        %v5641 = vsel %vm5576, %v5512, %v2120
        %v5642 = vsel %vm5576, %v5513, %v2122
        %v5643 = vsel %vm5576, %v5514, %v2124
        %v5644 = vsel %vm5576, %v5515, %v2126
        %v5645 = vsel %vm5576, %v5516, %v2128
        %v5646 = vsel %vm5576, %v5517, %v2130
        %v5647 = vsel %vm5576, %v5518, %v2132
        %v5648 = vsel %vm5576, %v5519, %v2134
        %v5649 = vsel %vm5576, %v5520, %v2136
        %v5650 = vsel %vm5576, %v5521, %v2138
        %v5651 = vsel %vm5576, %v5522, %v2140
        %v5652 = vsel %vm5576, %v5523, %v2142
        %v5653 = vsel %vm5576, %v5524, %v2144
        %v5654 = vsel %vm5576, %v5525, %v2146
        %v5655 = vsel %vm5576, %v5526, %v2148
        %v5656 = vsel %vm5576, %v5527, %v2150
        %v5657 = vsel %vm5576, %v5528, %v2152
        %v5658 = vsel %vm5576, %v5529, %v2154
        %v5659 = vsel %vm5576, %v5530, %v2156
        %v5660 = vsel %vm5576, %v5531, %v2158
        %v5661 = vsel %vm5576, %v5532, %v2160
        %v5662 = vsel %vm5576, %v5533, %v2162
        %v5663 = vsel %vm5576, %v5534, %v2164
        %v5664 = vsel %vm5576, %v5535, %v2166
        %v5665 = vsel %vm5576, %v5536, %v2168
        %v5666 = vsel %vm5576, %v5537, %v2170
        %v5667 = vsel %vm5576, %v5538, %v2172
        %v5668 = vsel %vm5576, %v5539, %v2174
        %v5669 = vsel %vm5576, %v5540, %v2176
        %v5670 = vsel %vm5576, %v5541, %v2178
        %v5671 = vsel %vm5576, %v5542, %v2180
        %v5672 = vsel %vm5576, %v5543, %v2182
        %v5673 = vsel %vm5576, %v5544, %v2184
        %v5674 = vsel %vm5576, %v5545, %v2186
        %v5675 = vsel %vm5576, %v5546, %v2188
        %v5676 = vsel %vm5576, %v5547, %v2190
        %v5677 = vsel %vm5576, %v5548, %v2192
        %v5678 = vsel %vm5576, %v5549, %v2194
        %v5679 = vsel %vm5576, %v5550, %v2196
        %v5680 = vsel %vm5576, %v5551, %v2198
        %v5681 = vsel %vm5576, %v5552, %v2200
        %v5682 = vsel %vm5576, %v5553, %v2202
        %v5683 = vsel %vm5576, %v5554, %v2204
        %v5684 = vsel %vm5576, %v5555, %v2206
        %v5685 = vsel %vm5576, %v5556, %v2208
        %v5686 = vsel %vm5576, %v5557, %v2210
        %v5687 = vsel %vm5576, %v5558, %v2212
        %v5688 = vsel %vm5576, %v5559, %v2214
        %v5689 = vsel %vm5576, %v5560, %v2216
        %v5690 = vsel %vm5576, %v5561, %v2218
        %v5691 = vsel %vm5576, %v5562, %v2220
        %v5692 = vsel %vm5576, %v5563, %v2222
        %v5693 = vsel %vm5576, %v5564, %v2224
        %v5694 = vsel %vm5576, %v5565, %v2226
        %v5695 = vsel %vm5576, %v5566, %v2228
        %v5696 = vsel %vm5576, %v5567, %v2230
        %v5697 = vsel %vm5576, %v5568, %v2232
        %v5698 = vsel %vm5576, %v5569, %v2234
        %v5699 = vsel %vm5576, %v5570, %v2236
        %v5700 = vsel %vm5576, %v5571, %v2238
        %v5701 = vsel %vm5576, %v5572, %v2240
        %v5702 = vsel %vm5576, %v5573, %v2242
        %v5703 = vsel %vm5576, %v5574, %v2244
        %v5704 = vsel %vm5576, %v5575, %v2246
        %vm5705 = vcmask 72704
        %v5706 = vsel %vm5705, %v5577, %v2504
        %v5707 = vsel %vm5705, %v5578, %v2506
        %v5708 = vsel %vm5705, %v5579, %v2508
        %v5709 = vsel %vm5705, %v5580, %v2510
        %v5710 = vsel %vm5705, %v5581, %v2512
        %v5711 = vsel %vm5705, %v5582, %v2514
        %v5712 = vsel %vm5705, %v5583, %v2516
        %v5713 = vsel %vm5705, %v5584, %v2518
        %v5714 = vsel %vm5705, %v5585, %v2520
        %v5715 = vsel %vm5705, %v5586, %v2522
        %v5716 = vsel %vm5705, %v5587, %v2524
        %v5717 = vsel %vm5705, %v5588, %v2526
        %v5718 = vsel %vm5705, %v5589, %v2528
        %v5719 = vsel %vm5705, %v5590, %v2530
        %v5720 = vsel %vm5705, %v5591, %v2532
        %v5721 = vsel %vm5705, %v5592, %v2534
        %v5722 = vsel %vm5705, %v5593, %v2536
        %v5723 = vsel %vm5705, %v5594, %v2538
        %v5724 = vsel %vm5705, %v5595, %v2540
        %v5725 = vsel %vm5705, %v5596, %v2542
        %v5726 = vsel %vm5705, %v5597, %v2544
        %v5727 = vsel %vm5705, %v5598, %v2546
        %v5728 = vsel %vm5705, %v5599, %v2548
        %v5729 = vsel %vm5705, %v5600, %v2550
        %v5730 = vsel %vm5705, %v5601, %v2552
        %v5731 = vsel %vm5705, %v5602, %v2554
        %v5732 = vsel %vm5705, %v5603, %v2556
        %v5733 = vsel %vm5705, %v5604, %v2558
        %v5734 = vsel %vm5705, %v5605, %v2560
        %v5735 = vsel %vm5705, %v5606, %v2562
        %v5736 = vsel %vm5705, %v5607, %v2564
        %v5737 = vsel %vm5705, %v5608, %v2566
        %v5738 = vsel %vm5705, %v5609, %v2568
        %v5739 = vsel %vm5705, %v5610, %v2570
        %v5740 = vsel %vm5705, %v5611, %v2572
        %v5741 = vsel %vm5705, %v5612, %v2574
        %v5742 = vsel %vm5705, %v5613, %v2576
        %v5743 = vsel %vm5705, %v5614, %v2578
        %v5744 = vsel %vm5705, %v5615, %v2580
        %v5745 = vsel %vm5705, %v5616, %v2582
        %v5746 = vsel %vm5705, %v5617, %v2584
        %v5747 = vsel %vm5705, %v5618, %v2586
        %v5748 = vsel %vm5705, %v5619, %v2588
        %v5749 = vsel %vm5705, %v5620, %v2590
        %v5750 = vsel %vm5705, %v5621, %v2592
        %v5751 = vsel %vm5705, %v5622, %v2594
        %v5752 = vsel %vm5705, %v5623, %v2596
        %v5753 = vsel %vm5705, %v5624, %v2598
        %v5754 = vsel %vm5705, %v5625, %v2600
        %v5755 = vsel %vm5705, %v5626, %v2602
        %v5756 = vsel %vm5705, %v5627, %v2604
        %v5757 = vsel %vm5705, %v5628, %v2606
        %v5758 = vsel %vm5705, %v5629, %v2608
        %v5759 = vsel %vm5705, %v5630, %v2610
        %v5760 = vsel %vm5705, %v5631, %v2612
        %v5761 = vsel %vm5705, %v5632, %v2614
        %v5762 = vsel %vm5705, %v5633, %v2616
        %v5763 = vsel %vm5705, %v5634, %v2618
        %v5764 = vsel %vm5705, %v5635, %v2620
        %v5765 = vsel %vm5705, %v5636, %v2622
        %v5766 = vsel %vm5705, %v5637, %v2624
        %v5767 = vsel %vm5705, %v5638, %v2626
        %v5768 = vsel %vm5705, %v5639, %v2628
        %v5769 = vsel %vm5705, %v5640, %v2630
        %v5770 = vsel %vm5705, %v5641, %v2632
        %v5771 = vsel %vm5705, %v5642, %v2634
        %v5772 = vsel %vm5705, %v5643, %v2636
        %v5773 = vsel %vm5705, %v5644, %v2638
        %v5774 = vsel %vm5705, %v5645, %v2640
        %v5775 = vsel %vm5705, %v5646, %v2642
        %v5776 = vsel %vm5705, %v5647, %v2644
        %v5777 = vsel %vm5705, %v5648, %v2646
        %v5778 = vsel %vm5705, %v5649, %v2648
        %v5779 = vsel %vm5705, %v5650, %v2650
        %v5780 = vsel %vm5705, %v5651, %v2652
        %v5781 = vsel %vm5705, %v5652, %v2654
        %v5782 = vsel %vm5705, %v5653, %v2656
        %v5783 = vsel %vm5705, %v5654, %v2658
        %v5784 = vsel %vm5705, %v5655, %v2660
        %v5785 = vsel %vm5705, %v5656, %v2662
        %v5786 = vsel %vm5705, %v5657, %v2664
        %v5787 = vsel %vm5705, %v5658, %v2666
        %v5788 = vsel %vm5705, %v5659, %v2668
        %v5789 = vsel %vm5705, %v5660, %v2670
        %v5790 = vsel %vm5705, %v5661, %v2672
        %v5791 = vsel %vm5705, %v5662, %v2674
        %v5792 = vsel %vm5705, %v5663, %v2676
        %v5793 = vsel %vm5705, %v5664, %v2678
        %v5794 = vsel %vm5705, %v5665, %v2680
        %v5795 = vsel %vm5705, %v5666, %v2682
        %v5796 = vsel %vm5705, %v5667, %v2684
        %v5797 = vsel %vm5705, %v5668, %v2686
        %v5798 = vsel %vm5705, %v5669, %v2688
        %v5799 = vsel %vm5705, %v5670, %v2690
        %v5800 = vsel %vm5705, %v5671, %v2692
        %v5801 = vsel %vm5705, %v5672, %v2694
        %v5802 = vsel %vm5705, %v5673, %v2696
        %v5803 = vsel %vm5705, %v5674, %v2698
        %v5804 = vsel %vm5705, %v5675, %v2700
        %v5805 = vsel %vm5705, %v5676, %v2702
        %v5806 = vsel %vm5705, %v5677, %v2704
        %v5807 = vsel %vm5705, %v5678, %v2706
        %v5808 = vsel %vm5705, %v5679, %v2708
        %v5809 = vsel %vm5705, %v5680, %v2710
        %v5810 = vsel %vm5705, %v5681, %v2712
        %v5811 = vsel %vm5705, %v5682, %v2714
        %v5812 = vsel %vm5705, %v5683, %v2716
        %v5813 = vsel %vm5705, %v5684, %v2718
        %v5814 = vsel %vm5705, %v5685, %v2720
        %v5815 = vsel %vm5705, %v5686, %v2722
        %v5816 = vsel %vm5705, %v5687, %v2724
        %v5817 = vsel %vm5705, %v5688, %v2726
        %v5818 = vsel %vm5705, %v5689, %v2728
        %v5819 = vsel %vm5705, %v5690, %v2730
        %v5820 = vsel %vm5705, %v5691, %v2732
        %v5821 = vsel %vm5705, %v5692, %v2734
        %v5822 = vsel %vm5705, %v5693, %v2736
        %v5823 = vsel %vm5705, %v5694, %v2738
        %v5824 = vsel %vm5705, %v5695, %v2740
        %v5825 = vsel %vm5705, %v5696, %v2742
        %v5826 = vsel %vm5705, %v5697, %v2744
        %v5827 = vsel %vm5705, %v5698, %v2746
        %v5828 = vsel %vm5705, %v5699, %v2748
        %v5829 = vsel %vm5705, %v5700, %v2750
        %v5830 = vsel %vm5705, %v5701, %v2752
        %v5831 = vsel %vm5705, %v5702, %v2754
        %v5832 = vsel %vm5705, %v5703, %v2756
        %v5833 = vsel %vm5705, %v5704, %v2758
        %vm5834 = vcmask 97280
        %v5835 = vsel %vm5834, %v5706, %v3016
        %v5836 = vsel %vm5834, %v5707, %v3018
        %v5837 = vsel %vm5834, %v5708, %v3020
        %v5838 = vsel %vm5834, %v5709, %v3022
        %v5839 = vsel %vm5834, %v5710, %v3024
        %v5840 = vsel %vm5834, %v5711, %v3026
        %v5841 = vsel %vm5834, %v5712, %v3028
        %v5842 = vsel %vm5834, %v5713, %v3030
        %v5843 = vsel %vm5834, %v5714, %v3032
        %v5844 = vsel %vm5834, %v5715, %v3034
        %v5845 = vsel %vm5834, %v5716, %v3036
        %v5846 = vsel %vm5834, %v5717, %v3038
        %v5847 = vsel %vm5834, %v5718, %v3040
        %v5848 = vsel %vm5834, %v5719, %v3042
        %v5849 = vsel %vm5834, %v5720, %v3044
        %v5850 = vsel %vm5834, %v5721, %v3046
        %v5851 = vsel %vm5834, %v5722, %v3048
        %v5852 = vsel %vm5834, %v5723, %v3050
        %v5853 = vsel %vm5834, %v5724, %v3052
        %v5854 = vsel %vm5834, %v5725, %v3054
        %v5855 = vsel %vm5834, %v5726, %v3056
        %v5856 = vsel %vm5834, %v5727, %v3058
        %v5857 = vsel %vm5834, %v5728, %v3060
        %v5858 = vsel %vm5834, %v5729, %v3062
        %v5859 = vsel %vm5834, %v5730, %v3064
        %v5860 = vsel %vm5834, %v5731, %v3066
        %v5861 = vsel %vm5834, %v5732, %v3068
        %v5862 = vsel %vm5834, %v5733, %v3070
        %v5863 = vsel %vm5834, %v5734, %v3072
        %v5864 = vsel %vm5834, %v5735, %v3074
        %v5865 = vsel %vm5834, %v5736, %v3076
        %v5866 = vsel %vm5834, %v5737, %v3078
        %v5867 = vsel %vm5834, %v5738, %v3080
        %v5868 = vsel %vm5834, %v5739, %v3082
        %v5869 = vsel %vm5834, %v5740, %v3084
        %v5870 = vsel %vm5834, %v5741, %v3086
        %v5871 = vsel %vm5834, %v5742, %v3088
        %v5872 = vsel %vm5834, %v5743, %v3090
        %v5873 = vsel %vm5834, %v5744, %v3092
        %v5874 = vsel %vm5834, %v5745, %v3094
        %v5875 = vsel %vm5834, %v5746, %v3096
        %v5876 = vsel %vm5834, %v5747, %v3098
        %v5877 = vsel %vm5834, %v5748, %v3100
        %v5878 = vsel %vm5834, %v5749, %v3102
        %v5879 = vsel %vm5834, %v5750, %v3104
        %v5880 = vsel %vm5834, %v5751, %v3106
        %v5881 = vsel %vm5834, %v5752, %v3108
        %v5882 = vsel %vm5834, %v5753, %v3110
        %v5883 = vsel %vm5834, %v5754, %v3112
        %v5884 = vsel %vm5834, %v5755, %v3114
        %v5885 = vsel %vm5834, %v5756, %v3116
        %v5886 = vsel %vm5834, %v5757, %v3118
        %v5887 = vsel %vm5834, %v5758, %v3120
        %v5888 = vsel %vm5834, %v5759, %v3122
        %v5889 = vsel %vm5834, %v5760, %v3124
        %v5890 = vsel %vm5834, %v5761, %v3126
        %v5891 = vsel %vm5834, %v5762, %v3128
        %v5892 = vsel %vm5834, %v5763, %v3130
        %v5893 = vsel %vm5834, %v5764, %v3132
        %v5894 = vsel %vm5834, %v5765, %v3134
        %v5895 = vsel %vm5834, %v5766, %v3136
        %v5896 = vsel %vm5834, %v5767, %v3138
        %v5897 = vsel %vm5834, %v5768, %v3140
        %v5898 = vsel %vm5834, %v5769, %v3142
        %v5899 = vsel %vm5834, %v5770, %v3144
        %v5900 = vsel %vm5834, %v5771, %v3146
        %v5901 = vsel %vm5834, %v5772, %v3148
        %v5902 = vsel %vm5834, %v5773, %v3150
        %v5903 = vsel %vm5834, %v5774, %v3152
        %v5904 = vsel %vm5834, %v5775, %v3154
        %v5905 = vsel %vm5834, %v5776, %v3156
        %v5906 = vsel %vm5834, %v5777, %v3158
        %v5907 = vsel %vm5834, %v5778, %v3160
        %v5908 = vsel %vm5834, %v5779, %v3162
        %v5909 = vsel %vm5834, %v5780, %v3164
        %v5910 = vsel %vm5834, %v5781, %v3166
        %v5911 = vsel %vm5834, %v5782, %v3168
        %v5912 = vsel %vm5834, %v5783, %v3170
        %v5913 = vsel %vm5834, %v5784, %v3172
        %v5914 = vsel %vm5834, %v5785, %v3174
        %v5915 = vsel %vm5834, %v5786, %v3176
        %v5916 = vsel %vm5834, %v5787, %v3178
        %v5917 = vsel %vm5834, %v5788, %v3180
        %v5918 = vsel %vm5834, %v5789, %v3182
        %v5919 = vsel %vm5834, %v5790, %v3184
        %v5920 = vsel %vm5834, %v5791, %v3186
        %v5921 = vsel %vm5834, %v5792, %v3188
        %v5922 = vsel %vm5834, %v5793, %v3190
        %v5923 = vsel %vm5834, %v5794, %v3192
        %v5924 = vsel %vm5834, %v5795, %v3194
        %v5925 = vsel %vm5834, %v5796, %v3196
        %v5926 = vsel %vm5834, %v5797, %v3198
        %v5927 = vsel %vm5834, %v5798, %v3200
        %v5928 = vsel %vm5834, %v5799, %v3202
        %v5929 = vsel %vm5834, %v5800, %v3204
        %v5930 = vsel %vm5834, %v5801, %v3206
        %v5931 = vsel %vm5834, %v5802, %v3208
        %v5932 = vsel %vm5834, %v5803, %v3210
        %v5933 = vsel %vm5834, %v5804, %v3212
        %v5934 = vsel %vm5834, %v5805, %v3214
        %v5935 = vsel %vm5834, %v5806, %v3216
        %v5936 = vsel %vm5834, %v5807, %v3218
        %v5937 = vsel %vm5834, %v5808, %v3220
        %v5938 = vsel %vm5834, %v5809, %v3222
        %v5939 = vsel %vm5834, %v5810, %v3224
        %v5940 = vsel %vm5834, %v5811, %v3226
        %v5941 = vsel %vm5834, %v5812, %v3228
        %v5942 = vsel %vm5834, %v5813, %v3230
        %v5943 = vsel %vm5834, %v5814, %v3232
        %v5944 = vsel %vm5834, %v5815, %v3234
        %v5945 = vsel %vm5834, %v5816, %v3236
        %v5946 = vsel %vm5834, %v5817, %v3238
        %v5947 = vsel %vm5834, %v5818, %v3240
        %v5948 = vsel %vm5834, %v5819, %v3242
        %v5949 = vsel %vm5834, %v5820, %v3244
        %v5950 = vsel %vm5834, %v5821, %v3246
        %v5951 = vsel %vm5834, %v5822, %v3248
        %v5952 = vsel %vm5834, %v5823, %v3250
        %v5953 = vsel %vm5834, %v5824, %v3252
        %v5954 = vsel %vm5834, %v5825, %v3254
        %v5955 = vsel %vm5834, %v5826, %v3256
        %v5956 = vsel %vm5834, %v5827, %v3258
        %v5957 = vsel %vm5834, %v5828, %v3260
        %v5958 = vsel %vm5834, %v5829, %v3262
        %v5959 = vsel %vm5834, %v5830, %v3264
        %v5960 = vsel %vm5834, %v5831, %v3266
        %v5961 = vsel %vm5834, %v5832, %v3268
        %v5962 = vsel %vm5834, %v5833, %v3270
        %vm5963 = vcmask 121856
        %v5964 = vsel %vm5963, %v5835, %v3528
        %v5965 = vsel %vm5963, %v5836, %v3530
        %v5966 = vsel %vm5963, %v5837, %v3532
        %v5967 = vsel %vm5963, %v5838, %v3534
        %v5968 = vsel %vm5963, %v5839, %v3536
        %v5969 = vsel %vm5963, %v5840, %v3538
        %v5970 = vsel %vm5963, %v5841, %v3540
        %v5971 = vsel %vm5963, %v5842, %v3542
        %v5972 = vsel %vm5963, %v5843, %v3544
        %v5973 = vsel %vm5963, %v5844, %v3546
        %v5974 = vsel %vm5963, %v5845, %v3548
        %v5975 = vsel %vm5963, %v5846, %v3550
        %v5976 = vsel %vm5963, %v5847, %v3552
        %v5977 = vsel %vm5963, %v5848, %v3554
        %v5978 = vsel %vm5963, %v5849, %v3556
        %v5979 = vsel %vm5963, %v5850, %v3558
        %v5980 = vsel %vm5963, %v5851, %v3560
        %v5981 = vsel %vm5963, %v5852, %v3562
        %v5982 = vsel %vm5963, %v5853, %v3564
        %v5983 = vsel %vm5963, %v5854, %v3566
        %v5984 = vsel %vm5963, %v5855, %v3568
        %v5985 = vsel %vm5963, %v5856, %v3570
        %v5986 = vsel %vm5963, %v5857, %v3572
        %v5987 = vsel %vm5963, %v5858, %v3574
        %v5988 = vsel %vm5963, %v5859, %v3576
        %v5989 = vsel %vm5963, %v5860, %v3578
        %v5990 = vsel %vm5963, %v5861, %v3580
        %v5991 = vsel %vm5963, %v5862, %v3582
        %v5992 = vsel %vm5963, %v5863, %v3584
        %v5993 = vsel %vm5963, %v5864, %v3586
        %v5994 = vsel %vm5963, %v5865, %v3588
        %v5995 = vsel %vm5963, %v5866, %v3590
        %v5996 = vsel %vm5963, %v5867, %v3592
        %v5997 = vsel %vm5963, %v5868, %v3594
        %v5998 = vsel %vm5963, %v5869, %v3596
        %v5999 = vsel %vm5963, %v5870, %v3598
        %v6000 = vsel %vm5963, %v5871, %v3600
        %v6001 = vsel %vm5963, %v5872, %v3602
        %v6002 = vsel %vm5963, %v5873, %v3604
        %v6003 = vsel %vm5963, %v5874, %v3606
        %v6004 = vsel %vm5963, %v5875, %v3608
        %v6005 = vsel %vm5963, %v5876, %v3610
        %v6006 = vsel %vm5963, %v5877, %v3612
        %v6007 = vsel %vm5963, %v5878, %v3614
        %v6008 = vsel %vm5963, %v5879, %v3616
        %v6009 = vsel %vm5963, %v5880, %v3618
        %v6010 = vsel %vm5963, %v5881, %v3620
        %v6011 = vsel %vm5963, %v5882, %v3622
        %v6012 = vsel %vm5963, %v5883, %v3624
        %v6013 = vsel %vm5963, %v5884, %v3626
        %v6014 = vsel %vm5963, %v5885, %v3628
        %v6015 = vsel %vm5963, %v5886, %v3630
        %v6016 = vsel %vm5963, %v5887, %v3632
        %v6017 = vsel %vm5963, %v5888, %v3634
        %v6018 = vsel %vm5963, %v5889, %v3636
        %v6019 = vsel %vm5963, %v5890, %v3638
        %v6020 = vsel %vm5963, %v5891, %v3640
        %v6021 = vsel %vm5963, %v5892, %v3642
        %v6022 = vsel %vm5963, %v5893, %v3644
        %v6023 = vsel %vm5963, %v5894, %v3646
        %v6024 = vsel %vm5963, %v5895, %v3648
        %v6025 = vsel %vm5963, %v5896, %v3650
        %v6026 = vsel %vm5963, %v5897, %v3652
        %v6027 = vsel %vm5963, %v5898, %v3654
        %v6028 = vsel %vm5963, %v5899, %v3656
        %v6029 = vsel %vm5963, %v5900, %v3658
        %v6030 = vsel %vm5963, %v5901, %v3660
        %v6031 = vsel %vm5963, %v5902, %v3662
        %v6032 = vsel %vm5963, %v5903, %v3664
        %v6033 = vsel %vm5963, %v5904, %v3666
        %v6034 = vsel %vm5963, %v5905, %v3668
        %v6035 = vsel %vm5963, %v5906, %v3670
        %v6036 = vsel %vm5963, %v5907, %v3672
        %v6037 = vsel %vm5963, %v5908, %v3674
        %v6038 = vsel %vm5963, %v5909, %v3676
        %v6039 = vsel %vm5963, %v5910, %v3678
        %v6040 = vsel %vm5963, %v5911, %v3680
        %v6041 = vsel %vm5963, %v5912, %v3682
        %v6042 = vsel %vm5963, %v5913, %v3684
        %v6043 = vsel %vm5963, %v5914, %v3686
        %v6044 = vsel %vm5963, %v5915, %v3688
        %v6045 = vsel %vm5963, %v5916, %v3690
        %v6046 = vsel %vm5963, %v5917, %v3692
        %v6047 = vsel %vm5963, %v5918, %v3694
        %v6048 = vsel %vm5963, %v5919, %v3696
        %v6049 = vsel %vm5963, %v5920, %v3698
        %v6050 = vsel %vm5963, %v5921, %v3700
        %v6051 = vsel %vm5963, %v5922, %v3702
        %v6052 = vsel %vm5963, %v5923, %v3704
        %v6053 = vsel %vm5963, %v5924, %v3706
        %v6054 = vsel %vm5963, %v5925, %v3708
        %v6055 = vsel %vm5963, %v5926, %v3710
        %v6056 = vsel %vm5963, %v5927, %v3712
        %v6057 = vsel %vm5963, %v5928, %v3714
        %v6058 = vsel %vm5963, %v5929, %v3716
        %v6059 = vsel %vm5963, %v5930, %v3718
        %v6060 = vsel %vm5963, %v5931, %v3720
        %v6061 = vsel %vm5963, %v5932, %v3722
        %v6062 = vsel %vm5963, %v5933, %v3724
        %v6063 = vsel %vm5963, %v5934, %v3726
        %v6064 = vsel %vm5963, %v5935, %v3728
        %v6065 = vsel %vm5963, %v5936, %v3730
        %v6066 = vsel %vm5963, %v5937, %v3732
        %v6067 = vsel %vm5963, %v5938, %v3734
        %v6068 = vsel %vm5963, %v5939, %v3736
        %v6069 = vsel %vm5963, %v5940, %v3738
        %v6070 = vsel %vm5963, %v5941, %v3740
        %v6071 = vsel %vm5963, %v5942, %v3742
        %v6072 = vsel %vm5963, %v5943, %v3744
        %v6073 = vsel %vm5963, %v5944, %v3746
        %v6074 = vsel %vm5963, %v5945, %v3748
        %v6075 = vsel %vm5963, %v5946, %v3750
        %v6076 = vsel %vm5963, %v5947, %v3752
        %v6077 = vsel %vm5963, %v5948, %v3754
        %v6078 = vsel %vm5963, %v5949, %v3756
        %v6079 = vsel %vm5963, %v5950, %v3758
        %v6080 = vsel %vm5963, %v5951, %v3760
        %v6081 = vsel %vm5963, %v5952, %v3762
        %v6082 = vsel %vm5963, %v5953, %v3764
        %v6083 = vsel %vm5963, %v5954, %v3766
        %v6084 = vsel %vm5963, %v5955, %v3768
        %v6085 = vsel %vm5963, %v5956, %v3770
        %v6086 = vsel %vm5963, %v5957, %v3772
        %v6087 = vsel %vm5963, %v5958, %v3774
        %v6088 = vsel %vm5963, %v5959, %v3776
        %v6089 = vsel %vm5963, %v5960, %v3778
        %v6090 = vsel %vm5963, %v5961, %v3780
        %v6091 = vsel %vm5963, %v5962, %v3782
        %vm6092 = vcmask 146432
        %v6093 = vsel %vm6092, %v5964, %v4040
        %v6094 = vsel %vm6092, %v5965, %v4042
        %v6095 = vsel %vm6092, %v5966, %v4044
        %v6096 = vsel %vm6092, %v5967, %v4046
        %v6097 = vsel %vm6092, %v5968, %v4048
        %v6098 = vsel %vm6092, %v5969, %v4050
        %v6099 = vsel %vm6092, %v5970, %v4052
        %v6100 = vsel %vm6092, %v5971, %v4054
        %v6101 = vsel %vm6092, %v5972, %v4056
        %v6102 = vsel %vm6092, %v5973, %v4058
        %v6103 = vsel %vm6092, %v5974, %v4060
        %v6104 = vsel %vm6092, %v5975, %v4062
        %v6105 = vsel %vm6092, %v5976, %v4064
        %v6106 = vsel %vm6092, %v5977, %v4066
        %v6107 = vsel %vm6092, %v5978, %v4068
        %v6108 = vsel %vm6092, %v5979, %v4070
        %v6109 = vsel %vm6092, %v5980, %v4072
        %v6110 = vsel %vm6092, %v5981, %v4074
        %v6111 = vsel %vm6092, %v5982, %v4076
        %v6112 = vsel %vm6092, %v5983, %v4078
        %v6113 = vsel %vm6092, %v5984, %v4080
        %v6114 = vsel %vm6092, %v5985, %v4082
        %v6115 = vsel %vm6092, %v5986, %v4084
        %v6116 = vsel %vm6092, %v5987, %v4086
        %v6117 = vsel %vm6092, %v5988, %v4088
        %v6118 = vsel %vm6092, %v5989, %v4090
        %v6119 = vsel %vm6092, %v5990, %v4092
        %v6120 = vsel %vm6092, %v5991, %v4094
        %v6121 = vsel %vm6092, %v5992, %v4096
        %v6122 = vsel %vm6092, %v5993, %v4098
        %v6123 = vsel %vm6092, %v5994, %v4100
        %v6124 = vsel %vm6092, %v5995, %v4102
        %v6125 = vsel %vm6092, %v5996, %v4104
        %v6126 = vsel %vm6092, %v5997, %v4106
        %v6127 = vsel %vm6092, %v5998, %v4108
        %v6128 = vsel %vm6092, %v5999, %v4110
        %v6129 = vsel %vm6092, %v6000, %v4112
        %v6130 = vsel %vm6092, %v6001, %v4114
        %v6131 = vsel %vm6092, %v6002, %v4116
        %v6132 = vsel %vm6092, %v6003, %v4118
        %v6133 = vsel %vm6092, %v6004, %v4120
        %v6134 = vsel %vm6092, %v6005, %v4122
        %v6135 = vsel %vm6092, %v6006, %v4124
        %v6136 = vsel %vm6092, %v6007, %v4126
        %v6137 = vsel %vm6092, %v6008, %v4128
        %v6138 = vsel %vm6092, %v6009, %v4130
        %v6139 = vsel %vm6092, %v6010, %v4132
        %v6140 = vsel %vm6092, %v6011, %v4134
        %v6141 = vsel %vm6092, %v6012, %v4136
        %v6142 = vsel %vm6092, %v6013, %v4138
        %v6143 = vsel %vm6092, %v6014, %v4140
        %v6144 = vsel %vm6092, %v6015, %v4142
        %v6145 = vsel %vm6092, %v6016, %v4144
        %v6146 = vsel %vm6092, %v6017, %v4146
        %v6147 = vsel %vm6092, %v6018, %v4148
        %v6148 = vsel %vm6092, %v6019, %v4150
        %v6149 = vsel %vm6092, %v6020, %v4152
        %v6150 = vsel %vm6092, %v6021, %v4154
        %v6151 = vsel %vm6092, %v6022, %v4156
        %v6152 = vsel %vm6092, %v6023, %v4158
        %v6153 = vsel %vm6092, %v6024, %v4160
        %v6154 = vsel %vm6092, %v6025, %v4162
        %v6155 = vsel %vm6092, %v6026, %v4164
        %v6156 = vsel %vm6092, %v6027, %v4166
        %v6157 = vsel %vm6092, %v6028, %v4168
        %v6158 = vsel %vm6092, %v6029, %v4170
        %v6159 = vsel %vm6092, %v6030, %v4172
        %v6160 = vsel %vm6092, %v6031, %v4174
        %v6161 = vsel %vm6092, %v6032, %v4176
        %v6162 = vsel %vm6092, %v6033, %v4178
        %v6163 = vsel %vm6092, %v6034, %v4180
        %v6164 = vsel %vm6092, %v6035, %v4182
        %v6165 = vsel %vm6092, %v6036, %v4184
        %v6166 = vsel %vm6092, %v6037, %v4186
        %v6167 = vsel %vm6092, %v6038, %v4188
        %v6168 = vsel %vm6092, %v6039, %v4190
        %v6169 = vsel %vm6092, %v6040, %v4192
        %v6170 = vsel %vm6092, %v6041, %v4194
        %v6171 = vsel %vm6092, %v6042, %v4196
        %v6172 = vsel %vm6092, %v6043, %v4198
        %v6173 = vsel %vm6092, %v6044, %v4200
        %v6174 = vsel %vm6092, %v6045, %v4202
        %v6175 = vsel %vm6092, %v6046, %v4204
        %v6176 = vsel %vm6092, %v6047, %v4206
        %v6177 = vsel %vm6092, %v6048, %v4208
        %v6178 = vsel %vm6092, %v6049, %v4210
        %v6179 = vsel %vm6092, %v6050, %v4212
        %v6180 = vsel %vm6092, %v6051, %v4214
        %v6181 = vsel %vm6092, %v6052, %v4216
        %v6182 = vsel %vm6092, %v6053, %v4218
        %v6183 = vsel %vm6092, %v6054, %v4220
        %v6184 = vsel %vm6092, %v6055, %v4222
        %v6185 = vsel %vm6092, %v6056, %v4224
        %v6186 = vsel %vm6092, %v6057, %v4226
        %v6187 = vsel %vm6092, %v6058, %v4228
        %v6188 = vsel %vm6092, %v6059, %v4230
        %v6189 = vsel %vm6092, %v6060, %v4232
        %v6190 = vsel %vm6092, %v6061, %v4234
        %v6191 = vsel %vm6092, %v6062, %v4236
        %v6192 = vsel %vm6092, %v6063, %v4238
        %v6193 = vsel %vm6092, %v6064, %v4240
        %v6194 = vsel %vm6092, %v6065, %v4242
        %v6195 = vsel %vm6092, %v6066, %v4244
        %v6196 = vsel %vm6092, %v6067, %v4246
        %v6197 = vsel %vm6092, %v6068, %v4248
        %v6198 = vsel %vm6092, %v6069, %v4250
        %v6199 = vsel %vm6092, %v6070, %v4252
        %v6200 = vsel %vm6092, %v6071, %v4254
        %v6201 = vsel %vm6092, %v6072, %v4256
        %v6202 = vsel %vm6092, %v6073, %v4258
        %v6203 = vsel %vm6092, %v6074, %v4260
        %v6204 = vsel %vm6092, %v6075, %v4262
        %v6205 = vsel %vm6092, %v6076, %v4264
        %v6206 = vsel %vm6092, %v6077, %v4266
        %v6207 = vsel %vm6092, %v6078, %v4268
        %v6208 = vsel %vm6092, %v6079, %v4270
        %v6209 = vsel %vm6092, %v6080, %v4272
        %v6210 = vsel %vm6092, %v6081, %v4274
        %v6211 = vsel %vm6092, %v6082, %v4276
        %v6212 = vsel %vm6092, %v6083, %v4278
        %v6213 = vsel %vm6092, %v6084, %v4280
        %v6214 = vsel %vm6092, %v6085, %v4282
        %v6215 = vsel %vm6092, %v6086, %v4284
        %v6216 = vsel %vm6092, %v6087, %v4286
        %v6217 = vsel %vm6092, %v6088, %v4288
        %v6218 = vsel %vm6092, %v6089, %v4290
        %v6219 = vsel %vm6092, %v6090, %v4292
        %v6220 = vsel %vm6092, %v6091, %v4294
        %vm6221 = vcmask 171008
        %v6222 = vsel %vm6221, %v6093, %v4552
        %v6223 = vsel %vm6221, %v6094, %v4554
        %v6224 = vsel %vm6221, %v6095, %v4556
        %v6225 = vsel %vm6221, %v6096, %v4558
        %v6226 = vsel %vm6221, %v6097, %v4560
        %v6227 = vsel %vm6221, %v6098, %v4562
        %v6228 = vsel %vm6221, %v6099, %v4564
        %v6229 = vsel %vm6221, %v6100, %v4566
        %v6230 = vsel %vm6221, %v6101, %v4568
        %v6231 = vsel %vm6221, %v6102, %v4570
        %v6232 = vsel %vm6221, %v6103, %v4572
        %v6233 = vsel %vm6221, %v6104, %v4574
        %v6234 = vsel %vm6221, %v6105, %v4576
        %v6235 = vsel %vm6221, %v6106, %v4578
        %v6236 = vsel %vm6221, %v6107, %v4580
        %v6237 = vsel %vm6221, %v6108, %v4582
        %v6238 = vsel %vm6221, %v6109, %v4584
        %v6239 = vsel %vm6221, %v6110, %v4586
        %v6240 = vsel %vm6221, %v6111, %v4588
        %v6241 = vsel %vm6221, %v6112, %v4590
        %v6242 = vsel %vm6221, %v6113, %v4592
        %v6243 = vsel %vm6221, %v6114, %v4594
        %v6244 = vsel %vm6221, %v6115, %v4596
        %v6245 = vsel %vm6221, %v6116, %v4598
        %v6246 = vsel %vm6221, %v6117, %v4600
        %v6247 = vsel %vm6221, %v6118, %v4602
        %v6248 = vsel %vm6221, %v6119, %v4604
        %v6249 = vsel %vm6221, %v6120, %v4606
        %v6250 = vsel %vm6221, %v6121, %v4608
        %v6251 = vsel %vm6221, %v6122, %v4610
        %v6252 = vsel %vm6221, %v6123, %v4612
        %v6253 = vsel %vm6221, %v6124, %v4614
        %v6254 = vsel %vm6221, %v6125, %v4616
        %v6255 = vsel %vm6221, %v6126, %v4618
        %v6256 = vsel %vm6221, %v6127, %v4620
        %v6257 = vsel %vm6221, %v6128, %v4622
        %v6258 = vsel %vm6221, %v6129, %v4624
        %v6259 = vsel %vm6221, %v6130, %v4626
        %v6260 = vsel %vm6221, %v6131, %v4628
        %v6261 = vsel %vm6221, %v6132, %v4630
        %v6262 = vsel %vm6221, %v6133, %v4632
        %v6263 = vsel %vm6221, %v6134, %v4634
        %v6264 = vsel %vm6221, %v6135, %v4636
        %v6265 = vsel %vm6221, %v6136, %v4638
        %v6266 = vsel %vm6221, %v6137, %v4640
        %v6267 = vsel %vm6221, %v6138, %v4642
        %v6268 = vsel %vm6221, %v6139, %v4644
        %v6269 = vsel %vm6221, %v6140, %v4646
        %v6270 = vsel %vm6221, %v6141, %v4648
        %v6271 = vsel %vm6221, %v6142, %v4650
        %v6272 = vsel %vm6221, %v6143, %v4652
        %v6273 = vsel %vm6221, %v6144, %v4654
        %v6274 = vsel %vm6221, %v6145, %v4656
        %v6275 = vsel %vm6221, %v6146, %v4658
        %v6276 = vsel %vm6221, %v6147, %v4660
        %v6277 = vsel %vm6221, %v6148, %v4662
        %v6278 = vsel %vm6221, %v6149, %v4664
        %v6279 = vsel %vm6221, %v6150, %v4666
        %v6280 = vsel %vm6221, %v6151, %v4668
        %v6281 = vsel %vm6221, %v6152, %v4670
        %v6282 = vsel %vm6221, %v6153, %v4672
        %v6283 = vsel %vm6221, %v6154, %v4674
        %v6284 = vsel %vm6221, %v6155, %v4676
        %v6285 = vsel %vm6221, %v6156, %v4678
        %v6286 = vsel %vm6221, %v6157, %v4680
        %v6287 = vsel %vm6221, %v6158, %v4682
        %v6288 = vsel %vm6221, %v6159, %v4684
        %v6289 = vsel %vm6221, %v6160, %v4686
        %v6290 = vsel %vm6221, %v6161, %v4688
        %v6291 = vsel %vm6221, %v6162, %v4690
        %v6292 = vsel %vm6221, %v6163, %v4692
        %v6293 = vsel %vm6221, %v6164, %v4694
        %v6294 = vsel %vm6221, %v6165, %v4696
        %v6295 = vsel %vm6221, %v6166, %v4698
        %v6296 = vsel %vm6221, %v6167, %v4700
        %v6297 = vsel %vm6221, %v6168, %v4702
        %v6298 = vsel %vm6221, %v6169, %v4704
        %v6299 = vsel %vm6221, %v6170, %v4706
        %v6300 = vsel %vm6221, %v6171, %v4708
        %v6301 = vsel %vm6221, %v6172, %v4710
        %v6302 = vsel %vm6221, %v6173, %v4712
        %v6303 = vsel %vm6221, %v6174, %v4714
        %v6304 = vsel %vm6221, %v6175, %v4716
        %v6305 = vsel %vm6221, %v6176, %v4718
        %v6306 = vsel %vm6221, %v6177, %v4720
        %v6307 = vsel %vm6221, %v6178, %v4722
        %v6308 = vsel %vm6221, %v6179, %v4724
        %v6309 = vsel %vm6221, %v6180, %v4726
        %v6310 = vsel %vm6221, %v6181, %v4728
        %v6311 = vsel %vm6221, %v6182, %v4730
        %v6312 = vsel %vm6221, %v6183, %v4732
        %v6313 = vsel %vm6221, %v6184, %v4734
        %v6314 = vsel %vm6221, %v6185, %v4736
        %v6315 = vsel %vm6221, %v6186, %v4738
        %v6316 = vsel %vm6221, %v6187, %v4740
        %v6317 = vsel %vm6221, %v6188, %v4742
        %v6318 = vsel %vm6221, %v6189, %v4744
        %v6319 = vsel %vm6221, %v6190, %v4746
        %v6320 = vsel %vm6221, %v6191, %v4748
        %v6321 = vsel %vm6221, %v6192, %v4750
        %v6322 = vsel %vm6221, %v6193, %v4752
        %v6323 = vsel %vm6221, %v6194, %v4754
        %v6324 = vsel %vm6221, %v6195, %v4756
        %v6325 = vsel %vm6221, %v6196, %v4758
        %v6326 = vsel %vm6221, %v6197, %v4760
        %v6327 = vsel %vm6221, %v6198, %v4762
        %v6328 = vsel %vm6221, %v6199, %v4764
        %v6329 = vsel %vm6221, %v6200, %v4766
        %v6330 = vsel %vm6221, %v6201, %v4768
        %v6331 = vsel %vm6221, %v6202, %v4770
        %v6332 = vsel %vm6221, %v6203, %v4772
        %v6333 = vsel %vm6221, %v6204, %v4774
        %v6334 = vsel %vm6221, %v6205, %v4776
        %v6335 = vsel %vm6221, %v6206, %v4778
        %v6336 = vsel %vm6221, %v6207, %v4780
        %v6337 = vsel %vm6221, %v6208, %v4782
        %v6338 = vsel %vm6221, %v6209, %v4784
        %v6339 = vsel %vm6221, %v6210, %v4786
        %v6340 = vsel %vm6221, %v6211, %v4788
        %v6341 = vsel %vm6221, %v6212, %v4790
        %v6342 = vsel %vm6221, %v6213, %v4792
        %v6343 = vsel %vm6221, %v6214, %v4794
        %v6344 = vsel %vm6221, %v6215, %v4796
        %v6345 = vsel %vm6221, %v6216, %v4798
        %v6346 = vsel %vm6221, %v6217, %v4800
        %v6347 = vsel %vm6221, %v6218, %v4802
        %v6348 = vsel %vm6221, %v6219, %v4804
        %v6349 = vsel %vm6221, %v6220, %v4806
        %vm6350 = vcmask 195584
        %v6351 = vsel %vm6350, %v6222, %v5064
        %v6352 = vsel %vm6350, %v6223, %v5066
        %v6353 = vsel %vm6350, %v6224, %v5068
        %v6354 = vsel %vm6350, %v6225, %v5070
        %v6355 = vsel %vm6350, %v6226, %v5072
        %v6356 = vsel %vm6350, %v6227, %v5074
        %v6357 = vsel %vm6350, %v6228, %v5076
        %v6358 = vsel %vm6350, %v6229, %v5078
        %v6359 = vsel %vm6350, %v6230, %v5080
        %v6360 = vsel %vm6350, %v6231, %v5082
        %v6361 = vsel %vm6350, %v6232, %v5084
        %v6362 = vsel %vm6350, %v6233, %v5086
        %v6363 = vsel %vm6350, %v6234, %v5088
        %v6364 = vsel %vm6350, %v6235, %v5090
        %v6365 = vsel %vm6350, %v6236, %v5092
        %v6366 = vsel %vm6350, %v6237, %v5094
        %v6367 = vsel %vm6350, %v6238, %v5096
        %v6368 = vsel %vm6350, %v6239, %v5098
        %v6369 = vsel %vm6350, %v6240, %v5100
        %v6370 = vsel %vm6350, %v6241, %v5102
        %v6371 = vsel %vm6350, %v6242, %v5104
        %v6372 = vsel %vm6350, %v6243, %v5106
        %v6373 = vsel %vm6350, %v6244, %v5108
        %v6374 = vsel %vm6350, %v6245, %v5110
        %v6375 = vsel %vm6350, %v6246, %v5112
        %v6376 = vsel %vm6350, %v6247, %v5114
        %v6377 = vsel %vm6350, %v6248, %v5116
        %v6378 = vsel %vm6350, %v6249, %v5118
        %v6379 = vsel %vm6350, %v6250, %v5120
        %v6380 = vsel %vm6350, %v6251, %v5122
        %v6381 = vsel %vm6350, %v6252, %v5124
        %v6382 = vsel %vm6350, %v6253, %v5126
        %v6383 = vsel %vm6350, %v6254, %v5128
        %v6384 = vsel %vm6350, %v6255, %v5130
        %v6385 = vsel %vm6350, %v6256, %v5132
        %v6386 = vsel %vm6350, %v6257, %v5134
        %v6387 = vsel %vm6350, %v6258, %v5136
        %v6388 = vsel %vm6350, %v6259, %v5138
        %v6389 = vsel %vm6350, %v6260, %v5140
        %v6390 = vsel %vm6350, %v6261, %v5142
        %v6391 = vsel %vm6350, %v6262, %v5144
        %v6392 = vsel %vm6350, %v6263, %v5146
        %v6393 = vsel %vm6350, %v6264, %v5148
        %v6394 = vsel %vm6350, %v6265, %v5150
        %v6395 = vsel %vm6350, %v6266, %v5152
        %v6396 = vsel %vm6350, %v6267, %v5154
        %v6397 = vsel %vm6350, %v6268, %v5156
        %v6398 = vsel %vm6350, %v6269, %v5158
        %v6399 = vsel %vm6350, %v6270, %v5160
        %v6400 = vsel %vm6350, %v6271, %v5162
        %v6401 = vsel %vm6350, %v6272, %v5164
        %v6402 = vsel %vm6350, %v6273, %v5166
        %v6403 = vsel %vm6350, %v6274, %v5168
        %v6404 = vsel %vm6350, %v6275, %v5170
        %v6405 = vsel %vm6350, %v6276, %v5172
        %v6406 = vsel %vm6350, %v6277, %v5174
        %v6407 = vsel %vm6350, %v6278, %v5176
        %v6408 = vsel %vm6350, %v6279, %v5178
        %v6409 = vsel %vm6350, %v6280, %v5180
        %v6410 = vsel %vm6350, %v6281, %v5182
        %v6411 = vsel %vm6350, %v6282, %v5184
        %v6412 = vsel %vm6350, %v6283, %v5186
        %v6413 = vsel %vm6350, %v6284, %v5188
        %v6414 = vsel %vm6350, %v6285, %v5190
        %v6415 = vsel %vm6350, %v6286, %v5192
        %v6416 = vsel %vm6350, %v6287, %v5194
        %v6417 = vsel %vm6350, %v6288, %v5196
        %v6418 = vsel %vm6350, %v6289, %v5198
        %v6419 = vsel %vm6350, %v6290, %v5200
        %v6420 = vsel %vm6350, %v6291, %v5202
        %v6421 = vsel %vm6350, %v6292, %v5204
        %v6422 = vsel %vm6350, %v6293, %v5206
        %v6423 = vsel %vm6350, %v6294, %v5208
        %v6424 = vsel %vm6350, %v6295, %v5210
        %v6425 = vsel %vm6350, %v6296, %v5212
        %v6426 = vsel %vm6350, %v6297, %v5214
        %v6427 = vsel %vm6350, %v6298, %v5216
        %v6428 = vsel %vm6350, %v6299, %v5218
        %v6429 = vsel %vm6350, %v6300, %v5220
        %v6430 = vsel %vm6350, %v6301, %v5222
        %v6431 = vsel %vm6350, %v6302, %v5224
        %v6432 = vsel %vm6350, %v6303, %v5226
        %v6433 = vsel %vm6350, %v6304, %v5228
        %v6434 = vsel %vm6350, %v6305, %v5230
        %v6435 = vsel %vm6350, %v6306, %v5232
        %v6436 = vsel %vm6350, %v6307, %v5234
        %v6437 = vsel %vm6350, %v6308, %v5236
        %v6438 = vsel %vm6350, %v6309, %v5238
        %v6439 = vsel %vm6350, %v6310, %v5240
        %v6440 = vsel %vm6350, %v6311, %v5242
        %v6441 = vsel %vm6350, %v6312, %v5244
        %v6442 = vsel %vm6350, %v6313, %v5246
        %v6443 = vsel %vm6350, %v6314, %v5248
        %v6444 = vsel %vm6350, %v6315, %v5250
        %v6445 = vsel %vm6350, %v6316, %v5252
        %v6446 = vsel %vm6350, %v6317, %v5254
        %v6447 = vsel %vm6350, %v6318, %v5256
        %v6448 = vsel %vm6350, %v6319, %v5258
        %v6449 = vsel %vm6350, %v6320, %v5260
        %v6450 = vsel %vm6350, %v6321, %v5262
        %v6451 = vsel %vm6350, %v6322, %v5264
        %v6452 = vsel %vm6350, %v6323, %v5266
        %v6453 = vsel %vm6350, %v6324, %v5268
        %v6454 = vsel %vm6350, %v6325, %v5270
        %v6455 = vsel %vm6350, %v6326, %v5272
        %v6456 = vsel %vm6350, %v6327, %v5274
        %v6457 = vsel %vm6350, %v6328, %v5276
        %v6458 = vsel %vm6350, %v6329, %v5278
        %v6459 = vsel %vm6350, %v6330, %v5280
        %v6460 = vsel %vm6350, %v6331, %v5282
        %v6461 = vsel %vm6350, %v6332, %v5284
        %v6462 = vsel %vm6350, %v6333, %v5286
        %v6463 = vsel %vm6350, %v6334, %v5288
        %v6464 = vsel %vm6350, %v6335, %v5290
        %v6465 = vsel %vm6350, %v6336, %v5292
        %v6466 = vsel %vm6350, %v6337, %v5294
        %v6467 = vsel %vm6350, %v6338, %v5296
        %v6468 = vsel %vm6350, %v6339, %v5298
        %v6469 = vsel %vm6350, %v6340, %v5300
        %v6470 = vsel %vm6350, %v6341, %v5302
        %v6471 = vsel %vm6350, %v6342, %v5304
        %v6472 = vsel %vm6350, %v6343, %v5306
        %v6473 = vsel %vm6350, %v6344, %v5308
        %v6474 = vsel %vm6350, %v6345, %v5310
        %v6475 = vsel %vm6350, %v6346, %v5312
        %v6476 = vsel %vm6350, %v6347, %v5314
        %v6477 = vsel %vm6350, %v6348, %v5316
        %v6478 = vsel %vm6350, %v6349, %v5318
        %v6479 = vpack.c.bf16 %v6352, %v6351
        %v6480 = vpack.c.bf16 %v6354, %v6353
        %v6481 = vpack.c.bf16 %v6356, %v6355
        %v6482 = vpack.c.bf16 %v6358, %v6357
        %v6483 = vpack.c.bf16 %v6360, %v6359
        %v6484 = vpack.c.bf16 %v6362, %v6361
        %v6485 = vpack.c.bf16 %v6364, %v6363
        %v6486 = vpack.c.bf16 %v6366, %v6365
        %v6487 = vpack.c.bf16 %v6368, %v6367
        %v6488 = vpack.c.bf16 %v6370, %v6369
        %v6489 = vpack.c.bf16 %v6372, %v6371
        %v6490 = vpack.c.bf16 %v6374, %v6373
        %v6491 = vpack.c.bf16 %v6376, %v6375
        %v6492 = vpack.c.bf16 %v6378, %v6377
        %v6493 = vpack.c.bf16 %v6380, %v6379
        %v6494 = vpack.c.bf16 %v6382, %v6381
        %v6495 = vpack.c.bf16 %v6384, %v6383
        %v6496 = vpack.c.bf16 %v6386, %v6385
        %v6497 = vpack.c.bf16 %v6388, %v6387
        %v6498 = vpack.c.bf16 %v6390, %v6389
        %v6499 = vpack.c.bf16 %v6392, %v6391
        %v6500 = vpack.c.bf16 %v6394, %v6393
        %v6501 = vpack.c.bf16 %v6396, %v6395
        %v6502 = vpack.c.bf16 %v6398, %v6397
        %v6503 = vpack.c.bf16 %v6400, %v6399
        %v6504 = vpack.c.bf16 %v6402, %v6401
        %v6505 = vpack.c.bf16 %v6404, %v6403
        %v6506 = vpack.c.bf16 %v6406, %v6405
        %v6507 = vpack.c.bf16 %v6408, %v6407
        %v6508 = vpack.c.bf16 %v6410, %v6409
        %v6509 = vpack.c.bf16 %v6412, %v6411
        %v6510 = vpack.c.bf16 %v6414, %v6413
        %v6511 = vpack.c.bf16 %v6416, %v6415
        %v6512 = vpack.c.bf16 %v6418, %v6417
        %v6513 = vpack.c.bf16 %v6420, %v6419
        %v6514 = vpack.c.bf16 %v6422, %v6421
        %v6515 = vpack.c.bf16 %v6424, %v6423
        %v6516 = vpack.c.bf16 %v6426, %v6425
        %v6517 = vpack.c.bf16 %v6428, %v6427
        %v6518 = vpack.c.bf16 %v6430, %v6429
        %v6519 = vpack.c.bf16 %v6432, %v6431
        %v6520 = vpack.c.bf16 %v6434, %v6433
        %v6521 = vpack.c.bf16 %v6436, %v6435
        %v6522 = vpack.c.bf16 %v6438, %v6437
        %v6523 = vpack.c.bf16 %v6440, %v6439
        %v6524 = vpack.c.bf16 %v6442, %v6441
        %v6525 = vpack.c.bf16 %v6444, %v6443
        %v6526 = vpack.c.bf16 %v6446, %v6445
        %v6527 = vpack.c.bf16 %v6448, %v6447
        %v6528 = vpack.c.bf16 %v6450, %v6449
        %v6529 = vpack.c.bf16 %v6452, %v6451
        %v6530 = vpack.c.bf16 %v6454, %v6453
        %v6531 = vpack.c.bf16 %v6456, %v6455
        %v6532 = vpack.c.bf16 %v6458, %v6457
        %v6533 = vpack.c.bf16 %v6460, %v6459
        %v6534 = vpack.c.bf16 %v6462, %v6461
        %v6535 = vpack.c.bf16 %v6464, %v6463
        %v6536 = vpack.c.bf16 %v6466, %v6465
        %v6537 = vpack.c.bf16 %v6468, %v6467
        %v6538 = vpack.c.bf16 %v6470, %v6469
        %v6539 = vpack.c.bf16 %v6472, %v6471
        %v6540 = vpack.c.bf16 %v6474, %v6473
        %v6541 = vpack.c.bf16 %v6476, %v6475
        %v6542 = vpack.c.bf16 %v6478, %v6477
        %v6543 = vld [vmem:[%s1] sm:$0xf]
        %v6544 = vld [vmem:[%s1 + $0x4] sm:$0xf]
        %v6545 = vld [vmem:[%s1 + $0x8] sm:$0xf]
        %v6546 = vld [vmem:[%s1 + $0xc] sm:$0x3]
        %v6551 = vunpack.c.l.b16 %v6543
        %v6552 = vunpack.c.l.b16 %v6544
        %v6553 = vunpack.c.l.b16 %v6545
        %v6554 = vunpack.c.l.b16 %v6546
        %v6555 = vpack.c.b16 %v6552, %v6551
        %v6556 = vpack.c.b16 %v6554, %v6553
        %vm6558 = vcmask 220160
        %v6560 = vsel %vm6558, %v6479, 0
        %v6563 = vsel %vm6558, %v6480, 0
        %v6566 = vsel %vm6558, %v6481, 0
        %v6569 = vsel %vm6558, %v6482, 0
        %v6572 = vsel %vm6558, %v6483, 0
        %v6575 = vsel %vm6558, %v6484, 0
        %v6578 = vsel %vm6558, %v6485, 0
        %v6581 = vsel %vm6558, %v6486, 0
        %v6584 = vsel %vm6558, %v6487, 0
        %v6587 = vsel %vm6558, %v6488, 0
        %v6590 = vsel %vm6558, %v6489, 0
        %v6593 = vsel %vm6558, %v6490, 0
        %v6596 = vsel %vm6558, %v6491, 0
        %v6599 = vsel %vm6558, %v6492, 0
        %v6602 = vsel %vm6558, %v6493, 0
        %v6605 = vsel %vm6558, %v6494, 0
        %v6608 = vsel %vm6558, %v6495, 0
        %v6611 = vsel %vm6558, %v6496, 0
        %v6614 = vsel %vm6558, %v6497, 0
        %v6617 = vsel %vm6558, %v6498, 0
        %v6620 = vsel %vm6558, %v6499, 0
        %v6623 = vsel %vm6558, %v6500, 0
        %v6626 = vsel %vm6558, %v6501, 0
        %v6629 = vsel %vm6558, %v6502, 0
        %v6632 = vsel %vm6558, %v6503, 0
        %v6635 = vsel %vm6558, %v6504, 0
        %v6638 = vsel %vm6558, %v6505, 0
        %v6641 = vsel %vm6558, %v6506, 0
        %v6644 = vsel %vm6558, %v6507, 0
        %v6647 = vsel %vm6558, %v6508, 0
        %v6650 = vsel %vm6558, %v6509, 0
        %v6653 = vsel %vm6558, %v6510, 0
        %v6656 = vsel %vm6558, %v6511, 0
        %v6659 = vsel %vm6558, %v6512, 0
        %v6662 = vsel %vm6558, %v6513, 0
        %v6665 = vsel %vm6558, %v6514, 0
        %v6668 = vsel %vm6558, %v6515, 0
        %v6671 = vsel %vm6558, %v6516, 0
        %v6674 = vsel %vm6558, %v6517, 0
        %v6677 = vsel %vm6558, %v6518, 0
        %v6680 = vsel %vm6558, %v6519, 0
        %v6683 = vsel %vm6558, %v6520, 0
        %v6686 = vsel %vm6558, %v6521, 0
        %v6689 = vsel %vm6558, %v6522, 0
        %v6692 = vsel %vm6558, %v6523, 0
        %v6695 = vsel %vm6558, %v6524, 0
        %v6698 = vsel %vm6558, %v6525, 0
        %v6701 = vsel %vm6558, %v6526, 0
        %v6704 = vsel %vm6558, %v6527, 0
        %v6707 = vsel %vm6558, %v6528, 0
        %v6710 = vsel %vm6558, %v6529, 0
        %v6713 = vsel %vm6558, %v6530, 0
        %v6716 = vsel %vm6558, %v6531, 0
        %v6719 = vsel %vm6558, %v6532, 0
        %v6722 = vsel %vm6558, %v6533, 0
        %v6725 = vsel %vm6558, %v6534, 0
        %v6728 = vsel %vm6558, %v6535, 0
        %v6731 = vsel %vm6558, %v6536, 0
        %v6734 = vsel %vm6558, %v6537, 0
        %v6737 = vsel %vm6558, %v6538, 0
        %v6740 = vsel %vm6558, %v6539, 0
        %v6743 = vsel %vm6558, %v6540, 0
        %v6746 = vsel %vm6558, %v6541, 0
        %v6749 = vsel %vm6558, %v6542, 0
        %vm6751 = vcmask 1044480
        %vm6752 = vcmask 1045504
        %v6753 = vsel %vm6751, 4294967295, 65535
        %v6754 = vsel %vm6752, %v6753, 0
        %v6756 = vand.u32 %v6556, %v6754
        %6758 = vmatprep.subr.bf16.mxu0 0
        %6759 = vmatpush1.bf16.msra.mxu0 %v6555
        %6760 = vmatprep.subr.bf16.mxu0 0
        %6761 = vmatpush1.bf16.msra.mxu0 %v6756
        %6762 = vmatprep.subr.bf16.mxu0 0
        %6763 = vmatpush1.bf16.msra.mxu0 0
        %6764 = vmatprep.subr.bf16.mxu0 0
        %6765 = vmatpush1.bf16.msra.mxu0 0
        %6766 = vmatprep.subr.bf16.mxu0 0
        %6767 = vmatpush1.bf16.msra.mxu0 0
        %6768 = vmatprep.subr.bf16.mxu0 0
        %6769 = vmatpush1.bf16.msra.mxu0 0
        %6770 = vmatprep.subr.bf16.mxu0 0
        %6771 = vmatpush1.bf16.msra.mxu0 0
        %6772 = vmatprep.subr.bf16.mxu0 0
        %6773 = vmatpush1.bf16.msra.mxu0 0
        %6774 = vmatprep.subr.bf16.mxu0 0
        %6775 = vmatpush1.bf16.msra.mxu0 0
        %6776 = vmatprep.subr.bf16.mxu0 0
        %6777 = vmatpush1.bf16.msra.mxu0 0
        %6778 = vmatprep.subr.bf16.mxu0 0
        %6779 = vmatpush1.bf16.msra.mxu0 0
        %6780 = vmatprep.subr.bf16.mxu0 0
        %6781 = vmatpush1.bf16.msra.mxu0 0
        %6782 = vmatprep.subr.bf16.mxu0 0
        %6783 = vmatpush1.bf16.msra.mxu0 0
        %6784 = vmatprep.subr.bf16.mxu0 0
        %6785 = vmatpush1.bf16.msra.mxu0 0
        %6786 = vmatprep.subr.bf16.mxu0 0
        %6787 = vmatpush1.bf16.msra.mxu0 0
        %6788 = vmatprep.subr.bf16.mxu0 0
        %6789 = vmatpush1.bf16.msra.mxu0 0
        %6790 = vmatprep.mubr.bf16.mxu0 0
        %6791 = vmatmul.mubr.bf16.gmra.mrb[0].mxu0 %v6560
        %v6792 = vpop.f32.mrb[0].mxu0
        %v6793 = vadd.f32 0.0, %v6792
        %v6794 = vpop.f32.mrb[0].mxu0
        %v6795 = vpop.f32.mrb[0].mxu0
        %v6796 = vadd.f32 0.0, %v6795
        %v6797 = vpop.f32.mrb[0].mxu0
        %6798 = vmatprep.mubr.bf16.mxu0 0
        %6799 = vmatmul.mubr.bf16.gmra.mrb[0].mxu0 %v6563
        %v6800 = vpop.f32.mrb[0].mxu0
        %v6801 = vadd.f32 0.0, %v6800
        %v6802 = vpop.f32.mrb[0].mxu0
        %v6803 = vpop.f32.mrb[0].mxu0
        %v6804 = vadd.f32 0.0, %v6803
        %v6805 = vpop.f32.mrb[0].mxu0
        %6806 = vmatprep.mubr.bf16.mxu0 0
        %6807 = vmatmul.mubr.bf16.gmra.mrb[0].mxu0 %v6566
        %v6808 = vpop.f32.mrb[0].mxu0
        %v6809 = vadd.f32 0.0, %v6808
        %v6810 = vpop.f32.mrb[0].mxu0
        %v6811 = vpop.f32.mrb[0].mxu0
        %v6812 = vadd.f32 0.0, %v6811
        %v6813 = vpop.f32.mrb[0].mxu0
        %6814 = vmatprep.mubr.bf16.mxu0 0
        %6815 = vmatmul.mubr.bf16.gmra.mrb[0].mxu0 %v6569
        %v6816 = vpop.f32.mrb[0].mxu0
        %v6817 = vadd.f32 0.0, %v6816
        %v6818 = vpop.f32.mrb[0].mxu0
        %v6819 = vpop.f32.mrb[0].mxu0
        %v6820 = vadd.f32 0.0, %v6819
        %v6821 = vpop.f32.mrb[0].mxu0
        %6822 = vmatprep.mubr.bf16.mxu0 0
        %6823 = vmatmul.mubr.bf16.gmra.mrb[0].mxu0 %v6572
        %v6824 = vpop.f32.mrb[0].mxu0
        %v6825 = vadd.f32 0.0, %v6824
        %v6826 = vpop.f32.mrb[0].mxu0
        %v6827 = vpop.f32.mrb[0].mxu0
        %v6828 = vadd.f32 0.0, %v6827
        %v6829 = vpop.f32.mrb[0].mxu0
        %6830 = vmatprep.mubr.bf16.mxu0 0
        %6831 = vmatmul.mubr.bf16.gmra.mrb[0].mxu0 %v6575
        %v6832 = vpop.f32.mrb[0].mxu0
        %v6833 = vadd.f32 0.0, %v6832
        %v6834 = vpop.f32.mrb[0].mxu0
        %v6835 = vpop.f32.mrb[0].mxu0
        %v6836 = vadd.f32 0.0, %v6835
        %v6837 = vpop.f32.mrb[0].mxu0
        %6838 = vmatprep.mubr.bf16.mxu0 0
        %6839 = vmatmul.mubr.bf16.gmra.mrb[0].mxu0 %v6578
        %v6840 = vpop.f32.mrb[0].mxu0
        %v6841 = vadd.f32 0.0, %v6840
        %v6842 = vpop.f32.mrb[0].mxu0
        %v6843 = vpop.f32.mrb[0].mxu0
        %v6844 = vadd.f32 0.0, %v6843
        %v6845 = vpop.f32.mrb[0].mxu0
        %6846 = vmatprep.mubr.bf16.mxu0 0
        %6847 = vmatmul.mubr.bf16.gmra.mrb[0].mxu0 %v6581
        %v6848 = vpop.f32.mrb[0].mxu0
        %v6849 = vadd.f32 0.0, %v6848
        %v6850 = vpop.f32.mrb[0].mxu0
        %v6851 = vpop.f32.mrb[0].mxu0
        %v6852 = vadd.f32 0.0, %v6851
        %v6853 = vpop.f32.mrb[0].mxu0
        %6854 = vmatprep.mubr.bf16.mxu0 0
        %6855 = vmatmul.mubr.bf16.gmra.mrb[0].mxu0 %v6584
        %v6856 = vpop.f32.mrb[0].mxu0
        %v6857 = vadd.f32 0.0, %v6856
        %v6858 = vpop.f32.mrb[0].mxu0
        %v6859 = vpop.f32.mrb[0].mxu0
        %v6860 = vadd.f32 0.0, %v6859
        %v6861 = vpop.f32.mrb[0].mxu0
        %6862 = vmatprep.mubr.bf16.mxu0 0
        %6863 = vmatmul.mubr.bf16.gmra.mrb[0].mxu0 %v6587
        %v6864 = vpop.f32.mrb[0].mxu0
        %v6865 = vadd.f32 0.0, %v6864
        %v6866 = vpop.f32.mrb[0].mxu0
        %v6867 = vpop.f32.mrb[0].mxu0
        %v6868 = vadd.f32 0.0, %v6867
        %v6869 = vpop.f32.mrb[0].mxu0
        %6870 = vmatprep.mubr.bf16.mxu0 0
        %6871 = vmatmul.mubr.bf16.gmra.mrb[0].mxu0 %v6590
        %v6872 = vpop.f32.mrb[0].mxu0
        %v6873 = vadd.f32 0.0, %v6872
        %v6874 = vpop.f32.mrb[0].mxu0
        %v6875 = vpop.f32.mrb[0].mxu0
        %v6876 = vadd.f32 0.0, %v6875
        %v6877 = vpop.f32.mrb[0].mxu0
        %6878 = vmatprep.mubr.bf16.mxu0 0
        %6879 = vmatmul.mubr.bf16.gmra.mrb[0].mxu0 %v6593
        %v6880 = vpop.f32.mrb[0].mxu0
        %v6881 = vadd.f32 0.0, %v6880
        %v6882 = vpop.f32.mrb[0].mxu0
        %v6883 = vpop.f32.mrb[0].mxu0
        %v6884 = vadd.f32 0.0, %v6883
        %v6885 = vpop.f32.mrb[0].mxu0
        %6886 = vmatprep.mubr.bf16.mxu0 0
        %6887 = vmatmul.mubr.bf16.gmra.mrb[0].mxu0 %v6596
        %v6888 = vpop.f32.mrb[0].mxu0
        %v6889 = vadd.f32 0.0, %v6888
        %v6890 = vpop.f32.mrb[0].mxu0
        %v6891 = vpop.f32.mrb[0].mxu0
        %v6892 = vadd.f32 0.0, %v6891
        %v6893 = vpop.f32.mrb[0].mxu0
        %6894 = vmatprep.mubr.bf16.mxu0 0
        %6895 = vmatmul.mubr.bf16.gmra.mrb[0].mxu0 %v6599
        %v6896 = vpop.f32.mrb[0].mxu0
        %v6897 = vadd.f32 0.0, %v6896
        %v6898 = vpop.f32.mrb[0].mxu0
        %v6899 = vpop.f32.mrb[0].mxu0
        %v6900 = vadd.f32 0.0, %v6899
        %v6901 = vpop.f32.mrb[0].mxu0
        %6902 = vmatprep.mubr.bf16.mxu0 0
        %6903 = vmatmul.mubr.bf16.gmra.mrb[0].mxu0 %v6602
        %v6904 = vpop.f32.mrb[0].mxu0
        %v6905 = vadd.f32 0.0, %v6904
        %v6906 = vpop.f32.mrb[0].mxu0
        %v6907 = vpop.f32.mrb[0].mxu0
        %v6908 = vadd.f32 0.0, %v6907
        %v6909 = vpop.f32.mrb[0].mxu0
        %6910 = vmatprep.mubr.bf16.mxu0 0
        %6911 = vmatmul.mubr.bf16.gmra.mrb[0].mxu0 %v6605
        %v6912 = vpop.f32.mrb[0].mxu0
        %v6913 = vadd.f32 0.0, %v6912
        %v6914 = vpop.f32.mrb[0].mxu0
        %v6915 = vpop.f32.mrb[0].mxu0
        %v6916 = vadd.f32 0.0, %v6915
        %v6917 = vpop.f32.mrb[0].mxu0
        %6918 = vmatprep.mubr.bf16.mxu0 0
        %6919 = vmatmul.mubr.bf16.gmra.mrb[0].mxu0 %v6608
        %v6920 = vpop.f32.mrb[0].mxu0
        %v6921 = vadd.f32 0.0, %v6920
        %v6922 = vpop.f32.mrb[0].mxu0
        %v6923 = vpop.f32.mrb[0].mxu0
        %v6924 = vadd.f32 0.0, %v6923
        %v6925 = vpop.f32.mrb[0].mxu0
        %6926 = vmatprep.mubr.bf16.mxu0 0
        %6927 = vmatmul.mubr.bf16.gmra.mrb[0].mxu0 %v6611
        %v6928 = vpop.f32.mrb[0].mxu0
        %v6929 = vadd.f32 0.0, %v6928
        %v6930 = vpop.f32.mrb[0].mxu0
        %v6931 = vpop.f32.mrb[0].mxu0
        %v6932 = vadd.f32 0.0, %v6931
        %v6933 = vpop.f32.mrb[0].mxu0
        %6934 = vmatprep.mubr.bf16.mxu0 0
        %6935 = vmatmul.mubr.bf16.gmra.mrb[0].mxu0 %v6614
        %v6936 = vpop.f32.mrb[0].mxu0
        %v6937 = vadd.f32 0.0, %v6936
        %v6938 = vpop.f32.mrb[0].mxu0
        %v6939 = vpop.f32.mrb[0].mxu0
        %v6940 = vadd.f32 0.0, %v6939
        %v6941 = vpop.f32.mrb[0].mxu0
        %6942 = vmatprep.mubr.bf16.mxu0 0
        %6943 = vmatmul.mubr.bf16.gmra.mrb[0].mxu0 %v6617
        %v6944 = vpop.f32.mrb[0].mxu0
        %v6945 = vadd.f32 0.0, %v6944
        %v6946 = vpop.f32.mrb[0].mxu0
        %v6947 = vpop.f32.mrb[0].mxu0
        %v6948 = vadd.f32 0.0, %v6947
        %v6949 = vpop.f32.mrb[0].mxu0
        %6950 = vmatprep.mubr.bf16.mxu0 0
        %6951 = vmatmul.mubr.bf16.gmra.mrb[0].mxu0 %v6620
        %v6952 = vpop.f32.mrb[0].mxu0
        %v6953 = vadd.f32 0.0, %v6952
        %v6954 = vpop.f32.mrb[0].mxu0
        %v6955 = vpop.f32.mrb[0].mxu0
        %v6956 = vadd.f32 0.0, %v6955
        %v6957 = vpop.f32.mrb[0].mxu0
        %6958 = vmatprep.mubr.bf16.mxu0 0
        %6959 = vmatmul.mubr.bf16.gmra.mrb[0].mxu0 %v6623
        %v6960 = vpop.f32.mrb[0].mxu0
        %v6961 = vadd.f32 0.0, %v6960
        %v6962 = vpop.f32.mrb[0].mxu0
        %v6963 = vpop.f32.mrb[0].mxu0
        %v6964 = vadd.f32 0.0, %v6963
        %v6965 = vpop.f32.mrb[0].mxu0
        %6966 = vmatprep.mubr.bf16.mxu0 0
        %6967 = vmatmul.mubr.bf16.gmra.mrb[0].mxu0 %v6626
        %v6968 = vpop.f32.mrb[0].mxu0
        %v6969 = vadd.f32 0.0, %v6968
        %v6970 = vpop.f32.mrb[0].mxu0
        %v6971 = vpop.f32.mrb[0].mxu0
        %v6972 = vadd.f32 0.0, %v6971
        %v6973 = vpop.f32.mrb[0].mxu0
        %6974 = vmatprep.mubr.bf16.mxu0 0
        %6975 = vmatmul.mubr.bf16.gmra.mrb[0].mxu0 %v6629
        %v6976 = vpop.f32.mrb[0].mxu0
        %v6977 = vadd.f32 0.0, %v6976
        %v6978 = vpop.f32.mrb[0].mxu0
        %v6979 = vpop.f32.mrb[0].mxu0
        %v6980 = vadd.f32 0.0, %v6979
        %v6981 = vpop.f32.mrb[0].mxu0
        %6982 = vmatprep.mubr.bf16.mxu0 0
        %6983 = vmatmul.mubr.bf16.gmra.mrb[0].mxu0 %v6632
        %v6984 = vpop.f32.mrb[0].mxu0
        %v6985 = vadd.f32 0.0, %v6984
        %v6986 = vpop.f32.mrb[0].mxu0
        %v6987 = vpop.f32.mrb[0].mxu0
        %v6988 = vadd.f32 0.0, %v6987
        %v6989 = vpop.f32.mrb[0].mxu0
        %6990 = vmatprep.mubr.bf16.mxu0 0
        %6991 = vmatmul.mubr.bf16.gmra.mrb[0].mxu0 %v6635
        %v6992 = vpop.f32.mrb[0].mxu0
        %v6993 = vadd.f32 0.0, %v6992
        %v6994 = vpop.f32.mrb[0].mxu0
        %v6995 = vpop.f32.mrb[0].mxu0
        %v6996 = vadd.f32 0.0, %v6995
        %v6997 = vpop.f32.mrb[0].mxu0
        %6998 = vmatprep.mubr.bf16.mxu0 0
        %6999 = vmatmul.mubr.bf16.gmra.mrb[0].mxu0 %v6638
        %v7000 = vpop.f32.mrb[0].mxu0
        %v7001 = vadd.f32 0.0, %v7000
        %v7002 = vpop.f32.mrb[0].mxu0
        %v7003 = vpop.f32.mrb[0].mxu0
        %v7004 = vadd.f32 0.0, %v7003
        %v7005 = vpop.f32.mrb[0].mxu0
        %7006 = vmatprep.mubr.bf16.mxu0 0
        %7007 = vmatmul.mubr.bf16.gmra.mrb[0].mxu0 %v6641
        %v7008 = vpop.f32.mrb[0].mxu0
        %v7009 = vadd.f32 0.0, %v7008
        %v7010 = vpop.f32.mrb[0].mxu0
        %v7011 = vpop.f32.mrb[0].mxu0
        %v7012 = vadd.f32 0.0, %v7011
        %v7013 = vpop.f32.mrb[0].mxu0
        %7014 = vmatprep.mubr.bf16.mxu0 0
        %7015 = vmatmul.mubr.bf16.gmra.mrb[0].mxu0 %v6644
        %v7016 = vpop.f32.mrb[0].mxu0
        %v7017 = vadd.f32 0.0, %v7016
        %v7018 = vpop.f32.mrb[0].mxu0
        %v7019 = vpop.f32.mrb[0].mxu0
        %v7020 = vadd.f32 0.0, %v7019
        %v7021 = vpop.f32.mrb[0].mxu0
        %7022 = vmatprep.mubr.bf16.mxu0 0
        %7023 = vmatmul.mubr.bf16.gmra.mrb[0].mxu0 %v6647
        %v7024 = vpop.f32.mrb[0].mxu0
        %v7025 = vadd.f32 0.0, %v7024
        %v7026 = vpop.f32.mrb[0].mxu0
        %v7027 = vpop.f32.mrb[0].mxu0
        %v7028 = vadd.f32 0.0, %v7027
        %v7029 = vpop.f32.mrb[0].mxu0
        %7030 = vmatprep.mubr.bf16.mxu0 0
        %7031 = vmatmul.mubr.bf16.gmra.mrb[0].mxu0 %v6650
        %v7032 = vpop.f32.mrb[0].mxu0
        %v7033 = vadd.f32 0.0, %v7032
        %v7034 = vpop.f32.mrb[0].mxu0
        %v7035 = vpop.f32.mrb[0].mxu0
        %v7036 = vadd.f32 0.0, %v7035
        %v7037 = vpop.f32.mrb[0].mxu0
        %7038 = vmatprep.mubr.bf16.mxu0 0
        %7039 = vmatmul.mubr.bf16.gmra.mrb[0].mxu0 %v6653
        %v7040 = vpop.f32.mrb[0].mxu0
        %v7041 = vadd.f32 0.0, %v7040
        %v7042 = vpop.f32.mrb[0].mxu0
        %v7043 = vpop.f32.mrb[0].mxu0
        %v7044 = vadd.f32 0.0, %v7043
        %v7045 = vpop.f32.mrb[0].mxu0
        %7046 = vmatprep.mubr.bf16.mxu0 0
        %7047 = vmatmul.mubr.bf16.gmra.mrb[0].mxu0 %v6656
        %v7048 = vpop.f32.mrb[0].mxu0
        %v7049 = vadd.f32 0.0, %v7048
        %v7050 = vpop.f32.mrb[0].mxu0
        %v7051 = vpop.f32.mrb[0].mxu0
        %v7052 = vadd.f32 0.0, %v7051
        %v7053 = vpop.f32.mrb[0].mxu0
        %7054 = vmatprep.mubr.bf16.mxu0 0
        %7055 = vmatmul.mubr.bf16.gmra.mrb[0].mxu0 %v6659
        %v7056 = vpop.f32.mrb[0].mxu0
        %v7057 = vadd.f32 0.0, %v7056
        %v7058 = vpop.f32.mrb[0].mxu0
        %v7059 = vpop.f32.mrb[0].mxu0
        %v7060 = vadd.f32 0.0, %v7059
        %v7061 = vpop.f32.mrb[0].mxu0
        %7062 = vmatprep.mubr.bf16.mxu0 0
        %7063 = vmatmul.mubr.bf16.gmra.mrb[0].mxu0 %v6662
        %v7064 = vpop.f32.mrb[0].mxu0
        %v7065 = vadd.f32 0.0, %v7064
        %v7066 = vpop.f32.mrb[0].mxu0
        %v7067 = vpop.f32.mrb[0].mxu0
        %v7068 = vadd.f32 0.0, %v7067
        %v7069 = vpop.f32.mrb[0].mxu0
        %7070 = vmatprep.mubr.bf16.mxu0 0
        %7071 = vmatmul.mubr.bf16.gmra.mrb[0].mxu0 %v6665
        %v7072 = vpop.f32.mrb[0].mxu0
        %v7073 = vadd.f32 0.0, %v7072
        %v7074 = vpop.f32.mrb[0].mxu0
        %v7075 = vpop.f32.mrb[0].mxu0
        %v7076 = vadd.f32 0.0, %v7075
        %v7077 = vpop.f32.mrb[0].mxu0
        %7078 = vmatprep.mubr.bf16.mxu0 0
        %7079 = vmatmul.mubr.bf16.gmra.mrb[0].mxu0 %v6668
        %v7080 = vpop.f32.mrb[0].mxu0
        %v7081 = vadd.f32 0.0, %v7080
        %v7082 = vpop.f32.mrb[0].mxu0
        %v7083 = vpop.f32.mrb[0].mxu0
        %v7084 = vadd.f32 0.0, %v7083
        %v7085 = vpop.f32.mrb[0].mxu0
        %7086 = vmatprep.mubr.bf16.mxu0 0
        %7087 = vmatmul.mubr.bf16.gmra.mrb[0].mxu0 %v6671
        %v7088 = vpop.f32.mrb[0].mxu0
        %v7089 = vadd.f32 0.0, %v7088
        %v7090 = vpop.f32.mrb[0].mxu0
        %v7091 = vpop.f32.mrb[0].mxu0
        %v7092 = vadd.f32 0.0, %v7091
        %v7093 = vpop.f32.mrb[0].mxu0
        %7094 = vmatprep.mubr.bf16.mxu0 0
        %7095 = vmatmul.mubr.bf16.gmra.mrb[0].mxu0 %v6674
        %v7096 = vpop.f32.mrb[0].mxu0
        %v7097 = vadd.f32 0.0, %v7096
        %v7098 = vpop.f32.mrb[0].mxu0
        %v7099 = vpop.f32.mrb[0].mxu0
        %v7100 = vadd.f32 0.0, %v7099
        %v7101 = vpop.f32.mrb[0].mxu0
        %7102 = vmatprep.mubr.bf16.mxu0 0
        %7103 = vmatmul.mubr.bf16.gmra.mrb[0].mxu0 %v6677
        %v7104 = vpop.f32.mrb[0].mxu0
        %v7105 = vadd.f32 0.0, %v7104
        %v7106 = vpop.f32.mrb[0].mxu0
        %v7107 = vpop.f32.mrb[0].mxu0
        %v7108 = vadd.f32 0.0, %v7107
        %v7109 = vpop.f32.mrb[0].mxu0
        %7110 = vmatprep.mubr.bf16.mxu0 0
        %7111 = vmatmul.mubr.bf16.gmra.mrb[0].mxu0 %v6680
        %v7112 = vpop.f32.mrb[0].mxu0
        %v7113 = vadd.f32 0.0, %v7112
        %v7114 = vpop.f32.mrb[0].mxu0
        %v7115 = vpop.f32.mrb[0].mxu0
        %v7116 = vadd.f32 0.0, %v7115
        %v7117 = vpop.f32.mrb[0].mxu0
        %7118 = vmatprep.mubr.bf16.mxu0 0
        %7119 = vmatmul.mubr.bf16.gmra.mrb[0].mxu0 %v6683
        %v7120 = vpop.f32.mrb[0].mxu0
        %v7121 = vadd.f32 0.0, %v7120
        %v7122 = vpop.f32.mrb[0].mxu0
        %v7123 = vpop.f32.mrb[0].mxu0
        %v7124 = vadd.f32 0.0, %v7123
        %v7125 = vpop.f32.mrb[0].mxu0
        %7126 = vmatprep.mubr.bf16.mxu0 0
        %7127 = vmatmul.mubr.bf16.gmra.mrb[0].mxu0 %v6686
        %v7128 = vpop.f32.mrb[0].mxu0
        %v7129 = vadd.f32 0.0, %v7128
        %v7130 = vpop.f32.mrb[0].mxu0
        %v7131 = vpop.f32.mrb[0].mxu0
        %v7132 = vadd.f32 0.0, %v7131
        %v7133 = vpop.f32.mrb[0].mxu0
        %7134 = vmatprep.mubr.bf16.mxu0 0
        %7135 = vmatmul.mubr.bf16.gmra.mrb[0].mxu0 %v6689
        %v7136 = vpop.f32.mrb[0].mxu0
        %v7137 = vadd.f32 0.0, %v7136
        %v7138 = vpop.f32.mrb[0].mxu0
        %v7139 = vpop.f32.mrb[0].mxu0
        %v7140 = vadd.f32 0.0, %v7139
        %v7141 = vpop.f32.mrb[0].mxu0
        %7142 = vmatprep.mubr.bf16.mxu0 0
        %7143 = vmatmul.mubr.bf16.gmra.mrb[0].mxu0 %v6692
        %v7144 = vpop.f32.mrb[0].mxu0
        %v7145 = vadd.f32 0.0, %v7144
        %v7146 = vpop.f32.mrb[0].mxu0
        %v7147 = vpop.f32.mrb[0].mxu0
        %v7148 = vadd.f32 0.0, %v7147
        %v7149 = vpop.f32.mrb[0].mxu0
        %7150 = vmatprep.mubr.bf16.mxu0 0
        %7151 = vmatmul.mubr.bf16.gmra.mrb[0].mxu0 %v6695
        %v7152 = vpop.f32.mrb[0].mxu0
        %v7153 = vadd.f32 0.0, %v7152
        %v7154 = vpop.f32.mrb[0].mxu0
        %v7155 = vpop.f32.mrb[0].mxu0
        %v7156 = vadd.f32 0.0, %v7155
        %v7157 = vpop.f32.mrb[0].mxu0
        %7158 = vmatprep.mubr.bf16.mxu0 0
        %7159 = vmatmul.mubr.bf16.gmra.mrb[0].mxu0 %v6698
        %v7160 = vpop.f32.mrb[0].mxu0
        %v7161 = vadd.f32 0.0, %v7160
        %v7162 = vpop.f32.mrb[0].mxu0
        %v7163 = vpop.f32.mrb[0].mxu0
        %v7164 = vadd.f32 0.0, %v7163
        %v7165 = vpop.f32.mrb[0].mxu0
        %7166 = vmatprep.mubr.bf16.mxu0 0
        %7167 = vmatmul.mubr.bf16.gmra.mrb[0].mxu0 %v6701
        %v7168 = vpop.f32.mrb[0].mxu0
        %v7169 = vadd.f32 0.0, %v7168
        %v7170 = vpop.f32.mrb[0].mxu0
        %v7171 = vpop.f32.mrb[0].mxu0
        %v7172 = vadd.f32 0.0, %v7171
        %v7173 = vpop.f32.mrb[0].mxu0
        %7174 = vmatprep.mubr.bf16.mxu0 0
        %7175 = vmatmul.mubr.bf16.gmra.mrb[0].mxu0 %v6704
        %v7176 = vpop.f32.mrb[0].mxu0
        %v7177 = vadd.f32 0.0, %v7176
        %v7178 = vpop.f32.mrb[0].mxu0
        %v7179 = vpop.f32.mrb[0].mxu0
        %v7180 = vadd.f32 0.0, %v7179
        %v7181 = vpop.f32.mrb[0].mxu0
        %7182 = vmatprep.mubr.bf16.mxu0 0
        %7183 = vmatmul.mubr.bf16.gmra.mrb[0].mxu0 %v6707
        %v7184 = vpop.f32.mrb[0].mxu0
        %v7185 = vadd.f32 0.0, %v7184
        %v7186 = vpop.f32.mrb[0].mxu0
        %v7187 = vpop.f32.mrb[0].mxu0
        %v7188 = vadd.f32 0.0, %v7187
        %v7189 = vpop.f32.mrb[0].mxu0
        %7190 = vmatprep.mubr.bf16.mxu0 0
        %7191 = vmatmul.mubr.bf16.gmra.mrb[0].mxu0 %v6710
        %v7192 = vpop.f32.mrb[0].mxu0
        %v7193 = vadd.f32 0.0, %v7192
        %v7194 = vpop.f32.mrb[0].mxu0
        %v7195 = vpop.f32.mrb[0].mxu0
        %v7196 = vadd.f32 0.0, %v7195
        %v7197 = vpop.f32.mrb[0].mxu0
        %7198 = vmatprep.mubr.bf16.mxu0 0
        %7199 = vmatmul.mubr.bf16.gmra.mrb[0].mxu0 %v6713
        %v7200 = vpop.f32.mrb[0].mxu0
        %v7201 = vadd.f32 0.0, %v7200
        %v7202 = vpop.f32.mrb[0].mxu0
        %v7203 = vpop.f32.mrb[0].mxu0
        %v7204 = vadd.f32 0.0, %v7203
        %v7205 = vpop.f32.mrb[0].mxu0
        %7206 = vmatprep.mubr.bf16.mxu0 0
        %7207 = vmatmul.mubr.bf16.gmra.mrb[0].mxu0 %v6716
        %v7208 = vpop.f32.mrb[0].mxu0
        %v7209 = vadd.f32 0.0, %v7208
        %v7210 = vpop.f32.mrb[0].mxu0
        %v7211 = vpop.f32.mrb[0].mxu0
        %v7212 = vadd.f32 0.0, %v7211
        %v7213 = vpop.f32.mrb[0].mxu0
        %7214 = vmatprep.mubr.bf16.mxu0 0
        %7215 = vmatmul.mubr.bf16.gmra.mrb[0].mxu0 %v6719
        %v7216 = vpop.f32.mrb[0].mxu0
        %v7217 = vadd.f32 0.0, %v7216
        %v7218 = vpop.f32.mrb[0].mxu0
        %v7219 = vpop.f32.mrb[0].mxu0
        %v7220 = vadd.f32 0.0, %v7219
        %v7221 = vpop.f32.mrb[0].mxu0
        %7222 = vmatprep.mubr.bf16.mxu0 0
        %7223 = vmatmul.mubr.bf16.gmra.mrb[0].mxu0 %v6722
        %v7224 = vpop.f32.mrb[0].mxu0
        %v7225 = vadd.f32 0.0, %v7224
        %v7226 = vpop.f32.mrb[0].mxu0
        %v7227 = vpop.f32.mrb[0].mxu0
        %v7228 = vadd.f32 0.0, %v7227
        %v7229 = vpop.f32.mrb[0].mxu0
        %7230 = vmatprep.mubr.bf16.mxu0 0
        %7231 = vmatmul.mubr.bf16.gmra.mrb[0].mxu0 %v6725
        %v7232 = vpop.f32.mrb[0].mxu0
        %v7233 = vadd.f32 0.0, %v7232
        %v7234 = vpop.f32.mrb[0].mxu0
        %v7235 = vpop.f32.mrb[0].mxu0
        %v7236 = vadd.f32 0.0, %v7235
        %v7237 = vpop.f32.mrb[0].mxu0
        %7238 = vmatprep.mubr.bf16.mxu0 0
        %7239 = vmatmul.mubr.bf16.gmra.mrb[0].mxu0 %v6728
        %v7240 = vpop.f32.mrb[0].mxu0
        %v7241 = vadd.f32 0.0, %v7240
        %v7242 = vpop.f32.mrb[0].mxu0
        %v7243 = vpop.f32.mrb[0].mxu0
        %v7244 = vadd.f32 0.0, %v7243
        %v7245 = vpop.f32.mrb[0].mxu0
        %7246 = vmatprep.mubr.bf16.mxu0 0
        %7247 = vmatmul.mubr.bf16.gmra.mrb[0].mxu0 %v6731
        %v7248 = vpop.f32.mrb[0].mxu0
        %v7249 = vadd.f32 0.0, %v7248
        %v7250 = vpop.f32.mrb[0].mxu0
        %v7251 = vpop.f32.mrb[0].mxu0
        %v7252 = vadd.f32 0.0, %v7251
        %v7253 = vpop.f32.mrb[0].mxu0
        %7254 = vmatprep.mubr.bf16.mxu0 0
        %7255 = vmatmul.mubr.bf16.gmra.mrb[0].mxu0 %v6734
        %v7256 = vpop.f32.mrb[0].mxu0
        %v7257 = vadd.f32 0.0, %v7256
        %v7258 = vpop.f32.mrb[0].mxu0
        %v7259 = vpop.f32.mrb[0].mxu0
        %v7260 = vadd.f32 0.0, %v7259
        %v7261 = vpop.f32.mrb[0].mxu0
        %7262 = vmatprep.mubr.bf16.mxu0 0
        %7263 = vmatmul.mubr.bf16.gmra.mrb[0].mxu0 %v6737
        %v7264 = vpop.f32.mrb[0].mxu0
        %v7265 = vadd.f32 0.0, %v7264
        %v7266 = vpop.f32.mrb[0].mxu0
        %v7267 = vpop.f32.mrb[0].mxu0
        %v7268 = vadd.f32 0.0, %v7267
        %v7269 = vpop.f32.mrb[0].mxu0
        %7270 = vmatprep.mubr.bf16.mxu0 0
        %7271 = vmatmul.mubr.bf16.gmra.mrb[0].mxu0 %v6740
        %v7272 = vpop.f32.mrb[0].mxu0
        %v7273 = vadd.f32 0.0, %v7272
        %v7274 = vpop.f32.mrb[0].mxu0
        %v7275 = vpop.f32.mrb[0].mxu0
        %v7276 = vadd.f32 0.0, %v7275
        %v7277 = vpop.f32.mrb[0].mxu0
        %7278 = vmatprep.mubr.bf16.mxu0 0
        %7279 = vmatmul.mubr.bf16.gmra.mrb[0].mxu0 %v6743
        %v7280 = vpop.f32.mrb[0].mxu0
        %v7281 = vadd.f32 0.0, %v7280
        %v7282 = vpop.f32.mrb[0].mxu0
        %v7283 = vpop.f32.mrb[0].mxu0
        %v7284 = vadd.f32 0.0, %v7283
        %v7285 = vpop.f32.mrb[0].mxu0
        %7286 = vmatprep.mubr.bf16.mxu0 0
        %7287 = vmatmul.mubr.bf16.gmra.mrb[0].mxu0 %v6746
        %v7288 = vpop.f32.mrb[0].mxu0
        %v7289 = vadd.f32 0.0, %v7288
        %v7290 = vpop.f32.mrb[0].mxu0
        %v7291 = vpop.f32.mrb[0].mxu0
        %v7292 = vadd.f32 0.0, %v7291
        %v7293 = vpop.f32.mrb[0].mxu0
        %7294 = vmatprep.mubr.bf16.mxu0 0
        %7295 = vmatmul.mubr.bf16.gmra.mrb[0].mxu0 %v6749
        %v7296 = vpop.f32.mrb[0].mxu0
        %v7297 = vadd.f32 0.0, %v7296
        %v7298 = vpop.f32.mrb[0].mxu0
        %v7299 = vpop.f32.mrb[0].mxu0
        %v7300 = vadd.f32 0.0, %v7299
        %v7301 = vpop.f32.mrb[0].mxu0
        %7302 = vdwg.mxu0
        %v7303 = vld [vmem:[%s2] sm:$0x1]
        %v7305 = vlaneseq
        %v7306 = vshrl.u32 %v7305, 7
        %v7307 = vsub.s32 0, %v7306
        %v7308 = vrot.slane %v7303, %v7307
        %v7310 = vmul.f32 %v6793, %v7308
        %v7311 = vmul.f32 %v6796, %v7308
        %v7312 = vmul.f32 %v6801, %v7308
        %v7313 = vmul.f32 %v6804, %v7308
        %v7314 = vmul.f32 %v6809, %v7308
        %v7315 = vmul.f32 %v6812, %v7308
        %v7316 = vmul.f32 %v6817, %v7308
        %v7317 = vmul.f32 %v6820, %v7308
        %v7318 = vmul.f32 %v6825, %v7308
        %v7319 = vmul.f32 %v6828, %v7308
        %v7320 = vmul.f32 %v6833, %v7308
        %v7321 = vmul.f32 %v6836, %v7308
        %v7322 = vmul.f32 %v6841, %v7308
        %v7323 = vmul.f32 %v6844, %v7308
        %v7324 = vmul.f32 %v6849, %v7308
        %v7325 = vmul.f32 %v6852, %v7308
        %v7326 = vmul.f32 %v6857, %v7308
        %v7327 = vmul.f32 %v6860, %v7308
        %v7328 = vmul.f32 %v6865, %v7308
        %v7329 = vmul.f32 %v6868, %v7308
        %v7330 = vmul.f32 %v6873, %v7308
        %v7331 = vmul.f32 %v6876, %v7308
        %v7332 = vmul.f32 %v6881, %v7308
        %v7333 = vmul.f32 %v6884, %v7308
        %v7334 = vmul.f32 %v6889, %v7308
        %v7335 = vmul.f32 %v6892, %v7308
        %v7336 = vmul.f32 %v6897, %v7308
        %v7337 = vmul.f32 %v6900, %v7308
        %v7338 = vmul.f32 %v6905, %v7308
        %v7339 = vmul.f32 %v6908, %v7308
        %v7340 = vmul.f32 %v6913, %v7308
        %v7341 = vmul.f32 %v6916, %v7308
        %v7342 = vmul.f32 %v6921, %v7308
        %v7343 = vmul.f32 %v6924, %v7308
        %v7344 = vmul.f32 %v6929, %v7308
        %v7345 = vmul.f32 %v6932, %v7308
        %v7346 = vmul.f32 %v6937, %v7308
        %v7347 = vmul.f32 %v6940, %v7308
        %v7348 = vmul.f32 %v6945, %v7308
        %v7349 = vmul.f32 %v6948, %v7308
        %v7350 = vmul.f32 %v6953, %v7308
        %v7351 = vmul.f32 %v6956, %v7308
        %v7352 = vmul.f32 %v6961, %v7308
        %v7353 = vmul.f32 %v6964, %v7308
        %v7354 = vmul.f32 %v6969, %v7308
        %v7355 = vmul.f32 %v6972, %v7308
        %v7356 = vmul.f32 %v6977, %v7308
        %v7357 = vmul.f32 %v6980, %v7308
        %v7358 = vmul.f32 %v6985, %v7308
        %v7359 = vmul.f32 %v6988, %v7308
        %v7360 = vmul.f32 %v6993, %v7308
        %v7361 = vmul.f32 %v6996, %v7308
        %v7362 = vmul.f32 %v7001, %v7308
        %v7363 = vmul.f32 %v7004, %v7308
        %v7364 = vmul.f32 %v7009, %v7308
        %v7365 = vmul.f32 %v7012, %v7308
        %v7366 = vmul.f32 %v7017, %v7308
        %v7367 = vmul.f32 %v7020, %v7308
        %v7368 = vmul.f32 %v7025, %v7308
        %v7369 = vmul.f32 %v7028, %v7308
        %v7370 = vmul.f32 %v7033, %v7308
        %v7371 = vmul.f32 %v7036, %v7308
        %v7372 = vmul.f32 %v7041, %v7308
        %v7373 = vmul.f32 %v7044, %v7308
        %v7374 = vmul.f32 %v7049, %v7308
        %v7375 = vmul.f32 %v7052, %v7308
        %v7376 = vmul.f32 %v7057, %v7308
        %v7377 = vmul.f32 %v7060, %v7308
        %v7378 = vmul.f32 %v7065, %v7308
        %v7379 = vmul.f32 %v7068, %v7308
        %v7380 = vmul.f32 %v7073, %v7308
        %v7381 = vmul.f32 %v7076, %v7308
        %v7382 = vmul.f32 %v7081, %v7308
        %v7383 = vmul.f32 %v7084, %v7308
        %v7384 = vmul.f32 %v7089, %v7308
        %v7385 = vmul.f32 %v7092, %v7308
        %v7386 = vmul.f32 %v7097, %v7308
        %v7387 = vmul.f32 %v7100, %v7308
        %v7388 = vmul.f32 %v7105, %v7308
        %v7389 = vmul.f32 %v7108, %v7308
        %v7390 = vmul.f32 %v7113, %v7308
        %v7391 = vmul.f32 %v7116, %v7308
        %v7392 = vmul.f32 %v7121, %v7308
        %v7393 = vmul.f32 %v7124, %v7308
        %v7394 = vmul.f32 %v7129, %v7308
        %v7395 = vmul.f32 %v7132, %v7308
        %v7396 = vmul.f32 %v7137, %v7308
        %v7397 = vmul.f32 %v7140, %v7308
        %v7398 = vmul.f32 %v7145, %v7308
        %v7399 = vmul.f32 %v7148, %v7308
        %v7400 = vmul.f32 %v7153, %v7308
        %v7401 = vmul.f32 %v7156, %v7308
        %v7402 = vmul.f32 %v7161, %v7308
        %v7403 = vmul.f32 %v7164, %v7308
        %v7404 = vmul.f32 %v7169, %v7308
        %v7405 = vmul.f32 %v7172, %v7308
        %v7406 = vmul.f32 %v7177, %v7308
        %v7407 = vmul.f32 %v7180, %v7308
        %v7408 = vmul.f32 %v7185, %v7308
        %v7409 = vmul.f32 %v7188, %v7308
        %v7410 = vmul.f32 %v7193, %v7308
        %v7411 = vmul.f32 %v7196, %v7308
        %v7412 = vmul.f32 %v7201, %v7308
        %v7413 = vmul.f32 %v7204, %v7308
        %v7414 = vmul.f32 %v7209, %v7308
        %v7415 = vmul.f32 %v7212, %v7308
        %v7416 = vmul.f32 %v7217, %v7308
        %v7417 = vmul.f32 %v7220, %v7308
        %v7418 = vmul.f32 %v7225, %v7308
        %v7419 = vmul.f32 %v7228, %v7308
        %v7420 = vmul.f32 %v7233, %v7308
        %v7421 = vmul.f32 %v7236, %v7308
        %v7422 = vmul.f32 %v7241, %v7308
        %v7423 = vmul.f32 %v7244, %v7308
        %v7424 = vmul.f32 %v7249, %v7308
        %v7425 = vmul.f32 %v7252, %v7308
        %v7426 = vmul.f32 %v7257, %v7308
        %v7427 = vmul.f32 %v7260, %v7308
        %v7428 = vmul.f32 %v7265, %v7308
        %v7429 = vmul.f32 %v7268, %v7308
        %v7430 = vmul.f32 %v7273, %v7308
        %v7431 = vmul.f32 %v7276, %v7308
        %v7432 = vmul.f32 %v7281, %v7308
        %v7433 = vmul.f32 %v7284, %v7308
        %v7434 = vmul.f32 %v7289, %v7308
        %v7435 = vmul.f32 %v7292, %v7308
        %v7436 = vmul.f32 %v7297, %v7308
        %v7437 = vmul.f32 %v7300, %v7308
        %v7438 = vld [vmem:[%s3] sm:$0x1]
        %v7440 = vlaneseq
        %v7441 = vshrl.u32 %v7440, 7
        %v7442 = vsub.s32 0, %v7441
        %v7443 = vrot.slane %v7438, %v7442
        %v7445 = vadd.f32 %v7310, %v7443
        %v7446 = vadd.f32 %v7311, %v7443
        %v7447 = vadd.f32 %v7312, %v7443
        %v7448 = vadd.f32 %v7313, %v7443
        %v7449 = vadd.f32 %v7314, %v7443
        %v7450 = vadd.f32 %v7315, %v7443
        %v7451 = vadd.f32 %v7316, %v7443
        %v7452 = vadd.f32 %v7317, %v7443
        %v7453 = vadd.f32 %v7318, %v7443
        %v7454 = vadd.f32 %v7319, %v7443
        %v7455 = vadd.f32 %v7320, %v7443
        %v7456 = vadd.f32 %v7321, %v7443
        %v7457 = vadd.f32 %v7322, %v7443
        %v7458 = vadd.f32 %v7323, %v7443
        %v7459 = vadd.f32 %v7324, %v7443
        %v7460 = vadd.f32 %v7325, %v7443
        %v7461 = vadd.f32 %v7326, %v7443
        %v7462 = vadd.f32 %v7327, %v7443
        %v7463 = vadd.f32 %v7328, %v7443
        %v7464 = vadd.f32 %v7329, %v7443
        %v7465 = vadd.f32 %v7330, %v7443
        %v7466 = vadd.f32 %v7331, %v7443
        %v7467 = vadd.f32 %v7332, %v7443
        %v7468 = vadd.f32 %v7333, %v7443
        %v7469 = vadd.f32 %v7334, %v7443
        %v7470 = vadd.f32 %v7335, %v7443
        %v7471 = vadd.f32 %v7336, %v7443
        %v7472 = vadd.f32 %v7337, %v7443
        %v7473 = vadd.f32 %v7338, %v7443
        %v7474 = vadd.f32 %v7339, %v7443
        %v7475 = vadd.f32 %v7340, %v7443
        %v7476 = vadd.f32 %v7341, %v7443
        %v7477 = vadd.f32 %v7342, %v7443
        %v7478 = vadd.f32 %v7343, %v7443
        %v7479 = vadd.f32 %v7344, %v7443
        %v7480 = vadd.f32 %v7345, %v7443
        %v7481 = vadd.f32 %v7346, %v7443
        %v7482 = vadd.f32 %v7347, %v7443
        %v7483 = vadd.f32 %v7348, %v7443
        %v7484 = vadd.f32 %v7349, %v7443
        %v7485 = vadd.f32 %v7350, %v7443
        %v7486 = vadd.f32 %v7351, %v7443
        %v7487 = vadd.f32 %v7352, %v7443
        %v7488 = vadd.f32 %v7353, %v7443
        %v7489 = vadd.f32 %v7354, %v7443
        %v7490 = vadd.f32 %v7355, %v7443
        %v7491 = vadd.f32 %v7356, %v7443
        %v7492 = vadd.f32 %v7357, %v7443
        %v7493 = vadd.f32 %v7358, %v7443
        %v7494 = vadd.f32 %v7359, %v7443
        %v7495 = vadd.f32 %v7360, %v7443
        %v7496 = vadd.f32 %v7361, %v7443
        %v7497 = vadd.f32 %v7362, %v7443
        %v7498 = vadd.f32 %v7363, %v7443
        %v7499 = vadd.f32 %v7364, %v7443
        %v7500 = vadd.f32 %v7365, %v7443
        %v7501 = vadd.f32 %v7366, %v7443
        %v7502 = vadd.f32 %v7367, %v7443
        %v7503 = vadd.f32 %v7368, %v7443
        %v7504 = vadd.f32 %v7369, %v7443
        %v7505 = vadd.f32 %v7370, %v7443
        %v7506 = vadd.f32 %v7371, %v7443
        %v7507 = vadd.f32 %v7372, %v7443
        %v7508 = vadd.f32 %v7373, %v7443
        %v7509 = vadd.f32 %v7374, %v7443
        %v7510 = vadd.f32 %v7375, %v7443
        %v7511 = vadd.f32 %v7376, %v7443
        %v7512 = vadd.f32 %v7377, %v7443
        %v7513 = vadd.f32 %v7378, %v7443
        %v7514 = vadd.f32 %v7379, %v7443
        %v7515 = vadd.f32 %v7380, %v7443
        %v7516 = vadd.f32 %v7381, %v7443
        %v7517 = vadd.f32 %v7382, %v7443
        %v7518 = vadd.f32 %v7383, %v7443
        %v7519 = vadd.f32 %v7384, %v7443
        %v7520 = vadd.f32 %v7385, %v7443
        %v7521 = vadd.f32 %v7386, %v7443
        %v7522 = vadd.f32 %v7387, %v7443
        %v7523 = vadd.f32 %v7388, %v7443
        %v7524 = vadd.f32 %v7389, %v7443
        %v7525 = vadd.f32 %v7390, %v7443
        %v7526 = vadd.f32 %v7391, %v7443
        %v7527 = vadd.f32 %v7392, %v7443
        %v7528 = vadd.f32 %v7393, %v7443
        %v7529 = vadd.f32 %v7394, %v7443
        %v7530 = vadd.f32 %v7395, %v7443
        %v7531 = vadd.f32 %v7396, %v7443
        %v7532 = vadd.f32 %v7397, %v7443
        %v7533 = vadd.f32 %v7398, %v7443
        %v7534 = vadd.f32 %v7399, %v7443
        %v7535 = vadd.f32 %v7400, %v7443
        %v7536 = vadd.f32 %v7401, %v7443
        %v7537 = vadd.f32 %v7402, %v7443
        %v7538 = vadd.f32 %v7403, %v7443
        %v7539 = vadd.f32 %v7404, %v7443
        %v7540 = vadd.f32 %v7405, %v7443
        %v7541 = vadd.f32 %v7406, %v7443
        %v7542 = vadd.f32 %v7407, %v7443
        %v7543 = vadd.f32 %v7408, %v7443
        %v7544 = vadd.f32 %v7409, %v7443
        %v7545 = vadd.f32 %v7410, %v7443
        %v7546 = vadd.f32 %v7411, %v7443
        %v7547 = vadd.f32 %v7412, %v7443
        %v7548 = vadd.f32 %v7413, %v7443
        %v7549 = vadd.f32 %v7414, %v7443
        %v7550 = vadd.f32 %v7415, %v7443
        %v7551 = vadd.f32 %v7416, %v7443
        %v7552 = vadd.f32 %v7417, %v7443
        %v7553 = vadd.f32 %v7418, %v7443
        %v7554 = vadd.f32 %v7419, %v7443
        %v7555 = vadd.f32 %v7420, %v7443
        %v7556 = vadd.f32 %v7421, %v7443
        %v7557 = vadd.f32 %v7422, %v7443
        %v7558 = vadd.f32 %v7423, %v7443
        %v7559 = vadd.f32 %v7424, %v7443
        %v7560 = vadd.f32 %v7425, %v7443
        %v7561 = vadd.f32 %v7426, %v7443
        %v7562 = vadd.f32 %v7427, %v7443
        %v7563 = vadd.f32 %v7428, %v7443
        %v7564 = vadd.f32 %v7429, %v7443
        %v7565 = vadd.f32 %v7430, %v7443
        %v7566 = vadd.f32 %v7431, %v7443
        %v7567 = vadd.f32 %v7432, %v7443
        %v7568 = vadd.f32 %v7433, %v7443
        %v7569 = vadd.f32 %v7434, %v7443
        %v7570 = vadd.f32 %v7435, %v7443
        %v7571 = vadd.f32 %v7436, %v7443
        %v7572 = vadd.f32 %v7437, %v7443
        %v7573 = vmax.f32 %v7445, 0.0
        %v7574 = vmax.f32 %v7446, 0.0
        %v7575 = vmax.f32 %v7447, 0.0
        %v7576 = vmax.f32 %v7448, 0.0
        %v7577 = vmax.f32 %v7449, 0.0
        %v7578 = vmax.f32 %v7450, 0.0
        %v7579 = vmax.f32 %v7451, 0.0
        %v7580 = vmax.f32 %v7452, 0.0
        %v7581 = vmax.f32 %v7453, 0.0
        %v7582 = vmax.f32 %v7454, 0.0
        %v7583 = vmax.f32 %v7455, 0.0
        %v7584 = vmax.f32 %v7456, 0.0
        %v7585 = vmax.f32 %v7457, 0.0
        %v7586 = vmax.f32 %v7458, 0.0
        %v7587 = vmax.f32 %v7459, 0.0
        %v7588 = vmax.f32 %v7460, 0.0
        %v7589 = vmax.f32 %v7461, 0.0
        %v7590 = vmax.f32 %v7462, 0.0
        %v7591 = vmax.f32 %v7463, 0.0
        %v7592 = vmax.f32 %v7464, 0.0
        %v7593 = vmax.f32 %v7465, 0.0
        %v7594 = vmax.f32 %v7466, 0.0
        %v7595 = vmax.f32 %v7467, 0.0
        %v7596 = vmax.f32 %v7468, 0.0
        %v7597 = vmax.f32 %v7469, 0.0
        %v7598 = vmax.f32 %v7470, 0.0
        %v7599 = vmax.f32 %v7471, 0.0
        %v7600 = vmax.f32 %v7472, 0.0
        %v7601 = vmax.f32 %v7473, 0.0
        %v7602 = vmax.f32 %v7474, 0.0
        %v7603 = vmax.f32 %v7475, 0.0
        %v7604 = vmax.f32 %v7476, 0.0
        %v7605 = vmax.f32 %v7477, 0.0
        %v7606 = vmax.f32 %v7478, 0.0
        %v7607 = vmax.f32 %v7479, 0.0
        %v7608 = vmax.f32 %v7480, 0.0
        %v7609 = vmax.f32 %v7481, 0.0
        %v7610 = vmax.f32 %v7482, 0.0
        %v7611 = vmax.f32 %v7483, 0.0
        %v7612 = vmax.f32 %v7484, 0.0
        %v7613 = vmax.f32 %v7485, 0.0
        %v7614 = vmax.f32 %v7486, 0.0
        %v7615 = vmax.f32 %v7487, 0.0
        %v7616 = vmax.f32 %v7488, 0.0
        %v7617 = vmax.f32 %v7489, 0.0
        %v7618 = vmax.f32 %v7490, 0.0
        %v7619 = vmax.f32 %v7491, 0.0
        %v7620 = vmax.f32 %v7492, 0.0
        %v7621 = vmax.f32 %v7493, 0.0
        %v7622 = vmax.f32 %v7494, 0.0
        %v7623 = vmax.f32 %v7495, 0.0
        %v7624 = vmax.f32 %v7496, 0.0
        %v7625 = vmax.f32 %v7497, 0.0
        %v7626 = vmax.f32 %v7498, 0.0
        %v7627 = vmax.f32 %v7499, 0.0
        %v7628 = vmax.f32 %v7500, 0.0
        %v7629 = vmax.f32 %v7501, 0.0
        %v7630 = vmax.f32 %v7502, 0.0
        %v7631 = vmax.f32 %v7503, 0.0
        %v7632 = vmax.f32 %v7504, 0.0
        %v7633 = vmax.f32 %v7505, 0.0
        %v7634 = vmax.f32 %v7506, 0.0
        %v7635 = vmax.f32 %v7507, 0.0
        %v7636 = vmax.f32 %v7508, 0.0
        %v7637 = vmax.f32 %v7509, 0.0
        %v7638 = vmax.f32 %v7510, 0.0
        %v7639 = vmax.f32 %v7511, 0.0
        %v7640 = vmax.f32 %v7512, 0.0
        %v7641 = vmax.f32 %v7513, 0.0
        %v7642 = vmax.f32 %v7514, 0.0
        %v7643 = vmax.f32 %v7515, 0.0
        %v7644 = vmax.f32 %v7516, 0.0
        %v7645 = vmax.f32 %v7517, 0.0
        %v7646 = vmax.f32 %v7518, 0.0
        %v7647 = vmax.f32 %v7519, 0.0
        %v7648 = vmax.f32 %v7520, 0.0
        %v7649 = vmax.f32 %v7521, 0.0
        %v7650 = vmax.f32 %v7522, 0.0
        %v7651 = vmax.f32 %v7523, 0.0
        %v7652 = vmax.f32 %v7524, 0.0
        %v7653 = vmax.f32 %v7525, 0.0
        %v7654 = vmax.f32 %v7526, 0.0
        %v7655 = vmax.f32 %v7527, 0.0
        %v7656 = vmax.f32 %v7528, 0.0
        %v7657 = vmax.f32 %v7529, 0.0
        %v7658 = vmax.f32 %v7530, 0.0
        %v7659 = vmax.f32 %v7531, 0.0
        %v7660 = vmax.f32 %v7532, 0.0
        %v7661 = vmax.f32 %v7533, 0.0
        %v7662 = vmax.f32 %v7534, 0.0
        %v7663 = vmax.f32 %v7535, 0.0
        %v7664 = vmax.f32 %v7536, 0.0
        %v7665 = vmax.f32 %v7537, 0.0
        %v7666 = vmax.f32 %v7538, 0.0
        %v7667 = vmax.f32 %v7539, 0.0
        %v7668 = vmax.f32 %v7540, 0.0
        %v7669 = vmax.f32 %v7541, 0.0
        %v7670 = vmax.f32 %v7542, 0.0
        %v7671 = vmax.f32 %v7543, 0.0
        %v7672 = vmax.f32 %v7544, 0.0
        %v7673 = vmax.f32 %v7545, 0.0
        %v7674 = vmax.f32 %v7546, 0.0
        %v7675 = vmax.f32 %v7547, 0.0
        %v7676 = vmax.f32 %v7548, 0.0
        %v7677 = vmax.f32 %v7549, 0.0
        %v7678 = vmax.f32 %v7550, 0.0
        %v7679 = vmax.f32 %v7551, 0.0
        %v7680 = vmax.f32 %v7552, 0.0
        %v7681 = vmax.f32 %v7553, 0.0
        %v7682 = vmax.f32 %v7554, 0.0
        %v7683 = vmax.f32 %v7555, 0.0
        %v7684 = vmax.f32 %v7556, 0.0
        %v7685 = vmax.f32 %v7557, 0.0
        %v7686 = vmax.f32 %v7558, 0.0
        %v7687 = vmax.f32 %v7559, 0.0
        %v7688 = vmax.f32 %v7560, 0.0
        %v7689 = vmax.f32 %v7561, 0.0
        %v7690 = vmax.f32 %v7562, 0.0
        %v7691 = vmax.f32 %v7563, 0.0
        %v7692 = vmax.f32 %v7564, 0.0
        %v7693 = vmax.f32 %v7565, 0.0
        %v7694 = vmax.f32 %v7566, 0.0
        %v7695 = vmax.f32 %v7567, 0.0
        %v7696 = vmax.f32 %v7568, 0.0
        %v7697 = vmax.f32 %v7569, 0.0
        %v7698 = vmax.f32 %v7570, 0.0
        %v7699 = vmax.f32 %v7571, 0.0
        %v7700 = vmax.f32 %v7572, 0.0
        %v7701 = vmax.f32 %v7573, %v7577
        %v7702 = vmax.f32 %v7574, %v7578
        %v7703 = vmax.f32 %v7575, %v7579
        %v7704 = vmax.f32 %v7576, %v7580
        %v7705 = vmax.f32 %v7581, %v7585
        %v7706 = vmax.f32 %v7582, %v7586
        %v7707 = vmax.f32 %v7583, %v7587
        %v7708 = vmax.f32 %v7584, %v7588
        %v7709 = vmax.f32 %v7589, %v7593
        %v7710 = vmax.f32 %v7590, %v7594
        %v7711 = vmax.f32 %v7591, %v7595
        %v7712 = vmax.f32 %v7592, %v7596
        %v7713 = vmax.f32 %v7597, %v7601
        %v7714 = vmax.f32 %v7598, %v7602
        %v7715 = vmax.f32 %v7599, %v7603
        %v7716 = vmax.f32 %v7600, %v7604
        %v7717 = vmax.f32 %v7605, %v7609
        %v7718 = vmax.f32 %v7606, %v7610
        %v7719 = vmax.f32 %v7607, %v7611
        %v7720 = vmax.f32 %v7608, %v7612
        %v7721 = vmax.f32 %v7613, %v7617
        %v7722 = vmax.f32 %v7614, %v7618
        %v7723 = vmax.f32 %v7615, %v7619
        %v7724 = vmax.f32 %v7616, %v7620
        %v7725 = vmax.f32 %v7621, %v7625
        %v7726 = vmax.f32 %v7622, %v7626
        %v7727 = vmax.f32 %v7623, %v7627
        %v7728 = vmax.f32 %v7624, %v7628
        %v7729 = vmax.f32 %v7629, %v7633
        %v7730 = vmax.f32 %v7630, %v7634
        %v7731 = vmax.f32 %v7631, %v7635
        %v7732 = vmax.f32 %v7632, %v7636
        %v7733 = vmax.f32 %v7637, %v7641
        %v7734 = vmax.f32 %v7638, %v7642
        %v7735 = vmax.f32 %v7639, %v7643
        %v7736 = vmax.f32 %v7640, %v7644
        %v7737 = vmax.f32 %v7645, %v7649
        %v7738 = vmax.f32 %v7646, %v7650
        %v7739 = vmax.f32 %v7647, %v7651
        %v7740 = vmax.f32 %v7648, %v7652
        %v7741 = vmax.f32 %v7653, %v7657
        %v7742 = vmax.f32 %v7654, %v7658
        %v7743 = vmax.f32 %v7655, %v7659
        %v7744 = vmax.f32 %v7656, %v7660
        %v7745 = vmax.f32 %v7661, %v7665
        %v7746 = vmax.f32 %v7662, %v7666
        %v7747 = vmax.f32 %v7663, %v7667
        %v7748 = vmax.f32 %v7664, %v7668
        %v7749 = vmax.f32 %v7669, %v7673
        %v7750 = vmax.f32 %v7670, %v7674
        %v7751 = vmax.f32 %v7671, %v7675
        %v7752 = vmax.f32 %v7672, %v7676
        %v7753 = vmax.f32 %v7677, %v7681
        %v7754 = vmax.f32 %v7678, %v7682
        %v7755 = vmax.f32 %v7679, %v7683
        %v7756 = vmax.f32 %v7680, %v7684
        %v7757 = vmax.f32 %v7685, %v7689
        %v7758 = vmax.f32 %v7686, %v7690
        %v7759 = vmax.f32 %v7687, %v7691
        %v7760 = vmax.f32 %v7688, %v7692
        %v7761 = vmax.f32 %v7693, %v7697
        %v7762 = vmax.f32 %v7694, %v7698
        %v7763 = vmax.f32 %v7695, %v7699
        %v7764 = vmax.f32 %v7696, %v7700
        %vm7765 = vcmask 261120
        %7766 = vst.msk [vmem:[#allocation2] sm:$0xff] %vm7765, %v7701
        %7767 = vst.msk [vmem:[#allocation2 + $0x8] sm:$0xff] %vm7765, %v7702
        %7768 = vst.msk [vmem:[#allocation2 + $0x10] sm:$0xff] %vm7765, %v7703
        %7769 = vst.msk [vmem:[#allocation2 + $0x18] sm:$0xff] %vm7765, %v7704
        %7770 = vst.msk [vmem:[#allocation2 + $0x20] sm:$0xff] %vm7765, %v7705
        %7771 = vst.msk [vmem:[#allocation2 + $0x28] sm:$0xff] %vm7765, %v7706
        %7772 = vst.msk [vmem:[#allocation2 + $0x30] sm:$0xff] %vm7765, %v7707
        %7773 = vst.msk [vmem:[#allocation2 + $0x38] sm:$0xff] %vm7765, %v7708
        %7774 = vst.msk [vmem:[#allocation2 + $0x40] sm:$0xff] %vm7765, %v7709
        %7775 = vst.msk [vmem:[#allocation2 + $0x48] sm:$0xff] %vm7765, %v7710
        %7776 = vst.msk [vmem:[#allocation2 + $0x50] sm:$0xff] %vm7765, %v7711
        %7777 = vst.msk [vmem:[#allocation2 + $0x58] sm:$0xff] %vm7765, %v7712
        %7778 = vst.msk [vmem:[#allocation2 + $0x60] sm:$0xff] %vm7765, %v7713
        %7779 = vst.msk [vmem:[#allocation2 + $0x68] sm:$0xff] %vm7765, %v7714
        %7780 = vst.msk [vmem:[#allocation2 + $0x70] sm:$0xff] %vm7765, %v7715
        %7781 = vst.msk [vmem:[#allocation2 + $0x78] sm:$0xff] %vm7765, %v7716
        %7782 = vst.msk [vmem:[#allocation2 + $0x80] sm:$0xff] %vm7765, %v7717
        %7783 = vst.msk [vmem:[#allocation2 + $0x88] sm:$0xff] %vm7765, %v7718
        %7784 = vst.msk [vmem:[#allocation2 + $0x90] sm:$0xff] %vm7765, %v7719
        %7785 = vst.msk [vmem:[#allocation2 + $0x98] sm:$0xff] %vm7765, %v7720
        %7786 = vst.msk [vmem:[#allocation2 + $0xa0] sm:$0xff] %vm7765, %v7721
        %7787 = vst.msk [vmem:[#allocation2 + $0xa8] sm:$0xff] %vm7765, %v7722
        %7788 = vst.msk [vmem:[#allocation2 + $0xb0] sm:$0xff] %vm7765, %v7723
        %7789 = vst.msk [vmem:[#allocation2 + $0xb8] sm:$0xff] %vm7765, %v7724
        %7790 = vst.msk [vmem:[#allocation2 + $0xc0] sm:$0xff] %vm7765, %v7725
        %7791 = vst.msk [vmem:[#allocation2 + $0xc8] sm:$0xff] %vm7765, %v7726
        %7792 = vst.msk [vmem:[#allocation2 + $0xd0] sm:$0xff] %vm7765, %v7727
        %7793 = vst.msk [vmem:[#allocation2 + $0xd8] sm:$0xff] %vm7765, %v7728
        %7794 = vst.msk [vmem:[#allocation2 + $0xe0] sm:$0xff] %vm7765, %v7729
        %7795 = vst.msk [vmem:[#allocation2 + $0xe8] sm:$0xff] %vm7765, %v7730
        %7796 = vst.msk [vmem:[#allocation2 + $0xf0] sm:$0xff] %vm7765, %v7731
        %7797 = vst.msk [vmem:[#allocation2 + $0xf8] sm:$0xff] %vm7765, %v7732
        %7798 = vst.msk [vmem:[#allocation2 + $0x100] sm:$0xff] %vm7765, %v7733
        %7799 = vst.msk [vmem:[#allocation2 + $0x108] sm:$0xff] %vm7765, %v7734
        %7800 = vst.msk [vmem:[#allocation2 + $0x110] sm:$0xff] %vm7765, %v7735
        %7801 = vst.msk [vmem:[#allocation2 + $0x118] sm:$0xff] %vm7765, %v7736
        %7802 = vst.msk [vmem:[#allocation2 + $0x120] sm:$0xff] %vm7765, %v7737
        %7803 = vst.msk [vmem:[#allocation2 + $0x128] sm:$0xff] %vm7765, %v7738
        %7804 = vst.msk [vmem:[#allocation2 + $0x130] sm:$0xff] %vm7765, %v7739
        %7805 = vst.msk [vmem:[#allocation2 + $0x138] sm:$0xff] %vm7765, %v7740
        %7806 = vst.msk [vmem:[#allocation2 + $0x140] sm:$0xff] %vm7765, %v7741
        %7807 = vst.msk [vmem:[#allocation2 + $0x148] sm:$0xff] %vm7765, %v7742
        %7808 = vst.msk [vmem:[#allocation2 + $0x150] sm:$0xff] %vm7765, %v7743
        %7809 = vst.msk [vmem:[#allocation2 + $0x158] sm:$0xff] %vm7765, %v7744
        %7810 = vst.msk [vmem:[#allocation2 + $0x160] sm:$0xff] %vm7765, %v7745
        %7811 = vst.msk [vmem:[#allocation2 + $0x168] sm:$0xff] %vm7765, %v7746
        %7812 = vst.msk [vmem:[#allocation2 + $0x170] sm:$0xff] %vm7765, %v7747
        %7813 = vst.msk [vmem:[#allocation2 + $0x178] sm:$0xff] %vm7765, %v7748
        %7814 = vst.msk [vmem:[#allocation2 + $0x180] sm:$0xff] %vm7765, %v7749
        %7815 = vst.msk [vmem:[#allocation2 + $0x188] sm:$0xff] %vm7765, %v7750
        %7816 = vst.msk [vmem:[#allocation2 + $0x190] sm:$0xff] %vm7765, %v7751
        %7817 = vst.msk [vmem:[#allocation2 + $0x198] sm:$0xff] %vm7765, %v7752
        %7818 = vst.msk [vmem:[#allocation2 + $0x1a0] sm:$0xff] %vm7765, %v7753
        %7819 = vst.msk [vmem:[#allocation2 + $0x1a8] sm:$0xff] %vm7765, %v7754
        %7820 = vst.msk [vmem:[#allocation2 + $0x1b0] sm:$0xff] %vm7765, %v7755
        %7821 = vst.msk [vmem:[#allocation2 + $0x1b8] sm:$0xff] %vm7765, %v7756
        %7822 = vst.msk [vmem:[#allocation2 + $0x1c0] sm:$0xff] %vm7765, %v7757
        %7823 = vst.msk [vmem:[#allocation2 + $0x1c8] sm:$0xff] %vm7765, %v7758
        %7824 = vst.msk [vmem:[#allocation2 + $0x1d0] sm:$0xff] %vm7765, %v7759
        %7825 = vst.msk [vmem:[#allocation2 + $0x1d8] sm:$0xff] %vm7765, %v7760
        %7826 = vst.msk [vmem:[#allocation2 + $0x1e0] sm:$0xff] %vm7765, %v7761
        %7827 = vst.msk [vmem:[#allocation2 + $0x1e8] sm:$0xff] %vm7765, %v7762
        %7828 = vst.msk [vmem:[#allocation2 + $0x1f0] sm:$0xff] %vm7765, %v7763
        %7829 = vst.msk [vmem:[#allocation2 + $0x1f8] sm:$0xff] %vm7765, %v7764
        %v7830 = vld [vmem:[#allocation2] ss:$2 sm:$0xff]
        %s7831 = scalar_lea.vmem [#allocation2], 16
        %v7832 = vld [vmem:[%s7831] ss:$2 sm:$0xff]
        %s7833 = scalar_lea.vmem [#allocation2], 32
        %v7834 = vld [vmem:[%s7833] ss:$2 sm:$0xff]
        %s7835 = scalar_lea.vmem [#allocation2], 48
        %v7836 = vld [vmem:[%s7835] ss:$2 sm:$0xff]
        %s7837 = scalar_lea.vmem [#allocation2], 64
        %v7838 = vld [vmem:[%s7837] ss:$2 sm:$0xff]
        %s7839 = scalar_lea.vmem [#allocation2], 80
        %v7840 = vld [vmem:[%s7839] ss:$2 sm:$0xff]
        %s7841 = scalar_lea.vmem [#allocation2], 96
        %v7842 = vld [vmem:[%s7841] ss:$2 sm:$0xff]
        %s7843 = scalar_lea.vmem [#allocation2], 112
        %v7844 = vld [vmem:[%s7843] ss:$2 sm:$0xff]
        %s7845 = scalar_lea.vmem [#allocation2], 128
        %v7846 = vld [vmem:[%s7845] ss:$2 sm:$0xff]
        %s7847 = scalar_lea.vmem [#allocation2], 144
        %v7848 = vld [vmem:[%s7847] ss:$2 sm:$0xff]
        %s7849 = scalar_lea.vmem [#allocation2], 160
        %v7850 = vld [vmem:[%s7849] ss:$2 sm:$0xff]
        %s7851 = scalar_lea.vmem [#allocation2], 176
        %v7852 = vld [vmem:[%s7851] ss:$2 sm:$0xff]
        %s7853 = scalar_lea.vmem [#allocation2], 192
        %v7854 = vld [vmem:[%s7853] ss:$2 sm:$0xff]
        %s7855 = scalar_lea.vmem [#allocation2], 208
        %v7856 = vld [vmem:[%s7855] ss:$2 sm:$0xff]
        %s7857 = scalar_lea.vmem [#allocation2], 224
        %v7858 = vld [vmem:[%s7857] ss:$2 sm:$0xff]
        %s7859 = scalar_lea.vmem [#allocation2], 240
        %v7860 = vld [vmem:[%s7859] ss:$2 sm:$0xff]
        %s7861 = scalar_lea.vmem [#allocation2], 256
        %v7862 = vld [vmem:[%s7861] ss:$2 sm:$0xff]
        %s7863 = scalar_lea.vmem [#allocation2], 272
        %v7864 = vld [vmem:[%s7863] ss:$2 sm:$0xff]
        %s7865 = scalar_lea.vmem [#allocation2], 288
        %v7866 = vld [vmem:[%s7865] ss:$2 sm:$0xff]
        %s7867 = scalar_lea.vmem [#allocation2], 304
        %v7868 = vld [vmem:[%s7867] ss:$2 sm:$0xff]
        %s7869 = scalar_lea.vmem [#allocation2], 320
        %v7870 = vld [vmem:[%s7869] ss:$2 sm:$0xff]
        %s7871 = scalar_lea.vmem [#allocation2], 336
        %v7872 = vld [vmem:[%s7871] ss:$2 sm:$0xff]
        %s7873 = scalar_lea.vmem [#allocation2], 352
        %v7874 = vld [vmem:[%s7873] ss:$2 sm:$0xff]
        %s7875 = scalar_lea.vmem [#allocation2], 368
        %v7876 = vld [vmem:[%s7875] ss:$2 sm:$0xff]
        %s7877 = scalar_lea.vmem [#allocation2], 384
        %v7878 = vld [vmem:[%s7877] ss:$2 sm:$0xff]
        %s7879 = scalar_lea.vmem [#allocation2], 400
        %v7880 = vld [vmem:[%s7879] ss:$2 sm:$0xff]
        %s7881 = scalar_lea.vmem [#allocation2], 416
        %v7882 = vld [vmem:[%s7881] ss:$2 sm:$0xff]
        %s7883 = scalar_lea.vmem [#allocation2], 432
        %v7884 = vld [vmem:[%s7883] ss:$2 sm:$0xff]
        %s7885 = scalar_lea.vmem [#allocation2], 448
        %v7886 = vld [vmem:[%s7885] ss:$2 sm:$0xff]
        %s7887 = scalar_lea.vmem [#allocation2], 464
        %v7888 = vld [vmem:[%s7887] ss:$2 sm:$0xff]
        %s7889 = scalar_lea.vmem [#allocation2], 480
        %v7890 = vld [vmem:[%s7889] ss:$2 sm:$0xff]
        %s7891 = scalar_lea.vmem [#allocation2], 496
        %v7892 = vld [vmem:[%s7891] ss:$2 sm:$0xff]
        %s7893 = scalar_lea.vmem [#allocation2], 1
        %v7894 = vld [vmem:[%s7893] ss:$2 sm:$0xff]
        %s7895 = scalar_lea.vmem [#allocation2], 17
        %v7896 = vld [vmem:[%s7895] ss:$2 sm:$0xff]
        %s7897 = scalar_lea.vmem [#allocation2], 33
        %v7898 = vld [vmem:[%s7897] ss:$2 sm:$0xff]
        %s7899 = scalar_lea.vmem [#allocation2], 49
        %v7900 = vld [vmem:[%s7899] ss:$2 sm:$0xff]
        %s7901 = scalar_lea.vmem [#allocation2], 65
        %v7902 = vld [vmem:[%s7901] ss:$2 sm:$0xff]
        %s7903 = scalar_lea.vmem [#allocation2], 81
        %v7904 = vld [vmem:[%s7903] ss:$2 sm:$0xff]
        %s7905 = scalar_lea.vmem [#allocation2], 97
        %v7906 = vld [vmem:[%s7905] ss:$2 sm:$0xff]
        %s7907 = scalar_lea.vmem [#allocation2], 113
        %v7908 = vld [vmem:[%s7907] ss:$2 sm:$0xff]
        %s7909 = scalar_lea.vmem [#allocation2], 129
        %v7910 = vld [vmem:[%s7909] ss:$2 sm:$0xff]
        %s7911 = scalar_lea.vmem [#allocation2], 145
        %v7912 = vld [vmem:[%s7911] ss:$2 sm:$0xff]
        %s7913 = scalar_lea.vmem [#allocation2], 161
        %v7914 = vld [vmem:[%s7913] ss:$2 sm:$0xff]
        %s7915 = scalar_lea.vmem [#allocation2], 177
        %v7916 = vld [vmem:[%s7915] ss:$2 sm:$0xff]
        %s7917 = scalar_lea.vmem [#allocation2], 193
        %v7918 = vld [vmem:[%s7917] ss:$2 sm:$0xff]
        %s7919 = scalar_lea.vmem [#allocation2], 209
        %v7920 = vld [vmem:[%s7919] ss:$2 sm:$0xff]
        %s7921 = scalar_lea.vmem [#allocation2], 225
        %v7922 = vld [vmem:[%s7921] ss:$2 sm:$0xff]
        %s7923 = scalar_lea.vmem [#allocation2], 241
        %v7924 = vld [vmem:[%s7923] ss:$2 sm:$0xff]
        %s7925 = scalar_lea.vmem [#allocation2], 257
        %v7926 = vld [vmem:[%s7925] ss:$2 sm:$0xff]
        %s7927 = scalar_lea.vmem [#allocation2], 273
        %v7928 = vld [vmem:[%s7927] ss:$2 sm:$0xff]
        %s7929 = scalar_lea.vmem [#allocation2], 289
        %v7930 = vld [vmem:[%s7929] ss:$2 sm:$0xff]
        %s7931 = scalar_lea.vmem [#allocation2], 305
        %v7932 = vld [vmem:[%s7931] ss:$2 sm:$0xff]
        %s7933 = scalar_lea.vmem [#allocation2], 321
        %v7934 = vld [vmem:[%s7933] ss:$2 sm:$0xff]
        %s7935 = scalar_lea.vmem [#allocation2], 337
        %v7936 = vld [vmem:[%s7935] ss:$2 sm:$0xff]
        %s7937 = scalar_lea.vmem [#allocation2], 353
        %v7938 = vld [vmem:[%s7937] ss:$2 sm:$0xff]
        %s7939 = scalar_lea.vmem [#allocation2], 369
        %v7940 = vld [vmem:[%s7939] ss:$2 sm:$0xff]
        %s7941 = scalar_lea.vmem [#allocation2], 385
        %v7942 = vld [vmem:[%s7941] ss:$2 sm:$0xff]
        %s7943 = scalar_lea.vmem [#allocation2], 401
        %v7944 = vld [vmem:[%s7943] ss:$2 sm:$0xff]
        %s7945 = scalar_lea.vmem [#allocation2], 417
        %v7946 = vld [vmem:[%s7945] ss:$2 sm:$0xff]
        %s7947 = scalar_lea.vmem [#allocation2], 433
        %v7948 = vld [vmem:[%s7947] ss:$2 sm:$0xff]
        %s7949 = scalar_lea.vmem [#allocation2], 449
        %v7950 = vld [vmem:[%s7949] ss:$2 sm:$0xff]
        %s7951 = scalar_lea.vmem [#allocation2], 465
        %v7952 = vld [vmem:[%s7951] ss:$2 sm:$0xff]
        %s7953 = scalar_lea.vmem [#allocation2], 481
        %v7954 = vld [vmem:[%s7953] ss:$2 sm:$0xff]
        %s7955 = scalar_lea.vmem [#allocation2], 497
        %v7956 = vld [vmem:[%s7955] ss:$2 sm:$0xff]
        %v7957 = vmax.f32 %v7830, %v7894
        %v7958 = vmax.f32 %v7832, %v7896
        %v7959 = vmax.f32 %v7834, %v7898
        %v7960 = vmax.f32 %v7836, %v7900
        %v7961 = vmax.f32 %v7838, %v7902
        %v7962 = vmax.f32 %v7840, %v7904
        %v7963 = vmax.f32 %v7842, %v7906
        %v7964 = vmax.f32 %v7844, %v7908
        %v7965 = vmax.f32 %v7846, %v7910
        %v7966 = vmax.f32 %v7848, %v7912
        %v7967 = vmax.f32 %v7850, %v7914
        %v7968 = vmax.f32 %v7852, %v7916
        %v7969 = vmax.f32 %v7854, %v7918
        %v7970 = vmax.f32 %v7856, %v7920
        %v7971 = vmax.f32 %v7858, %v7922
        %v7972 = vmax.f32 %v7860, %v7924
        %v7973 = vmax.f32 %v7862, %v7926
        %v7974 = vmax.f32 %v7864, %v7928
        %v7975 = vmax.f32 %v7866, %v7930
        %v7976 = vmax.f32 %v7868, %v7932
        %v7977 = vmax.f32 %v7870, %v7934
        %v7978 = vmax.f32 %v7872, %v7936
        %v7979 = vmax.f32 %v7874, %v7938
        %v7980 = vmax.f32 %v7876, %v7940
        %v7981 = vmax.f32 %v7878, %v7942
        %v7982 = vmax.f32 %v7880, %v7944
        %v7983 = vmax.f32 %v7882, %v7946
        %v7984 = vmax.f32 %v7884, %v7948
        %v7985 = vmax.f32 %v7886, %v7950
        %v7986 = vmax.f32 %v7888, %v7952
        %v7987 = vmax.f32 %v7890, %v7954
        %v7988 = vmax.f32 %v7892, %v7956
        %7989 = vst.msk [vmem:[%s190] sm:$0xff] %vm7765, %v7957
        %7990 = vst.msk [vmem:[%s190 + $0x8] sm:$0xff] %vm7765, %v7958
        %7991 = vst.msk [vmem:[%s190 + $0x10] sm:$0xff] %vm7765, %v7959
        %7992 = vst.msk [vmem:[%s190 + $0x18] sm:$0xff] %vm7765, %v7960
        %7993 = vst.msk [vmem:[%s190 + $0x20] sm:$0xff] %vm7765, %v7961
        %7994 = vst.msk [vmem:[%s190 + $0x28] sm:$0xff] %vm7765, %v7962
        %7995 = vst.msk [vmem:[%s190 + $0x30] sm:$0xff] %vm7765, %v7963
        %7996 = vst.msk [vmem:[%s190 + $0x38] sm:$0xff] %vm7765, %v7964
        %7997 = vst.msk [vmem:[%s190 + $0x40] sm:$0xff] %vm7765, %v7965
        %7998 = vst.msk [vmem:[%s190 + $0x48] sm:$0xff] %vm7765, %v7966
        %7999 = vst.msk [vmem:[%s190 + $0x50] sm:$0xff] %vm7765, %v7967
        %8000 = vst.msk [vmem:[%s190 + $0x58] sm:$0xff] %vm7765, %v7968
        %8001 = vst.msk [vmem:[%s190 + $0x60] sm:$0xff] %vm7765, %v7969
        %8002 = vst.msk [vmem:[%s190 + $0x68] sm:$0xff] %vm7765, %v7970
        %8003 = vst.msk [vmem:[%s190 + $0x70] sm:$0xff] %vm7765, %v7971
        %8004 = vst.msk [vmem:[%s190 + $0x78] sm:$0xff] %vm7765, %v7972
        %8005 = vst.msk [vmem:[%s190 + $0x80] sm:$0xff] %vm7765, %v7973
        %8006 = vst.msk [vmem:[%s190 + $0x88] sm:$0xff] %vm7765, %v7974
        %8007 = vst.msk [vmem:[%s190 + $0x90] sm:$0xff] %vm7765, %v7975
        %8008 = vst.msk [vmem:[%s190 + $0x98] sm:$0xff] %vm7765, %v7976
        %8009 = vst.msk [vmem:[%s190 + $0xa0] sm:$0xff] %vm7765, %v7977
        %8010 = vst.msk [vmem:[%s190 + $0xa8] sm:$0xff] %vm7765, %v7978
        %8011 = vst.msk [vmem:[%s190 + $0xb0] sm:$0xff] %vm7765, %v7979
        %8012 = vst.msk [vmem:[%s190 + $0xb8] sm:$0xff] %vm7765, %v7980
        %8013 = vst.msk [vmem:[%s190 + $0xc0] sm:$0xff] %vm7765, %v7981
        %8014 = vst.msk [vmem:[%s190 + $0xc8] sm:$0xff] %vm7765, %v7982
        %8015 = vst.msk [vmem:[%s190 + $0xd0] sm:$0xff] %vm7765, %v7983
        %8016 = vst.msk [vmem:[%s190 + $0xd8] sm:$0xff] %vm7765, %v7984
        %8017 = vst.msk [vmem:[%s190 + $0xe0] sm:$0xff] %vm7765, %v7985
        %8018 = vst.msk [vmem:[%s190 + $0xe8] sm:$0xff] %vm7765, %v7986
        %8019 = vst.msk [vmem:[%s190 + $0xf0] sm:$0xff] %vm7765, %v7987
        %8020 = vst.msk [vmem:[%s190 + $0xf8] sm:$0xff] %vm7765, %v7988
        %s8021 = sand.u32 %s115, 1
        %s8022 = scalar_lea.sflag [#allocation4], %s8021
        %s8023 = sand.u32 %s115, 1
        %s8024 = smul.addr %s8023, 256
        %s8025 = scalar_lea.vmem [#allocation3], %s8024
        // Predicated region
        $region37: #{tpu_custom_call.1} parent=35 // pred_check
          %p8026 = pneg %p125
        $region38: #{tpu_custom_call.1} parent=35 // pred_check_branch
          %8028 = sbr.rel (%p8026) target = $region40
        $region39: #{tpu_custom_call.1} parent=35 // pred_region
          %s8030 = ssub.s32 4096, 4096
          %8031 = vsyncadd %s8022, %s8030
          %s8032 = smul.addr %s18, 32
          %s8033 = smul.addr %s8032, 128
          %s8034 = scalar_lea.hbm %s4, %s8033
          %s8035 = sshll.u32 %s8025, 4
          %s8036 = int_to_ptr.vmem [resolvable:$true] %s8035
          %8041 = dma.vmem_to_hbm [thread:$0]  %s8036, 4096, %s8034, %s8022, 128, 128, 8
        $region40: #{tpu_custom_call.1} parent=35 // pred_fallthru
          _
      $region36: #{tpu_custom_call.1} parent=5 // pred_fallthru
        _
      %p8042 = scmp.le.s32.totalorder 2, %s13
      // Predicated region
      $region41: #{tpu_custom_call.1} parent=5 // pred_check
        %p8043 = pneg %p8042
      $region42: #{tpu_custom_call.1} parent=5 // pred_check_branch
        %8045 = sbr.rel (%p8043) target = $region44
      $region43: #{tpu_custom_call.1} parent=5 // pred_region
        %s8046 = ssub.s32 %s13, 2
        // Predicated region
        $region45: #{tpu_custom_call.1} parent=43 // pred_check
          %p8047 = pneg %p131
        $region46: #{tpu_custom_call.1} parent=43 // pred_check_branch
          %8049 = sbr.rel (%p8047) target = $region48
        $region47: #{tpu_custom_call.1} parent=43 // pred_region
          %s8050 = sand.u32 %s116, 1
          %s8051 = scalar_lea.sflag [#allocation4], %s8050
          %s8052 = sand.u32 %s116, 1
          %s8053 = smul.addr %s8052, 256
          %s8054 = scalar_lea.vmem [#allocation3], %s8053
          %8055 = dma.done %s8051, 4096
        $region48: #{tpu_custom_call.1} parent=43 // pred_fallthru
          _
      $region44: #{tpu_custom_call.1} parent=5 // pred_fallthru
        _
    $region6: #{tpu_custom_call.1} parent=1 // loop_footer
      %s17 = sadd.s32 1, %s13
    $region7: #{tpu_custom_call.1} parent=1 // loop_footer_branch
      %12 = sbr.rel target = $region3
    $region8: #{tpu_custom_call.1} parent=1 // loop_exit
      _
    %8056 = vsyncpa [#allocation4], 1
    %s8057 = scalar_lea.sflag [#allocation4], 1
    %8058 = vsyncpa %s8057, 1

</llo_original>
